<compile_context>
chip_gen: v7x
topology: tpu7x:2x2x1
jax: 0.10.0
libtpu: 0.0.40
codegen_flags: <defaults>
</compile_context>

<pallas_src>
import math

import jax
import jax.numpy as jnp
from jax import lax
from jax.experimental import pallas as pl
from jax.experimental.pallas import tpu as pltpu

SEQ = 100          # sequence length (fixed by reshape(batch, 100*64) in the module)
D_IN = 5           # input feature dim
D_MODEL = 64       # embed dim
N_HEADS = 8
HEAD_DIM = D_MODEL // N_HEADS
D_FF = 128         # transformer feed-forward dim
FC_OUT = 100       # fc output dim
FC_PAD = 128       # fc output padded to a lane-dense 128 columns (zeros)
EPS = 1e-5         # LayerNorm eps (PyTorch default)

MAX_ENC_BATCH_BLOCK = 16   # encoder: elements per grid step (~1.5 MiB VMEM/step)
MAX_HEAD_ROW_BLOCK = 128   # head: rows per grid step (~10 MiB with resident padded Wfc)


def _cdiv(a, b):
    return -(-a // b)


def _round_up(a, m):
    return _cdiv(a, m) * m


def _layer_norm(x, gamma, beta):
    # Single-pass LN: sum and sum-of-squares together (no dependency chain between
    # the two cross-lane reductions), biased variance like torch.nn.LayerNorm.
    n = x.shape[-1]
    s1 = jnp.sum(x, axis=-1, keepdims=True)
    s2 = jnp.sum(x * x, axis=-1, keepdims=True)
    mean = s1 * (1.0 / n)
    var = s2 * (1.0 / n) - mean * mean
    return (x - mean) * lax.rsqrt(var + EPS) * gamma + beta


# --------------------------------------------------------------------------------------
# Encoder kernel: embed + pos-enc + 1x TransformerEncoderLayer for bt elements per step.
# --------------------------------------------------------------------------------------
def encoder_kernel(x_ref, pe_ref, we_ref, be_ref, wqkv_ref, bqkv_ref,
                   wo_st_ref, bo_ref, g1_ref, bn1_ref,
                   w1_ref, b1_ref, w2_ref, b2_ref, g2_ref, bn2_ref,
                   out_ref, h_s, qkv_s):
    bt = x_ref.shape[0]                      # elements in this block (static)

    def body(b, carry):
        # ---- embed (sqrt(100) pre-folded into we/be) + positional encoding ----
        # (dropout == identity).  Parked in VMEM scratch for the later residual.
        hb = jnp.dot(x_ref[b], we_ref[...], preferred_element_type=jnp.float32)
        h_s[...] = hb + be_ref[...] + pe_ref[...]

        # ---- fused Q|K|V projection (query 1/sqrt(head_dim) pre-folded) ----
        qkv_s[...] = (jnp.dot(h_s[...], wqkv_ref[...],
                              preferred_element_type=jnp.float32) + bqkv_ref[...])

        # ---- multi-head attention:  sum_h softmax(q_h k_h^T) @ (V_full @ wo_st[h]) ----
        acc = jnp.zeros((SEQ, D_MODEL), jnp.float32)
        for hd in range(N_HEADS):
            c0 = hd * HEAD_DIM
            q_h = qkv_s[:, c0:c0 + HEAD_DIM]                            # (SEQ, 8)
            k_h = qkv_s[:, D_MODEL + c0:D_MODEL + c0 + HEAD_DIM]        # (SEQ, 8)

            s = lax.dot_general(q_h, k_h, (((1,), (1,)), ((), ())),
                                preferred_element_type=jnp.float32)     # (SEQ, SEQ)
            p = jnp.exp(s - jnp.max(s, axis=-1, keepdims=True))
            p = p * pl.reciprocal(jnp.sum(p, axis=-1, keepdims=True), approx=True)

            # Lane-dense K=64 contraction; wo_st[hd] is the zero-padded block-diagonal
            # slab of the out-projection, so this equals V_h @ Wo_h exactly.
            vwo = jnp.dot(qkv_s[:, 2 * D_MODEL:], wo_st_ref[hd],
                          preferred_element_type=jnp.float32)           # (SEQ, 64)
            acc = acc + jnp.dot(p, vwo, preferred_element_type=jnp.float32)

        # ---- residual + LayerNorm 1   (dropout == identity) ----
        h1 = _layer_norm(h_s[...] + acc + bo_ref[...], g1_ref[...], bn1_ref[...])

        # ---- feed-forward + residual + LayerNorm 2; tile-aligned per-element store ----
        ff = jnp.dot(h1, w1_ref[...], preferred_element_type=jnp.float32) + b1_ref[...]
        ff = jnp.maximum(ff, 0.0)
        ff = jnp.dot(ff, w2_ref[...], preferred_element_type=jnp.float32) + b2_ref[...]
        out_ref[b] = _layer_norm(h1 + ff, g2_ref[...], bn2_ref[...])
        return carry

    lax.fori_loop(0, bt, body, 0)


# --------------------------------------------------------------------------------------
# Head kernel: fc(6400 -> 128-padded) -> ReLU -> output(128-padded -> 1).
# --------------------------------------------------------------------------------------
def head_kernel(x_ref, wfc_ref, bfc_ref, wout_ref, bout_ref, o_ref):
    h = jnp.dot(x_ref[...], wfc_ref[...], preferred_element_type=jnp.float32) + bfc_ref[...]
    h = jnp.maximum(h, 0.0)
    o_ref[...] = (jnp.dot(h, wout_ref[...], preferred_element_type=jnp.float32)
                  + bout_ref[...])


def _const_spec(w):
    zeros = (0,) * w.ndim
    return pl.BlockSpec(w.shape, lambda i, _z=zeros: _z)


def prepare_operands(p):
    """Fold scales, merge QKV, build the block-diagonal Wo slabs, pad the head weights."""
    ops = {}
    emb_scale = math.sqrt(100.0)                       # the module multiplies by sqrt(100)
    ops["we"] = p["we"] * emb_scale
    ops["be"] = p["be"] * emb_scale
    q_scale = 1.0 / math.sqrt(HEAD_DIM)
    ops["wqkv"] = jnp.concatenate([p["wq"] * q_scale, p["wk"], p["wv"]], axis=1)   # (64, 192)
    ops["bqkv"] = jnp.concatenate([p["bq"] * q_scale, p["bk"], p["bv"]], axis=1)   # (1, 192)
    ops["pe"] = p["pe"]                                                            # (SEQ, 64)

    # Block-diagonal out-projection, one zero-padded (64, 64) slab per head:
    #   wo_st[h, 8h:8h+8, :] = Wo[8h:8h+8, :]   =>   V_full @ wo_st[h] == V_h @ Wo_h
    wo_st = jnp.zeros((N_HEADS, D_MODEL, D_MODEL), jnp.float32)
    for h in range(N_HEADS):
        r0 = h * HEAD_DIM
        wo_st = wo_st.at[h, r0:r0 + HEAD_DIM, :].set(p["wo"][r0:r0 + HEAD_DIM, :])
    ops["wo_st"] = wo_st

    for name in ("bo", "g1", "bn1", "w1", "b1", "w2", "b2", "g2", "bn2", "bout"):
        ops[name] = p[name]

    # Zero-pad fc to 128 output lanes (exact: ReLU(0)=0 and the extra wout rows are 0).
    pad = FC_PAD - FC_OUT
    ops["wfc"] = jnp.pad(p["wfc"], ((0, 0), (0, pad)))
    ops["bfc"] = jnp.pad(p["bfc"], ((0, 0), (0, pad)))
    ops["wout"] = jnp.pad(p["wout"], ((0, pad), (0, 0)))
    return ops


def transformer_encoder_forward(x, p):
    B = x.shape[0]
    assert x.shape[1] == SEQ and x.shape[2] == D_IN

    # Encoder batch block: cap at MAX_ENC_BATCH_BLOCK, but keep >= 2 grid blocks when
    # B >= 2 so the 'parallel' axis can be sharded across v7x's two TensorCores.
    bt = max(1, min(MAX_ENC_BATCH_BLOCK, _cdiv(B, 2)))
    bp = _round_up(B, bt)
    if bp != B:
        x = jnp.pad(x, ((0, bp - B), (0, 0), (0, 0)))
    n_enc_blocks = bp // bt

    ops = prepare_operands(p)
    enc_weights = [ops["pe"], ops["we"], ops["be"], ops["wqkv"], ops["bqkv"],
                   ops["wo_st"], ops["bo"], ops["g1"], ops["bn1"],
                   ops["w1"], ops["b1"], ops["w2"], ops["b2"], ops["g2"], ops["bn2"]]

    enc = pl.pallas_call(
        encoder_kernel,
        out_shape=jax.ShapeDtypeStruct((bp, SEQ, D_MODEL), jnp.float32),
        grid=(n_enc_blocks,),
        in_specs=[pl.BlockSpec((bt, SEQ, D_IN), lambda i: (i, 0, 0))]
                 + [_const_spec(w) for w in enc_weights],
        out_specs=pl.BlockSpec((bt, SEQ, D_MODEL), lambda i: (i, 0, 0)),
        scratch_shapes=[
            pltpu.VMEM((SEQ, D_MODEL), jnp.float32),        # h (embed + pos-enc)
            pltpu.VMEM((SEQ, 3 * D_MODEL), jnp.float32),    # fused q|k|v
        ],
        compiler_params=pltpu.CompilerParams(dimension_semantics=("parallel",)),
    )(x, *enc_weights)

    # Free contiguous view; matches torch's .reshape(B, 100*64).
    flat = enc.reshape(bp, SEQ * D_MODEL)

    # Head row block: independent of (and larger than) the encoder block to amortize
    # the per-step pipeline overhead against the 6400-deep weight stream; multiple of 8
    # for aligned tiling; (block x2 buffers + resident padded Wfc) < v5e's 16 MiB
    # scoped-VMEM default at 128 rows.
    hb = min(MAX_HEAD_ROW_BLOCK, _round_up(max(1, _cdiv(bp, 2)), 8))
    bph = _round_up(bp, hb)
    if bph != bp:
        flat = jnp.pad(flat, ((0, bph - bp), (0, 0)))
    n_head_blocks = bph // hb

    head_weights = [ops["wfc"], ops["bfc"], ops["wout"], ops["bout"]]
    out = pl.pallas_call(
        head_kernel,
        out_shape=jax.ShapeDtypeStruct((bph, 1), jnp.float32),
        grid=(n_head_blocks,),
        in_specs=[pl.BlockSpec((hb, SEQ * D_MODEL), lambda i: (i, 0))]
                 + [_const_spec(w) for w in head_weights],
        out_specs=pl.BlockSpec((hb, 1), lambda i: (i, 0)),
        compiler_params=pltpu.CompilerParams(dimension_semantics=("parallel",)),
    )(flat, *head_weights)
    return out[:B]


def make_positional_encoding():
    position = jnp.arange(SEQ, dtype=jnp.float32)[:, None]
    div_term = jnp.exp(jnp.arange(0, D_MODEL, 2, dtype=jnp.float32)
                       * (-math.log(10000.0) / D_MODEL))
    angles = position * div_term                                   # (SEQ, D_MODEL/2)
    pe = jnp.zeros((SEQ, D_MODEL), jnp.float32)
    pe = pe.at[:, 0::2].set(jnp.sin(angles))
    pe = pe.at[:, 1::2].set(jnp.cos(angles))
    return pe


def init_params(key):
    def linear(k, fan_in, fan_out):
        bound = 1.0 / math.sqrt(fan_in)
        kw, kb = jax.random.split(k)
        w = jax.random.uniform(kw, (fan_in, fan_out), jnp.float32, -bound, bound)
        b = jax.random.uniform(kb, (1, fan_out), jnp.float32, -bound, bound)
        return w, b

    keys = jax.random.split(key, 9)
    p = {}
    p["we"], p["be"] = linear(keys[0], D_IN, D_MODEL)              # embed: Linear(5, 64)
    p["pe"] = make_positional_encoding()
    p["wq"], p["bq"] = linear(keys[1], D_MODEL, D_MODEL)           # attn in_proj (q)
    p["wk"], p["bk"] = linear(keys[2], D_MODEL, D_MODEL)           # attn in_proj (k)
    p["wv"], p["bv"] = linear(keys[3], D_MODEL, D_MODEL)           # attn in_proj (v)
    p["wo"], p["bo"] = linear(keys[4], D_MODEL, D_MODEL)           # attn out_proj
    p["g1"] = jnp.ones((1, D_MODEL), jnp.float32)
    p["bn1"] = jnp.zeros((1, D_MODEL), jnp.float32)
    p["w1"], p["b1"] = linear(keys[5], D_MODEL, D_FF)              # ffn linear1
    p["w2"], p["b2"] = linear(keys[6], D_FF, D_MODEL)              # ffn linear2
    p["g2"] = jnp.ones((1, D_MODEL), jnp.float32)
    p["bn2"] = jnp.zeros((1, D_MODEL), jnp.float32)
    p["wfc"], p["bfc"] = linear(keys[7], SEQ * D_MODEL, FC_OUT)    # fc: Linear(6400, 100)
    p["wout"], p["bout"] = linear(keys[8], FC_OUT, 1)              # output_layer: Linear(100, 1)
    return p


if __name__ == "__main__":
    key = jax.random.PRNGKey(0)
    k_x, k_p = jax.random.split(key)
    params = init_params(k_p)
    # data_batch: [batch, seq=100, feat=5]  (seq must be 100 per the module's reshape)
    data_batch = jax.random.normal(k_x, (2, SEQ, D_IN), jnp.float32)

    fwd = jax.jit(lambda xb: transformer_encoder_forward(xb, params))
    out = fwd(data_batch)
    jax.block_until_ready(out)
    assert out.shape == (2, 1)
    print("KERNEL_OK")
</pallas_src>

<mosaic_0001>
module attributes {stable_mosaic.version = 11 : i64} {
  func.func @encoder_kernel(%arg0: i32, %arg1: memref<1x100x5xf32, #tpu.memory_space<vmem>>, %arg2: memref<100x64xf32, #tpu.memory_space<vmem>>, %arg3: memref<5x64xf32, #tpu.memory_space<vmem>>, %arg4: memref<1x64xf32, #tpu.memory_space<vmem>>, %arg5: memref<64x192xf32, #tpu.memory_space<vmem>>, %arg6: memref<1x192xf32, #tpu.memory_space<vmem>>, %arg7: memref<8x64x64xf32, #tpu.memory_space<vmem>>, %arg8: memref<1x64xf32, #tpu.memory_space<vmem>>, %arg9: memref<1x64xf32, #tpu.memory_space<vmem>>, %arg10: memref<1x64xf32, #tpu.memory_space<vmem>>, %arg11: memref<64x128xf32, #tpu.memory_space<vmem>>, %arg12: memref<1x128xf32, #tpu.memory_space<vmem>>, %arg13: memref<128x64xf32, #tpu.memory_space<vmem>>, %arg14: memref<1x64xf32, #tpu.memory_space<vmem>>, %arg15: memref<1x64xf32, #tpu.memory_space<vmem>>, %arg16: memref<1x64xf32, #tpu.memory_space<vmem>>, %arg17: memref<1x100x64xf32, #tpu.memory_space<vmem>>, %arg18: memref<100x64xf32, #tpu.memory_space<vmem>>, %arg19: memref<100x192xf32, #tpu.memory_space<vmem>>) attributes {dimension_semantics = [#tpu.dimension_semantics<parallel>], iteration_bounds = array<i64: 2>, scalar_prefetch = 0 : i64, scratch_operands = 2 : i64, tpu.core_type = #tpu.core_type<tc>, window_params = [{transform_indices = @transform_0, window_bounds = array<i64: 1, 100, 5>}, {pipeline_mode = #tpu.pipeline_mode<synchronous>, transform_indices = @transform_1, window_bounds = array<i64: 100, 64>}, {pipeline_mode = #tpu.pipeline_mode<synchronous>, transform_indices = @transform_2, window_bounds = array<i64: 5, 64>}, {pipeline_mode = #tpu.pipeline_mode<synchronous>, transform_indices = @transform_3, window_bounds = array<i64: 1, 64>}, {pipeline_mode = #tpu.pipeline_mode<synchronous>, transform_indices = @transform_4, window_bounds = array<i64: 64, 192>}, {pipeline_mode = #tpu.pipeline_mode<synchronous>, transform_indices = @transform_5, window_bounds = array<i64: 1, 192>}, {pipeline_mode = #tpu.pipeline_mode<synchronous>, transform_indices = @transform_6, window_bounds = array<i64: 8, 64, 64>}, {pipeline_mode = #tpu.pipeline_mode<synchronous>, transform_indices = @transform_7, window_bounds = array<i64: 1, 64>}, {pipeline_mode = #tpu.pipeline_mode<synchronous>, transform_indices = @transform_8, window_bounds = array<i64: 1, 64>}, {pipeline_mode = #tpu.pipeline_mode<synchronous>, transform_indices = @transform_9, window_bounds = array<i64: 1, 64>}, {pipeline_mode = #tpu.pipeline_mode<synchronous>, transform_indices = @transform_10, window_bounds = array<i64: 64, 128>}, {pipeline_mode = #tpu.pipeline_mode<synchronous>, transform_indices = @transform_11, window_bounds = array<i64: 1, 128>}, {pipeline_mode = #tpu.pipeline_mode<synchronous>, transform_indices = @transform_12, window_bounds = array<i64: 128, 64>}, {pipeline_mode = #tpu.pipeline_mode<synchronous>, transform_indices = @transform_13, window_bounds = array<i64: 1, 64>}, {pipeline_mode = #tpu.pipeline_mode<synchronous>, transform_indices = @transform_14, window_bounds = array<i64: 1, 64>}, {pipeline_mode = #tpu.pipeline_mode<synchronous>, transform_indices = @transform_15, window_bounds = array<i64: 1, 64>}, {transform_indices = @transform_16, window_bounds = array<i64: 1, 100, 64>}]} {
    %c0_i32 = arith.constant 0 : i32
    %0 = arith.index_cast %c0_i32 : i32 to index
    %c0 = arith.constant 0 : index
    %c0_0 = arith.constant 0 : index
    %1 = vector.load %arg1[%0, %c0, %c0_0] : memref<1x100x5xf32, #tpu.memory_space<vmem>>, vector<1x100x5xf32>
    %2 = vector.shape_cast %1 : vector<1x100x5xf32> to vector<100x5xf32>
    %c0_1 = arith.constant 0 : index
    %c0_2 = arith.constant 0 : index
    %3 = vector.load %arg3[%c0_1, %c0_2] : memref<5x64xf32, #tpu.memory_space<vmem>>, vector<5x64xf32>
    %cst = arith.constant dense<0.000000e+00> : vector<100x64xf32>
    %4 = tpu.matmul %2, %3, %cst {dimension_numbers = #tpu.dot_dimension_numbers<[1], [0], [0], [1], [0, 0, 1, 1], [], []>} : vector<100x5xf32>, vector<5x64xf32>, vector<100x64xf32> -> vector<100x64xf32>
    %c0_3 = arith.constant 0 : index
    %c0_4 = arith.constant 0 : index
    %5 = vector.load %arg4[%c0_3, %c0_4] : memref<1x64xf32, #tpu.memory_space<vmem>>, vector<1x64xf32>
    %6 = vector.broadcast %5 : vector<1x64xf32> to vector<100x64xf32>
    %7 = arith.addf %4, %6 : vector<100x64xf32>
    %c0_5 = arith.constant 0 : index
    %c0_6 = arith.constant 0 : index
    %8 = vector.load %arg2[%c0_5, %c0_6] : memref<100x64xf32, #tpu.memory_space<vmem>>, vector<100x64xf32>
    %9 = arith.addf %7, %8 : vector<100x64xf32>
    %c0_7 = arith.constant 0 : index
    %c0_8 = arith.constant 0 : index
    %10 = vector.load %arg18[%c0_7, %c0_8] : memref<100x64xf32, #tpu.memory_space<vmem>>, vector<100x64xf32>
    tpu.vector_store %arg18[%c0_7, %c0_8], %9 {strides = array<i32>} : memref<100x64xf32, #tpu.memory_space<vmem>>, vector<100x64xf32>,
    %c0_9 = arith.constant 0 : index
    %c0_10 = arith.constant 0 : index
    %11 = vector.load %arg18[%c0_9, %c0_10] : memref<100x64xf32, #tpu.memory_space<vmem>>, vector<100x64xf32>
    %c0_11 = arith.constant 0 : index
    %c0_12 = arith.constant 0 : index
    %12 = vector.load %arg5[%c0_11, %c0_12] : memref<64x192xf32, #tpu.memory_space<vmem>>, vector<64x192xf32>
    %cst_13 = arith.constant dense<0.000000e+00> : vector<100x192xf32>
    %13 = tpu.matmul %11, %12, %cst_13 {dimension_numbers = #tpu.dot_dimension_numbers<[1], [0], [0], [1], [0, 0, 1, 1], [], []>} : vector<100x64xf32>, vector<64x192xf32>, vector<100x192xf32> -> vector<100x192xf32>
    %c0_14 = arith.constant 0 : index
    %c0_15 = arith.constant 0 : index
    %14 = vector.load %arg6[%c0_14, %c0_15] : memref<1x192xf32, #tpu.memory_space<vmem>>, vector<1x192xf32>
    %15 = vector.broadcast %14 : vector<1x192xf32> to vector<100x192xf32>
    %16 = arith.addf %13, %15 : vector<100x192xf32>
    %c0_16 = arith.constant 0 : index
    %c0_17 = arith.constant 0 : index
    %17 = vector.load %arg19[%c0_16, %c0_17] : memref<100x192xf32, #tpu.memory_space<vmem>>, vector<100x192xf32>
    tpu.vector_store %arg19[%c0_16, %c0_17], %16 {strides = array<i32>} : memref<100x192xf32, #tpu.memory_space<vmem>>, vector<100x192xf32>,
    %cst_18 = arith.constant 0.000000e+00 : f32
    %18 = vector.broadcast %cst_18 : f32 to vector<100x64xf32>
    %c0_19 = arith.constant 0 : index
    %c0_20 = arith.constant 0 : index
    %19 = vector.load %arg19[%c0_19, %c0_20] : memref<100x192xf32, #tpu.memory_space<vmem>>, vector<100x8xf32>
    %c0_21 = arith.constant 0 : index
    %c64 = arith.constant 64 : index
    %20 = vector.load %arg19[%c0_21, %c64] : memref<100x192xf32, #tpu.memory_space<vmem>>, vector<100x8xf32>
    %cst_22 = arith.constant dense<0.000000e+00> : vector<100x100xf32>
    %21 = tpu.matmul %19, %20, %cst_22 {dimension_numbers = #tpu.dot_dimension_numbers<[1], [1], [0], [0], [0, 0, 1, 0], [], []>} : vector<100x8xf32>, vector<100x8xf32>, vector<100x100xf32> -> vector<100x100xf32>
    %cst_23 = arith.constant dense<0xFF800000> : vector<100xf32>
    %22 = vector.multi_reduction <maximumf>, %21, %cst_23 [1] : vector<100x100xf32> to vector<100xf32>
    %23 = vector.shape_cast %22 : vector<100xf32> to vector<100x1xf32>
    %24 = vector.broadcast %23 : vector<100x1xf32> to vector<100x100xf32>
    %25 = arith.subf %21, %24 : vector<100x100xf32>
    %26 = math.exp %25 : vector<100x100xf32>
    %cst_24 = arith.constant dense<0.000000e+00> : vector<100xf32>
    %27 = vector.multi_reduction <add>, %26, %cst_24 [1] : vector<100x100xf32> to vector<100xf32>
    %28 = vector.shape_cast %27 : vector<100xf32> to vector<100x1xf32>
    %29 = tpu.reciprocal %28 {approx = true} : vector<100x1xf32> -> vector<100x1xf32>
    %30 = vector.broadcast %29 : vector<100x1xf32> to vector<100x100xf32>
    %31 = arith.mulf %26, %30 : vector<100x100xf32>
    %c0_25 = arith.constant 0 : index
    %c128 = arith.constant 128 : index
    %32 = vector.load %arg19[%c0_25, %c128] : memref<100x192xf32, #tpu.memory_space<vmem>>, vector<100x64xf32>
    %c0_26 = arith.constant 0 : index
    %c0_27 = arith.constant 0 : index
    %c0_28 = arith.constant 0 : index
    %33 = vector.load %arg7[%c0_26, %c0_27, %c0_28] : memref<8x64x64xf32, #tpu.memory_space<vmem>>, vector<1x64x64xf32>
    %34 = vector.shape_cast %33 : vector<1x64x64xf32> to vector<64x64xf32>
    %cst_29 = arith.constant dense<0.000000e+00> : vector<100x64xf32>
    %35 = tpu.matmul %32, %34, %cst_29 {dimension_numbers = #tpu.dot_dimension_numbers<[1], [0], [0], [1], [0, 0, 1, 1], [], []>} : vector<100x64xf32>, vector<64x64xf32>, vector<100x64xf32> -> vector<100x64xf32>
    %cst_30 = arith.constant dense<0.000000e+00> : vector<100x64xf32>
    %36 = tpu.matmul %31, %35, %cst_30 {dimension_numbers = #tpu.dot_dimension_numbers<[1], [0], [0], [1], [0, 0, 1, 1], [], []>} : vector<100x100xf32>, vector<100x64xf32>, vector<100x64xf32> -> vector<100x64xf32>
    %37 = arith.addf %18, %36 : vector<100x64xf32>
    %c0_31 = arith.constant 0 : index
    %c8 = arith.constant 8 : index
    %38 = vector.load %arg19[%c0_31, %c8] : memref<100x192xf32, #tpu.memory_space<vmem>>, vector<100x8xf32>
    %c0_32 = arith.constant 0 : index
    %c72 = arith.constant 72 : index
    %39 = vector.load %arg19[%c0_32, %c72] : memref<100x192xf32, #tpu.memory_space<vmem>>, vector<100x8xf32>
    %cst_33 = arith.constant dense<0.000000e+00> : vector<100x100xf32>
    %40 = tpu.matmul %38, %39, %cst_33 {dimension_numbers = #tpu.dot_dimension_numbers<[1], [1], [0], [0], [0, 0, 1, 0], [], []>} : vector<100x8xf32>, vector<100x8xf32>, vector<100x100xf32> -> vector<100x100xf32>
    %cst_34 = arith.constant dense<0xFF800000> : vector<100xf32>
    %41 = vector.multi_reduction <maximumf>, %40, %cst_34 [1] : vector<100x100xf32> to vector<100xf32>
    %42 = vector.shape_cast %41 : vector<100xf32> to vector<100x1xf32>
    %43 = vector.broadcast %42 : vector<100x1xf32> to vector<100x100xf32>
    %44 = arith.subf %40, %43 : vector<100x100xf32>
    %45 = math.exp %44 : vector<100x100xf32>
    %cst_35 = arith.constant dense<0.000000e+00> : vector<100xf32>
    %46 = vector.multi_reduction <add>, %45, %cst_35 [1] : vector<100x100xf32> to vector<100xf32>
    %47 = vector.shape_cast %46 : vector<100xf32> to vector<100x1xf32>
    %48 = tpu.reciprocal %47 {approx = true} : vector<100x1xf32> -> vector<100x1xf32>
    %49 = vector.broadcast %48 : vector<100x1xf32> to vector<100x100xf32>
    %50 = arith.mulf %45, %49 : vector<100x100xf32>
    %c0_36 = arith.constant 0 : index
    %c128_37 = arith.constant 128 : index
    %51 = vector.load %arg19[%c0_36, %c128_37] : memref<100x192xf32, #tpu.memory_space<vmem>>, vector<100x64xf32>
    %c1 = arith.constant 1 : index
    %c0_38 = arith.constant 0 : index
    %c0_39 = arith.constant 0 : index
    %52 = vector.load %arg7[%c1, %c0_38, %c0_39] : memref<8x64x64xf32, #tpu.memory_space<vmem>>, vector<1x64x64xf32>
    %53 = vector.shape_cast %52 : vector<1x64x64xf32> to vector<64x64xf32>
    %cst_40 = arith.constant dense<0.000000e+00> : vector<100x64xf32>
    %54 = tpu.matmul %51, %53, %cst_40 {dimension_numbers = #tpu.dot_dimension_numbers<[1], [0], [0], [1], [0, 0, 1, 1], [], []>} : vector<100x64xf32>, vector<64x64xf32>, vector<100x64xf32> -> vector<100x64xf32>
    %cst_41 = arith.constant dense<0.000000e+00> : vector<100x64xf32>
    %55 = tpu.matmul %50, %54, %cst_41 {dimension_numbers = #tpu.dot_dimension_numbers<[1], [0], [0], [1], [0, 0, 1, 1], [], []>} : vector<100x100xf32>, vector<100x64xf32>, vector<100x64xf32> -> vector<100x64xf32>
    %56 = arith.addf %37, %55 : vector<100x64xf32>
    %c0_42 = arith.constant 0 : index
    %c16 = arith.constant 16 : index
    %57 = vector.load %arg19[%c0_42, %c16] : memref<100x192xf32, #tpu.memory_space<vmem>>, vector<100x8xf32>
    %c0_43 = arith.constant 0 : index
    %c80 = arith.constant 80 : index
    %58 = vector.load %arg19[%c0_43, %c80] : memref<100x192xf32, #tpu.memory_space<vmem>>, vector<100x8xf32>
    %cst_44 = arith.constant dense<0.000000e+00> : vector<100x100xf32>
    %59 = tpu.matmul %57, %58, %cst_44 {dimension_numbers = #tpu.dot_dimension_numbers<[1], [1], [0], [0], [0, 0, 1, 0], [], []>} : vector<100x8xf32>, vector<100x8xf32>, vector<100x100xf32> -> vector<100x100xf32>
    %cst_45 = arith.constant dense<0xFF800000> : vector<100xf32>
    %60 = vector.multi_reduction <maximumf>, %59, %cst_45 [1] : vector<100x100xf32> to vector<100xf32>
    %61 = vector.shape_cast %60 : vector<100xf32> to vector<100x1xf32>
    %62 = vector.broadcast %61 : vector<100x1xf32> to vector<100x100xf32>
    %63 = arith.subf %59, %62 : vector<100x100xf32>
    %64 = math.exp %63 : vector<100x100xf32>
    %cst_46 = arith.constant dense<0.000000e+00> : vector<100xf32>
    %65 = vector.multi_reduction <add>, %64, %cst_46 [1] : vector<100x100xf32> to vector<100xf32>
    %66 = vector.shape_cast %65 : vector<100xf32> to vector<100x1xf32>
    %67 = tpu.reciprocal %66 {approx = true} : vector<100x1xf32> -> vector<100x1xf32>
    %68 = vector.broadcast %67 : vector<100x1xf32> to vector<100x100xf32>
    %69 = arith.mulf %64, %68 : vector<100x100xf32>
    %c0_47 = arith.constant 0 : index
    %c128_48 = arith.constant 128 : index
    %70 = vector.load %arg19[%c0_47, %c128_48] : memref<100x192xf32, #tpu.memory_space<vmem>>, vector<100x64xf32>
    %c2 = arith.constant 2 : index
    %c0_49 = arith.constant 0 : index
    %c0_50 = arith.constant 0 : index
    %71 = vector.load %arg7[%c2, %c0_49, %c0_50] : memref<8x64x64xf32, #tpu.memory_space<vmem>>, vector<1x64x64xf32>
    %72 = vector.shape_cast %71 : vector<1x64x64xf32> to vector<64x64xf32>
    %cst_51 = arith.constant dense<0.000000e+00> : vector<100x64xf32>
    %73 = tpu.matmul %70, %72, %cst_51 {dimension_numbers = #tpu.dot_dimension_numbers<[1], [0], [0], [1], [0, 0, 1, 1], [], []>} : vector<100x64xf32>, vector<64x64xf32>, vector<100x64xf32> -> vector<100x64xf32>
    %cst_52 = arith.constant dense<0.000000e+00> : vector<100x64xf32>
    %74 = tpu.matmul %69, %73, %cst_52 {dimension_numbers = #tpu.dot_dimension_numbers<[1], [0], [0], [1], [0, 0, 1, 1], [], []>} : vector<100x100xf32>, vector<100x64xf32>, vector<100x64xf32> -> vector<100x64xf32>
    %75 = arith.addf %56, %74 : vector<100x64xf32>
    %c0_53 = arith.constant 0 : index
    %c24 = arith.constant 24 : index
    %76 = vector.load %arg19[%c0_53, %c24] : memref<100x192xf32, #tpu.memory_space<vmem>>, vector<100x8xf32>
    %c0_54 = arith.constant 0 : index
    %c88 = arith.constant 88 : index
    %77 = vector.load %arg19[%c0_54, %c88] : memref<100x192xf32, #tpu.memory_space<vmem>>, vector<100x8xf32>
    %cst_55 = arith.constant dense<0.000000e+00> : vector<100x100xf32>
    %78 = tpu.matmul %76, %77, %cst_55 {dimension_numbers = #tpu.dot_dimension_numbers<[1], [1], [0], [0], [0, 0, 1, 0], [], []>} : vector<100x8xf32>, vector<100x8xf32>, vector<100x100xf32> -> vector<100x100xf32>
    %cst_56 = arith.constant dense<0xFF800000> : vector<100xf32>
    %79 = vector.multi_reduction <maximumf>, %78, %cst_56 [1] : vector<100x100xf32> to vector<100xf32>
    %80 = vector.shape_cast %79 : vector<100xf32> to vector<100x1xf32>
    %81 = vector.broadcast %80 : vector<100x1xf32> to vector<100x100xf32>
    %82 = arith.subf %78, %81 : vector<100x100xf32>
    %83 = math.exp %82 : vector<100x100xf32>
    %cst_57 = arith.constant dense<0.000000e+00> : vector<100xf32>
    %84 = vector.multi_reduction <add>, %83, %cst_57 [1] : vector<100x100xf32> to vector<100xf32>
    %85 = vector.shape_cast %84 : vector<100xf32> to vector<100x1xf32>
    %86 = tpu.reciprocal %85 {approx = true} : vector<100x1xf32> -> vector<100x1xf32>
    %87 = vector.broadcast %86 : vector<100x1xf32> to vector<100x100xf32>
    %88 = arith.mulf %83, %87 : vector<100x100xf32>
    %c0_58 = arith.constant 0 : index
    %c128_59 = arith.constant 128 : index
    %89 = vector.load %arg19[%c0_58, %c128_59] : memref<100x192xf32, #tpu.memory_space<vmem>>, vector<100x64xf32>
    %c3 = arith.constant 3 : index
    %c0_60 = arith.constant 0 : index
    %c0_61 = arith.constant 0 : index
    %90 = vector.load %arg7[%c3, %c0_60, %c0_61] : memref<8x64x64xf32, #tpu.memory_space<vmem>>, vector<1x64x64xf32>
    %91 = vector.shape_cast %90 : vector<1x64x64xf32> to vector<64x64xf32>
    %cst_62 = arith.constant dense<0.000000e+00> : vector<100x64xf32>
    %92 = tpu.matmul %89, %91, %cst_62 {dimension_numbers = #tpu.dot_dimension_numbers<[1], [0], [0], [1], [0, 0, 1, 1], [], []>} : vector<100x64xf32>, vector<64x64xf32>, vector<100x64xf32> -> vector<100x64xf32>
    %cst_63 = arith.constant dense<0.000000e+00> : vector<100x64xf32>
    %93 = tpu.matmul %88, %92, %cst_63 {dimension_numbers = #tpu.dot_dimension_numbers<[1], [0], [0], [1], [0, 0, 1, 1], [], []>} : vector<100x100xf32>, vector<100x64xf32>, vector<100x64xf32> -> vector<100x64xf32>
    %94 = arith.addf %75, %93 : vector<100x64xf32>
    %c0_64 = arith.constant 0 : index
    %c32 = arith.constant 32 : index
    %95 = vector.load %arg19[%c0_64, %c32] : memref<100x192xf32, #tpu.memory_space<vmem>>, vector<100x8xf32>
    %c0_65 = arith.constant 0 : index
    %c96 = arith.constant 96 : index
    %96 = vector.load %arg19[%c0_65, %c96] : memref<100x192xf32, #tpu.memory_space<vmem>>, vector<100x8xf32>
    %cst_66 = arith.constant dense<0.000000e+00> : vector<100x100xf32>
    %97 = tpu.matmul %95, %96, %cst_66 {dimension_numbers = #tpu.dot_dimension_numbers<[1], [1], [0], [0], [0, 0, 1, 0], [], []>} : vector<100x8xf32>, vector<100x8xf32>, vector<100x100xf32> -> vector<100x100xf32>
    %cst_67 = arith.constant dense<0xFF800000> : vector<100xf32>
    %98 = vector.multi_reduction <maximumf>, %97, %cst_67 [1] : vector<100x100xf32> to vector<100xf32>
    %99 = vector.shape_cast %98 : vector<100xf32> to vector<100x1xf32>
    %100 = vector.broadcast %99 : vector<100x1xf32> to vector<100x100xf32>
    %101 = arith.subf %97, %100 : vector<100x100xf32>
    %102 = math.exp %101 : vector<100x100xf32>
    %cst_68 = arith.constant dense<0.000000e+00> : vector<100xf32>
    %103 = vector.multi_reduction <add>, %102, %cst_68 [1] : vector<100x100xf32> to vector<100xf32>
    %104 = vector.shape_cast %103 : vector<100xf32> to vector<100x1xf32>
    %105 = tpu.reciprocal %104 {approx = true} : vector<100x1xf32> -> vector<100x1xf32>
    %106 = vector.broadcast %105 : vector<100x1xf32> to vector<100x100xf32>
    %107 = arith.mulf %102, %106 : vector<100x100xf32>
    %c0_69 = arith.constant 0 : index
    %c128_70 = arith.constant 128 : index
    %108 = vector.load %arg19[%c0_69, %c128_70] : memref<100x192xf32, #tpu.memory_space<vmem>>, vector<100x64xf32>
    %c4 = arith.constant 4 : index
    %c0_71 = arith.constant 0 : index
    %c0_72 = arith.constant 0 : index
    %109 = vector.load %arg7[%c4, %c0_71, %c0_72] : memref<8x64x64xf32, #tpu.memory_space<vmem>>, vector<1x64x64xf32>
    %110 = vector.shape_cast %109 : vector<1x64x64xf32> to vector<64x64xf32>
    %cst_73 = arith.constant dense<0.000000e+00> : vector<100x64xf32>
    %111 = tpu.matmul %108, %110, %cst_73 {dimension_numbers = #tpu.dot_dimension_numbers<[1], [0], [0], [1], [0, 0, 1, 1], [], []>} : vector<100x64xf32>, vector<64x64xf32>, vector<100x64xf32> -> vector<100x64xf32>
    %cst_74 = arith.constant dense<0.000000e+00> : vector<100x64xf32>
    %112 = tpu.matmul %107, %111, %cst_74 {dimension_numbers = #tpu.dot_dimension_numbers<[1], [0], [0], [1], [0, 0, 1, 1], [], []>} : vector<100x100xf32>, vector<100x64xf32>, vector<100x64xf32> -> vector<100x64xf32>
    %113 = arith.addf %94, %112 : vector<100x64xf32>
    %c0_75 = arith.constant 0 : index
    %c40 = arith.constant 40 : index
    %114 = vector.load %arg19[%c0_75, %c40] : memref<100x192xf32, #tpu.memory_space<vmem>>, vector<100x8xf32>
    %c0_76 = arith.constant 0 : index
    %c104 = arith.constant 104 : index
    %115 = vector.load %arg19[%c0_76, %c104] : memref<100x192xf32, #tpu.memory_space<vmem>>, vector<100x8xf32>
    %cst_77 = arith.constant dense<0.000000e+00> : vector<100x100xf32>
    %116 = tpu.matmul %114, %115, %cst_77 {dimension_numbers = #tpu.dot_dimension_numbers<[1], [1], [0], [0], [0, 0, 1, 0], [], []>} : vector<100x8xf32>, vector<100x8xf32>, vector<100x100xf32> -> vector<100x100xf32>
    %cst_78 = arith.constant dense<0xFF800000> : vector<100xf32>
    %117 = vector.multi_reduction <maximumf>, %116, %cst_78 [1] : vector<100x100xf32> to vector<100xf32>
    %118 = vector.shape_cast %117 : vector<100xf32> to vector<100x1xf32>
    %119 = vector.broadcast %118 : vector<100x1xf32> to vector<100x100xf32>
    %120 = arith.subf %116, %119 : vector<100x100xf32>
    %121 = math.exp %120 : vector<100x100xf32>
    %cst_79 = arith.constant dense<0.000000e+00> : vector<100xf32>
    %122 = vector.multi_reduction <add>, %121, %cst_79 [1] : vector<100x100xf32> to vector<100xf32>
    %123 = vector.shape_cast %122 : vector<100xf32> to vector<100x1xf32>
    %124 = tpu.reciprocal %123 {approx = true} : vector<100x1xf32> -> vector<100x1xf32>
    %125 = vector.broadcast %124 : vector<100x1xf32> to vector<100x100xf32>
    %126 = arith.mulf %121, %125 : vector<100x100xf32>
    %c0_80 = arith.constant 0 : index
    %c128_81 = arith.constant 128 : index
    %127 = vector.load %arg19[%c0_80, %c128_81] : memref<100x192xf32, #tpu.memory_space<vmem>>, vector<100x64xf32>
    %c5 = arith.constant 5 : index
    %c0_82 = arith.constant 0 : index
    %c0_83 = arith.constant 0 : index
    %128 = vector.load %arg7[%c5, %c0_82, %c0_83] : memref<8x64x64xf32, #tpu.memory_space<vmem>>, vector<1x64x64xf32>
    %129 = vector.shape_cast %128 : vector<1x64x64xf32> to vector<64x64xf32>
    %cst_84 = arith.constant dense<0.000000e+00> : vector<100x64xf32>
    %130 = tpu.matmul %127, %129, %cst_84 {dimension_numbers = #tpu.dot_dimension_numbers<[1], [0], [0], [1], [0, 0, 1, 1], [], []>} : vector<100x64xf32>, vector<64x64xf32>, vector<100x64xf32> -> vector<100x64xf32>
    %cst_85 = arith.constant dense<0.000000e+00> : vector<100x64xf32>
    %131 = tpu.matmul %126, %130, %cst_85 {dimension_numbers = #tpu.dot_dimension_numbers<[1], [0], [0], [1], [0, 0, 1, 1], [], []>} : vector<100x100xf32>, vector<100x64xf32>, vector<100x64xf32> -> vector<100x64xf32>
    %132 = arith.addf %113, %131 : vector<100x64xf32>
    %c0_86 = arith.constant 0 : index
    %c48 = arith.constant 48 : index
    %133 = vector.load %arg19[%c0_86, %c48] : memref<100x192xf32, #tpu.memory_space<vmem>>, vector<100x8xf32>
    %c0_87 = arith.constant 0 : index
    %c112 = arith.constant 112 : index
    %134 = vector.load %arg19[%c0_87, %c112] : memref<100x192xf32, #tpu.memory_space<vmem>>, vector<100x8xf32>
    %cst_88 = arith.constant dense<0.000000e+00> : vector<100x100xf32>
    %135 = tpu.matmul %133, %134, %cst_88 {dimension_numbers = #tpu.dot_dimension_numbers<[1], [1], [0], [0], [0, 0, 1, 0], [], []>} : vector<100x8xf32>, vector<100x8xf32>, vector<100x100xf32> -> vector<100x100xf32>
    %cst_89 = arith.constant dense<0xFF800000> : vector<100xf32>
    %136 = vector.multi_reduction <maximumf>, %135, %cst_89 [1] : vector<100x100xf32> to vector<100xf32>
    %137 = vector.shape_cast %136 : vector<100xf32> to vector<100x1xf32>
    %138 = vector.broadcast %137 : vector<100x1xf32> to vector<100x100xf32>
    %139 = arith.subf %135, %138 : vector<100x100xf32>
    %140 = math.exp %139 : vector<100x100xf32>
    %cst_90 = arith.constant dense<0.000000e+00> : vector<100xf32>
    %141 = vector.multi_reduction <add>, %140, %cst_90 [1] : vector<100x100xf32> to vector<100xf32>
    %142 = vector.shape_cast %141 : vector<100xf32> to vector<100x1xf32>
    %143 = tpu.reciprocal %142 {approx = true} : vector<100x1xf32> -> vector<100x1xf32>
    %144 = vector.broadcast %143 : vector<100x1xf32> to vector<100x100xf32>
    %145 = arith.mulf %140, %144 : vector<100x100xf32>
    %c0_91 = arith.constant 0 : index
    %c128_92 = arith.constant 128 : index
    %146 = vector.load %arg19[%c0_91, %c128_92] : memref<100x192xf32, #tpu.memory_space<vmem>>, vector<100x64xf32>
    %c6 = arith.constant 6 : index
    %c0_93 = arith.constant 0 : index
    %c0_94 = arith.constant 0 : index
    %147 = vector.load %arg7[%c6, %c0_93, %c0_94] : memref<8x64x64xf32, #tpu.memory_space<vmem>>, vector<1x64x64xf32>
    %148 = vector.shape_cast %147 : vector<1x64x64xf32> to vector<64x64xf32>
    %cst_95 = arith.constant dense<0.000000e+00> : vector<100x64xf32>
    %149 = tpu.matmul %146, %148, %cst_95 {dimension_numbers = #tpu.dot_dimension_numbers<[1], [0], [0], [1], [0, 0, 1, 1], [], []>} : vector<100x64xf32>, vector<64x64xf32>, vector<100x64xf32> -> vector<100x64xf32>
    %cst_96 = arith.constant dense<0.000000e+00> : vector<100x64xf32>
    %150 = tpu.matmul %145, %149, %cst_96 {dimension_numbers = #tpu.dot_dimension_numbers<[1], [0], [0], [1], [0, 0, 1, 1], [], []>} : vector<100x100xf32>, vector<100x64xf32>, vector<100x64xf32> -> vector<100x64xf32>
    %151 = arith.addf %132, %150 : vector<100x64xf32>
    %c0_97 = arith.constant 0 : index
    %c56 = arith.constant 56 : index
    %152 = vector.load %arg19[%c0_97, %c56] : memref<100x192xf32, #tpu.memory_space<vmem>>, vector<100x8xf32>
    %c0_98 = arith.constant 0 : index
    %c120 = arith.constant 120 : index
    %153 = vector.load %arg19[%c0_98, %c120] : memref<100x192xf32, #tpu.memory_space<vmem>>, vector<100x8xf32>
    %cst_99 = arith.constant dense<0.000000e+00> : vector<100x100xf32>
    %154 = tpu.matmul %152, %153, %cst_99 {dimension_numbers = #tpu.dot_dimension_numbers<[1], [1], [0], [0], [0, 0, 1, 0], [], []>} : vector<100x8xf32>, vector<100x8xf32>, vector<100x100xf32> -> vector<100x100xf32>
    %cst_100 = arith.constant dense<0xFF800000> : vector<100xf32>
    %155 = vector.multi_reduction <maximumf>, %154, %cst_100 [1] : vector<100x100xf32> to vector<100xf32>
    %156 = vector.shape_cast %155 : vector<100xf32> to vector<100x1xf32>
    %157 = vector.broadcast %156 : vector<100x1xf32> to vector<100x100xf32>
    %158 = arith.subf %154, %157 : vector<100x100xf32>
    %159 = math.exp %158 : vector<100x100xf32>
    %cst_101 = arith.constant dense<0.000000e+00> : vector<100xf32>
    %160 = vector.multi_reduction <add>, %159, %cst_101 [1] : vector<100x100xf32> to vector<100xf32>
    %161 = vector.shape_cast %160 : vector<100xf32> to vector<100x1xf32>
    %162 = tpu.reciprocal %161 {approx = true} : vector<100x1xf32> -> vector<100x1xf32>
    %163 = vector.broadcast %162 : vector<100x1xf32> to vector<100x100xf32>
    %164 = arith.mulf %159, %163 : vector<100x100xf32>
    %c0_102 = arith.constant 0 : index
    %c128_103 = arith.constant 128 : index
    %165 = vector.load %arg19[%c0_102, %c128_103] : memref<100x192xf32, #tpu.memory_space<vmem>>, vector<100x64xf32>
    %c7 = arith.constant 7 : index
    %c0_104 = arith.constant 0 : index
    %c0_105 = arith.constant 0 : index
    %166 = vector.load %arg7[%c7, %c0_104, %c0_105] : memref<8x64x64xf32, #tpu.memory_space<vmem>>, vector<1x64x64xf32>
    %167 = vector.shape_cast %166 : vector<1x64x64xf32> to vector<64x64xf32>
    %cst_106 = arith.constant dense<0.000000e+00> : vector<100x64xf32>
    %168 = tpu.matmul %165, %167, %cst_106 {dimension_numbers = #tpu.dot_dimension_numbers<[1], [0], [0], [1], [0, 0, 1, 1], [], []>} : vector<100x64xf32>, vector<64x64xf32>, vector<100x64xf32> -> vector<100x64xf32>
    %cst_107 = arith.constant dense<0.000000e+00> : vector<100x64xf32>
    %169 = tpu.matmul %164, %168, %cst_107 {dimension_numbers = #tpu.dot_dimension_numbers<[1], [0], [0], [1], [0, 0, 1, 1], [], []>} : vector<100x100xf32>, vector<100x64xf32>, vector<100x64xf32> -> vector<100x64xf32>
    %170 = arith.addf %151, %169 : vector<100x64xf32>
    %c0_108 = arith.constant 0 : index
    %c0_109 = arith.constant 0 : index
    %171 = vector.load %arg18[%c0_108, %c0_109] : memref<100x64xf32, #tpu.memory_space<vmem>>, vector<100x64xf32>
    %172 = arith.addf %171, %170 : vector<100x64xf32>
    %c0_110 = arith.constant 0 : index
    %c0_111 = arith.constant 0 : index
    %173 = vector.load %arg8[%c0_110, %c0_111] : memref<1x64xf32, #tpu.memory_space<vmem>>, vector<1x64xf32>
    %174 = vector.broadcast %173 : vector<1x64xf32> to vector<100x64xf32>
    %175 = arith.addf %172, %174 : vector<100x64xf32>
    %c0_112 = arith.constant 0 : index
    %c0_113 = arith.constant 0 : index
    %176 = vector.load %arg9[%c0_112, %c0_113] : memref<1x64xf32, #tpu.memory_space<vmem>>, vector<1x64xf32>
    %c0_114 = arith.constant 0 : index
    %c0_115 = arith.constant 0 : index
    %177 = vector.load %arg10[%c0_114, %c0_115] : memref<1x64xf32, #tpu.memory_space<vmem>>, vector<1x64xf32>
    %cst_116 = arith.constant dense<0.000000e+00> : vector<100xf32>
    %178 = vector.multi_reduction <add>, %175, %cst_116 [1] : vector<100x64xf32> to vector<100xf32>
    %179 = vector.shape_cast %178 : vector<100xf32> to vector<100x1xf32>
    %180 = arith.mulf %175, %175 : vector<100x64xf32>
    %cst_117 = arith.constant dense<0.000000e+00> : vector<100xf32>
    %181 = vector.multi_reduction <add>, %180, %cst_117 [1] : vector<100x64xf32> to vector<100xf32>
    %182 = vector.shape_cast %181 : vector<100xf32> to vector<100x1xf32>
    %cst_118 = arith.constant 1.562500e-02 : f32
    %183 = vector.broadcast %cst_118 : f32 to vector<100x1xf32>
    %184 = arith.mulf %179, %183 : vector<100x1xf32>
    %cst_119 = arith.constant 1.562500e-02 : f32
    %185 = vector.broadcast %cst_119 : f32 to vector<100x1xf32>
    %186 = arith.mulf %182, %185 : vector<100x1xf32>
    %187 = arith.mulf %184, %184 : vector<100x1xf32>
    %188 = arith.subf %186, %187 : vector<100x1xf32>
    %189 = vector.broadcast %184 : vector<100x1xf32> to vector<100x64xf32>
    %190 = arith.subf %175, %189 : vector<100x64xf32>
    %cst_120 = arith.constant 9.99999974E-6 : f32
    %191 = vector.broadcast %cst_120 : f32 to vector<100x1xf32>
    %192 = arith.addf %188, %191 : vector<100x1xf32>
    %193 = math.rsqrt %192 : vector<100x1xf32>
    %194 = vector.broadcast %193 : vector<100x1xf32> to vector<100x64xf32>
    %195 = arith.mulf %190, %194 : vector<100x64xf32>
    %196 = vector.broadcast %176 : vector<1x64xf32> to vector<100x64xf32>
    %197 = arith.mulf %195, %196 : vector<100x64xf32>
    %198 = vector.broadcast %177 : vector<1x64xf32> to vector<100x64xf32>
    %199 = arith.addf %197, %198 : vector<100x64xf32>
    %c0_121 = arith.constant 0 : index
    %c0_122 = arith.constant 0 : index
    %200 = vector.load %arg11[%c0_121, %c0_122] : memref<64x128xf32, #tpu.memory_space<vmem>>, vector<64x128xf32>
    %cst_123 = arith.constant dense<0.000000e+00> : vector<100x128xf32>
    %201 = tpu.matmul %199, %200, %cst_123 {dimension_numbers = #tpu.dot_dimension_numbers<[1], [0], [0], [1], [0, 0, 1, 1], [], []>} : vector<100x64xf32>, vector<64x128xf32>, vector<100x128xf32> -> vector<100x128xf32>
    %c0_124 = arith.constant 0 : index
    %c0_125 = arith.constant 0 : index
    %202 = vector.load %arg12[%c0_124, %c0_125] : memref<1x128xf32, #tpu.memory_space<vmem>>, vector<1x128xf32>
    %203 = vector.broadcast %202 : vector<1x128xf32> to vector<100x128xf32>
    %204 = arith.addf %201, %203 : vector<100x128xf32>
    %cst_126 = arith.constant 0.000000e+00 : f32
    %205 = vector.broadcast %cst_126 : f32 to vector<100x128xf32>
    %206 = arith.maximumf %204, %205 : vector<100x128xf32>
    %c0_127 = arith.constant 0 : index
    %c0_128 = arith.constant 0 : index
    %207 = vector.load %arg13[%c0_127, %c0_128] : memref<128x64xf32, #tpu.memory_space<vmem>>, vector<128x64xf32>
    %cst_129 = arith.constant dense<0.000000e+00> : vector<100x64xf32>
    %208 = tpu.matmul %206, %207, %cst_129 {dimension_numbers = #tpu.dot_dimension_numbers<[1], [0], [0], [1], [0, 0, 1, 1], [], []>} : vector<100x128xf32>, vector<128x64xf32>, vector<100x64xf32> -> vector<100x64xf32>
    %c0_130 = arith.constant 0 : index
    %c0_131 = arith.constant 0 : index
    %209 = vector.load %arg14[%c0_130, %c0_131] : memref<1x64xf32, #tpu.memory_space<vmem>>, vector<1x64xf32>
    %210 = vector.broadcast %209 : vector<1x64xf32> to vector<100x64xf32>
    %211 = arith.addf %208, %210 : vector<100x64xf32>
    %212 = arith.addf %199, %211 : vector<100x64xf32>
    %c0_132 = arith.constant 0 : index
    %c0_133 = arith.constant 0 : index
    %213 = vector.load %arg15[%c0_132, %c0_133] : memref<1x64xf32, #tpu.memory_space<vmem>>, vector<1x64xf32>
    %c0_134 = arith.constant 0 : index
    %c0_135 = arith.constant 0 : index
    %214 = vector.load %arg16[%c0_134, %c0_135] : memref<1x64xf32, #tpu.memory_space<vmem>>, vector<1x64xf32>
    %cst_136 = arith.constant dense<0.000000e+00> : vector<100xf32>
    %215 = vector.multi_reduction <add>, %212, %cst_136 [1] : vector<100x64xf32> to vector<100xf32>
    %216 = vector.shape_cast %215 : vector<100xf32> to vector<100x1xf32>
    %217 = arith.mulf %212, %212 : vector<100x64xf32>
    %cst_137 = arith.constant dense<0.000000e+00> : vector<100xf32>
    %218 = vector.multi_reduction <add>, %217, %cst_137 [1] : vector<100x64xf32> to vector<100xf32>
    %219 = vector.shape_cast %218 : vector<100xf32> to vector<100x1xf32>
    %cst_138 = arith.constant 1.562500e-02 : f32
    %220 = vector.broadcast %cst_138 : f32 to vector<100x1xf32>
    %221 = arith.mulf %216, %220 : vector<100x1xf32>
    %cst_139 = arith.constant 1.562500e-02 : f32
    %222 = vector.broadcast %cst_139 : f32 to vector<100x1xf32>
    %223 = arith.mulf %219, %222 : vector<100x1xf32>
    %224 = arith.mulf %221, %221 : vector<100x1xf32>
    %225 = arith.subf %223, %224 : vector<100x1xf32>
    %226 = vector.broadcast %221 : vector<100x1xf32> to vector<100x64xf32>
    %227 = arith.subf %212, %226 : vector<100x64xf32>
    %cst_140 = arith.constant 9.99999974E-6 : f32
    %228 = vector.broadcast %cst_140 : f32 to vector<100x1xf32>
    %229 = arith.addf %225, %228 : vector<100x1xf32>
    %230 = math.rsqrt %229 : vector<100x1xf32>
    %231 = vector.broadcast %230 : vector<100x1xf32> to vector<100x64xf32>
    %232 = arith.mulf %227, %231 : vector<100x64xf32>
    %233 = vector.broadcast %213 : vector<1x64xf32> to vector<100x64xf32>
    %234 = arith.mulf %232, %233 : vector<100x64xf32>
    %235 = vector.broadcast %214 : vector<1x64xf32> to vector<100x64xf32>
    %236 = arith.addf %234, %235 : vector<100x64xf32>
    %237 = arith.index_cast %c0_i32 : i32 to index
    %c0_141 = arith.constant 0 : index
    %c0_142 = arith.constant 0 : index
    %238 = vector.load %arg17[%237, %c0_141, %c0_142] : memref<1x100x64xf32, #tpu.memory_space<vmem>>, vector<1x100x64xf32>
    %239 = vector.shape_cast %238 : vector<1x100x64xf32> to vector<100x64xf32>
    %240 = vector.shape_cast %236 : vector<100x64xf32> to vector<1x100x64xf32>
    tpu.vector_store %arg17[%237, %c0_141, %c0_142], %240 {strides = array<i32>} : memref<1x100x64xf32, #tpu.memory_space<vmem>>, vector<1x100x64xf32>,
    %c1_i32 = arith.constant 1 : i32
    return
  }
  func.func @transform_0(%arg0: i32) -> (i32, i32, i32) {
    %c0_i32 = arith.constant 0 : i32
    %c0_i32_0 = arith.constant 0 : i32
    %c0_i32_1 = arith.constant 0 : i32
    return %arg0, %c0_i32, %c0_i32_0 : i32, i32, i32
  }
  func.func @transform_1(%arg0: i32) -> (i32, i32) {
    %c0_i32 = arith.constant 0 : i32
    %c0_i32_0 = arith.constant 0 : i32
    %c0_i32_1 = arith.constant 0 : i32
    return %c0_i32, %c0_i32_0 : i32, i32
  }
  func.func @transform_2(%arg0: i32) -> (i32, i32) {
    %c0_i32 = arith.constant 0 : i32
    %c0_i32_0 = arith.constant 0 : i32
    %c0_i32_1 = arith.constant 0 : i32
    return %c0_i32, %c0_i32_0 : i32, i32
  }
  func.func @transform_3(%arg0: i32) -> (i32, i32) {
    %c0_i32 = arith.constant 0 : i32
    %c0_i32_0 = arith.constant 0 : i32
    %c0_i32_1 = arith.constant 0 : i32
    return %c0_i32, %c0_i32_0 : i32, i32
  }
  func.func @transform_4(%arg0: i32) -> (i32, i32) {
    %c0_i32 = arith.constant 0 : i32
    %c0_i32_0 = arith.constant 0 : i32
    %c0_i32_1 = arith.constant 0 : i32
    return %c0_i32, %c0_i32_0 : i32, i32
  }
  func.func @transform_5(%arg0: i32) -> (i32, i32) {
    %c0_i32 = arith.constant 0 : i32
    %c0_i32_0 = arith.constant 0 : i32
    %c0_i32_1 = arith.constant 0 : i32
    return %c0_i32, %c0_i32_0 : i32, i32
  }
  func.func @transform_6(%arg0: i32) -> (i32, i32, i32) {
    %c0_i32 = arith.constant 0 : i32
    %c0_i32_0 = arith.constant 0 : i32
    %c0_i32_1 = arith.constant 0 : i32
    %c0_i32_2 = arith.constant 0 : i32
    return %c0_i32, %c0_i32_0, %c0_i32_1 : i32, i32, i32
  }
  func.func @transform_7(%arg0: i32) -> (i32, i32) {
    %c0_i32 = arith.constant 0 : i32
    %c0_i32_0 = arith.constant 0 : i32
    %c0_i32_1 = arith.constant 0 : i32
    return %c0_i32, %c0_i32_0 : i32, i32
  }
  func.func @transform_8(%arg0: i32) -> (i32, i32) {
    %c0_i32 = arith.constant 0 : i32
    %c0_i32_0 = arith.constant 0 : i32
    %c0_i32_1 = arith.constant 0 : i32
    return %c0_i32, %c0_i32_0 : i32, i32
  }
  func.func @transform_9(%arg0: i32) -> (i32, i32) {
    %c0_i32 = arith.constant 0 : i32
    %c0_i32_0 = arith.constant 0 : i32
    %c0_i32_1 = arith.constant 0 : i32
    return %c0_i32, %c0_i32_0 : i32, i32
  }
  func.func @transform_10(%arg0: i32) -> (i32, i32) {
    %c0_i32 = arith.constant 0 : i32
    %c0_i32_0 = arith.constant 0 : i32
    %c0_i32_1 = arith.constant 0 : i32
    return %c0_i32, %c0_i32_0 : i32, i32
  }
  func.func @transform_11(%arg0: i32) -> (i32, i32) {
    %c0_i32 = arith.constant 0 : i32
    %c0_i32_0 = arith.constant 0 : i32
    %c0_i32_1 = arith.constant 0 : i32
    return %c0_i32, %c0_i32_0 : i32, i32
  }
  func.func @transform_12(%arg0: i32) -> (i32, i32) {
    %c0_i32 = arith.constant 0 : i32
    %c0_i32_0 = arith.constant 0 : i32
    %c0_i32_1 = arith.constant 0 : i32
    return %c0_i32, %c0_i32_0 : i32, i32
  }
  func.func @transform_13(%arg0: i32) -> (i32, i32) {
    %c0_i32 = arith.constant 0 : i32
    %c0_i32_0 = arith.constant 0 : i32
    %c0_i32_1 = arith.constant 0 : i32
    return %c0_i32, %c0_i32_0 : i32, i32
  }
  func.func @transform_14(%arg0: i32) -> (i32, i32) {
    %c0_i32 = arith.constant 0 : i32
    %c0_i32_0 = arith.constant 0 : i32
    %c0_i32_1 = arith.constant 0 : i32
    return %c0_i32, %c0_i32_0 : i32, i32
  }
  func.func @transform_15(%arg0: i32) -> (i32, i32) {
    %c0_i32 = arith.constant 0 : i32
    %c0_i32_0 = arith.constant 0 : i32
    %c0_i32_1 = arith.constant 0 : i32
    return %c0_i32, %c0_i32_0 : i32, i32
  }
  func.func @transform_16(%arg0: i32) -> (i32, i32, i32) {
    %c0_i32 = arith.constant 0 : i32
    %c0_i32_0 = arith.constant 0 : i32
    %c0_i32_1 = arith.constant 0 : i32
    return %arg0, %c0_i32, %c0_i32_0 : i32, i32, i32
  }
}

module attributes {stable_mosaic.version = 11 : i64} {
  func.func @head_kernel(%arg0: i32, %arg1: memref<8x6400xf32, #tpu.memory_space<vmem>>, %arg2: memref<6400x128xf32, #tpu.memory_space<vmem>>, %arg3: memref<1x128xf32, #tpu.memory_space<vmem>>, %arg4: memref<128x1xf32, #tpu.memory_space<vmem>>, %arg5: memref<1x1xf32, #tpu.memory_space<vmem>>, %arg6: memref<8x1xf32, #tpu.memory_space<vmem>>) attributes {dimension_semantics = [#tpu.dimension_semantics<parallel>], iteration_bounds = array<i64: 1>, scalar_prefetch = 0 : i64, scratch_operands = 0 : i64, tpu.core_type = #tpu.core_type<tc>, window_params = [{transform_indices = @transform_0, window_bounds = array<i64: 8, 6400>}, {pipeline_mode = #tpu.pipeline_mode<synchronous>, transform_indices = @transform_1, window_bounds = array<i64: 6400, 128>}, {pipeline_mode = #tpu.pipeline_mode<synchronous>, transform_indices = @transform_2, window_bounds = array<i64: 1, 128>}, {pipeline_mode = #tpu.pipeline_mode<synchronous>, transform_indices = @transform_3, window_bounds = array<i64: 128, 1>}, {pipeline_mode = #tpu.pipeline_mode<synchronous>, transform_indices = @transform_4, window_bounds = array<i64: 1, 1>}, {transform_indices = @transform_5, window_bounds = array<i64: 8, 1>}]} {
    %c0 = arith.constant 0 : index
    %c0_0 = arith.constant 0 : index
    %0 = vector.load %arg1[%c0, %c0_0] : memref<8x6400xf32, #tpu.memory_space<vmem>>, vector<8x6400xf32>
    %c0_1 = arith.constant 0 : index
    %c0_2 = arith.constant 0 : index
    %1 = vector.load %arg2[%c0_1, %c0_2] : memref<6400x128xf32, #tpu.memory_space<vmem>>, vector<6400x128xf32>
    %cst = arith.constant dense<0.000000e+00> : vector<8x128xf32>
    %2 = tpu.matmul %0, %1, %cst {dimension_numbers = #tpu.dot_dimension_numbers<[1], [0], [0], [1], [0, 0, 1, 1], [], []>} : vector<8x6400xf32>, vector<6400x128xf32>, vector<8x128xf32> -> vector<8x128xf32>
    %c0_3 = arith.constant 0 : index
    %c0_4 = arith.constant 0 : index
    %3 = vector.load %arg3[%c0_3, %c0_4] : memref<1x128xf32, #tpu.memory_space<vmem>>, vector<1x128xf32>
    %4 = vector.broadcast %3 : vector<1x128xf32> to vector<8x128xf32>
    %5 = arith.addf %2, %4 : vector<8x128xf32>
    %cst_5 = arith.constant 0.000000e+00 : f32
    %6 = vector.broadcast %cst_5 : f32 to vector<8x128xf32>
    %7 = arith.maximumf %5, %6 : vector<8x128xf32>
    %c0_6 = arith.constant 0 : index
    %c0_7 = arith.constant 0 : index
    %8 = vector.load %arg4[%c0_6, %c0_7] : memref<128x1xf32, #tpu.memory_space<vmem>>, vector<128x1xf32>
    %cst_8 = arith.constant dense<0.000000e+00> : vector<8x1xf32>
    %9 = tpu.matmul %7, %8, %cst_8 {dimension_numbers = #tpu.dot_dimension_numbers<[1], [0], [0], [1], [0, 0, 1, 1], [], []>} : vector<8x128xf32>, vector<128x1xf32>, vector<8x1xf32> -> vector<8x1xf32>
    %c0_9 = arith.constant 0 : index
    %c0_10 = arith.constant 0 : index
    %10 = vector.load %arg5[%c0_9, %c0_10] : memref<1x1xf32, #tpu.memory_space<vmem>>, vector<1x1xf32>
    %11 = vector.broadcast %10 : vector<1x1xf32> to vector<8x1xf32>
    %12 = arith.addf %9, %11 : vector<8x1xf32>
    %c0_11 = arith.constant 0 : index
    %c0_12 = arith.constant 0 : index
    %13 = vector.load %arg6[%c0_11, %c0_12] : memref<8x1xf32, #tpu.memory_space<vmem>>, vector<8x1xf32>
    tpu.vector_store %arg6[%c0_11, %c0_12], %12 {strides = array<i32>} : memref<8x1xf32, #tpu.memory_space<vmem>>, vector<8x1xf32>,
    return
  }
  func.func @transform_0(%arg0: i32) -> (i32, i32) {
    %c0_i32 = arith.constant 0 : i32
    %c0_i32_0 = arith.constant 0 : i32
    return %arg0, %c0_i32 : i32, i32
  }
  func.func @transform_1(%arg0: i32) -> (i32, i32) {
    %c0_i32 = arith.constant 0 : i32
    %c0_i32_0 = arith.constant 0 : i32
    %c0_i32_1 = arith.constant 0 : i32
    return %c0_i32, %c0_i32_0 : i32, i32
  }
  func.func @transform_2(%arg0: i32) -> (i32, i32) {
    %c0_i32 = arith.constant 0 : i32
    %c0_i32_0 = arith.constant 0 : i32
    %c0_i32_1 = arith.constant 0 : i32
    return %c0_i32, %c0_i32_0 : i32, i32
  }
  func.func @transform_3(%arg0: i32) -> (i32, i32) {
    %c0_i32 = arith.constant 0 : i32
    %c0_i32_0 = arith.constant 0 : i32
    %c0_i32_1 = arith.constant 0 : i32
    return %c0_i32, %c0_i32_0 : i32, i32
  }
  func.func @transform_4(%arg0: i32) -> (i32, i32) {
    %c0_i32 = arith.constant 0 : i32
    %c0_i32_0 = arith.constant 0 : i32
    %c0_i32_1 = arith.constant 0 : i32
    return %c0_i32, %c0_i32_0 : i32, i32
  }
  func.func @transform_5(%arg0: i32) -> (i32, i32) {
    %c0_i32 = arith.constant 0 : i32
    %c0_i32_0 = arith.constant 0 : i32
    return %arg0, %c0_i32 : i32, i32
  }
}

</mosaic_0001>

<llo_original>
// kernel: _lambda_.3
$region0: #{_lambda_.3}
  #allocation0 [shape = 'u32[]', space=smem, size = 0x4, offset = 0x4, fixed_abs, tag = 'smem constant byte address 0x4 - core index']
  #allocation1 [shape = 'u32[144,128]{1,0:T(1,128)}', space=vmem, size = 0x12000, scoped, tag = 'internal scratch']
  #allocation2 [shape = 'f32[1,1]{1,0:T(1,128)S(1)}', space=vmem, size = 0x200, scoped, tag = 'scoped memory for _lambda_.3']
  %s0 = inlined_call_operand.vmem [shape: f32[8,6400], index: 0, kind: input, shape index: {}]
  %s1 = inlined_call_operand.hbm [shape: f32[6400,128], index: 1, kind: input, shape index: {}]
  %s2 = inlined_call_operand.hbm [shape: f32[1,128], index: 2, kind: input, shape index: {}]
  %s3 = inlined_call_operand.hbm [shape: f32[128,1], index: 3, kind: input, shape index: {}]
  %s4 = inlined_call_operand.<no memory space> [shape: f32[1,1], index: 4, kind: input, shape index: {}]
  %s5 = inlined_call_operand.vmem [shape: f32[8,1], index: 5, kind: output, shape index: {}]
  %s6 = sld [smem:[#allocation0]]
  $region42: #{_lambda_.3} parent=0
    _
  %s8 = ssub.s32 1, %s6
  %s9 = scalar_select 0, %s8, %s6
  %v10 = vstv %s4
  %11 = vst [vmem:[#allocation2] sm:$0x1] %v10
  $region1: #{_lambda_.3} parent=0
    #allocation3 [shape = 'u8[3276800]{0}', space=vmem, size = 0x320000, scoped, tag = 'input window, operand 1, single buffered']
    #allocation4 [shape = 's32[1]{0}', space=sflag, size = 0x4, scoped, tag = 'scoped memory for _lambda_.3']
    #allocation5 [shape = 'u8[512]{0}', space=vmem, size = 0x400, scoped, tag = 'input window, operand 2, single buffered']
    #allocation6 [shape = 's32[1]{0}', space=sflag, size = 0x4, scoped, tag = 'scoped memory for _lambda_.3']
    #allocation7 [shape = 'u8[65536]{0}', space=vmem, size = 0x10000, scoped, tag = 'input window, operand 3, single buffered']
    %12 = vsyncpa [#allocation4], 0
    %13 = vsyncpa [#allocation6], 0
    // Predicated region
    $region2: #{_lambda_.3} parent=1 // pred_check
      _
    $region3: #{_lambda_.3} parent=1 // pred_check_branch
      %15 = sbr.rel (0) target = $region5
    $region4: #{_lambda_.3} parent=1 // pred_region
      _
    $region5: #{_lambda_.3} parent=1 // pred_fallthru
      _
    // Predicated region
    $region6: #{_lambda_.3} parent=1 // pred_check
      _
    $region7: #{_lambda_.3} parent=1 // pred_check_branch
      %17 = sbr.rel (0) target = $region9
    $region8: #{_lambda_.3} parent=1 // pred_region
      %s19 = ssub.s32 102400, 102400
      %20 = vsyncadd [#allocation4], %s19
      %s21 = sshll.u32 [#allocation3], 4
      %s22 = int_to_ptr.vmem [resolvable:$true] %s21
      %27 = dma.hbm_to_vmem [thread:$0]  %s1, 102400, %s22, [#allocation4], 128, 128, 8
    $region9: #{_lambda_.3} parent=1 // pred_fallthru
      _
    // Predicated region
    $region10: #{_lambda_.3} parent=1 // pred_check
      _
    $region11: #{_lambda_.3} parent=1 // pred_check_branch
      %29 = sbr.rel (0) target = $region13
    $region12: #{_lambda_.3} parent=1 // pred_region
      %s31 = ssub.s32 16, 16
      %32 = vsyncadd [#allocation6], %s31
      %s34 = sshll.u32 [#allocation5], 4
      %s35 = int_to_ptr.vmem [resolvable:$true] %s34
      %37 = dma.hbm_to_vmem [thread:$0]  %s2, 16, %s35, [#allocation6]
    $region13: #{_lambda_.3} parent=1 // pred_fallthru
      _
    // Predicated region
    $region14: #{_lambda_.3} parent=1 // pred_check
      _
    $region15: #{_lambda_.3} parent=1 // pred_check_branch
      %39 = sbr.rel (0) target = $region17
    $region16: #{_lambda_.3} parent=1 // pred_region
      %s41 = ssub.s32 2048, 2048
      %42 = vsyncadd [#allocation6], %s41
      %s43 = sshll.u32 [#allocation7], 4
      %s44 = int_to_ptr.vmem [resolvable:$true] %s43
      %49 = dma.hbm_to_vmem [thread:$0]  %s3, 2048, %s44, [#allocation6], 128, 128, 8
    $region17: #{_lambda_.3} parent=1 // pred_fallthru
      _
    // Predicated region
    $region18: #{_lambda_.3} parent=1 // pred_check
      _
    $region19: #{_lambda_.3} parent=1 // pred_check_branch
      %51 = sbr.rel (0) target = $region21
    $region20: #{_lambda_.3} parent=1 // pred_region
      _
    $region21: #{_lambda_.3} parent=1 // pred_fallthru
      _
    // Predicated region
    $region22: #{_lambda_.3} parent=1 // pred_check
      _
    $region23: #{_lambda_.3} parent=1 // pred_check_branch
      %53 = sbr.rel (0) target = $region25
    $region24: #{_lambda_.3} parent=1 // pred_region
      %54 = dma.done [#allocation4], 102400
    $region25: #{_lambda_.3} parent=1 // pred_fallthru
      _
    // Predicated region
    $region26: #{_lambda_.3} parent=1 // pred_check
      _
    $region27: #{_lambda_.3} parent=1 // pred_check_branch
      %56 = sbr.rel (0) target = $region29
    $region28: #{_lambda_.3} parent=1 // pred_region
      %57 = dma.done [#allocation6], 16
    $region29: #{_lambda_.3} parent=1 // pred_fallthru
      _
    // Predicated region
    $region30: #{_lambda_.3} parent=1 // pred_check
      _
    $region31: #{_lambda_.3} parent=1 // pred_check_branch
      %59 = sbr.rel (0) target = $region33
    $region32: #{_lambda_.3} parent=1 // pred_region
      %60 = dma.done [#allocation6], 2048
    $region33: #{_lambda_.3} parent=1 // pred_fallthru
      _
    %v61 = vld [vmem:[%s0] sm:$0xff]
    %v62 = vld [vmem:[%s0 + $0x8] sm:$0xff]
    %v63 = vld [vmem:[%s0 + $0x10] sm:$0xff]
    %v64 = vld [vmem:[%s0 + $0x18] sm:$0xff]
    %v65 = vld [vmem:[%s0 + $0x20] sm:$0xff]
    %v66 = vld [vmem:[%s0 + $0x28] sm:$0xff]
    %v67 = vld [vmem:[%s0 + $0x30] sm:$0xff]
    %v68 = vld [vmem:[%s0 + $0x38] sm:$0xff]
    %v69 = vld [vmem:[%s0 + $0x40] sm:$0xff]
    %v70 = vld [vmem:[%s0 + $0x48] sm:$0xff]
    %v71 = vld [vmem:[%s0 + $0x50] sm:$0xff]
    %v72 = vld [vmem:[%s0 + $0x58] sm:$0xff]
    %v73 = vld [vmem:[%s0 + $0x60] sm:$0xff]
    %v74 = vld [vmem:[%s0 + $0x68] sm:$0xff]
    %v75 = vld [vmem:[%s0 + $0x70] sm:$0xff]
    %v76 = vld [vmem:[%s0 + $0x78] sm:$0xff]
    %v77 = vld [vmem:[%s0 + $0x80] sm:$0xff]
    %v78 = vld [vmem:[%s0 + $0x88] sm:$0xff]
    %v79 = vld [vmem:[%s0 + $0x90] sm:$0xff]
    %v80 = vld [vmem:[%s0 + $0x98] sm:$0xff]
    %v81 = vld [vmem:[%s0 + $0xa0] sm:$0xff]
    %v82 = vld [vmem:[%s0 + $0xa8] sm:$0xff]
    %v83 = vld [vmem:[%s0 + $0xb0] sm:$0xff]
    %v84 = vld [vmem:[%s0 + $0xb8] sm:$0xff]
    %v85 = vld [vmem:[%s0 + $0xc0] sm:$0xff]
    %v86 = vld [vmem:[%s0 + $0xc8] sm:$0xff]
    %v87 = vld [vmem:[%s0 + $0xd0] sm:$0xff]
    %v88 = vld [vmem:[%s0 + $0xd8] sm:$0xff]
    %v89 = vld [vmem:[%s0 + $0xe0] sm:$0xff]
    %v90 = vld [vmem:[%s0 + $0xe8] sm:$0xff]
    %v91 = vld [vmem:[%s0 + $0xf0] sm:$0xff]
    %v92 = vld [vmem:[%s0 + $0xf8] sm:$0xff]
    %v93 = vld [vmem:[%s0 + $0x100] sm:$0xff]
    %v94 = vld [vmem:[%s0 + $0x108] sm:$0xff]
    %v95 = vld [vmem:[%s0 + $0x110] sm:$0xff]
    %v96 = vld [vmem:[%s0 + $0x118] sm:$0xff]
    %v97 = vld [vmem:[%s0 + $0x120] sm:$0xff]
    %v98 = vld [vmem:[%s0 + $0x128] sm:$0xff]
    %v99 = vld [vmem:[%s0 + $0x130] sm:$0xff]
    %v100 = vld [vmem:[%s0 + $0x138] sm:$0xff]
    %v101 = vld [vmem:[%s0 + $0x140] sm:$0xff]
    %v102 = vld [vmem:[%s0 + $0x148] sm:$0xff]
    %v103 = vld [vmem:[%s0 + $0x150] sm:$0xff]
    %v104 = vld [vmem:[%s0 + $0x158] sm:$0xff]
    %v105 = vld [vmem:[%s0 + $0x160] sm:$0xff]
    %v106 = vld [vmem:[%s0 + $0x168] sm:$0xff]
    %v107 = vld [vmem:[%s0 + $0x170] sm:$0xff]
    %v108 = vld [vmem:[%s0 + $0x178] sm:$0xff]
    %v109 = vld [vmem:[%s0 + $0x180] sm:$0xff]
    %v110 = vld [vmem:[%s0 + $0x188] sm:$0xff]
    %v111 = vld [vmem:[#allocation3] sm:$0xff]
    %v112 = vld [vmem:[#allocation3 + $0x8] sm:$0xff]
    %v113 = vld [vmem:[#allocation3 + $0x10] sm:$0xff]
    %v114 = vld [vmem:[#allocation3 + $0x18] sm:$0xff]
    %v115 = vld [vmem:[#allocation3 + $0x20] sm:$0xff]
    %v116 = vld [vmem:[#allocation3 + $0x28] sm:$0xff]
    %v117 = vld [vmem:[#allocation3 + $0x30] sm:$0xff]
    %v118 = vld [vmem:[#allocation3 + $0x38] sm:$0xff]
    %v119 = vld [vmem:[#allocation3 + $0x40] sm:$0xff]
    %v120 = vld [vmem:[#allocation3 + $0x48] sm:$0xff]
    %v121 = vld [vmem:[#allocation3 + $0x50] sm:$0xff]
    %v122 = vld [vmem:[#allocation3 + $0x58] sm:$0xff]
    %v123 = vld [vmem:[#allocation3 + $0x60] sm:$0xff]
    %v124 = vld [vmem:[#allocation3 + $0x68] sm:$0xff]
    %v125 = vld [vmem:[#allocation3 + $0x70] sm:$0xff]
    %v126 = vld [vmem:[#allocation3 + $0x78] sm:$0xff]
    %v127 = vld [vmem:[#allocation3 + $0x80] sm:$0xff]
    %v128 = vld [vmem:[#allocation3 + $0x88] sm:$0xff]
    %v129 = vld [vmem:[#allocation3 + $0x90] sm:$0xff]
    %v130 = vld [vmem:[#allocation3 + $0x98] sm:$0xff]
    %v131 = vld [vmem:[#allocation3 + $0xa0] sm:$0xff]
    %v132 = vld [vmem:[#allocation3 + $0xa8] sm:$0xff]
    %v133 = vld [vmem:[#allocation3 + $0xb0] sm:$0xff]
    %v134 = vld [vmem:[#allocation3 + $0xb8] sm:$0xff]
    %v135 = vld [vmem:[#allocation3 + $0xc0] sm:$0xff]
    %v136 = vld [vmem:[#allocation3 + $0xc8] sm:$0xff]
    %v137 = vld [vmem:[#allocation3 + $0xd0] sm:$0xff]
    %v138 = vld [vmem:[#allocation3 + $0xd8] sm:$0xff]
    %v139 = vld [vmem:[#allocation3 + $0xe0] sm:$0xff]
    %v140 = vld [vmem:[#allocation3 + $0xe8] sm:$0xff]
    %v141 = vld [vmem:[#allocation3 + $0xf0] sm:$0xff]
    %v142 = vld [vmem:[#allocation3 + $0xf8] sm:$0xff]
    %v143 = vld [vmem:[#allocation3 + $0x100] sm:$0xff]
    %v144 = vld [vmem:[#allocation3 + $0x108] sm:$0xff]
    %v145 = vld [vmem:[#allocation3 + $0x110] sm:$0xff]
    %v146 = vld [vmem:[#allocation3 + $0x118] sm:$0xff]
    %v147 = vld [vmem:[#allocation3 + $0x120] sm:$0xff]
    %v148 = vld [vmem:[#allocation3 + $0x128] sm:$0xff]
    %v149 = vld [vmem:[#allocation3 + $0x130] sm:$0xff]
    %v150 = vld [vmem:[#allocation3 + $0x138] sm:$0xff]
    %v151 = vld [vmem:[#allocation3 + $0x140] sm:$0xff]
    %v152 = vld [vmem:[#allocation3 + $0x148] sm:$0xff]
    %v153 = vld [vmem:[#allocation3 + $0x150] sm:$0xff]
    %v154 = vld [vmem:[#allocation3 + $0x158] sm:$0xff]
    %v155 = vld [vmem:[#allocation3 + $0x160] sm:$0xff]
    %v156 = vld [vmem:[#allocation3 + $0x168] sm:$0xff]
    %v157 = vld [vmem:[#allocation3 + $0x170] sm:$0xff]
    %v158 = vld [vmem:[#allocation3 + $0x178] sm:$0xff]
    %v159 = vld [vmem:[#allocation3 + $0x180] sm:$0xff]
    %v160 = vld [vmem:[#allocation3 + $0x188] sm:$0xff]
    %v161 = vld [vmem:[#allocation3 + $0x190] sm:$0xff]
    %v162 = vld [vmem:[#allocation3 + $0x198] sm:$0xff]
    %v163 = vld [vmem:[#allocation3 + $0x1a0] sm:$0xff]
    %v164 = vld [vmem:[#allocation3 + $0x1a8] sm:$0xff]
    %v165 = vld [vmem:[#allocation3 + $0x1b0] sm:$0xff]
    %v166 = vld [vmem:[#allocation3 + $0x1b8] sm:$0xff]
    %v167 = vld [vmem:[#allocation3 + $0x1c0] sm:$0xff]
    %v168 = vld [vmem:[#allocation3 + $0x1c8] sm:$0xff]
    %v169 = vld [vmem:[#allocation3 + $0x1d0] sm:$0xff]
    %v170 = vld [vmem:[#allocation3 + $0x1d8] sm:$0xff]
    %v171 = vld [vmem:[#allocation3 + $0x1e0] sm:$0xff]
    %v172 = vld [vmem:[#allocation3 + $0x1e8] sm:$0xff]
    %v173 = vld [vmem:[#allocation3 + $0x1f0] sm:$0xff]
    %v174 = vld [vmem:[#allocation3 + $0x1f8] sm:$0xff]
    %v175 = vld [vmem:[#allocation3 + $0x200] sm:$0xff]
    %v176 = vld [vmem:[#allocation3 + $0x208] sm:$0xff]
    %v177 = vld [vmem:[#allocation3 + $0x210] sm:$0xff]
    %v178 = vld [vmem:[#allocation3 + $0x218] sm:$0xff]
    %v179 = vld [vmem:[#allocation3 + $0x220] sm:$0xff]
    %v180 = vld [vmem:[#allocation3 + $0x228] sm:$0xff]
    %v181 = vld [vmem:[#allocation3 + $0x230] sm:$0xff]
    %v182 = vld [vmem:[#allocation3 + $0x238] sm:$0xff]
    %v183 = vld [vmem:[#allocation3 + $0x240] sm:$0xff]
    %v184 = vld [vmem:[#allocation3 + $0x248] sm:$0xff]
    %v185 = vld [vmem:[#allocation3 + $0x250] sm:$0xff]
    %v186 = vld [vmem:[#allocation3 + $0x258] sm:$0xff]
    %v187 = vld [vmem:[#allocation3 + $0x260] sm:$0xff]
    %v188 = vld [vmem:[#allocation3 + $0x268] sm:$0xff]
    %v189 = vld [vmem:[#allocation3 + $0x270] sm:$0xff]
    %v190 = vld [vmem:[#allocation3 + $0x278] sm:$0xff]
    %v191 = vld [vmem:[#allocation3 + $0x280] sm:$0xff]
    %v192 = vld [vmem:[#allocation3 + $0x288] sm:$0xff]
    %v193 = vld [vmem:[#allocation3 + $0x290] sm:$0xff]
    %v194 = vld [vmem:[#allocation3 + $0x298] sm:$0xff]
    %v195 = vld [vmem:[#allocation3 + $0x2a0] sm:$0xff]
    %v196 = vld [vmem:[#allocation3 + $0x2a8] sm:$0xff]
    %v197 = vld [vmem:[#allocation3 + $0x2b0] sm:$0xff]
    %v198 = vld [vmem:[#allocation3 + $0x2b8] sm:$0xff]
    %v199 = vld [vmem:[#allocation3 + $0x2c0] sm:$0xff]
    %v200 = vld [vmem:[#allocation3 + $0x2c8] sm:$0xff]
    %v201 = vld [vmem:[#allocation3 + $0x2d0] sm:$0xff]
    %v202 = vld [vmem:[#allocation3 + $0x2d8] sm:$0xff]
    %v203 = vld [vmem:[#allocation3 + $0x2e0] sm:$0xff]
    %v204 = vld [vmem:[#allocation3 + $0x2e8] sm:$0xff]
    %v205 = vld [vmem:[#allocation3 + $0x2f0] sm:$0xff]
    %v206 = vld [vmem:[#allocation3 + $0x2f8] sm:$0xff]
    %v207 = vld [vmem:[#allocation3 + $0x300] sm:$0xff]
    %v208 = vld [vmem:[#allocation3 + $0x308] sm:$0xff]
    %v209 = vld [vmem:[#allocation3 + $0x310] sm:$0xff]
    %v210 = vld [vmem:[#allocation3 + $0x318] sm:$0xff]
    %v211 = vld [vmem:[#allocation3 + $0x320] sm:$0xff]
    %v212 = vld [vmem:[#allocation3 + $0x328] sm:$0xff]
    %v213 = vld [vmem:[#allocation3 + $0x330] sm:$0xff]
    %v214 = vld [vmem:[#allocation3 + $0x338] sm:$0xff]
    %v215 = vld [vmem:[#allocation3 + $0x340] sm:$0xff]
    %v216 = vld [vmem:[#allocation3 + $0x348] sm:$0xff]
    %v217 = vld [vmem:[#allocation3 + $0x350] sm:$0xff]
    %v218 = vld [vmem:[#allocation3 + $0x358] sm:$0xff]
    %v219 = vld [vmem:[#allocation3 + $0x360] sm:$0xff]
    %v220 = vld [vmem:[#allocation3 + $0x368] sm:$0xff]
    %v221 = vld [vmem:[#allocation3 + $0x370] sm:$0xff]
    %v222 = vld [vmem:[#allocation3 + $0x378] sm:$0xff]
    %v223 = vld [vmem:[#allocation3 + $0x380] sm:$0xff]
    %v224 = vld [vmem:[#allocation3 + $0x388] sm:$0xff]
    %v225 = vld [vmem:[#allocation3 + $0x390] sm:$0xff]
    %v226 = vld [vmem:[#allocation3 + $0x398] sm:$0xff]
    %v227 = vld [vmem:[#allocation3 + $0x3a0] sm:$0xff]
    %v228 = vld [vmem:[#allocation3 + $0x3a8] sm:$0xff]
    %v229 = vld [vmem:[#allocation3 + $0x3b0] sm:$0xff]
    %v230 = vld [vmem:[#allocation3 + $0x3b8] sm:$0xff]
    %v231 = vld [vmem:[#allocation3 + $0x3c0] sm:$0xff]
    %v232 = vld [vmem:[#allocation3 + $0x3c8] sm:$0xff]
    %v233 = vld [vmem:[#allocation3 + $0x3d0] sm:$0xff]
    %v234 = vld [vmem:[#allocation3 + $0x3d8] sm:$0xff]
    %v235 = vld [vmem:[#allocation3 + $0x3e0] sm:$0xff]
    %v236 = vld [vmem:[#allocation3 + $0x3e8] sm:$0xff]
    %v237 = vld [vmem:[#allocation3 + $0x3f0] sm:$0xff]
    %v238 = vld [vmem:[#allocation3 + $0x3f8] sm:$0xff]
    %v239 = vld [vmem:[#allocation3 + $0x400] sm:$0xff]
    %v240 = vld [vmem:[#allocation3 + $0x408] sm:$0xff]
    %v241 = vld [vmem:[#allocation3 + $0x410] sm:$0xff]
    %v242 = vld [vmem:[#allocation3 + $0x418] sm:$0xff]
    %v243 = vld [vmem:[#allocation3 + $0x420] sm:$0xff]
    %v244 = vld [vmem:[#allocation3 + $0x428] sm:$0xff]
    %v245 = vld [vmem:[#allocation3 + $0x430] sm:$0xff]
    %v246 = vld [vmem:[#allocation3 + $0x438] sm:$0xff]
    %v247 = vld [vmem:[#allocation3 + $0x440] sm:$0xff]
    %v248 = vld [vmem:[#allocation3 + $0x448] sm:$0xff]
    %v249 = vld [vmem:[#allocation3 + $0x450] sm:$0xff]
    %v250 = vld [vmem:[#allocation3 + $0x458] sm:$0xff]
    %v251 = vld [vmem:[#allocation3 + $0x460] sm:$0xff]
    %v252 = vld [vmem:[#allocation3 + $0x468] sm:$0xff]
    %v253 = vld [vmem:[#allocation3 + $0x470] sm:$0xff]
    %v254 = vld [vmem:[#allocation3 + $0x478] sm:$0xff]
    %v255 = vld [vmem:[#allocation3 + $0x480] sm:$0xff]
    %v256 = vld [vmem:[#allocation3 + $0x488] sm:$0xff]
    %v257 = vld [vmem:[#allocation3 + $0x490] sm:$0xff]
    %v258 = vld [vmem:[#allocation3 + $0x498] sm:$0xff]
    %v259 = vld [vmem:[#allocation3 + $0x4a0] sm:$0xff]
    %v260 = vld [vmem:[#allocation3 + $0x4a8] sm:$0xff]
    %v261 = vld [vmem:[#allocation3 + $0x4b0] sm:$0xff]
    %v262 = vld [vmem:[#allocation3 + $0x4b8] sm:$0xff]
    %v263 = vld [vmem:[#allocation3 + $0x4c0] sm:$0xff]
    %v264 = vld [vmem:[#allocation3 + $0x4c8] sm:$0xff]
    %v265 = vld [vmem:[#allocation3 + $0x4d0] sm:$0xff]
    %v266 = vld [vmem:[#allocation3 + $0x4d8] sm:$0xff]
    %v267 = vld [vmem:[#allocation3 + $0x4e0] sm:$0xff]
    %v268 = vld [vmem:[#allocation3 + $0x4e8] sm:$0xff]
    %v269 = vld [vmem:[#allocation3 + $0x4f0] sm:$0xff]
    %v270 = vld [vmem:[#allocation3 + $0x4f8] sm:$0xff]
    %v271 = vld [vmem:[#allocation3 + $0x500] sm:$0xff]
    %v272 = vld [vmem:[#allocation3 + $0x508] sm:$0xff]
    %v273 = vld [vmem:[#allocation3 + $0x510] sm:$0xff]
    %v274 = vld [vmem:[#allocation3 + $0x518] sm:$0xff]
    %v275 = vld [vmem:[#allocation3 + $0x520] sm:$0xff]
    %v276 = vld [vmem:[#allocation3 + $0x528] sm:$0xff]
    %v277 = vld [vmem:[#allocation3 + $0x530] sm:$0xff]
    %v278 = vld [vmem:[#allocation3 + $0x538] sm:$0xff]
    %v279 = vld [vmem:[#allocation3 + $0x540] sm:$0xff]
    %v280 = vld [vmem:[#allocation3 + $0x548] sm:$0xff]
    %v281 = vld [vmem:[#allocation3 + $0x550] sm:$0xff]
    %v282 = vld [vmem:[#allocation3 + $0x558] sm:$0xff]
    %v283 = vld [vmem:[#allocation3 + $0x560] sm:$0xff]
    %v284 = vld [vmem:[#allocation3 + $0x568] sm:$0xff]
    %v285 = vld [vmem:[#allocation3 + $0x570] sm:$0xff]
    %v286 = vld [vmem:[#allocation3 + $0x578] sm:$0xff]
    %v287 = vld [vmem:[#allocation3 + $0x580] sm:$0xff]
    %v288 = vld [vmem:[#allocation3 + $0x588] sm:$0xff]
    %v289 = vld [vmem:[#allocation3 + $0x590] sm:$0xff]
    %v290 = vld [vmem:[#allocation3 + $0x598] sm:$0xff]
    %v291 = vld [vmem:[#allocation3 + $0x5a0] sm:$0xff]
    %v292 = vld [vmem:[#allocation3 + $0x5a8] sm:$0xff]
    %v293 = vld [vmem:[#allocation3 + $0x5b0] sm:$0xff]
    %v294 = vld [vmem:[#allocation3 + $0x5b8] sm:$0xff]
    %v295 = vld [vmem:[#allocation3 + $0x5c0] sm:$0xff]
    %v296 = vld [vmem:[#allocation3 + $0x5c8] sm:$0xff]
    %v297 = vld [vmem:[#allocation3 + $0x5d0] sm:$0xff]
    %v298 = vld [vmem:[#allocation3 + $0x5d8] sm:$0xff]
    %v299 = vld [vmem:[#allocation3 + $0x5e0] sm:$0xff]
    %v300 = vld [vmem:[#allocation3 + $0x5e8] sm:$0xff]
    %v301 = vld [vmem:[#allocation3 + $0x5f0] sm:$0xff]
    %v302 = vld [vmem:[#allocation3 + $0x5f8] sm:$0xff]
    %v303 = vld [vmem:[#allocation3 + $0x600] sm:$0xff]
    %v304 = vld [vmem:[#allocation3 + $0x608] sm:$0xff]
    %v305 = vld [vmem:[#allocation3 + $0x610] sm:$0xff]
    %v306 = vld [vmem:[#allocation3 + $0x618] sm:$0xff]
    %v307 = vld [vmem:[#allocation3 + $0x620] sm:$0xff]
    %v308 = vld [vmem:[#allocation3 + $0x628] sm:$0xff]
    %v309 = vld [vmem:[#allocation3 + $0x630] sm:$0xff]
    %v310 = vld [vmem:[#allocation3 + $0x638] sm:$0xff]
    %v311 = vld [vmem:[#allocation3 + $0x640] sm:$0xff]
    %v312 = vld [vmem:[#allocation3 + $0x648] sm:$0xff]
    %v313 = vld [vmem:[#allocation3 + $0x650] sm:$0xff]
    %v314 = vld [vmem:[#allocation3 + $0x658] sm:$0xff]
    %v315 = vld [vmem:[#allocation3 + $0x660] sm:$0xff]
    %v316 = vld [vmem:[#allocation3 + $0x668] sm:$0xff]
    %v317 = vld [vmem:[#allocation3 + $0x670] sm:$0xff]
    %v318 = vld [vmem:[#allocation3 + $0x678] sm:$0xff]
    %v319 = vld [vmem:[#allocation3 + $0x680] sm:$0xff]
    %v320 = vld [vmem:[#allocation3 + $0x688] sm:$0xff]
    %v321 = vld [vmem:[#allocation3 + $0x690] sm:$0xff]
    %v322 = vld [vmem:[#allocation3 + $0x698] sm:$0xff]
    %v323 = vld [vmem:[#allocation3 + $0x6a0] sm:$0xff]
    %v324 = vld [vmem:[#allocation3 + $0x6a8] sm:$0xff]
    %v325 = vld [vmem:[#allocation3 + $0x6b0] sm:$0xff]
    %v326 = vld [vmem:[#allocation3 + $0x6b8] sm:$0xff]
    %v327 = vld [vmem:[#allocation3 + $0x6c0] sm:$0xff]
    %v328 = vld [vmem:[#allocation3 + $0x6c8] sm:$0xff]
    %v329 = vld [vmem:[#allocation3 + $0x6d0] sm:$0xff]
    %v330 = vld [vmem:[#allocation3 + $0x6d8] sm:$0xff]
    %v331 = vld [vmem:[#allocation3 + $0x6e0] sm:$0xff]
    %v332 = vld [vmem:[#allocation3 + $0x6e8] sm:$0xff]
    %v333 = vld [vmem:[#allocation3 + $0x6f0] sm:$0xff]
    %v334 = vld [vmem:[#allocation3 + $0x6f8] sm:$0xff]
    %v335 = vld [vmem:[#allocation3 + $0x700] sm:$0xff]
    %v336 = vld [vmem:[#allocation3 + $0x708] sm:$0xff]
    %v337 = vld [vmem:[#allocation3 + $0x710] sm:$0xff]
    %v338 = vld [vmem:[#allocation3 + $0x718] sm:$0xff]
    %v339 = vld [vmem:[#allocation3 + $0x720] sm:$0xff]
    %v340 = vld [vmem:[#allocation3 + $0x728] sm:$0xff]
    %v341 = vld [vmem:[#allocation3 + $0x730] sm:$0xff]
    %v342 = vld [vmem:[#allocation3 + $0x738] sm:$0xff]
    %v343 = vld [vmem:[#allocation3 + $0x740] sm:$0xff]
    %v344 = vld [vmem:[#allocation3 + $0x748] sm:$0xff]
    %v345 = vld [vmem:[#allocation3 + $0x750] sm:$0xff]
    %v346 = vld [vmem:[#allocation3 + $0x758] sm:$0xff]
    %v347 = vld [vmem:[#allocation3 + $0x760] sm:$0xff]
    %v348 = vld [vmem:[#allocation3 + $0x768] sm:$0xff]
    %v349 = vld [vmem:[#allocation3 + $0x770] sm:$0xff]
    %v350 = vld [vmem:[#allocation3 + $0x778] sm:$0xff]
    %v351 = vld [vmem:[#allocation3 + $0x780] sm:$0xff]
    %v352 = vld [vmem:[#allocation3 + $0x788] sm:$0xff]
    %v353 = vld [vmem:[#allocation3 + $0x790] sm:$0xff]
    %v354 = vld [vmem:[#allocation3 + $0x798] sm:$0xff]
    %v355 = vld [vmem:[#allocation3 + $0x7a0] sm:$0xff]
    %v356 = vld [vmem:[#allocation3 + $0x7a8] sm:$0xff]
    %v357 = vld [vmem:[#allocation3 + $0x7b0] sm:$0xff]
    %v358 = vld [vmem:[#allocation3 + $0x7b8] sm:$0xff]
    %v359 = vld [vmem:[#allocation3 + $0x7c0] sm:$0xff]
    %v360 = vld [vmem:[#allocation3 + $0x7c8] sm:$0xff]
    %v361 = vld [vmem:[#allocation3 + $0x7d0] sm:$0xff]
    %v362 = vld [vmem:[#allocation3 + $0x7d8] sm:$0xff]
    %v363 = vld [vmem:[#allocation3 + $0x7e0] sm:$0xff]
    %v364 = vld [vmem:[#allocation3 + $0x7e8] sm:$0xff]
    %v365 = vld [vmem:[#allocation3 + $0x7f0] sm:$0xff]
    %v366 = vld [vmem:[#allocation3 + $0x7f8] sm:$0xff]
    %v367 = vld [vmem:[#allocation3 + $0x800] sm:$0xff]
    %v368 = vld [vmem:[#allocation3 + $0x808] sm:$0xff]
    %v369 = vld [vmem:[#allocation3 + $0x810] sm:$0xff]
    %v370 = vld [vmem:[#allocation3 + $0x818] sm:$0xff]
    %v371 = vld [vmem:[#allocation3 + $0x820] sm:$0xff]
    %v372 = vld [vmem:[#allocation3 + $0x828] sm:$0xff]
    %v373 = vld [vmem:[#allocation3 + $0x830] sm:$0xff]
    %v374 = vld [vmem:[#allocation3 + $0x838] sm:$0xff]
    %v375 = vld [vmem:[#allocation3 + $0x840] sm:$0xff]
    %v376 = vld [vmem:[#allocation3 + $0x848] sm:$0xff]
    %v377 = vld [vmem:[#allocation3 + $0x850] sm:$0xff]
    %v378 = vld [vmem:[#allocation3 + $0x858] sm:$0xff]
    %v379 = vld [vmem:[#allocation3 + $0x860] sm:$0xff]
    %v380 = vld [vmem:[#allocation3 + $0x868] sm:$0xff]
    %v381 = vld [vmem:[#allocation3 + $0x870] sm:$0xff]
    %v382 = vld [vmem:[#allocation3 + $0x878] sm:$0xff]
    %v383 = vld [vmem:[#allocation3 + $0x880] sm:$0xff]
    %v384 = vld [vmem:[#allocation3 + $0x888] sm:$0xff]
    %v385 = vld [vmem:[#allocation3 + $0x890] sm:$0xff]
    %v386 = vld [vmem:[#allocation3 + $0x898] sm:$0xff]
    %v387 = vld [vmem:[#allocation3 + $0x8a0] sm:$0xff]
    %v388 = vld [vmem:[#allocation3 + $0x8a8] sm:$0xff]
    %v389 = vld [vmem:[#allocation3 + $0x8b0] sm:$0xff]
    %v390 = vld [vmem:[#allocation3 + $0x8b8] sm:$0xff]
    %v391 = vld [vmem:[#allocation3 + $0x8c0] sm:$0xff]
    %v392 = vld [vmem:[#allocation3 + $0x8c8] sm:$0xff]
    %v393 = vld [vmem:[#allocation3 + $0x8d0] sm:$0xff]
    %v394 = vld [vmem:[#allocation3 + $0x8d8] sm:$0xff]
    %v395 = vld [vmem:[#allocation3 + $0x8e0] sm:$0xff]
    %v396 = vld [vmem:[#allocation3 + $0x8e8] sm:$0xff]
    %v397 = vld [vmem:[#allocation3 + $0x8f0] sm:$0xff]
    %v398 = vld [vmem:[#allocation3 + $0x8f8] sm:$0xff]
    %v399 = vld [vmem:[#allocation3 + $0x900] sm:$0xff]
    %v400 = vld [vmem:[#allocation3 + $0x908] sm:$0xff]
    %v401 = vld [vmem:[#allocation3 + $0x910] sm:$0xff]
    %v402 = vld [vmem:[#allocation3 + $0x918] sm:$0xff]
    %v403 = vld [vmem:[#allocation3 + $0x920] sm:$0xff]
    %v404 = vld [vmem:[#allocation3 + $0x928] sm:$0xff]
    %v405 = vld [vmem:[#allocation3 + $0x930] sm:$0xff]
    %v406 = vld [vmem:[#allocation3 + $0x938] sm:$0xff]
    %v407 = vld [vmem:[#allocation3 + $0x940] sm:$0xff]
    %v408 = vld [vmem:[#allocation3 + $0x948] sm:$0xff]
    %v409 = vld [vmem:[#allocation3 + $0x950] sm:$0xff]
    %v410 = vld [vmem:[#allocation3 + $0x958] sm:$0xff]
    %v411 = vld [vmem:[#allocation3 + $0x960] sm:$0xff]
    %v412 = vld [vmem:[#allocation3 + $0x968] sm:$0xff]
    %v413 = vld [vmem:[#allocation3 + $0x970] sm:$0xff]
    %v414 = vld [vmem:[#allocation3 + $0x978] sm:$0xff]
    %v415 = vld [vmem:[#allocation3 + $0x980] sm:$0xff]
    %v416 = vld [vmem:[#allocation3 + $0x988] sm:$0xff]
    %v417 = vld [vmem:[#allocation3 + $0x990] sm:$0xff]
    %v418 = vld [vmem:[#allocation3 + $0x998] sm:$0xff]
    %v419 = vld [vmem:[#allocation3 + $0x9a0] sm:$0xff]
    %v420 = vld [vmem:[#allocation3 + $0x9a8] sm:$0xff]
    %v421 = vld [vmem:[#allocation3 + $0x9b0] sm:$0xff]
    %v422 = vld [vmem:[#allocation3 + $0x9b8] sm:$0xff]
    %v423 = vld [vmem:[#allocation3 + $0x9c0] sm:$0xff]
    %v424 = vld [vmem:[#allocation3 + $0x9c8] sm:$0xff]
    %v425 = vld [vmem:[#allocation3 + $0x9d0] sm:$0xff]
    %v426 = vld [vmem:[#allocation3 + $0x9d8] sm:$0xff]
    %v427 = vld [vmem:[#allocation3 + $0x9e0] sm:$0xff]
    %v428 = vld [vmem:[#allocation3 + $0x9e8] sm:$0xff]
    %v429 = vld [vmem:[#allocation3 + $0x9f0] sm:$0xff]
    %v430 = vld [vmem:[#allocation3 + $0x9f8] sm:$0xff]
    %v431 = vld [vmem:[#allocation3 + $0xa00] sm:$0xff]
    %v432 = vld [vmem:[#allocation3 + $0xa08] sm:$0xff]
    %v433 = vld [vmem:[#allocation3 + $0xa10] sm:$0xff]
    %v434 = vld [vmem:[#allocation3 + $0xa18] sm:$0xff]
    %v435 = vld [vmem:[#allocation3 + $0xa20] sm:$0xff]
    %v436 = vld [vmem:[#allocation3 + $0xa28] sm:$0xff]
    %v437 = vld [vmem:[#allocation3 + $0xa30] sm:$0xff]
    %v438 = vld [vmem:[#allocation3 + $0xa38] sm:$0xff]
    %v439 = vld [vmem:[#allocation3 + $0xa40] sm:$0xff]
    %v440 = vld [vmem:[#allocation3 + $0xa48] sm:$0xff]
    %v441 = vld [vmem:[#allocation3 + $0xa50] sm:$0xff]
    %v442 = vld [vmem:[#allocation3 + $0xa58] sm:$0xff]
    %v443 = vld [vmem:[#allocation3 + $0xa60] sm:$0xff]
    %v444 = vld [vmem:[#allocation3 + $0xa68] sm:$0xff]
    %v445 = vld [vmem:[#allocation3 + $0xa70] sm:$0xff]
    %v446 = vld [vmem:[#allocation3 + $0xa78] sm:$0xff]
    %v447 = vld [vmem:[#allocation3 + $0xa80] sm:$0xff]
    %v448 = vld [vmem:[#allocation3 + $0xa88] sm:$0xff]
    %v449 = vld [vmem:[#allocation3 + $0xa90] sm:$0xff]
    %v450 = vld [vmem:[#allocation3 + $0xa98] sm:$0xff]
    %v451 = vld [vmem:[#allocation3 + $0xaa0] sm:$0xff]
    %v452 = vld [vmem:[#allocation3 + $0xaa8] sm:$0xff]
    %v453 = vld [vmem:[#allocation3 + $0xab0] sm:$0xff]
    %v454 = vld [vmem:[#allocation3 + $0xab8] sm:$0xff]
    %v455 = vld [vmem:[#allocation3 + $0xac0] sm:$0xff]
    %v456 = vld [vmem:[#allocation3 + $0xac8] sm:$0xff]
    %v457 = vld [vmem:[#allocation3 + $0xad0] sm:$0xff]
    %v458 = vld [vmem:[#allocation3 + $0xad8] sm:$0xff]
    %v459 = vld [vmem:[#allocation3 + $0xae0] sm:$0xff]
    %v460 = vld [vmem:[#allocation3 + $0xae8] sm:$0xff]
    %v461 = vld [vmem:[#allocation3 + $0xaf0] sm:$0xff]
    %v462 = vld [vmem:[#allocation3 + $0xaf8] sm:$0xff]
    %v463 = vld [vmem:[#allocation3 + $0xb00] sm:$0xff]
    %v464 = vld [vmem:[#allocation3 + $0xb08] sm:$0xff]
    %v465 = vld [vmem:[#allocation3 + $0xb10] sm:$0xff]
    %v466 = vld [vmem:[#allocation3 + $0xb18] sm:$0xff]
    %v467 = vld [vmem:[#allocation3 + $0xb20] sm:$0xff]
    %v468 = vld [vmem:[#allocation3 + $0xb28] sm:$0xff]
    %v469 = vld [vmem:[#allocation3 + $0xb30] sm:$0xff]
    %v470 = vld [vmem:[#allocation3 + $0xb38] sm:$0xff]
    %v471 = vld [vmem:[#allocation3 + $0xb40] sm:$0xff]
    %v472 = vld [vmem:[#allocation3 + $0xb48] sm:$0xff]
    %v473 = vld [vmem:[#allocation3 + $0xb50] sm:$0xff]
    %v474 = vld [vmem:[#allocation3 + $0xb58] sm:$0xff]
    %v475 = vld [vmem:[#allocation3 + $0xb60] sm:$0xff]
    %v476 = vld [vmem:[#allocation3 + $0xb68] sm:$0xff]
    %v477 = vld [vmem:[#allocation3 + $0xb70] sm:$0xff]
    %v478 = vld [vmem:[#allocation3 + $0xb78] sm:$0xff]
    %v479 = vld [vmem:[#allocation3 + $0xb80] sm:$0xff]
    %v480 = vld [vmem:[#allocation3 + $0xb88] sm:$0xff]
    %v481 = vld [vmem:[#allocation3 + $0xb90] sm:$0xff]
    %v482 = vld [vmem:[#allocation3 + $0xb98] sm:$0xff]
    %v483 = vld [vmem:[#allocation3 + $0xba0] sm:$0xff]
    %v484 = vld [vmem:[#allocation3 + $0xba8] sm:$0xff]
    %v485 = vld [vmem:[#allocation3 + $0xbb0] sm:$0xff]
    %v486 = vld [vmem:[#allocation3 + $0xbb8] sm:$0xff]
    %v487 = vld [vmem:[#allocation3 + $0xbc0] sm:$0xff]
    %v488 = vld [vmem:[#allocation3 + $0xbc8] sm:$0xff]
    %v489 = vld [vmem:[#allocation3 + $0xbd0] sm:$0xff]
    %v490 = vld [vmem:[#allocation3 + $0xbd8] sm:$0xff]
    %v491 = vld [vmem:[#allocation3 + $0xbe0] sm:$0xff]
    %v492 = vld [vmem:[#allocation3 + $0xbe8] sm:$0xff]
    %v493 = vld [vmem:[#allocation3 + $0xbf0] sm:$0xff]
    %v494 = vld [vmem:[#allocation3 + $0xbf8] sm:$0xff]
    %v495 = vld [vmem:[#allocation3 + $0xc00] sm:$0xff]
    %v496 = vld [vmem:[#allocation3 + $0xc08] sm:$0xff]
    %v497 = vld [vmem:[#allocation3 + $0xc10] sm:$0xff]
    %v498 = vld [vmem:[#allocation3 + $0xc18] sm:$0xff]
    %v499 = vld [vmem:[#allocation3 + $0xc20] sm:$0xff]
    %v500 = vld [vmem:[#allocation3 + $0xc28] sm:$0xff]
    %v501 = vld [vmem:[#allocation3 + $0xc30] sm:$0xff]
    %v502 = vld [vmem:[#allocation3 + $0xc38] sm:$0xff]
    %v503 = vld [vmem:[#allocation3 + $0xc40] sm:$0xff]
    %v504 = vld [vmem:[#allocation3 + $0xc48] sm:$0xff]
    %v505 = vld [vmem:[#allocation3 + $0xc50] sm:$0xff]
    %v506 = vld [vmem:[#allocation3 + $0xc58] sm:$0xff]
    %v507 = vld [vmem:[#allocation3 + $0xc60] sm:$0xff]
    %v508 = vld [vmem:[#allocation3 + $0xc68] sm:$0xff]
    %v509 = vld [vmem:[#allocation3 + $0xc70] sm:$0xff]
    %v510 = vld [vmem:[#allocation3 + $0xc78] sm:$0xff]
    %v511 = vld [vmem:[#allocation3 + $0xc80] sm:$0xff]
    %v512 = vld [vmem:[#allocation3 + $0xc88] sm:$0xff]
    %v513 = vld [vmem:[#allocation3 + $0xc90] sm:$0xff]
    %v514 = vld [vmem:[#allocation3 + $0xc98] sm:$0xff]
    %v515 = vld [vmem:[#allocation3 + $0xca0] sm:$0xff]
    %v516 = vld [vmem:[#allocation3 + $0xca8] sm:$0xff]
    %v517 = vld [vmem:[#allocation3 + $0xcb0] sm:$0xff]
    %v518 = vld [vmem:[#allocation3 + $0xcb8] sm:$0xff]
    %v519 = vld [vmem:[#allocation3 + $0xcc0] sm:$0xff]
    %v520 = vld [vmem:[#allocation3 + $0xcc8] sm:$0xff]
    %v521 = vld [vmem:[#allocation3 + $0xcd0] sm:$0xff]
    %v522 = vld [vmem:[#allocation3 + $0xcd8] sm:$0xff]
    %v523 = vld [vmem:[#allocation3 + $0xce0] sm:$0xff]
    %v524 = vld [vmem:[#allocation3 + $0xce8] sm:$0xff]
    %v525 = vld [vmem:[#allocation3 + $0xcf0] sm:$0xff]
    %v526 = vld [vmem:[#allocation3 + $0xcf8] sm:$0xff]
    %v527 = vld [vmem:[#allocation3 + $0xd00] sm:$0xff]
    %v528 = vld [vmem:[#allocation3 + $0xd08] sm:$0xff]
    %v529 = vld [vmem:[#allocation3 + $0xd10] sm:$0xff]
    %v530 = vld [vmem:[#allocation3 + $0xd18] sm:$0xff]
    %v531 = vld [vmem:[#allocation3 + $0xd20] sm:$0xff]
    %v532 = vld [vmem:[#allocation3 + $0xd28] sm:$0xff]
    %v533 = vld [vmem:[#allocation3 + $0xd30] sm:$0xff]
    %v534 = vld [vmem:[#allocation3 + $0xd38] sm:$0xff]
    %v535 = vld [vmem:[#allocation3 + $0xd40] sm:$0xff]
    %v536 = vld [vmem:[#allocation3 + $0xd48] sm:$0xff]
    %v537 = vld [vmem:[#allocation3 + $0xd50] sm:$0xff]
    %v538 = vld [vmem:[#allocation3 + $0xd58] sm:$0xff]
    %v539 = vld [vmem:[#allocation3 + $0xd60] sm:$0xff]
    %v540 = vld [vmem:[#allocation3 + $0xd68] sm:$0xff]
    %v541 = vld [vmem:[#allocation3 + $0xd70] sm:$0xff]
    %v542 = vld [vmem:[#allocation3 + $0xd78] sm:$0xff]
    %v543 = vld [vmem:[#allocation3 + $0xd80] sm:$0xff]
    %v544 = vld [vmem:[#allocation3 + $0xd88] sm:$0xff]
    %v545 = vld [vmem:[#allocation3 + $0xd90] sm:$0xff]
    %v546 = vld [vmem:[#allocation3 + $0xd98] sm:$0xff]
    %v547 = vld [vmem:[#allocation3 + $0xda0] sm:$0xff]
    %v548 = vld [vmem:[#allocation3 + $0xda8] sm:$0xff]
    %v549 = vld [vmem:[#allocation3 + $0xdb0] sm:$0xff]
    %v550 = vld [vmem:[#allocation3 + $0xdb8] sm:$0xff]
    %v551 = vld [vmem:[#allocation3 + $0xdc0] sm:$0xff]
    %v552 = vld [vmem:[#allocation3 + $0xdc8] sm:$0xff]
    %v553 = vld [vmem:[#allocation3 + $0xdd0] sm:$0xff]
    %v554 = vld [vmem:[#allocation3 + $0xdd8] sm:$0xff]
    %v555 = vld [vmem:[#allocation3 + $0xde0] sm:$0xff]
    %v556 = vld [vmem:[#allocation3 + $0xde8] sm:$0xff]
    %v557 = vld [vmem:[#allocation3 + $0xdf0] sm:$0xff]
    %v558 = vld [vmem:[#allocation3 + $0xdf8] sm:$0xff]
    %v559 = vld [vmem:[#allocation3 + $0xe00] sm:$0xff]
    %v560 = vld [vmem:[#allocation3 + $0xe08] sm:$0xff]
    %v561 = vld [vmem:[#allocation3 + $0xe10] sm:$0xff]
    %v562 = vld [vmem:[#allocation3 + $0xe18] sm:$0xff]
    %v563 = vld [vmem:[#allocation3 + $0xe20] sm:$0xff]
    %v564 = vld [vmem:[#allocation3 + $0xe28] sm:$0xff]
    %v565 = vld [vmem:[#allocation3 + $0xe30] sm:$0xff]
    %v566 = vld [vmem:[#allocation3 + $0xe38] sm:$0xff]
    %v567 = vld [vmem:[#allocation3 + $0xe40] sm:$0xff]
    %v568 = vld [vmem:[#allocation3 + $0xe48] sm:$0xff]
    %v569 = vld [vmem:[#allocation3 + $0xe50] sm:$0xff]
    %v570 = vld [vmem:[#allocation3 + $0xe58] sm:$0xff]
    %v571 = vld [vmem:[#allocation3 + $0xe60] sm:$0xff]
    %v572 = vld [vmem:[#allocation3 + $0xe68] sm:$0xff]
    %v573 = vld [vmem:[#allocation3 + $0xe70] sm:$0xff]
    %v574 = vld [vmem:[#allocation3 + $0xe78] sm:$0xff]
    %v575 = vld [vmem:[#allocation3 + $0xe80] sm:$0xff]
    %v576 = vld [vmem:[#allocation3 + $0xe88] sm:$0xff]
    %v577 = vld [vmem:[#allocation3 + $0xe90] sm:$0xff]
    %v578 = vld [vmem:[#allocation3 + $0xe98] sm:$0xff]
    %v579 = vld [vmem:[#allocation3 + $0xea0] sm:$0xff]
    %v580 = vld [vmem:[#allocation3 + $0xea8] sm:$0xff]
    %v581 = vld [vmem:[#allocation3 + $0xeb0] sm:$0xff]
    %v582 = vld [vmem:[#allocation3 + $0xeb8] sm:$0xff]
    %v583 = vld [vmem:[#allocation3 + $0xec0] sm:$0xff]
    %v584 = vld [vmem:[#allocation3 + $0xec8] sm:$0xff]
    %v585 = vld [vmem:[#allocation3 + $0xed0] sm:$0xff]
    %v586 = vld [vmem:[#allocation3 + $0xed8] sm:$0xff]
    %v587 = vld [vmem:[#allocation3 + $0xee0] sm:$0xff]
    %v588 = vld [vmem:[#allocation3 + $0xee8] sm:$0xff]
    %v589 = vld [vmem:[#allocation3 + $0xef0] sm:$0xff]
    %v590 = vld [vmem:[#allocation3 + $0xef8] sm:$0xff]
    %v591 = vld [vmem:[#allocation3 + $0xf00] sm:$0xff]
    %v592 = vld [vmem:[#allocation3 + $0xf08] sm:$0xff]
    %v593 = vld [vmem:[#allocation3 + $0xf10] sm:$0xff]
    %v594 = vld [vmem:[#allocation3 + $0xf18] sm:$0xff]
    %v595 = vld [vmem:[#allocation3 + $0xf20] sm:$0xff]
    %v596 = vld [vmem:[#allocation3 + $0xf28] sm:$0xff]
    %v597 = vld [vmem:[#allocation3 + $0xf30] sm:$0xff]
    %v598 = vld [vmem:[#allocation3 + $0xf38] sm:$0xff]
    %v599 = vld [vmem:[#allocation3 + $0xf40] sm:$0xff]
    %v600 = vld [vmem:[#allocation3 + $0xf48] sm:$0xff]
    %v601 = vld [vmem:[#allocation3 + $0xf50] sm:$0xff]
    %v602 = vld [vmem:[#allocation3 + $0xf58] sm:$0xff]
    %v603 = vld [vmem:[#allocation3 + $0xf60] sm:$0xff]
    %v604 = vld [vmem:[#allocation3 + $0xf68] sm:$0xff]
    %v605 = vld [vmem:[#allocation3 + $0xf70] sm:$0xff]
    %v606 = vld [vmem:[#allocation3 + $0xf78] sm:$0xff]
    %v607 = vld [vmem:[#allocation3 + $0xf80] sm:$0xff]
    %v608 = vld [vmem:[#allocation3 + $0xf88] sm:$0xff]
    %v609 = vld [vmem:[#allocation3 + $0xf90] sm:$0xff]
    %v610 = vld [vmem:[#allocation3 + $0xf98] sm:$0xff]
    %v611 = vld [vmem:[#allocation3 + $0xfa0] sm:$0xff]
    %v612 = vld [vmem:[#allocation3 + $0xfa8] sm:$0xff]
    %v613 = vld [vmem:[#allocation3 + $0xfb0] sm:$0xff]
    %v614 = vld [vmem:[#allocation3 + $0xfb8] sm:$0xff]
    %v615 = vld [vmem:[#allocation3 + $0xfc0] sm:$0xff]
    %v616 = vld [vmem:[#allocation3 + $0xfc8] sm:$0xff]
    %v617 = vld [vmem:[#allocation3 + $0xfd0] sm:$0xff]
    %v618 = vld [vmem:[#allocation3 + $0xfd8] sm:$0xff]
    %v619 = vld [vmem:[#allocation3 + $0xfe0] sm:$0xff]
    %v620 = vld [vmem:[#allocation3 + $0xfe8] sm:$0xff]
    %v621 = vld [vmem:[#allocation3 + $0xff0] sm:$0xff]
    %v622 = vld [vmem:[#allocation3 + $0xff8] sm:$0xff]
    %v623 = vld [vmem:[#allocation3 + $0x1000] sm:$0xff]
    %v624 = vld [vmem:[#allocation3 + $0x1008] sm:$0xff]
    %v625 = vld [vmem:[#allocation3 + $0x1010] sm:$0xff]
    %v626 = vld [vmem:[#allocation3 + $0x1018] sm:$0xff]
    %v627 = vld [vmem:[#allocation3 + $0x1020] sm:$0xff]
    %v628 = vld [vmem:[#allocation3 + $0x1028] sm:$0xff]
    %v629 = vld [vmem:[#allocation3 + $0x1030] sm:$0xff]
    %v630 = vld [vmem:[#allocation3 + $0x1038] sm:$0xff]
    %v631 = vld [vmem:[#allocation3 + $0x1040] sm:$0xff]
    %v632 = vld [vmem:[#allocation3 + $0x1048] sm:$0xff]
    %v633 = vld [vmem:[#allocation3 + $0x1050] sm:$0xff]
    %v634 = vld [vmem:[#allocation3 + $0x1058] sm:$0xff]
    %v635 = vld [vmem:[#allocation3 + $0x1060] sm:$0xff]
    %v636 = vld [vmem:[#allocation3 + $0x1068] sm:$0xff]
    %v637 = vld [vmem:[#allocation3 + $0x1070] sm:$0xff]
    %v638 = vld [vmem:[#allocation3 + $0x1078] sm:$0xff]
    %v639 = vld [vmem:[#allocation3 + $0x1080] sm:$0xff]
    %v640 = vld [vmem:[#allocation3 + $0x1088] sm:$0xff]
    %v641 = vld [vmem:[#allocation3 + $0x1090] sm:$0xff]
    %v642 = vld [vmem:[#allocation3 + $0x1098] sm:$0xff]
    %v643 = vld [vmem:[#allocation3 + $0x10a0] sm:$0xff]
    %v644 = vld [vmem:[#allocation3 + $0x10a8] sm:$0xff]
    %v645 = vld [vmem:[#allocation3 + $0x10b0] sm:$0xff]
    %v646 = vld [vmem:[#allocation3 + $0x10b8] sm:$0xff]
    %v647 = vld [vmem:[#allocation3 + $0x10c0] sm:$0xff]
    %v648 = vld [vmem:[#allocation3 + $0x10c8] sm:$0xff]
    %v649 = vld [vmem:[#allocation3 + $0x10d0] sm:$0xff]
    %v650 = vld [vmem:[#allocation3 + $0x10d8] sm:$0xff]
    %v651 = vld [vmem:[#allocation3 + $0x10e0] sm:$0xff]
    %v652 = vld [vmem:[#allocation3 + $0x10e8] sm:$0xff]
    %v653 = vld [vmem:[#allocation3 + $0x10f0] sm:$0xff]
    %v654 = vld [vmem:[#allocation3 + $0x10f8] sm:$0xff]
    %v655 = vld [vmem:[#allocation3 + $0x1100] sm:$0xff]
    %v656 = vld [vmem:[#allocation3 + $0x1108] sm:$0xff]
    %v657 = vld [vmem:[#allocation3 + $0x1110] sm:$0xff]
    %v658 = vld [vmem:[#allocation3 + $0x1118] sm:$0xff]
    %v659 = vld [vmem:[#allocation3 + $0x1120] sm:$0xff]
    %v660 = vld [vmem:[#allocation3 + $0x1128] sm:$0xff]
    %v661 = vld [vmem:[#allocation3 + $0x1130] sm:$0xff]
    %v662 = vld [vmem:[#allocation3 + $0x1138] sm:$0xff]
    %v663 = vld [vmem:[#allocation3 + $0x1140] sm:$0xff]
    %v664 = vld [vmem:[#allocation3 + $0x1148] sm:$0xff]
    %v665 = vld [vmem:[#allocation3 + $0x1150] sm:$0xff]
    %v666 = vld [vmem:[#allocation3 + $0x1158] sm:$0xff]
    %v667 = vld [vmem:[#allocation3 + $0x1160] sm:$0xff]
    %v668 = vld [vmem:[#allocation3 + $0x1168] sm:$0xff]
    %v669 = vld [vmem:[#allocation3 + $0x1170] sm:$0xff]
    %v670 = vld [vmem:[#allocation3 + $0x1178] sm:$0xff]
    %v671 = vld [vmem:[#allocation3 + $0x1180] sm:$0xff]
    %v672 = vld [vmem:[#allocation3 + $0x1188] sm:$0xff]
    %v673 = vld [vmem:[#allocation3 + $0x1190] sm:$0xff]
    %v674 = vld [vmem:[#allocation3 + $0x1198] sm:$0xff]
    %v675 = vld [vmem:[#allocation3 + $0x11a0] sm:$0xff]
    %v676 = vld [vmem:[#allocation3 + $0x11a8] sm:$0xff]
    %v677 = vld [vmem:[#allocation3 + $0x11b0] sm:$0xff]
    %v678 = vld [vmem:[#allocation3 + $0x11b8] sm:$0xff]
    %v679 = vld [vmem:[#allocation3 + $0x11c0] sm:$0xff]
    %v680 = vld [vmem:[#allocation3 + $0x11c8] sm:$0xff]
    %v681 = vld [vmem:[#allocation3 + $0x11d0] sm:$0xff]
    %v682 = vld [vmem:[#allocation3 + $0x11d8] sm:$0xff]
    %v683 = vld [vmem:[#allocation3 + $0x11e0] sm:$0xff]
    %v684 = vld [vmem:[#allocation3 + $0x11e8] sm:$0xff]
    %v685 = vld [vmem:[#allocation3 + $0x11f0] sm:$0xff]
    %v686 = vld [vmem:[#allocation3 + $0x11f8] sm:$0xff]
    %v687 = vld [vmem:[#allocation3 + $0x1200] sm:$0xff]
    %v688 = vld [vmem:[#allocation3 + $0x1208] sm:$0xff]
    %v689 = vld [vmem:[#allocation3 + $0x1210] sm:$0xff]
    %v690 = vld [vmem:[#allocation3 + $0x1218] sm:$0xff]
    %v691 = vld [vmem:[#allocation3 + $0x1220] sm:$0xff]
    %v692 = vld [vmem:[#allocation3 + $0x1228] sm:$0xff]
    %v693 = vld [vmem:[#allocation3 + $0x1230] sm:$0xff]
    %v694 = vld [vmem:[#allocation3 + $0x1238] sm:$0xff]
    %v695 = vld [vmem:[#allocation3 + $0x1240] sm:$0xff]
    %v696 = vld [vmem:[#allocation3 + $0x1248] sm:$0xff]
    %v697 = vld [vmem:[#allocation3 + $0x1250] sm:$0xff]
    %v698 = vld [vmem:[#allocation3 + $0x1258] sm:$0xff]
    %v699 = vld [vmem:[#allocation3 + $0x1260] sm:$0xff]
    %v700 = vld [vmem:[#allocation3 + $0x1268] sm:$0xff]
    %v701 = vld [vmem:[#allocation3 + $0x1270] sm:$0xff]
    %v702 = vld [vmem:[#allocation3 + $0x1278] sm:$0xff]
    %v703 = vld [vmem:[#allocation3 + $0x1280] sm:$0xff]
    %v704 = vld [vmem:[#allocation3 + $0x1288] sm:$0xff]
    %v705 = vld [vmem:[#allocation3 + $0x1290] sm:$0xff]
    %v706 = vld [vmem:[#allocation3 + $0x1298] sm:$0xff]
    %v707 = vld [vmem:[#allocation3 + $0x12a0] sm:$0xff]
    %v708 = vld [vmem:[#allocation3 + $0x12a8] sm:$0xff]
    %v709 = vld [vmem:[#allocation3 + $0x12b0] sm:$0xff]
    %v710 = vld [vmem:[#allocation3 + $0x12b8] sm:$0xff]
    %v711 = vld [vmem:[#allocation3 + $0x12c0] sm:$0xff]
    %v712 = vld [vmem:[#allocation3 + $0x12c8] sm:$0xff]
    %v713 = vld [vmem:[#allocation3 + $0x12d0] sm:$0xff]
    %v714 = vld [vmem:[#allocation3 + $0x12d8] sm:$0xff]
    %v715 = vld [vmem:[#allocation3 + $0x12e0] sm:$0xff]
    %v716 = vld [vmem:[#allocation3 + $0x12e8] sm:$0xff]
    %v717 = vld [vmem:[#allocation3 + $0x12f0] sm:$0xff]
    %v718 = vld [vmem:[#allocation3 + $0x12f8] sm:$0xff]
    %v719 = vld [vmem:[#allocation3 + $0x1300] sm:$0xff]
    %v720 = vld [vmem:[#allocation3 + $0x1308] sm:$0xff]
    %v721 = vld [vmem:[#allocation3 + $0x1310] sm:$0xff]
    %v722 = vld [vmem:[#allocation3 + $0x1318] sm:$0xff]
    %v723 = vld [vmem:[#allocation3 + $0x1320] sm:$0xff]
    %v724 = vld [vmem:[#allocation3 + $0x1328] sm:$0xff]
    %v725 = vld [vmem:[#allocation3 + $0x1330] sm:$0xff]
    %v726 = vld [vmem:[#allocation3 + $0x1338] sm:$0xff]
    %v727 = vld [vmem:[#allocation3 + $0x1340] sm:$0xff]
    %v728 = vld [vmem:[#allocation3 + $0x1348] sm:$0xff]
    %v729 = vld [vmem:[#allocation3 + $0x1350] sm:$0xff]
    %v730 = vld [vmem:[#allocation3 + $0x1358] sm:$0xff]
    %v731 = vld [vmem:[#allocation3 + $0x1360] sm:$0xff]
    %v732 = vld [vmem:[#allocation3 + $0x1368] sm:$0xff]
    %v733 = vld [vmem:[#allocation3 + $0x1370] sm:$0xff]
    %v734 = vld [vmem:[#allocation3 + $0x1378] sm:$0xff]
    %v735 = vld [vmem:[#allocation3 + $0x1380] sm:$0xff]
    %v736 = vld [vmem:[#allocation3 + $0x1388] sm:$0xff]
    %v737 = vld [vmem:[#allocation3 + $0x1390] sm:$0xff]
    %v738 = vld [vmem:[#allocation3 + $0x1398] sm:$0xff]
    %v739 = vld [vmem:[#allocation3 + $0x13a0] sm:$0xff]
    %v740 = vld [vmem:[#allocation3 + $0x13a8] sm:$0xff]
    %v741 = vld [vmem:[#allocation3 + $0x13b0] sm:$0xff]
    %v742 = vld [vmem:[#allocation3 + $0x13b8] sm:$0xff]
    %v743 = vld [vmem:[#allocation3 + $0x13c0] sm:$0xff]
    %v744 = vld [vmem:[#allocation3 + $0x13c8] sm:$0xff]
    %v745 = vld [vmem:[#allocation3 + $0x13d0] sm:$0xff]
    %v746 = vld [vmem:[#allocation3 + $0x13d8] sm:$0xff]
    %v747 = vld [vmem:[#allocation3 + $0x13e0] sm:$0xff]
    %v748 = vld [vmem:[#allocation3 + $0x13e8] sm:$0xff]
    %v749 = vld [vmem:[#allocation3 + $0x13f0] sm:$0xff]
    %v750 = vld [vmem:[#allocation3 + $0x13f8] sm:$0xff]
    %v751 = vld [vmem:[#allocation3 + $0x1400] sm:$0xff]
    %v752 = vld [vmem:[#allocation3 + $0x1408] sm:$0xff]
    %v753 = vld [vmem:[#allocation3 + $0x1410] sm:$0xff]
    %v754 = vld [vmem:[#allocation3 + $0x1418] sm:$0xff]
    %v755 = vld [vmem:[#allocation3 + $0x1420] sm:$0xff]
    %v756 = vld [vmem:[#allocation3 + $0x1428] sm:$0xff]
    %v757 = vld [vmem:[#allocation3 + $0x1430] sm:$0xff]
    %v758 = vld [vmem:[#allocation3 + $0x1438] sm:$0xff]
    %v759 = vld [vmem:[#allocation3 + $0x1440] sm:$0xff]
    %v760 = vld [vmem:[#allocation3 + $0x1448] sm:$0xff]
    %v761 = vld [vmem:[#allocation3 + $0x1450] sm:$0xff]
    %v762 = vld [vmem:[#allocation3 + $0x1458] sm:$0xff]
    %v763 = vld [vmem:[#allocation3 + $0x1460] sm:$0xff]
    %v764 = vld [vmem:[#allocation3 + $0x1468] sm:$0xff]
    %v765 = vld [vmem:[#allocation3 + $0x1470] sm:$0xff]
    %v766 = vld [vmem:[#allocation3 + $0x1478] sm:$0xff]
    %v767 = vld [vmem:[#allocation3 + $0x1480] sm:$0xff]
    %v768 = vld [vmem:[#allocation3 + $0x1488] sm:$0xff]
    %v769 = vld [vmem:[#allocation3 + $0x1490] sm:$0xff]
    %v770 = vld [vmem:[#allocation3 + $0x1498] sm:$0xff]
    %v771 = vld [vmem:[#allocation3 + $0x14a0] sm:$0xff]
    %v772 = vld [vmem:[#allocation3 + $0x14a8] sm:$0xff]
    %v773 = vld [vmem:[#allocation3 + $0x14b0] sm:$0xff]
    %v774 = vld [vmem:[#allocation3 + $0x14b8] sm:$0xff]
    %v775 = vld [vmem:[#allocation3 + $0x14c0] sm:$0xff]
    %v776 = vld [vmem:[#allocation3 + $0x14c8] sm:$0xff]
    %v777 = vld [vmem:[#allocation3 + $0x14d0] sm:$0xff]
    %v778 = vld [vmem:[#allocation3 + $0x14d8] sm:$0xff]
    %v779 = vld [vmem:[#allocation3 + $0x14e0] sm:$0xff]
    %v780 = vld [vmem:[#allocation3 + $0x14e8] sm:$0xff]
    %v781 = vld [vmem:[#allocation3 + $0x14f0] sm:$0xff]
    %v782 = vld [vmem:[#allocation3 + $0x14f8] sm:$0xff]
    %v783 = vld [vmem:[#allocation3 + $0x1500] sm:$0xff]
    %v784 = vld [vmem:[#allocation3 + $0x1508] sm:$0xff]
    %v785 = vld [vmem:[#allocation3 + $0x1510] sm:$0xff]
    %v786 = vld [vmem:[#allocation3 + $0x1518] sm:$0xff]
    %v787 = vld [vmem:[#allocation3 + $0x1520] sm:$0xff]
    %v788 = vld [vmem:[#allocation3 + $0x1528] sm:$0xff]
    %v789 = vld [vmem:[#allocation3 + $0x1530] sm:$0xff]
    %v790 = vld [vmem:[#allocation3 + $0x1538] sm:$0xff]
    %v791 = vld [vmem:[#allocation3 + $0x1540] sm:$0xff]
    %v792 = vld [vmem:[#allocation3 + $0x1548] sm:$0xff]
    %v793 = vld [vmem:[#allocation3 + $0x1550] sm:$0xff]
    %v794 = vld [vmem:[#allocation3 + $0x1558] sm:$0xff]
    %v795 = vld [vmem:[#allocation3 + $0x1560] sm:$0xff]
    %v796 = vld [vmem:[#allocation3 + $0x1568] sm:$0xff]
    %v797 = vld [vmem:[#allocation3 + $0x1570] sm:$0xff]
    %v798 = vld [vmem:[#allocation3 + $0x1578] sm:$0xff]
    %v799 = vld [vmem:[#allocation3 + $0x1580] sm:$0xff]
    %v800 = vld [vmem:[#allocation3 + $0x1588] sm:$0xff]
    %v801 = vld [vmem:[#allocation3 + $0x1590] sm:$0xff]
    %v802 = vld [vmem:[#allocation3 + $0x1598] sm:$0xff]
    %v803 = vld [vmem:[#allocation3 + $0x15a0] sm:$0xff]
    %v804 = vld [vmem:[#allocation3 + $0x15a8] sm:$0xff]
    %v805 = vld [vmem:[#allocation3 + $0x15b0] sm:$0xff]
    %v806 = vld [vmem:[#allocation3 + $0x15b8] sm:$0xff]
    %v807 = vld [vmem:[#allocation3 + $0x15c0] sm:$0xff]
    %v808 = vld [vmem:[#allocation3 + $0x15c8] sm:$0xff]
    %v809 = vld [vmem:[#allocation3 + $0x15d0] sm:$0xff]
    %v810 = vld [vmem:[#allocation3 + $0x15d8] sm:$0xff]
    %v811 = vld [vmem:[#allocation3 + $0x15e0] sm:$0xff]
    %v812 = vld [vmem:[#allocation3 + $0x15e8] sm:$0xff]
    %v813 = vld [vmem:[#allocation3 + $0x15f0] sm:$0xff]
    %v814 = vld [vmem:[#allocation3 + $0x15f8] sm:$0xff]
    %v815 = vld [vmem:[#allocation3 + $0x1600] sm:$0xff]
    %v816 = vld [vmem:[#allocation3 + $0x1608] sm:$0xff]
    %v817 = vld [vmem:[#allocation3 + $0x1610] sm:$0xff]
    %v818 = vld [vmem:[#allocation3 + $0x1618] sm:$0xff]
    %v819 = vld [vmem:[#allocation3 + $0x1620] sm:$0xff]
    %v820 = vld [vmem:[#allocation3 + $0x1628] sm:$0xff]
    %v821 = vld [vmem:[#allocation3 + $0x1630] sm:$0xff]
    %v822 = vld [vmem:[#allocation3 + $0x1638] sm:$0xff]
    %v823 = vld [vmem:[#allocation3 + $0x1640] sm:$0xff]
    %v824 = vld [vmem:[#allocation3 + $0x1648] sm:$0xff]
    %v825 = vld [vmem:[#allocation3 + $0x1650] sm:$0xff]
    %v826 = vld [vmem:[#allocation3 + $0x1658] sm:$0xff]
    %v827 = vld [vmem:[#allocation3 + $0x1660] sm:$0xff]
    %v828 = vld [vmem:[#allocation3 + $0x1668] sm:$0xff]
    %v829 = vld [vmem:[#allocation3 + $0x1670] sm:$0xff]
    %v830 = vld [vmem:[#allocation3 + $0x1678] sm:$0xff]
    %v831 = vld [vmem:[#allocation3 + $0x1680] sm:$0xff]
    %v832 = vld [vmem:[#allocation3 + $0x1688] sm:$0xff]
    %v833 = vld [vmem:[#allocation3 + $0x1690] sm:$0xff]
    %v834 = vld [vmem:[#allocation3 + $0x1698] sm:$0xff]
    %v835 = vld [vmem:[#allocation3 + $0x16a0] sm:$0xff]
    %v836 = vld [vmem:[#allocation3 + $0x16a8] sm:$0xff]
    %v837 = vld [vmem:[#allocation3 + $0x16b0] sm:$0xff]
    %v838 = vld [vmem:[#allocation3 + $0x16b8] sm:$0xff]
    %v839 = vld [vmem:[#allocation3 + $0x16c0] sm:$0xff]
    %v840 = vld [vmem:[#allocation3 + $0x16c8] sm:$0xff]
    %v841 = vld [vmem:[#allocation3 + $0x16d0] sm:$0xff]
    %v842 = vld [vmem:[#allocation3 + $0x16d8] sm:$0xff]
    %v843 = vld [vmem:[#allocation3 + $0x16e0] sm:$0xff]
    %v844 = vld [vmem:[#allocation3 + $0x16e8] sm:$0xff]
    %v845 = vld [vmem:[#allocation3 + $0x16f0] sm:$0xff]
    %v846 = vld [vmem:[#allocation3 + $0x16f8] sm:$0xff]
    %v847 = vld [vmem:[#allocation3 + $0x1700] sm:$0xff]
    %v848 = vld [vmem:[#allocation3 + $0x1708] sm:$0xff]
    %v849 = vld [vmem:[#allocation3 + $0x1710] sm:$0xff]
    %v850 = vld [vmem:[#allocation3 + $0x1718] sm:$0xff]
    %v851 = vld [vmem:[#allocation3 + $0x1720] sm:$0xff]
    %v852 = vld [vmem:[#allocation3 + $0x1728] sm:$0xff]
    %v853 = vld [vmem:[#allocation3 + $0x1730] sm:$0xff]
    %v854 = vld [vmem:[#allocation3 + $0x1738] sm:$0xff]
    %v855 = vld [vmem:[#allocation3 + $0x1740] sm:$0xff]
    %v856 = vld [vmem:[#allocation3 + $0x1748] sm:$0xff]
    %v857 = vld [vmem:[#allocation3 + $0x1750] sm:$0xff]
    %v858 = vld [vmem:[#allocation3 + $0x1758] sm:$0xff]
    %v859 = vld [vmem:[#allocation3 + $0x1760] sm:$0xff]
    %v860 = vld [vmem:[#allocation3 + $0x1768] sm:$0xff]
    %v861 = vld [vmem:[#allocation3 + $0x1770] sm:$0xff]
    %v862 = vld [vmem:[#allocation3 + $0x1778] sm:$0xff]
    %v863 = vld [vmem:[#allocation3 + $0x1780] sm:$0xff]
    %v864 = vld [vmem:[#allocation3 + $0x1788] sm:$0xff]
    %v865 = vld [vmem:[#allocation3 + $0x1790] sm:$0xff]
    %v866 = vld [vmem:[#allocation3 + $0x1798] sm:$0xff]
    %v867 = vld [vmem:[#allocation3 + $0x17a0] sm:$0xff]
    %v868 = vld [vmem:[#allocation3 + $0x17a8] sm:$0xff]
    %v869 = vld [vmem:[#allocation3 + $0x17b0] sm:$0xff]
    %v870 = vld [vmem:[#allocation3 + $0x17b8] sm:$0xff]
    %v871 = vld [vmem:[#allocation3 + $0x17c0] sm:$0xff]
    %v872 = vld [vmem:[#allocation3 + $0x17c8] sm:$0xff]
    %v873 = vld [vmem:[#allocation3 + $0x17d0] sm:$0xff]
    %v874 = vld [vmem:[#allocation3 + $0x17d8] sm:$0xff]
    %v875 = vld [vmem:[#allocation3 + $0x17e0] sm:$0xff]
    %v876 = vld [vmem:[#allocation3 + $0x17e8] sm:$0xff]
    %v877 = vld [vmem:[#allocation3 + $0x17f0] sm:$0xff]
    %v878 = vld [vmem:[#allocation3 + $0x17f8] sm:$0xff]
    %v879 = vld [vmem:[#allocation3 + $0x1800] sm:$0xff]
    %v880 = vld [vmem:[#allocation3 + $0x1808] sm:$0xff]
    %v881 = vld [vmem:[#allocation3 + $0x1810] sm:$0xff]
    %v882 = vld [vmem:[#allocation3 + $0x1818] sm:$0xff]
    %v883 = vld [vmem:[#allocation3 + $0x1820] sm:$0xff]
    %v884 = vld [vmem:[#allocation3 + $0x1828] sm:$0xff]
    %v885 = vld [vmem:[#allocation3 + $0x1830] sm:$0xff]
    %v886 = vld [vmem:[#allocation3 + $0x1838] sm:$0xff]
    %v887 = vld [vmem:[#allocation3 + $0x1840] sm:$0xff]
    %v888 = vld [vmem:[#allocation3 + $0x1848] sm:$0xff]
    %v889 = vld [vmem:[#allocation3 + $0x1850] sm:$0xff]
    %v890 = vld [vmem:[#allocation3 + $0x1858] sm:$0xff]
    %v891 = vld [vmem:[#allocation3 + $0x1860] sm:$0xff]
    %v892 = vld [vmem:[#allocation3 + $0x1868] sm:$0xff]
    %v893 = vld [vmem:[#allocation3 + $0x1870] sm:$0xff]
    %v894 = vld [vmem:[#allocation3 + $0x1878] sm:$0xff]
    %v895 = vld [vmem:[#allocation3 + $0x1880] sm:$0xff]
    %v896 = vld [vmem:[#allocation3 + $0x1888] sm:$0xff]
    %v897 = vld [vmem:[#allocation3 + $0x1890] sm:$0xff]
    %v898 = vld [vmem:[#allocation3 + $0x1898] sm:$0xff]
    %v899 = vld [vmem:[#allocation3 + $0x18a0] sm:$0xff]
    %v900 = vld [vmem:[#allocation3 + $0x18a8] sm:$0xff]
    %v901 = vld [vmem:[#allocation3 + $0x18b0] sm:$0xff]
    %v902 = vld [vmem:[#allocation3 + $0x18b8] sm:$0xff]
    %v903 = vld [vmem:[#allocation3 + $0x18c0] sm:$0xff]
    %v904 = vld [vmem:[#allocation3 + $0x18c8] sm:$0xff]
    %v905 = vld [vmem:[#allocation3 + $0x18d0] sm:$0xff]
    %v906 = vld [vmem:[#allocation3 + $0x18d8] sm:$0xff]
    %v907 = vld [vmem:[#allocation3 + $0x18e0] sm:$0xff]
    %v908 = vld [vmem:[#allocation3 + $0x18e8] sm:$0xff]
    %v909 = vld [vmem:[#allocation3 + $0x18f0] sm:$0xff]
    %v910 = vld [vmem:[#allocation3 + $0x18f8] sm:$0xff]
    %v911 = vld [vmem:[#allocation5] sm:$0x1]
    %v913 = vlaneseq
    %v914 = vshrl.u32 %v913, 7
    %v915 = vsub.s32 0, %v914
    %v916 = vrot.slane %v911, %v915
    %918 = vmatprep.subr.mxu0 0.0
    %919 = vmatpush1.msra.mxu0 %v111
    %920 = vmatprep.subr.mxu0 0.0
    %921 = vmatpush1.msra.mxu0 %v112
    %922 = vmatprep.subr.mxu0 0.0
    %923 = vmatpush1.msra.mxu0 %v113
    %924 = vmatprep.subr.mxu0 0.0
    %925 = vmatpush1.msra.mxu0 %v114
    %926 = vmatprep.subr.mxu0 0.0
    %927 = vmatpush1.msra.mxu0 %v115
    %928 = vmatprep.subr.mxu0 0.0
    %929 = vmatpush1.msra.mxu0 %v116
    %930 = vmatprep.subr.mxu0 0.0
    %931 = vmatpush1.msra.mxu0 %v117
    %932 = vmatprep.subr.mxu0 0.0
    %933 = vmatpush1.msra.mxu0 %v118
    %934 = vmatprep.subr.mxu0 0.0
    %935 = vmatpush1.msra.mxu0 %v119
    %936 = vmatprep.subr.mxu0 0.0
    %937 = vmatpush1.msra.mxu0 %v120
    %938 = vmatprep.subr.mxu0 0.0
    %939 = vmatpush1.msra.mxu0 %v121
    %940 = vmatprep.subr.mxu0 0.0
    %941 = vmatpush1.msra.mxu0 %v122
    %942 = vmatprep.subr.mxu0 0.0
    %943 = vmatpush1.msra.mxu0 %v123
    %944 = vmatprep.subr.mxu0 0.0
    %945 = vmatpush1.msra.mxu0 %v124
    %946 = vmatprep.subr.mxu0 0.0
    %947 = vmatpush1.msra.mxu0 %v125
    %948 = vmatprep.subr.mxu0 0.0
    %949 = vmatpush1.msra.mxu0 %v126
    %950 = vmatprep.subr.mxu0 0.0
    %951 = vmatpush1.msra.mxu0 %v127
    %952 = vmatprep.subr.mxu0 0.0
    %953 = vmatpush1.msra.mxu0 %v128
    %954 = vmatprep.subr.mxu0 0.0
    %955 = vmatpush1.msra.mxu0 %v129
    %956 = vmatprep.subr.mxu0 0.0
    %957 = vmatpush1.msra.mxu0 %v130
    %958 = vmatprep.subr.mxu0 0.0
    %959 = vmatpush1.msra.mxu0 %v131
    %960 = vmatprep.subr.mxu0 0.0
    %961 = vmatpush1.msra.mxu0 %v132
    %962 = vmatprep.subr.mxu0 0.0
    %963 = vmatpush1.msra.mxu0 %v133
    %964 = vmatprep.subr.mxu0 0.0
    %965 = vmatpush1.msra.mxu0 %v134
    %966 = vmatprep.subr.mxu0 0.0
    %967 = vmatpush1.msra.mxu0 %v135
    %968 = vmatprep.subr.mxu0 0.0
    %969 = vmatpush1.msra.mxu0 %v136
    %970 = vmatprep.subr.mxu0 0.0
    %971 = vmatpush1.msra.mxu0 %v137
    %972 = vmatprep.subr.mxu0 0.0
    %973 = vmatpush1.msra.mxu0 %v138
    %974 = vmatprep.subr.mxu0 0.0
    %975 = vmatpush1.msra.mxu0 %v139
    %976 = vmatprep.subr.mxu0 0.0
    %977 = vmatpush1.msra.mxu0 %v140
    %978 = vmatprep.subr.mxu0 0.0
    %979 = vmatpush1.msra.mxu0 %v141
    %980 = vmatprep.subr.mxu0 0.0
    %981 = vmatpush1.msra.mxu0 %v142
    %982 = vmatprep.mubr.f32.mxu0 %v62
    %983 = vmatmul.mubr.f32.gmra.mrb[0].mxu0 %v61
    %v984 = vpop.f32.mrb[0].mxu0
    %v985 = vadd.f32 %v916, %v984
    %v986 = vpop.f32.mrb[0].mxu0
    %987 = vdwg.mxu0
    %988 = vmatprep.subr.mxu0 0.0
    %989 = vmatpush1.msra.mxu0 %v143
    %990 = vmatprep.subr.mxu0 0.0
    %991 = vmatpush1.msra.mxu0 %v144
    %992 = vmatprep.subr.mxu0 0.0
    %993 = vmatpush1.msra.mxu0 %v145
    %994 = vmatprep.subr.mxu0 0.0
    %995 = vmatpush1.msra.mxu0 %v146
    %996 = vmatprep.subr.mxu0 0.0
    %997 = vmatpush1.msra.mxu0 %v147
    %998 = vmatprep.subr.mxu0 0.0
    %999 = vmatpush1.msra.mxu0 %v148
    %1000 = vmatprep.subr.mxu0 0.0
    %1001 = vmatpush1.msra.mxu0 %v149
    %1002 = vmatprep.subr.mxu0 0.0
    %1003 = vmatpush1.msra.mxu0 %v150
    %1004 = vmatprep.subr.mxu0 0.0
    %1005 = vmatpush1.msra.mxu0 %v151
    %1006 = vmatprep.subr.mxu0 0.0
    %1007 = vmatpush1.msra.mxu0 %v152
    %1008 = vmatprep.subr.mxu0 0.0
    %1009 = vmatpush1.msra.mxu0 %v153
    %1010 = vmatprep.subr.mxu0 0.0
    %1011 = vmatpush1.msra.mxu0 %v154
    %1012 = vmatprep.subr.mxu0 0.0
    %1013 = vmatpush1.msra.mxu0 %v155
    %1014 = vmatprep.subr.mxu0 0.0
    %1015 = vmatpush1.msra.mxu0 %v156
    %1016 = vmatprep.subr.mxu0 0.0
    %1017 = vmatpush1.msra.mxu0 %v157
    %1018 = vmatprep.subr.mxu0 0.0
    %1019 = vmatpush1.msra.mxu0 %v158
    %1020 = vmatprep.subr.mxu0 0.0
    %1021 = vmatpush1.msra.mxu0 %v159
    %1022 = vmatprep.subr.mxu0 0.0
    %1023 = vmatpush1.msra.mxu0 %v160
    %1024 = vmatprep.subr.mxu0 0.0
    %1025 = vmatpush1.msra.mxu0 %v161
    %1026 = vmatprep.subr.mxu0 0.0
    %1027 = vmatpush1.msra.mxu0 %v162
    %1028 = vmatprep.subr.mxu0 0.0
    %1029 = vmatpush1.msra.mxu0 %v163
    %1030 = vmatprep.subr.mxu0 0.0
    %1031 = vmatpush1.msra.mxu0 %v164
    %1032 = vmatprep.subr.mxu0 0.0
    %1033 = vmatpush1.msra.mxu0 %v165
    %1034 = vmatprep.subr.mxu0 0.0
    %1035 = vmatpush1.msra.mxu0 %v166
    %1036 = vmatprep.subr.mxu0 0.0
    %1037 = vmatpush1.msra.mxu0 %v167
    %1038 = vmatprep.subr.mxu0 0.0
    %1039 = vmatpush1.msra.mxu0 %v168
    %1040 = vmatprep.subr.mxu0 0.0
    %1041 = vmatpush1.msra.mxu0 %v169
    %1042 = vmatprep.subr.mxu0 0.0
    %1043 = vmatpush1.msra.mxu0 %v170
    %1044 = vmatprep.subr.mxu0 0.0
    %1045 = vmatpush1.msra.mxu0 %v171
    %1046 = vmatprep.subr.mxu0 0.0
    %1047 = vmatpush1.msra.mxu0 %v172
    %1048 = vmatprep.subr.mxu0 0.0
    %1049 = vmatpush1.msra.mxu0 %v173
    %1050 = vmatprep.subr.mxu0 0.0
    %1051 = vmatpush1.msra.mxu0 %v174
    %1052 = vmatprep.mubr.f32.mxu0 %v64
    %1053 = vmatmul.mubr.f32.gmra.mrb[0].mxu0 %v63
    %v1054 = vpop.f32.mrb[0].mxu0
    %v1055 = vadd.f32 %v985, %v1054
    %v1056 = vpop.f32.mrb[0].mxu0
    %1057 = vdwg.mxu0
    %1058 = vmatprep.subr.mxu0 0.0
    %1059 = vmatpush1.msra.mxu0 %v175
    %1060 = vmatprep.subr.mxu0 0.0
    %1061 = vmatpush1.msra.mxu0 %v176
    %1062 = vmatprep.subr.mxu0 0.0
    %1063 = vmatpush1.msra.mxu0 %v177
    %1064 = vmatprep.subr.mxu0 0.0
    %1065 = vmatpush1.msra.mxu0 %v178
    %1066 = vmatprep.subr.mxu0 0.0
    %1067 = vmatpush1.msra.mxu0 %v179
    %1068 = vmatprep.subr.mxu0 0.0
    %1069 = vmatpush1.msra.mxu0 %v180
    %1070 = vmatprep.subr.mxu0 0.0
    %1071 = vmatpush1.msra.mxu0 %v181
    %1072 = vmatprep.subr.mxu0 0.0
    %1073 = vmatpush1.msra.mxu0 %v182
    %1074 = vmatprep.subr.mxu0 0.0
    %1075 = vmatpush1.msra.mxu0 %v183
    %1076 = vmatprep.subr.mxu0 0.0
    %1077 = vmatpush1.msra.mxu0 %v184
    %1078 = vmatprep.subr.mxu0 0.0
    %1079 = vmatpush1.msra.mxu0 %v185
    %1080 = vmatprep.subr.mxu0 0.0
    %1081 = vmatpush1.msra.mxu0 %v186
    %1082 = vmatprep.subr.mxu0 0.0
    %1083 = vmatpush1.msra.mxu0 %v187
    %1084 = vmatprep.subr.mxu0 0.0
    %1085 = vmatpush1.msra.mxu0 %v188
    %1086 = vmatprep.subr.mxu0 0.0
    %1087 = vmatpush1.msra.mxu0 %v189
    %1088 = vmatprep.subr.mxu0 0.0
    %1089 = vmatpush1.msra.mxu0 %v190
    %1090 = vmatprep.subr.mxu0 0.0
    %1091 = vmatpush1.msra.mxu0 %v191
    %1092 = vmatprep.subr.mxu0 0.0
    %1093 = vmatpush1.msra.mxu0 %v192
    %1094 = vmatprep.subr.mxu0 0.0
    %1095 = vmatpush1.msra.mxu0 %v193
    %1096 = vmatprep.subr.mxu0 0.0
    %1097 = vmatpush1.msra.mxu0 %v194
    %1098 = vmatprep.subr.mxu0 0.0
    %1099 = vmatpush1.msra.mxu0 %v195
    %1100 = vmatprep.subr.mxu0 0.0
    %1101 = vmatpush1.msra.mxu0 %v196
    %1102 = vmatprep.subr.mxu0 0.0
    %1103 = vmatpush1.msra.mxu0 %v197
    %1104 = vmatprep.subr.mxu0 0.0
    %1105 = vmatpush1.msra.mxu0 %v198
    %1106 = vmatprep.subr.mxu0 0.0
    %1107 = vmatpush1.msra.mxu0 %v199
    %1108 = vmatprep.subr.mxu0 0.0
    %1109 = vmatpush1.msra.mxu0 %v200
    %1110 = vmatprep.subr.mxu0 0.0
    %1111 = vmatpush1.msra.mxu0 %v201
    %1112 = vmatprep.subr.mxu0 0.0
    %1113 = vmatpush1.msra.mxu0 %v202
    %1114 = vmatprep.subr.mxu0 0.0
    %1115 = vmatpush1.msra.mxu0 %v203
    %1116 = vmatprep.subr.mxu0 0.0
    %1117 = vmatpush1.msra.mxu0 %v204
    %1118 = vmatprep.subr.mxu0 0.0
    %1119 = vmatpush1.msra.mxu0 %v205
    %1120 = vmatprep.subr.mxu0 0.0
    %1121 = vmatpush1.msra.mxu0 %v206
    %1122 = vmatprep.mubr.f32.mxu0 %v66
    %1123 = vmatmul.mubr.f32.gmra.mrb[0].mxu0 %v65
    %v1124 = vpop.f32.mrb[0].mxu0
    %v1125 = vadd.f32 %v1055, %v1124
    %v1126 = vpop.f32.mrb[0].mxu0
    %1127 = vdwg.mxu0
    %1128 = vmatprep.subr.mxu0 0.0
    %1129 = vmatpush1.msra.mxu0 %v207
    %1130 = vmatprep.subr.mxu0 0.0
    %1131 = vmatpush1.msra.mxu0 %v208
    %1132 = vmatprep.subr.mxu0 0.0
    %1133 = vmatpush1.msra.mxu0 %v209
    %1134 = vmatprep.subr.mxu0 0.0
    %1135 = vmatpush1.msra.mxu0 %v210
    %1136 = vmatprep.subr.mxu0 0.0
    %1137 = vmatpush1.msra.mxu0 %v211
    %1138 = vmatprep.subr.mxu0 0.0
    %1139 = vmatpush1.msra.mxu0 %v212
    %1140 = vmatprep.subr.mxu0 0.0
    %1141 = vmatpush1.msra.mxu0 %v213
    %1142 = vmatprep.subr.mxu0 0.0
    %1143 = vmatpush1.msra.mxu0 %v214
    %1144 = vmatprep.subr.mxu0 0.0
    %1145 = vmatpush1.msra.mxu0 %v215
    %1146 = vmatprep.subr.mxu0 0.0
    %1147 = vmatpush1.msra.mxu0 %v216
    %1148 = vmatprep.subr.mxu0 0.0
    %1149 = vmatpush1.msra.mxu0 %v217
    %1150 = vmatprep.subr.mxu0 0.0
    %1151 = vmatpush1.msra.mxu0 %v218
    %1152 = vmatprep.subr.mxu0 0.0
    %1153 = vmatpush1.msra.mxu0 %v219
    %1154 = vmatprep.subr.mxu0 0.0
    %1155 = vmatpush1.msra.mxu0 %v220
    %1156 = vmatprep.subr.mxu0 0.0
    %1157 = vmatpush1.msra.mxu0 %v221
    %1158 = vmatprep.subr.mxu0 0.0
    %1159 = vmatpush1.msra.mxu0 %v222
    %1160 = vmatprep.subr.mxu0 0.0
    %1161 = vmatpush1.msra.mxu0 %v223
    %1162 = vmatprep.subr.mxu0 0.0
    %1163 = vmatpush1.msra.mxu0 %v224
    %1164 = vmatprep.subr.mxu0 0.0
    %1165 = vmatpush1.msra.mxu0 %v225
    %1166 = vmatprep.subr.mxu0 0.0
    %1167 = vmatpush1.msra.mxu0 %v226
    %1168 = vmatprep.subr.mxu0 0.0
    %1169 = vmatpush1.msra.mxu0 %v227
    %1170 = vmatprep.subr.mxu0 0.0
    %1171 = vmatpush1.msra.mxu0 %v228
    %1172 = vmatprep.subr.mxu0 0.0
    %1173 = vmatpush1.msra.mxu0 %v229
    %1174 = vmatprep.subr.mxu0 0.0
    %1175 = vmatpush1.msra.mxu0 %v230
    %1176 = vmatprep.subr.mxu0 0.0
    %1177 = vmatpush1.msra.mxu0 %v231
    %1178 = vmatprep.subr.mxu0 0.0
    %1179 = vmatpush1.msra.mxu0 %v232
    %1180 = vmatprep.subr.mxu0 0.0
    %1181 = vmatpush1.msra.mxu0 %v233
    %1182 = vmatprep.subr.mxu0 0.0
    %1183 = vmatpush1.msra.mxu0 %v234
    %1184 = vmatprep.subr.mxu0 0.0
    %1185 = vmatpush1.msra.mxu0 %v235
    %1186 = vmatprep.subr.mxu0 0.0
    %1187 = vmatpush1.msra.mxu0 %v236
    %1188 = vmatprep.subr.mxu0 0.0
    %1189 = vmatpush1.msra.mxu0 %v237
    %1190 = vmatprep.subr.mxu0 0.0
    %1191 = vmatpush1.msra.mxu0 %v238
    %1192 = vmatprep.mubr.f32.mxu0 %v68
    %1193 = vmatmul.mubr.f32.gmra.mrb[0].mxu0 %v67
    %v1194 = vpop.f32.mrb[0].mxu0
    %v1195 = vadd.f32 %v1125, %v1194
    %v1196 = vpop.f32.mrb[0].mxu0
    %1197 = vdwg.mxu0
    %1198 = vmatprep.subr.mxu0 0.0
    %1199 = vmatpush1.msra.mxu0 %v239
    %1200 = vmatprep.subr.mxu0 0.0
    %1201 = vmatpush1.msra.mxu0 %v240
    %1202 = vmatprep.subr.mxu0 0.0
    %1203 = vmatpush1.msra.mxu0 %v241
    %1204 = vmatprep.subr.mxu0 0.0
    %1205 = vmatpush1.msra.mxu0 %v242
    %1206 = vmatprep.subr.mxu0 0.0
    %1207 = vmatpush1.msra.mxu0 %v243
    %1208 = vmatprep.subr.mxu0 0.0
    %1209 = vmatpush1.msra.mxu0 %v244
    %1210 = vmatprep.subr.mxu0 0.0
    %1211 = vmatpush1.msra.mxu0 %v245
    %1212 = vmatprep.subr.mxu0 0.0
    %1213 = vmatpush1.msra.mxu0 %v246
    %1214 = vmatprep.subr.mxu0 0.0
    %1215 = vmatpush1.msra.mxu0 %v247
    %1216 = vmatprep.subr.mxu0 0.0
    %1217 = vmatpush1.msra.mxu0 %v248
    %1218 = vmatprep.subr.mxu0 0.0
    %1219 = vmatpush1.msra.mxu0 %v249
    %1220 = vmatprep.subr.mxu0 0.0
    %1221 = vmatpush1.msra.mxu0 %v250
    %1222 = vmatprep.subr.mxu0 0.0
    %1223 = vmatpush1.msra.mxu0 %v251
    %1224 = vmatprep.subr.mxu0 0.0
    %1225 = vmatpush1.msra.mxu0 %v252
    %1226 = vmatprep.subr.mxu0 0.0
    %1227 = vmatpush1.msra.mxu0 %v253
    %1228 = vmatprep.subr.mxu0 0.0
    %1229 = vmatpush1.msra.mxu0 %v254
    %1230 = vmatprep.subr.mxu0 0.0
    %1231 = vmatpush1.msra.mxu0 %v255
    %1232 = vmatprep.subr.mxu0 0.0
    %1233 = vmatpush1.msra.mxu0 %v256
    %1234 = vmatprep.subr.mxu0 0.0
    %1235 = vmatpush1.msra.mxu0 %v257
    %1236 = vmatprep.subr.mxu0 0.0
    %1237 = vmatpush1.msra.mxu0 %v258
    %1238 = vmatprep.subr.mxu0 0.0
    %1239 = vmatpush1.msra.mxu0 %v259
    %1240 = vmatprep.subr.mxu0 0.0
    %1241 = vmatpush1.msra.mxu0 %v260
    %1242 = vmatprep.subr.mxu0 0.0
    %1243 = vmatpush1.msra.mxu0 %v261
    %1244 = vmatprep.subr.mxu0 0.0
    %1245 = vmatpush1.msra.mxu0 %v262
    %1246 = vmatprep.subr.mxu0 0.0
    %1247 = vmatpush1.msra.mxu0 %v263
    %1248 = vmatprep.subr.mxu0 0.0
    %1249 = vmatpush1.msra.mxu0 %v264
    %1250 = vmatprep.subr.mxu0 0.0
    %1251 = vmatpush1.msra.mxu0 %v265
    %1252 = vmatprep.subr.mxu0 0.0
    %1253 = vmatpush1.msra.mxu0 %v266
    %1254 = vmatprep.subr.mxu0 0.0
    %1255 = vmatpush1.msra.mxu0 %v267
    %1256 = vmatprep.subr.mxu0 0.0
    %1257 = vmatpush1.msra.mxu0 %v268
    %1258 = vmatprep.subr.mxu0 0.0
    %1259 = vmatpush1.msra.mxu0 %v269
    %1260 = vmatprep.subr.mxu0 0.0
    %1261 = vmatpush1.msra.mxu0 %v270
    %1262 = vmatprep.mubr.f32.mxu0 %v70
    %1263 = vmatmul.mubr.f32.gmra.mrb[0].mxu0 %v69
    %v1264 = vpop.f32.mrb[0].mxu0
    %v1265 = vadd.f32 %v1195, %v1264
    %v1266 = vpop.f32.mrb[0].mxu0
    %1267 = vdwg.mxu0
    %1268 = vmatprep.subr.mxu0 0.0
    %1269 = vmatpush1.msra.mxu0 %v271
    %1270 = vmatprep.subr.mxu0 0.0
    %1271 = vmatpush1.msra.mxu0 %v272
    %1272 = vmatprep.subr.mxu0 0.0
    %1273 = vmatpush1.msra.mxu0 %v273
    %1274 = vmatprep.subr.mxu0 0.0
    %1275 = vmatpush1.msra.mxu0 %v274
    %1276 = vmatprep.subr.mxu0 0.0
    %1277 = vmatpush1.msra.mxu0 %v275
    %1278 = vmatprep.subr.mxu0 0.0
    %1279 = vmatpush1.msra.mxu0 %v276
    %1280 = vmatprep.subr.mxu0 0.0
    %1281 = vmatpush1.msra.mxu0 %v277
    %1282 = vmatprep.subr.mxu0 0.0
    %1283 = vmatpush1.msra.mxu0 %v278
    %1284 = vmatprep.subr.mxu0 0.0
    %1285 = vmatpush1.msra.mxu0 %v279
    %1286 = vmatprep.subr.mxu0 0.0
    %1287 = vmatpush1.msra.mxu0 %v280
    %1288 = vmatprep.subr.mxu0 0.0
    %1289 = vmatpush1.msra.mxu0 %v281
    %1290 = vmatprep.subr.mxu0 0.0
    %1291 = vmatpush1.msra.mxu0 %v282
    %1292 = vmatprep.subr.mxu0 0.0
    %1293 = vmatpush1.msra.mxu0 %v283
    %1294 = vmatprep.subr.mxu0 0.0
    %1295 = vmatpush1.msra.mxu0 %v284
    %1296 = vmatprep.subr.mxu0 0.0
    %1297 = vmatpush1.msra.mxu0 %v285
    %1298 = vmatprep.subr.mxu0 0.0
    %1299 = vmatpush1.msra.mxu0 %v286
    %1300 = vmatprep.subr.mxu0 0.0
    %1301 = vmatpush1.msra.mxu0 %v287
    %1302 = vmatprep.subr.mxu0 0.0
    %1303 = vmatpush1.msra.mxu0 %v288
    %1304 = vmatprep.subr.mxu0 0.0
    %1305 = vmatpush1.msra.mxu0 %v289
    %1306 = vmatprep.subr.mxu0 0.0
    %1307 = vmatpush1.msra.mxu0 %v290
    %1308 = vmatprep.subr.mxu0 0.0
    %1309 = vmatpush1.msra.mxu0 %v291
    %1310 = vmatprep.subr.mxu0 0.0
    %1311 = vmatpush1.msra.mxu0 %v292
    %1312 = vmatprep.subr.mxu0 0.0
    %1313 = vmatpush1.msra.mxu0 %v293
    %1314 = vmatprep.subr.mxu0 0.0
    %1315 = vmatpush1.msra.mxu0 %v294
    %1316 = vmatprep.subr.mxu0 0.0
    %1317 = vmatpush1.msra.mxu0 %v295
    %1318 = vmatprep.subr.mxu0 0.0
    %1319 = vmatpush1.msra.mxu0 %v296
    %1320 = vmatprep.subr.mxu0 0.0
    %1321 = vmatpush1.msra.mxu0 %v297
    %1322 = vmatprep.subr.mxu0 0.0
    %1323 = vmatpush1.msra.mxu0 %v298
    %1324 = vmatprep.subr.mxu0 0.0
    %1325 = vmatpush1.msra.mxu0 %v299
    %1326 = vmatprep.subr.mxu0 0.0
    %1327 = vmatpush1.msra.mxu0 %v300
    %1328 = vmatprep.subr.mxu0 0.0
    %1329 = vmatpush1.msra.mxu0 %v301
    %1330 = vmatprep.subr.mxu0 0.0
    %1331 = vmatpush1.msra.mxu0 %v302
    %1332 = vmatprep.mubr.f32.mxu0 %v72
    %1333 = vmatmul.mubr.f32.gmra.mrb[0].mxu0 %v71
    %v1334 = vpop.f32.mrb[0].mxu0
    %v1335 = vadd.f32 %v1265, %v1334
    %v1336 = vpop.f32.mrb[0].mxu0
    %1337 = vdwg.mxu0
    %1338 = vmatprep.subr.mxu0 0.0
    %1339 = vmatpush1.msra.mxu0 %v303
    %1340 = vmatprep.subr.mxu0 0.0
    %1341 = vmatpush1.msra.mxu0 %v304
    %1342 = vmatprep.subr.mxu0 0.0
    %1343 = vmatpush1.msra.mxu0 %v305
    %1344 = vmatprep.subr.mxu0 0.0
    %1345 = vmatpush1.msra.mxu0 %v306
    %1346 = vmatprep.subr.mxu0 0.0
    %1347 = vmatpush1.msra.mxu0 %v307
    %1348 = vmatprep.subr.mxu0 0.0
    %1349 = vmatpush1.msra.mxu0 %v308
    %1350 = vmatprep.subr.mxu0 0.0
    %1351 = vmatpush1.msra.mxu0 %v309
    %1352 = vmatprep.subr.mxu0 0.0
    %1353 = vmatpush1.msra.mxu0 %v310
    %1354 = vmatprep.subr.mxu0 0.0
    %1355 = vmatpush1.msra.mxu0 %v311
    %1356 = vmatprep.subr.mxu0 0.0
    %1357 = vmatpush1.msra.mxu0 %v312
    %1358 = vmatprep.subr.mxu0 0.0
    %1359 = vmatpush1.msra.mxu0 %v313
    %1360 = vmatprep.subr.mxu0 0.0
    %1361 = vmatpush1.msra.mxu0 %v314
    %1362 = vmatprep.subr.mxu0 0.0
    %1363 = vmatpush1.msra.mxu0 %v315
    %1364 = vmatprep.subr.mxu0 0.0
    %1365 = vmatpush1.msra.mxu0 %v316
    %1366 = vmatprep.subr.mxu0 0.0
    %1367 = vmatpush1.msra.mxu0 %v317
    %1368 = vmatprep.subr.mxu0 0.0
    %1369 = vmatpush1.msra.mxu0 %v318
    %1370 = vmatprep.subr.mxu0 0.0
    %1371 = vmatpush1.msra.mxu0 %v319
    %1372 = vmatprep.subr.mxu0 0.0
    %1373 = vmatpush1.msra.mxu0 %v320
    %1374 = vmatprep.subr.mxu0 0.0
    %1375 = vmatpush1.msra.mxu0 %v321
    %1376 = vmatprep.subr.mxu0 0.0
    %1377 = vmatpush1.msra.mxu0 %v322
    %1378 = vmatprep.subr.mxu0 0.0
    %1379 = vmatpush1.msra.mxu0 %v323
    %1380 = vmatprep.subr.mxu0 0.0
    %1381 = vmatpush1.msra.mxu0 %v324
    %1382 = vmatprep.subr.mxu0 0.0
    %1383 = vmatpush1.msra.mxu0 %v325
    %1384 = vmatprep.subr.mxu0 0.0
    %1385 = vmatpush1.msra.mxu0 %v326
    %1386 = vmatprep.subr.mxu0 0.0
    %1387 = vmatpush1.msra.mxu0 %v327
    %1388 = vmatprep.subr.mxu0 0.0
    %1389 = vmatpush1.msra.mxu0 %v328
    %1390 = vmatprep.subr.mxu0 0.0
    %1391 = vmatpush1.msra.mxu0 %v329
    %1392 = vmatprep.subr.mxu0 0.0
    %1393 = vmatpush1.msra.mxu0 %v330
    %1394 = vmatprep.subr.mxu0 0.0
    %1395 = vmatpush1.msra.mxu0 %v331
    %1396 = vmatprep.subr.mxu0 0.0
    %1397 = vmatpush1.msra.mxu0 %v332
    %1398 = vmatprep.subr.mxu0 0.0
    %1399 = vmatpush1.msra.mxu0 %v333
    %1400 = vmatprep.subr.mxu0 0.0
    %1401 = vmatpush1.msra.mxu0 %v334
    %1402 = vmatprep.mubr.f32.mxu0 %v74
    %1403 = vmatmul.mubr.f32.gmra.mrb[0].mxu0 %v73
    %v1404 = vpop.f32.mrb[0].mxu0
    %v1405 = vadd.f32 %v1335, %v1404
    %v1406 = vpop.f32.mrb[0].mxu0
    %1407 = vdwg.mxu0
    %1408 = vmatprep.subr.mxu0 0.0
    %1409 = vmatpush1.msra.mxu0 %v335
    %1410 = vmatprep.subr.mxu0 0.0
    %1411 = vmatpush1.msra.mxu0 %v336
    %1412 = vmatprep.subr.mxu0 0.0
    %1413 = vmatpush1.msra.mxu0 %v337
    %1414 = vmatprep.subr.mxu0 0.0
    %1415 = vmatpush1.msra.mxu0 %v338
    %1416 = vmatprep.subr.mxu0 0.0
    %1417 = vmatpush1.msra.mxu0 %v339
    %1418 = vmatprep.subr.mxu0 0.0
    %1419 = vmatpush1.msra.mxu0 %v340
    %1420 = vmatprep.subr.mxu0 0.0
    %1421 = vmatpush1.msra.mxu0 %v341
    %1422 = vmatprep.subr.mxu0 0.0
    %1423 = vmatpush1.msra.mxu0 %v342
    %1424 = vmatprep.subr.mxu0 0.0
    %1425 = vmatpush1.msra.mxu0 %v343
    %1426 = vmatprep.subr.mxu0 0.0
    %1427 = vmatpush1.msra.mxu0 %v344
    %1428 = vmatprep.subr.mxu0 0.0
    %1429 = vmatpush1.msra.mxu0 %v345
    %1430 = vmatprep.subr.mxu0 0.0
    %1431 = vmatpush1.msra.mxu0 %v346
    %1432 = vmatprep.subr.mxu0 0.0
    %1433 = vmatpush1.msra.mxu0 %v347
    %1434 = vmatprep.subr.mxu0 0.0
    %1435 = vmatpush1.msra.mxu0 %v348
    %1436 = vmatprep.subr.mxu0 0.0
    %1437 = vmatpush1.msra.mxu0 %v349
    %1438 = vmatprep.subr.mxu0 0.0
    %1439 = vmatpush1.msra.mxu0 %v350
    %1440 = vmatprep.subr.mxu0 0.0
    %1441 = vmatpush1.msra.mxu0 %v351
    %1442 = vmatprep.subr.mxu0 0.0
    %1443 = vmatpush1.msra.mxu0 %v352
    %1444 = vmatprep.subr.mxu0 0.0
    %1445 = vmatpush1.msra.mxu0 %v353
    %1446 = vmatprep.subr.mxu0 0.0
    %1447 = vmatpush1.msra.mxu0 %v354
    %1448 = vmatprep.subr.mxu0 0.0
    %1449 = vmatpush1.msra.mxu0 %v355
    %1450 = vmatprep.subr.mxu0 0.0
    %1451 = vmatpush1.msra.mxu0 %v356
    %1452 = vmatprep.subr.mxu0 0.0
    %1453 = vmatpush1.msra.mxu0 %v357
    %1454 = vmatprep.subr.mxu0 0.0
    %1455 = vmatpush1.msra.mxu0 %v358
    %1456 = vmatprep.subr.mxu0 0.0
    %1457 = vmatpush1.msra.mxu0 %v359
    %1458 = vmatprep.subr.mxu0 0.0
    %1459 = vmatpush1.msra.mxu0 %v360
    %1460 = vmatprep.subr.mxu0 0.0
    %1461 = vmatpush1.msra.mxu0 %v361
    %1462 = vmatprep.subr.mxu0 0.0
    %1463 = vmatpush1.msra.mxu0 %v362
    %1464 = vmatprep.subr.mxu0 0.0
    %1465 = vmatpush1.msra.mxu0 %v363
    %1466 = vmatprep.subr.mxu0 0.0
    %1467 = vmatpush1.msra.mxu0 %v364
    %1468 = vmatprep.subr.mxu0 0.0
    %1469 = vmatpush1.msra.mxu0 %v365
    %1470 = vmatprep.subr.mxu0 0.0
    %1471 = vmatpush1.msra.mxu0 %v366
    %1472 = vmatprep.mubr.f32.mxu0 %v76
    %1473 = vmatmul.mubr.f32.gmra.mrb[0].mxu0 %v75
    %v1474 = vpop.f32.mrb[0].mxu0
    %v1475 = vadd.f32 %v1405, %v1474
    %v1476 = vpop.f32.mrb[0].mxu0
    %1477 = vdwg.mxu0
    %1478 = vmatprep.subr.mxu0 0.0
    %1479 = vmatpush1.msra.mxu0 %v367
    %1480 = vmatprep.subr.mxu0 0.0
    %1481 = vmatpush1.msra.mxu0 %v368
    %1482 = vmatprep.subr.mxu0 0.0
    %1483 = vmatpush1.msra.mxu0 %v369
    %1484 = vmatprep.subr.mxu0 0.0
    %1485 = vmatpush1.msra.mxu0 %v370
    %1486 = vmatprep.subr.mxu0 0.0
    %1487 = vmatpush1.msra.mxu0 %v371
    %1488 = vmatprep.subr.mxu0 0.0
    %1489 = vmatpush1.msra.mxu0 %v372
    %1490 = vmatprep.subr.mxu0 0.0
    %1491 = vmatpush1.msra.mxu0 %v373
    %1492 = vmatprep.subr.mxu0 0.0
    %1493 = vmatpush1.msra.mxu0 %v374
    %1494 = vmatprep.subr.mxu0 0.0
    %1495 = vmatpush1.msra.mxu0 %v375
    %1496 = vmatprep.subr.mxu0 0.0
    %1497 = vmatpush1.msra.mxu0 %v376
    %1498 = vmatprep.subr.mxu0 0.0
    %1499 = vmatpush1.msra.mxu0 %v377
    %1500 = vmatprep.subr.mxu0 0.0
    %1501 = vmatpush1.msra.mxu0 %v378
    %1502 = vmatprep.subr.mxu0 0.0
    %1503 = vmatpush1.msra.mxu0 %v379
    %1504 = vmatprep.subr.mxu0 0.0
    %1505 = vmatpush1.msra.mxu0 %v380
    %1506 = vmatprep.subr.mxu0 0.0
    %1507 = vmatpush1.msra.mxu0 %v381
    %1508 = vmatprep.subr.mxu0 0.0
    %1509 = vmatpush1.msra.mxu0 %v382
    %1510 = vmatprep.subr.mxu0 0.0
    %1511 = vmatpush1.msra.mxu0 %v383
    %1512 = vmatprep.subr.mxu0 0.0
    %1513 = vmatpush1.msra.mxu0 %v384
    %1514 = vmatprep.subr.mxu0 0.0
    %1515 = vmatpush1.msra.mxu0 %v385
    %1516 = vmatprep.subr.mxu0 0.0
    %1517 = vmatpush1.msra.mxu0 %v386
    %1518 = vmatprep.subr.mxu0 0.0
    %1519 = vmatpush1.msra.mxu0 %v387
    %1520 = vmatprep.subr.mxu0 0.0
    %1521 = vmatpush1.msra.mxu0 %v388
    %1522 = vmatprep.subr.mxu0 0.0
    %1523 = vmatpush1.msra.mxu0 %v389
    %1524 = vmatprep.subr.mxu0 0.0
    %1525 = vmatpush1.msra.mxu0 %v390
    %1526 = vmatprep.subr.mxu0 0.0
    %1527 = vmatpush1.msra.mxu0 %v391
    %1528 = vmatprep.subr.mxu0 0.0
    %1529 = vmatpush1.msra.mxu0 %v392
    %1530 = vmatprep.subr.mxu0 0.0
    %1531 = vmatpush1.msra.mxu0 %v393
    %1532 = vmatprep.subr.mxu0 0.0
    %1533 = vmatpush1.msra.mxu0 %v394
    %1534 = vmatprep.subr.mxu0 0.0
    %1535 = vmatpush1.msra.mxu0 %v395
    %1536 = vmatprep.subr.mxu0 0.0
    %1537 = vmatpush1.msra.mxu0 %v396
    %1538 = vmatprep.subr.mxu0 0.0
    %1539 = vmatpush1.msra.mxu0 %v397
    %1540 = vmatprep.subr.mxu0 0.0
    %1541 = vmatpush1.msra.mxu0 %v398
    %1542 = vmatprep.mubr.f32.mxu0 %v78
    %1543 = vmatmul.mubr.f32.gmra.mrb[0].mxu0 %v77
    %v1544 = vpop.f32.mrb[0].mxu0
    %v1545 = vadd.f32 %v1475, %v1544
    %v1546 = vpop.f32.mrb[0].mxu0
    %1547 = vdwg.mxu0
    %1548 = vmatprep.subr.mxu0 0.0
    %1549 = vmatpush1.msra.mxu0 %v399
    %1550 = vmatprep.subr.mxu0 0.0
    %1551 = vmatpush1.msra.mxu0 %v400
    %1552 = vmatprep.subr.mxu0 0.0
    %1553 = vmatpush1.msra.mxu0 %v401
    %1554 = vmatprep.subr.mxu0 0.0
    %1555 = vmatpush1.msra.mxu0 %v402
    %1556 = vmatprep.subr.mxu0 0.0
    %1557 = vmatpush1.msra.mxu0 %v403
    %1558 = vmatprep.subr.mxu0 0.0
    %1559 = vmatpush1.msra.mxu0 %v404
    %1560 = vmatprep.subr.mxu0 0.0
    %1561 = vmatpush1.msra.mxu0 %v405
    %1562 = vmatprep.subr.mxu0 0.0
    %1563 = vmatpush1.msra.mxu0 %v406
    %1564 = vmatprep.subr.mxu0 0.0
    %1565 = vmatpush1.msra.mxu0 %v407
    %1566 = vmatprep.subr.mxu0 0.0
    %1567 = vmatpush1.msra.mxu0 %v408
    %1568 = vmatprep.subr.mxu0 0.0
    %1569 = vmatpush1.msra.mxu0 %v409
    %1570 = vmatprep.subr.mxu0 0.0
    %1571 = vmatpush1.msra.mxu0 %v410
    %1572 = vmatprep.subr.mxu0 0.0
    %1573 = vmatpush1.msra.mxu0 %v411
    %1574 = vmatprep.subr.mxu0 0.0
    %1575 = vmatpush1.msra.mxu0 %v412
    %1576 = vmatprep.subr.mxu0 0.0
    %1577 = vmatpush1.msra.mxu0 %v413
    %1578 = vmatprep.subr.mxu0 0.0
    %1579 = vmatpush1.msra.mxu0 %v414
    %1580 = vmatprep.subr.mxu0 0.0
    %1581 = vmatpush1.msra.mxu0 %v415
    %1582 = vmatprep.subr.mxu0 0.0
    %1583 = vmatpush1.msra.mxu0 %v416
    %1584 = vmatprep.subr.mxu0 0.0
    %1585 = vmatpush1.msra.mxu0 %v417
    %1586 = vmatprep.subr.mxu0 0.0
    %1587 = vmatpush1.msra.mxu0 %v418
    %1588 = vmatprep.subr.mxu0 0.0
    %1589 = vmatpush1.msra.mxu0 %v419
    %1590 = vmatprep.subr.mxu0 0.0
    %1591 = vmatpush1.msra.mxu0 %v420
    %1592 = vmatprep.subr.mxu0 0.0
    %1593 = vmatpush1.msra.mxu0 %v421
    %1594 = vmatprep.subr.mxu0 0.0
    %1595 = vmatpush1.msra.mxu0 %v422
    %1596 = vmatprep.subr.mxu0 0.0
    %1597 = vmatpush1.msra.mxu0 %v423
    %1598 = vmatprep.subr.mxu0 0.0
    %1599 = vmatpush1.msra.mxu0 %v424
    %1600 = vmatprep.subr.mxu0 0.0
    %1601 = vmatpush1.msra.mxu0 %v425
    %1602 = vmatprep.subr.mxu0 0.0
    %1603 = vmatpush1.msra.mxu0 %v426
    %1604 = vmatprep.subr.mxu0 0.0
    %1605 = vmatpush1.msra.mxu0 %v427
    %1606 = vmatprep.subr.mxu0 0.0
    %1607 = vmatpush1.msra.mxu0 %v428
    %1608 = vmatprep.subr.mxu0 0.0
    %1609 = vmatpush1.msra.mxu0 %v429
    %1610 = vmatprep.subr.mxu0 0.0
    %1611 = vmatpush1.msra.mxu0 %v430
    %1612 = vmatprep.mubr.f32.mxu0 %v80
    %1613 = vmatmul.mubr.f32.gmra.mrb[0].mxu0 %v79
    %v1614 = vpop.f32.mrb[0].mxu0
    %v1615 = vadd.f32 %v1545, %v1614
    %v1616 = vpop.f32.mrb[0].mxu0
    %1617 = vdwg.mxu0
    %1618 = vmatprep.subr.mxu0 0.0
    %1619 = vmatpush1.msra.mxu0 %v431
    %1620 = vmatprep.subr.mxu0 0.0
    %1621 = vmatpush1.msra.mxu0 %v432
    %1622 = vmatprep.subr.mxu0 0.0
    %1623 = vmatpush1.msra.mxu0 %v433
    %1624 = vmatprep.subr.mxu0 0.0
    %1625 = vmatpush1.msra.mxu0 %v434
    %1626 = vmatprep.subr.mxu0 0.0
    %1627 = vmatpush1.msra.mxu0 %v435
    %1628 = vmatprep.subr.mxu0 0.0
    %1629 = vmatpush1.msra.mxu0 %v436
    %1630 = vmatprep.subr.mxu0 0.0
    %1631 = vmatpush1.msra.mxu0 %v437
    %1632 = vmatprep.subr.mxu0 0.0
    %1633 = vmatpush1.msra.mxu0 %v438
    %1634 = vmatprep.subr.mxu0 0.0
    %1635 = vmatpush1.msra.mxu0 %v439
    %1636 = vmatprep.subr.mxu0 0.0
    %1637 = vmatpush1.msra.mxu0 %v440
    %1638 = vmatprep.subr.mxu0 0.0
    %1639 = vmatpush1.msra.mxu0 %v441
    %1640 = vmatprep.subr.mxu0 0.0
    %1641 = vmatpush1.msra.mxu0 %v442
    %1642 = vmatprep.subr.mxu0 0.0
    %1643 = vmatpush1.msra.mxu0 %v443
    %1644 = vmatprep.subr.mxu0 0.0
    %1645 = vmatpush1.msra.mxu0 %v444
    %1646 = vmatprep.subr.mxu0 0.0
    %1647 = vmatpush1.msra.mxu0 %v445
    %1648 = vmatprep.subr.mxu0 0.0
    %1649 = vmatpush1.msra.mxu0 %v446
    %1650 = vmatprep.subr.mxu0 0.0
    %1651 = vmatpush1.msra.mxu0 %v447
    %1652 = vmatprep.subr.mxu0 0.0
    %1653 = vmatpush1.msra.mxu0 %v448
    %1654 = vmatprep.subr.mxu0 0.0
    %1655 = vmatpush1.msra.mxu0 %v449
    %1656 = vmatprep.subr.mxu0 0.0
    %1657 = vmatpush1.msra.mxu0 %v450
    %1658 = vmatprep.subr.mxu0 0.0
    %1659 = vmatpush1.msra.mxu0 %v451
    %1660 = vmatprep.subr.mxu0 0.0
    %1661 = vmatpush1.msra.mxu0 %v452
    %1662 = vmatprep.subr.mxu0 0.0
    %1663 = vmatpush1.msra.mxu0 %v453
    %1664 = vmatprep.subr.mxu0 0.0
    %1665 = vmatpush1.msra.mxu0 %v454
    %1666 = vmatprep.subr.mxu0 0.0
    %1667 = vmatpush1.msra.mxu0 %v455
    %1668 = vmatprep.subr.mxu0 0.0
    %1669 = vmatpush1.msra.mxu0 %v456
    %1670 = vmatprep.subr.mxu0 0.0
    %1671 = vmatpush1.msra.mxu0 %v457
    %1672 = vmatprep.subr.mxu0 0.0
    %1673 = vmatpush1.msra.mxu0 %v458
    %1674 = vmatprep.subr.mxu0 0.0
    %1675 = vmatpush1.msra.mxu0 %v459
    %1676 = vmatprep.subr.mxu0 0.0
    %1677 = vmatpush1.msra.mxu0 %v460
    %1678 = vmatprep.subr.mxu0 0.0
    %1679 = vmatpush1.msra.mxu0 %v461
    %1680 = vmatprep.subr.mxu0 0.0
    %1681 = vmatpush1.msra.mxu0 %v462
    %1682 = vmatprep.mubr.f32.mxu0 %v82
    %1683 = vmatmul.mubr.f32.gmra.mrb[0].mxu0 %v81
    %v1684 = vpop.f32.mrb[0].mxu0
    %v1685 = vadd.f32 %v1615, %v1684
    %v1686 = vpop.f32.mrb[0].mxu0
    %1687 = vdwg.mxu0
    %1688 = vmatprep.subr.mxu0 0.0
    %1689 = vmatpush1.msra.mxu0 %v463
    %1690 = vmatprep.subr.mxu0 0.0
    %1691 = vmatpush1.msra.mxu0 %v464
    %1692 = vmatprep.subr.mxu0 0.0
    %1693 = vmatpush1.msra.mxu0 %v465
    %1694 = vmatprep.subr.mxu0 0.0
    %1695 = vmatpush1.msra.mxu0 %v466
    %1696 = vmatprep.subr.mxu0 0.0
    %1697 = vmatpush1.msra.mxu0 %v467
    %1698 = vmatprep.subr.mxu0 0.0
    %1699 = vmatpush1.msra.mxu0 %v468
    %1700 = vmatprep.subr.mxu0 0.0
    %1701 = vmatpush1.msra.mxu0 %v469
    %1702 = vmatprep.subr.mxu0 0.0
    %1703 = vmatpush1.msra.mxu0 %v470
    %1704 = vmatprep.subr.mxu0 0.0
    %1705 = vmatpush1.msra.mxu0 %v471
    %1706 = vmatprep.subr.mxu0 0.0
    %1707 = vmatpush1.msra.mxu0 %v472
    %1708 = vmatprep.subr.mxu0 0.0
    %1709 = vmatpush1.msra.mxu0 %v473
    %1710 = vmatprep.subr.mxu0 0.0
    %1711 = vmatpush1.msra.mxu0 %v474
    %1712 = vmatprep.subr.mxu0 0.0
    %1713 = vmatpush1.msra.mxu0 %v475
    %1714 = vmatprep.subr.mxu0 0.0
    %1715 = vmatpush1.msra.mxu0 %v476
    %1716 = vmatprep.subr.mxu0 0.0
    %1717 = vmatpush1.msra.mxu0 %v477
    %1718 = vmatprep.subr.mxu0 0.0
    %1719 = vmatpush1.msra.mxu0 %v478
    %1720 = vmatprep.subr.mxu0 0.0
    %1721 = vmatpush1.msra.mxu0 %v479
    %1722 = vmatprep.subr.mxu0 0.0
    %1723 = vmatpush1.msra.mxu0 %v480
    %1724 = vmatprep.subr.mxu0 0.0
    %1725 = vmatpush1.msra.mxu0 %v481
    %1726 = vmatprep.subr.mxu0 0.0
    %1727 = vmatpush1.msra.mxu0 %v482
    %1728 = vmatprep.subr.mxu0 0.0
    %1729 = vmatpush1.msra.mxu0 %v483
    %1730 = vmatprep.subr.mxu0 0.0
    %1731 = vmatpush1.msra.mxu0 %v484
    %1732 = vmatprep.subr.mxu0 0.0
    %1733 = vmatpush1.msra.mxu0 %v485
    %1734 = vmatprep.subr.mxu0 0.0
    %1735 = vmatpush1.msra.mxu0 %v486
    %1736 = vmatprep.subr.mxu0 0.0
    %1737 = vmatpush1.msra.mxu0 %v487
    %1738 = vmatprep.subr.mxu0 0.0
    %1739 = vmatpush1.msra.mxu0 %v488
    %1740 = vmatprep.subr.mxu0 0.0
    %1741 = vmatpush1.msra.mxu0 %v489
    %1742 = vmatprep.subr.mxu0 0.0
    %1743 = vmatpush1.msra.mxu0 %v490
    %1744 = vmatprep.subr.mxu0 0.0
    %1745 = vmatpush1.msra.mxu0 %v491
    %1746 = vmatprep.subr.mxu0 0.0
    %1747 = vmatpush1.msra.mxu0 %v492
    %1748 = vmatprep.subr.mxu0 0.0
    %1749 = vmatpush1.msra.mxu0 %v493
    %1750 = vmatprep.subr.mxu0 0.0
    %1751 = vmatpush1.msra.mxu0 %v494
    %1752 = vmatprep.mubr.f32.mxu0 %v84
    %1753 = vmatmul.mubr.f32.gmra.mrb[0].mxu0 %v83
    %v1754 = vpop.f32.mrb[0].mxu0
    %v1755 = vadd.f32 %v1685, %v1754
    %v1756 = vpop.f32.mrb[0].mxu0
    %1757 = vdwg.mxu0
    %1758 = vmatprep.subr.mxu0 0.0
    %1759 = vmatpush1.msra.mxu0 %v495
    %1760 = vmatprep.subr.mxu0 0.0
    %1761 = vmatpush1.msra.mxu0 %v496
    %1762 = vmatprep.subr.mxu0 0.0
    %1763 = vmatpush1.msra.mxu0 %v497
    %1764 = vmatprep.subr.mxu0 0.0
    %1765 = vmatpush1.msra.mxu0 %v498
    %1766 = vmatprep.subr.mxu0 0.0
    %1767 = vmatpush1.msra.mxu0 %v499
    %1768 = vmatprep.subr.mxu0 0.0
    %1769 = vmatpush1.msra.mxu0 %v500
    %1770 = vmatprep.subr.mxu0 0.0
    %1771 = vmatpush1.msra.mxu0 %v501
    %1772 = vmatprep.subr.mxu0 0.0
    %1773 = vmatpush1.msra.mxu0 %v502
    %1774 = vmatprep.subr.mxu0 0.0
    %1775 = vmatpush1.msra.mxu0 %v503
    %1776 = vmatprep.subr.mxu0 0.0
    %1777 = vmatpush1.msra.mxu0 %v504
    %1778 = vmatprep.subr.mxu0 0.0
    %1779 = vmatpush1.msra.mxu0 %v505
    %1780 = vmatprep.subr.mxu0 0.0
    %1781 = vmatpush1.msra.mxu0 %v506
    %1782 = vmatprep.subr.mxu0 0.0
    %1783 = vmatpush1.msra.mxu0 %v507
    %1784 = vmatprep.subr.mxu0 0.0
    %1785 = vmatpush1.msra.mxu0 %v508
    %1786 = vmatprep.subr.mxu0 0.0
    %1787 = vmatpush1.msra.mxu0 %v509
    %1788 = vmatprep.subr.mxu0 0.0
    %1789 = vmatpush1.msra.mxu0 %v510
    %1790 = vmatprep.subr.mxu0 0.0
    %1791 = vmatpush1.msra.mxu0 %v511
    %1792 = vmatprep.subr.mxu0 0.0
    %1793 = vmatpush1.msra.mxu0 %v512
    %1794 = vmatprep.subr.mxu0 0.0
    %1795 = vmatpush1.msra.mxu0 %v513
    %1796 = vmatprep.subr.mxu0 0.0
    %1797 = vmatpush1.msra.mxu0 %v514
    %1798 = vmatprep.subr.mxu0 0.0
    %1799 = vmatpush1.msra.mxu0 %v515
    %1800 = vmatprep.subr.mxu0 0.0
    %1801 = vmatpush1.msra.mxu0 %v516
    %1802 = vmatprep.subr.mxu0 0.0
    %1803 = vmatpush1.msra.mxu0 %v517
    %1804 = vmatprep.subr.mxu0 0.0
    %1805 = vmatpush1.msra.mxu0 %v518
    %1806 = vmatprep.subr.mxu0 0.0
    %1807 = vmatpush1.msra.mxu0 %v519
    %1808 = vmatprep.subr.mxu0 0.0
    %1809 = vmatpush1.msra.mxu0 %v520
    %1810 = vmatprep.subr.mxu0 0.0
    %1811 = vmatpush1.msra.mxu0 %v521
    %1812 = vmatprep.subr.mxu0 0.0
    %1813 = vmatpush1.msra.mxu0 %v522
    %1814 = vmatprep.subr.mxu0 0.0
    %1815 = vmatpush1.msra.mxu0 %v523
    %1816 = vmatprep.subr.mxu0 0.0
    %1817 = vmatpush1.msra.mxu0 %v524
    %1818 = vmatprep.subr.mxu0 0.0
    %1819 = vmatpush1.msra.mxu0 %v525
    %1820 = vmatprep.subr.mxu0 0.0
    %1821 = vmatpush1.msra.mxu0 %v526
    %1822 = vmatprep.mubr.f32.mxu0 %v86
    %1823 = vmatmul.mubr.f32.gmra.mrb[0].mxu0 %v85
    %v1824 = vpop.f32.mrb[0].mxu0
    %v1825 = vadd.f32 %v1755, %v1824
    %v1826 = vpop.f32.mrb[0].mxu0
    %1827 = vdwg.mxu0
    %1828 = vmatprep.subr.mxu0 0.0
    %1829 = vmatpush1.msra.mxu0 %v527
    %1830 = vmatprep.subr.mxu0 0.0
    %1831 = vmatpush1.msra.mxu0 %v528
    %1832 = vmatprep.subr.mxu0 0.0
    %1833 = vmatpush1.msra.mxu0 %v529
    %1834 = vmatprep.subr.mxu0 0.0
    %1835 = vmatpush1.msra.mxu0 %v530
    %1836 = vmatprep.subr.mxu0 0.0
    %1837 = vmatpush1.msra.mxu0 %v531
    %1838 = vmatprep.subr.mxu0 0.0
    %1839 = vmatpush1.msra.mxu0 %v532
    %1840 = vmatprep.subr.mxu0 0.0
    %1841 = vmatpush1.msra.mxu0 %v533
    %1842 = vmatprep.subr.mxu0 0.0
    %1843 = vmatpush1.msra.mxu0 %v534
    %1844 = vmatprep.subr.mxu0 0.0
    %1845 = vmatpush1.msra.mxu0 %v535
    %1846 = vmatprep.subr.mxu0 0.0
    %1847 = vmatpush1.msra.mxu0 %v536
    %1848 = vmatprep.subr.mxu0 0.0
    %1849 = vmatpush1.msra.mxu0 %v537
    %1850 = vmatprep.subr.mxu0 0.0
    %1851 = vmatpush1.msra.mxu0 %v538
    %1852 = vmatprep.subr.mxu0 0.0
    %1853 = vmatpush1.msra.mxu0 %v539
    %1854 = vmatprep.subr.mxu0 0.0
    %1855 = vmatpush1.msra.mxu0 %v540
    %1856 = vmatprep.subr.mxu0 0.0
    %1857 = vmatpush1.msra.mxu0 %v541
    %1858 = vmatprep.subr.mxu0 0.0
    %1859 = vmatpush1.msra.mxu0 %v542
    %1860 = vmatprep.subr.mxu0 0.0
    %1861 = vmatpush1.msra.mxu0 %v543
    %1862 = vmatprep.subr.mxu0 0.0
    %1863 = vmatpush1.msra.mxu0 %v544
    %1864 = vmatprep.subr.mxu0 0.0
    %1865 = vmatpush1.msra.mxu0 %v545
    %1866 = vmatprep.subr.mxu0 0.0
    %1867 = vmatpush1.msra.mxu0 %v546
    %1868 = vmatprep.subr.mxu0 0.0
    %1869 = vmatpush1.msra.mxu0 %v547
    %1870 = vmatprep.subr.mxu0 0.0
    %1871 = vmatpush1.msra.mxu0 %v548
    %1872 = vmatprep.subr.mxu0 0.0
    %1873 = vmatpush1.msra.mxu0 %v549
    %1874 = vmatprep.subr.mxu0 0.0
    %1875 = vmatpush1.msra.mxu0 %v550
    %1876 = vmatprep.subr.mxu0 0.0
    %1877 = vmatpush1.msra.mxu0 %v551
    %1878 = vmatprep.subr.mxu0 0.0
    %1879 = vmatpush1.msra.mxu0 %v552
    %1880 = vmatprep.subr.mxu0 0.0
    %1881 = vmatpush1.msra.mxu0 %v553
    %1882 = vmatprep.subr.mxu0 0.0
    %1883 = vmatpush1.msra.mxu0 %v554
    %1884 = vmatprep.subr.mxu0 0.0
    %1885 = vmatpush1.msra.mxu0 %v555
    %1886 = vmatprep.subr.mxu0 0.0
    %1887 = vmatpush1.msra.mxu0 %v556
    %1888 = vmatprep.subr.mxu0 0.0
    %1889 = vmatpush1.msra.mxu0 %v557
    %1890 = vmatprep.subr.mxu0 0.0
    %1891 = vmatpush1.msra.mxu0 %v558
    %1892 = vmatprep.mubr.f32.mxu0 %v88
    %1893 = vmatmul.mubr.f32.gmra.mrb[0].mxu0 %v87
    %v1894 = vpop.f32.mrb[0].mxu0
    %v1895 = vadd.f32 %v1825, %v1894
    %v1896 = vpop.f32.mrb[0].mxu0
    %1897 = vdwg.mxu0
    %1898 = vmatprep.subr.mxu0 0.0
    %1899 = vmatpush1.msra.mxu0 %v559
    %1900 = vmatprep.subr.mxu0 0.0
    %1901 = vmatpush1.msra.mxu0 %v560
    %1902 = vmatprep.subr.mxu0 0.0
    %1903 = vmatpush1.msra.mxu0 %v561
    %1904 = vmatprep.subr.mxu0 0.0
    %1905 = vmatpush1.msra.mxu0 %v562
    %1906 = vmatprep.subr.mxu0 0.0
    %1907 = vmatpush1.msra.mxu0 %v563
    %1908 = vmatprep.subr.mxu0 0.0
    %1909 = vmatpush1.msra.mxu0 %v564
    %1910 = vmatprep.subr.mxu0 0.0
    %1911 = vmatpush1.msra.mxu0 %v565
    %1912 = vmatprep.subr.mxu0 0.0
    %1913 = vmatpush1.msra.mxu0 %v566
    %1914 = vmatprep.subr.mxu0 0.0
    %1915 = vmatpush1.msra.mxu0 %v567
    %1916 = vmatprep.subr.mxu0 0.0
    %1917 = vmatpush1.msra.mxu0 %v568
    %1918 = vmatprep.subr.mxu0 0.0
    %1919 = vmatpush1.msra.mxu0 %v569
    %1920 = vmatprep.subr.mxu0 0.0
    %1921 = vmatpush1.msra.mxu0 %v570
    %1922 = vmatprep.subr.mxu0 0.0
    %1923 = vmatpush1.msra.mxu0 %v571
    %1924 = vmatprep.subr.mxu0 0.0
    %1925 = vmatpush1.msra.mxu0 %v572
    %1926 = vmatprep.subr.mxu0 0.0
    %1927 = vmatpush1.msra.mxu0 %v573
    %1928 = vmatprep.subr.mxu0 0.0
    %1929 = vmatpush1.msra.mxu0 %v574
    %1930 = vmatprep.subr.mxu0 0.0
    %1931 = vmatpush1.msra.mxu0 %v575
    %1932 = vmatprep.subr.mxu0 0.0
    %1933 = vmatpush1.msra.mxu0 %v576
    %1934 = vmatprep.subr.mxu0 0.0
    %1935 = vmatpush1.msra.mxu0 %v577
    %1936 = vmatprep.subr.mxu0 0.0
    %1937 = vmatpush1.msra.mxu0 %v578
    %1938 = vmatprep.subr.mxu0 0.0
    %1939 = vmatpush1.msra.mxu0 %v579
    %1940 = vmatprep.subr.mxu0 0.0
    %1941 = vmatpush1.msra.mxu0 %v580
    %1942 = vmatprep.subr.mxu0 0.0
    %1943 = vmatpush1.msra.mxu0 %v581
    %1944 = vmatprep.subr.mxu0 0.0
    %1945 = vmatpush1.msra.mxu0 %v582
    %1946 = vmatprep.subr.mxu0 0.0
    %1947 = vmatpush1.msra.mxu0 %v583
    %1948 = vmatprep.subr.mxu0 0.0
    %1949 = vmatpush1.msra.mxu0 %v584
    %1950 = vmatprep.subr.mxu0 0.0
    %1951 = vmatpush1.msra.mxu0 %v585
    %1952 = vmatprep.subr.mxu0 0.0
    %1953 = vmatpush1.msra.mxu0 %v586
    %1954 = vmatprep.subr.mxu0 0.0
    %1955 = vmatpush1.msra.mxu0 %v587
    %1956 = vmatprep.subr.mxu0 0.0
    %1957 = vmatpush1.msra.mxu0 %v588
    %1958 = vmatprep.subr.mxu0 0.0
    %1959 = vmatpush1.msra.mxu0 %v589
    %1960 = vmatprep.subr.mxu0 0.0
    %1961 = vmatpush1.msra.mxu0 %v590
    %1962 = vmatprep.mubr.f32.mxu0 %v90
    %1963 = vmatmul.mubr.f32.gmra.mrb[0].mxu0 %v89
    %v1964 = vpop.f32.mrb[0].mxu0
    %v1965 = vadd.f32 %v1895, %v1964
    %v1966 = vpop.f32.mrb[0].mxu0
    %1967 = vdwg.mxu0
    %1968 = vmatprep.subr.mxu0 0.0
    %1969 = vmatpush1.msra.mxu0 %v591
    %1970 = vmatprep.subr.mxu0 0.0
    %1971 = vmatpush1.msra.mxu0 %v592
    %1972 = vmatprep.subr.mxu0 0.0
    %1973 = vmatpush1.msra.mxu0 %v593
    %1974 = vmatprep.subr.mxu0 0.0
    %1975 = vmatpush1.msra.mxu0 %v594
    %1976 = vmatprep.subr.mxu0 0.0
    %1977 = vmatpush1.msra.mxu0 %v595
    %1978 = vmatprep.subr.mxu0 0.0
    %1979 = vmatpush1.msra.mxu0 %v596
    %1980 = vmatprep.subr.mxu0 0.0
    %1981 = vmatpush1.msra.mxu0 %v597
    %1982 = vmatprep.subr.mxu0 0.0
    %1983 = vmatpush1.msra.mxu0 %v598
    %1984 = vmatprep.subr.mxu0 0.0
    %1985 = vmatpush1.msra.mxu0 %v599
    %1986 = vmatprep.subr.mxu0 0.0
    %1987 = vmatpush1.msra.mxu0 %v600
    %1988 = vmatprep.subr.mxu0 0.0
    %1989 = vmatpush1.msra.mxu0 %v601
    %1990 = vmatprep.subr.mxu0 0.0
    %1991 = vmatpush1.msra.mxu0 %v602
    %1992 = vmatprep.subr.mxu0 0.0
    %1993 = vmatpush1.msra.mxu0 %v603
    %1994 = vmatprep.subr.mxu0 0.0
    %1995 = vmatpush1.msra.mxu0 %v604
    %1996 = vmatprep.subr.mxu0 0.0
    %1997 = vmatpush1.msra.mxu0 %v605
    %1998 = vmatprep.subr.mxu0 0.0
    %1999 = vmatpush1.msra.mxu0 %v606
    %2000 = vmatprep.subr.mxu0 0.0
    %2001 = vmatpush1.msra.mxu0 %v607
    %2002 = vmatprep.subr.mxu0 0.0
    %2003 = vmatpush1.msra.mxu0 %v608
    %2004 = vmatprep.subr.mxu0 0.0
    %2005 = vmatpush1.msra.mxu0 %v609
    %2006 = vmatprep.subr.mxu0 0.0
    %2007 = vmatpush1.msra.mxu0 %v610
    %2008 = vmatprep.subr.mxu0 0.0
    %2009 = vmatpush1.msra.mxu0 %v611
    %2010 = vmatprep.subr.mxu0 0.0
    %2011 = vmatpush1.msra.mxu0 %v612
    %2012 = vmatprep.subr.mxu0 0.0
    %2013 = vmatpush1.msra.mxu0 %v613
    %2014 = vmatprep.subr.mxu0 0.0
    %2015 = vmatpush1.msra.mxu0 %v614
    %2016 = vmatprep.subr.mxu0 0.0
    %2017 = vmatpush1.msra.mxu0 %v615
    %2018 = vmatprep.subr.mxu0 0.0
    %2019 = vmatpush1.msra.mxu0 %v616
    %2020 = vmatprep.subr.mxu0 0.0
    %2021 = vmatpush1.msra.mxu0 %v617
    %2022 = vmatprep.subr.mxu0 0.0
    %2023 = vmatpush1.msra.mxu0 %v618
    %2024 = vmatprep.subr.mxu0 0.0
    %2025 = vmatpush1.msra.mxu0 %v619
    %2026 = vmatprep.subr.mxu0 0.0
    %2027 = vmatpush1.msra.mxu0 %v620
    %2028 = vmatprep.subr.mxu0 0.0
    %2029 = vmatpush1.msra.mxu0 %v621
    %2030 = vmatprep.subr.mxu0 0.0
    %2031 = vmatpush1.msra.mxu0 %v622
    %2032 = vmatprep.mubr.f32.mxu0 %v92
    %2033 = vmatmul.mubr.f32.gmra.mrb[0].mxu0 %v91
    %v2034 = vpop.f32.mrb[0].mxu0
    %v2035 = vadd.f32 %v1965, %v2034
    %v2036 = vpop.f32.mrb[0].mxu0
    %2037 = vdwg.mxu0
    %2038 = vmatprep.subr.mxu0 0.0
    %2039 = vmatpush1.msra.mxu0 %v623
    %2040 = vmatprep.subr.mxu0 0.0
    %2041 = vmatpush1.msra.mxu0 %v624
    %2042 = vmatprep.subr.mxu0 0.0
    %2043 = vmatpush1.msra.mxu0 %v625
    %2044 = vmatprep.subr.mxu0 0.0
    %2045 = vmatpush1.msra.mxu0 %v626
    %2046 = vmatprep.subr.mxu0 0.0
    %2047 = vmatpush1.msra.mxu0 %v627
    %2048 = vmatprep.subr.mxu0 0.0
    %2049 = vmatpush1.msra.mxu0 %v628
    %2050 = vmatprep.subr.mxu0 0.0
    %2051 = vmatpush1.msra.mxu0 %v629
    %2052 = vmatprep.subr.mxu0 0.0
    %2053 = vmatpush1.msra.mxu0 %v630
    %2054 = vmatprep.subr.mxu0 0.0
    %2055 = vmatpush1.msra.mxu0 %v631
    %2056 = vmatprep.subr.mxu0 0.0
    %2057 = vmatpush1.msra.mxu0 %v632
    %2058 = vmatprep.subr.mxu0 0.0
    %2059 = vmatpush1.msra.mxu0 %v633
    %2060 = vmatprep.subr.mxu0 0.0
    %2061 = vmatpush1.msra.mxu0 %v634
    %2062 = vmatprep.subr.mxu0 0.0
    %2063 = vmatpush1.msra.mxu0 %v635
    %2064 = vmatprep.subr.mxu0 0.0
    %2065 = vmatpush1.msra.mxu0 %v636
    %2066 = vmatprep.subr.mxu0 0.0
    %2067 = vmatpush1.msra.mxu0 %v637
    %2068 = vmatprep.subr.mxu0 0.0
    %2069 = vmatpush1.msra.mxu0 %v638
    %2070 = vmatprep.subr.mxu0 0.0
    %2071 = vmatpush1.msra.mxu0 %v639
    %2072 = vmatprep.subr.mxu0 0.0
    %2073 = vmatpush1.msra.mxu0 %v640
    %2074 = vmatprep.subr.mxu0 0.0
    %2075 = vmatpush1.msra.mxu0 %v641
    %2076 = vmatprep.subr.mxu0 0.0
    %2077 = vmatpush1.msra.mxu0 %v642
    %2078 = vmatprep.subr.mxu0 0.0
    %2079 = vmatpush1.msra.mxu0 %v643
    %2080 = vmatprep.subr.mxu0 0.0
    %2081 = vmatpush1.msra.mxu0 %v644
    %2082 = vmatprep.subr.mxu0 0.0
    %2083 = vmatpush1.msra.mxu0 %v645
    %2084 = vmatprep.subr.mxu0 0.0
    %2085 = vmatpush1.msra.mxu0 %v646
    %2086 = vmatprep.subr.mxu0 0.0
    %2087 = vmatpush1.msra.mxu0 %v647
    %2088 = vmatprep.subr.mxu0 0.0
    %2089 = vmatpush1.msra.mxu0 %v648
    %2090 = vmatprep.subr.mxu0 0.0
    %2091 = vmatpush1.msra.mxu0 %v649
    %2092 = vmatprep.subr.mxu0 0.0
    %2093 = vmatpush1.msra.mxu0 %v650
    %2094 = vmatprep.subr.mxu0 0.0
    %2095 = vmatpush1.msra.mxu0 %v651
    %2096 = vmatprep.subr.mxu0 0.0
    %2097 = vmatpush1.msra.mxu0 %v652
    %2098 = vmatprep.subr.mxu0 0.0
    %2099 = vmatpush1.msra.mxu0 %v653
    %2100 = vmatprep.subr.mxu0 0.0
    %2101 = vmatpush1.msra.mxu0 %v654
    %2102 = vmatprep.mubr.f32.mxu0 %v94
    %2103 = vmatmul.mubr.f32.gmra.mrb[0].mxu0 %v93
    %v2104 = vpop.f32.mrb[0].mxu0
    %v2105 = vadd.f32 %v2035, %v2104
    %v2106 = vpop.f32.mrb[0].mxu0
    %2107 = vdwg.mxu0
    %2108 = vmatprep.subr.mxu0 0.0
    %2109 = vmatpush1.msra.mxu0 %v655
    %2110 = vmatprep.subr.mxu0 0.0
    %2111 = vmatpush1.msra.mxu0 %v656
    %2112 = vmatprep.subr.mxu0 0.0
    %2113 = vmatpush1.msra.mxu0 %v657
    %2114 = vmatprep.subr.mxu0 0.0
    %2115 = vmatpush1.msra.mxu0 %v658
    %2116 = vmatprep.subr.mxu0 0.0
    %2117 = vmatpush1.msra.mxu0 %v659
    %2118 = vmatprep.subr.mxu0 0.0
    %2119 = vmatpush1.msra.mxu0 %v660
    %2120 = vmatprep.subr.mxu0 0.0
    %2121 = vmatpush1.msra.mxu0 %v661
    %2122 = vmatprep.subr.mxu0 0.0
    %2123 = vmatpush1.msra.mxu0 %v662
    %2124 = vmatprep.subr.mxu0 0.0
    %2125 = vmatpush1.msra.mxu0 %v663
    %2126 = vmatprep.subr.mxu0 0.0
    %2127 = vmatpush1.msra.mxu0 %v664
    %2128 = vmatprep.subr.mxu0 0.0
    %2129 = vmatpush1.msra.mxu0 %v665
    %2130 = vmatprep.subr.mxu0 0.0
    %2131 = vmatpush1.msra.mxu0 %v666
    %2132 = vmatprep.subr.mxu0 0.0
    %2133 = vmatpush1.msra.mxu0 %v667
    %2134 = vmatprep.subr.mxu0 0.0
    %2135 = vmatpush1.msra.mxu0 %v668
    %2136 = vmatprep.subr.mxu0 0.0
    %2137 = vmatpush1.msra.mxu0 %v669
    %2138 = vmatprep.subr.mxu0 0.0
    %2139 = vmatpush1.msra.mxu0 %v670
    %2140 = vmatprep.subr.mxu0 0.0
    %2141 = vmatpush1.msra.mxu0 %v671
    %2142 = vmatprep.subr.mxu0 0.0
    %2143 = vmatpush1.msra.mxu0 %v672
    %2144 = vmatprep.subr.mxu0 0.0
    %2145 = vmatpush1.msra.mxu0 %v673
    %2146 = vmatprep.subr.mxu0 0.0
    %2147 = vmatpush1.msra.mxu0 %v674
    %2148 = vmatprep.subr.mxu0 0.0
    %2149 = vmatpush1.msra.mxu0 %v675
    %2150 = vmatprep.subr.mxu0 0.0
    %2151 = vmatpush1.msra.mxu0 %v676
    %2152 = vmatprep.subr.mxu0 0.0
    %2153 = vmatpush1.msra.mxu0 %v677
    %2154 = vmatprep.subr.mxu0 0.0
    %2155 = vmatpush1.msra.mxu0 %v678
    %2156 = vmatprep.subr.mxu0 0.0
    %2157 = vmatpush1.msra.mxu0 %v679
    %2158 = vmatprep.subr.mxu0 0.0
    %2159 = vmatpush1.msra.mxu0 %v680
    %2160 = vmatprep.subr.mxu0 0.0
    %2161 = vmatpush1.msra.mxu0 %v681
    %2162 = vmatprep.subr.mxu0 0.0
    %2163 = vmatpush1.msra.mxu0 %v682
    %2164 = vmatprep.subr.mxu0 0.0
    %2165 = vmatpush1.msra.mxu0 %v683
    %2166 = vmatprep.subr.mxu0 0.0
    %2167 = vmatpush1.msra.mxu0 %v684
    %2168 = vmatprep.subr.mxu0 0.0
    %2169 = vmatpush1.msra.mxu0 %v685
    %2170 = vmatprep.subr.mxu0 0.0
    %2171 = vmatpush1.msra.mxu0 %v686
    %2172 = vmatprep.mubr.f32.mxu0 %v96
    %2173 = vmatmul.mubr.f32.gmra.mrb[0].mxu0 %v95
    %v2174 = vpop.f32.mrb[0].mxu0
    %v2175 = vadd.f32 %v2105, %v2174
    %v2176 = vpop.f32.mrb[0].mxu0
    %2177 = vdwg.mxu0
    %2178 = vmatprep.subr.mxu0 0.0
    %2179 = vmatpush1.msra.mxu0 %v687
    %2180 = vmatprep.subr.mxu0 0.0
    %2181 = vmatpush1.msra.mxu0 %v688
    %2182 = vmatprep.subr.mxu0 0.0
    %2183 = vmatpush1.msra.mxu0 %v689
    %2184 = vmatprep.subr.mxu0 0.0
    %2185 = vmatpush1.msra.mxu0 %v690
    %2186 = vmatprep.subr.mxu0 0.0
    %2187 = vmatpush1.msra.mxu0 %v691
    %2188 = vmatprep.subr.mxu0 0.0
    %2189 = vmatpush1.msra.mxu0 %v692
    %2190 = vmatprep.subr.mxu0 0.0
    %2191 = vmatpush1.msra.mxu0 %v693
    %2192 = vmatprep.subr.mxu0 0.0
    %2193 = vmatpush1.msra.mxu0 %v694
    %2194 = vmatprep.subr.mxu0 0.0
    %2195 = vmatpush1.msra.mxu0 %v695
    %2196 = vmatprep.subr.mxu0 0.0
    %2197 = vmatpush1.msra.mxu0 %v696
    %2198 = vmatprep.subr.mxu0 0.0
    %2199 = vmatpush1.msra.mxu0 %v697
    %2200 = vmatprep.subr.mxu0 0.0
    %2201 = vmatpush1.msra.mxu0 %v698
    %2202 = vmatprep.subr.mxu0 0.0
    %2203 = vmatpush1.msra.mxu0 %v699
    %2204 = vmatprep.subr.mxu0 0.0
    %2205 = vmatpush1.msra.mxu0 %v700
    %2206 = vmatprep.subr.mxu0 0.0
    %2207 = vmatpush1.msra.mxu0 %v701
    %2208 = vmatprep.subr.mxu0 0.0
    %2209 = vmatpush1.msra.mxu0 %v702
    %2210 = vmatprep.subr.mxu0 0.0
    %2211 = vmatpush1.msra.mxu0 %v703
    %2212 = vmatprep.subr.mxu0 0.0
    %2213 = vmatpush1.msra.mxu0 %v704
    %2214 = vmatprep.subr.mxu0 0.0
    %2215 = vmatpush1.msra.mxu0 %v705
    %2216 = vmatprep.subr.mxu0 0.0
    %2217 = vmatpush1.msra.mxu0 %v706
    %2218 = vmatprep.subr.mxu0 0.0
    %2219 = vmatpush1.msra.mxu0 %v707
    %2220 = vmatprep.subr.mxu0 0.0
    %2221 = vmatpush1.msra.mxu0 %v708
    %2222 = vmatprep.subr.mxu0 0.0
    %2223 = vmatpush1.msra.mxu0 %v709
    %2224 = vmatprep.subr.mxu0 0.0
    %2225 = vmatpush1.msra.mxu0 %v710
    %2226 = vmatprep.subr.mxu0 0.0
    %2227 = vmatpush1.msra.mxu0 %v711
    %2228 = vmatprep.subr.mxu0 0.0
    %2229 = vmatpush1.msra.mxu0 %v712
    %2230 = vmatprep.subr.mxu0 0.0
    %2231 = vmatpush1.msra.mxu0 %v713
    %2232 = vmatprep.subr.mxu0 0.0
    %2233 = vmatpush1.msra.mxu0 %v714
    %2234 = vmatprep.subr.mxu0 0.0
    %2235 = vmatpush1.msra.mxu0 %v715
    %2236 = vmatprep.subr.mxu0 0.0
    %2237 = vmatpush1.msra.mxu0 %v716
    %2238 = vmatprep.subr.mxu0 0.0
    %2239 = vmatpush1.msra.mxu0 %v717
    %2240 = vmatprep.subr.mxu0 0.0
    %2241 = vmatpush1.msra.mxu0 %v718
    %2242 = vmatprep.mubr.f32.mxu0 %v98
    %2243 = vmatmul.mubr.f32.gmra.mrb[0].mxu0 %v97
    %v2244 = vpop.f32.mrb[0].mxu0
    %v2245 = vadd.f32 %v2175, %v2244
    %v2246 = vpop.f32.mrb[0].mxu0
    %2247 = vdwg.mxu0
    %2248 = vmatprep.subr.mxu0 0.0
    %2249 = vmatpush1.msra.mxu0 %v719
    %2250 = vmatprep.subr.mxu0 0.0
    %2251 = vmatpush1.msra.mxu0 %v720
    %2252 = vmatprep.subr.mxu0 0.0
    %2253 = vmatpush1.msra.mxu0 %v721
    %2254 = vmatprep.subr.mxu0 0.0
    %2255 = vmatpush1.msra.mxu0 %v722
    %2256 = vmatprep.subr.mxu0 0.0
    %2257 = vmatpush1.msra.mxu0 %v723
    %2258 = vmatprep.subr.mxu0 0.0
    %2259 = vmatpush1.msra.mxu0 %v724
    %2260 = vmatprep.subr.mxu0 0.0
    %2261 = vmatpush1.msra.mxu0 %v725
    %2262 = vmatprep.subr.mxu0 0.0
    %2263 = vmatpush1.msra.mxu0 %v726
    %2264 = vmatprep.subr.mxu0 0.0
    %2265 = vmatpush1.msra.mxu0 %v727
    %2266 = vmatprep.subr.mxu0 0.0
    %2267 = vmatpush1.msra.mxu0 %v728
    %2268 = vmatprep.subr.mxu0 0.0
    %2269 = vmatpush1.msra.mxu0 %v729
    %2270 = vmatprep.subr.mxu0 0.0
    %2271 = vmatpush1.msra.mxu0 %v730
    %2272 = vmatprep.subr.mxu0 0.0
    %2273 = vmatpush1.msra.mxu0 %v731
    %2274 = vmatprep.subr.mxu0 0.0
    %2275 = vmatpush1.msra.mxu0 %v732
    %2276 = vmatprep.subr.mxu0 0.0
    %2277 = vmatpush1.msra.mxu0 %v733
    %2278 = vmatprep.subr.mxu0 0.0
    %2279 = vmatpush1.msra.mxu0 %v734
    %2280 = vmatprep.subr.mxu0 0.0
    %2281 = vmatpush1.msra.mxu0 %v735
    %2282 = vmatprep.subr.mxu0 0.0
    %2283 = vmatpush1.msra.mxu0 %v736
    %2284 = vmatprep.subr.mxu0 0.0
    %2285 = vmatpush1.msra.mxu0 %v737
    %2286 = vmatprep.subr.mxu0 0.0
    %2287 = vmatpush1.msra.mxu0 %v738
    %2288 = vmatprep.subr.mxu0 0.0
    %2289 = vmatpush1.msra.mxu0 %v739
    %2290 = vmatprep.subr.mxu0 0.0
    %2291 = vmatpush1.msra.mxu0 %v740
    %2292 = vmatprep.subr.mxu0 0.0
    %2293 = vmatpush1.msra.mxu0 %v741
    %2294 = vmatprep.subr.mxu0 0.0
    %2295 = vmatpush1.msra.mxu0 %v742
    %2296 = vmatprep.subr.mxu0 0.0
    %2297 = vmatpush1.msra.mxu0 %v743
    %2298 = vmatprep.subr.mxu0 0.0
    %2299 = vmatpush1.msra.mxu0 %v744
    %2300 = vmatprep.subr.mxu0 0.0
    %2301 = vmatpush1.msra.mxu0 %v745
    %2302 = vmatprep.subr.mxu0 0.0
    %2303 = vmatpush1.msra.mxu0 %v746
    %2304 = vmatprep.subr.mxu0 0.0
    %2305 = vmatpush1.msra.mxu0 %v747
    %2306 = vmatprep.subr.mxu0 0.0
    %2307 = vmatpush1.msra.mxu0 %v748
    %2308 = vmatprep.subr.mxu0 0.0
    %2309 = vmatpush1.msra.mxu0 %v749
    %2310 = vmatprep.subr.mxu0 0.0
    %2311 = vmatpush1.msra.mxu0 %v750
    %2312 = vmatprep.mubr.f32.mxu0 %v100
    %2313 = vmatmul.mubr.f32.gmra.mrb[0].mxu0 %v99
    %v2314 = vpop.f32.mrb[0].mxu0
    %v2315 = vadd.f32 %v2245, %v2314
    %v2316 = vpop.f32.mrb[0].mxu0
    %2317 = vdwg.mxu0
    %2318 = vmatprep.subr.mxu0 0.0
    %2319 = vmatpush1.msra.mxu0 %v751
    %2320 = vmatprep.subr.mxu0 0.0
    %2321 = vmatpush1.msra.mxu0 %v752
    %2322 = vmatprep.subr.mxu0 0.0
    %2323 = vmatpush1.msra.mxu0 %v753
    %2324 = vmatprep.subr.mxu0 0.0
    %2325 = vmatpush1.msra.mxu0 %v754
    %2326 = vmatprep.subr.mxu0 0.0
    %2327 = vmatpush1.msra.mxu0 %v755
    %2328 = vmatprep.subr.mxu0 0.0
    %2329 = vmatpush1.msra.mxu0 %v756
    %2330 = vmatprep.subr.mxu0 0.0
    %2331 = vmatpush1.msra.mxu0 %v757
    %2332 = vmatprep.subr.mxu0 0.0
    %2333 = vmatpush1.msra.mxu0 %v758
    %2334 = vmatprep.subr.mxu0 0.0
    %2335 = vmatpush1.msra.mxu0 %v759
    %2336 = vmatprep.subr.mxu0 0.0
    %2337 = vmatpush1.msra.mxu0 %v760
    %2338 = vmatprep.subr.mxu0 0.0
    %2339 = vmatpush1.msra.mxu0 %v761
    %2340 = vmatprep.subr.mxu0 0.0
    %2341 = vmatpush1.msra.mxu0 %v762
    %2342 = vmatprep.subr.mxu0 0.0
    %2343 = vmatpush1.msra.mxu0 %v763
    %2344 = vmatprep.subr.mxu0 0.0
    %2345 = vmatpush1.msra.mxu0 %v764
    %2346 = vmatprep.subr.mxu0 0.0
    %2347 = vmatpush1.msra.mxu0 %v765
    %2348 = vmatprep.subr.mxu0 0.0
    %2349 = vmatpush1.msra.mxu0 %v766
    %2350 = vmatprep.subr.mxu0 0.0
    %2351 = vmatpush1.msra.mxu0 %v767
    %2352 = vmatprep.subr.mxu0 0.0
    %2353 = vmatpush1.msra.mxu0 %v768
    %2354 = vmatprep.subr.mxu0 0.0
    %2355 = vmatpush1.msra.mxu0 %v769
    %2356 = vmatprep.subr.mxu0 0.0
    %2357 = vmatpush1.msra.mxu0 %v770
    %2358 = vmatprep.subr.mxu0 0.0
    %2359 = vmatpush1.msra.mxu0 %v771
    %2360 = vmatprep.subr.mxu0 0.0
    %2361 = vmatpush1.msra.mxu0 %v772
    %2362 = vmatprep.subr.mxu0 0.0
    %2363 = vmatpush1.msra.mxu0 %v773
    %2364 = vmatprep.subr.mxu0 0.0
    %2365 = vmatpush1.msra.mxu0 %v774
    %2366 = vmatprep.subr.mxu0 0.0
    %2367 = vmatpush1.msra.mxu0 %v775
    %2368 = vmatprep.subr.mxu0 0.0
    %2369 = vmatpush1.msra.mxu0 %v776
    %2370 = vmatprep.subr.mxu0 0.0
    %2371 = vmatpush1.msra.mxu0 %v777
    %2372 = vmatprep.subr.mxu0 0.0
    %2373 = vmatpush1.msra.mxu0 %v778
    %2374 = vmatprep.subr.mxu0 0.0
    %2375 = vmatpush1.msra.mxu0 %v779
    %2376 = vmatprep.subr.mxu0 0.0
    %2377 = vmatpush1.msra.mxu0 %v780
    %2378 = vmatprep.subr.mxu0 0.0
    %2379 = vmatpush1.msra.mxu0 %v781
    %2380 = vmatprep.subr.mxu0 0.0
    %2381 = vmatpush1.msra.mxu0 %v782
    %2382 = vmatprep.mubr.f32.mxu0 %v102
    %2383 = vmatmul.mubr.f32.gmra.mrb[0].mxu0 %v101
    %v2384 = vpop.f32.mrb[0].mxu0
    %v2385 = vadd.f32 %v2315, %v2384
    %v2386 = vpop.f32.mrb[0].mxu0
    %2387 = vdwg.mxu0
    %2388 = vmatprep.subr.mxu0 0.0
    %2389 = vmatpush1.msra.mxu0 %v783
    %2390 = vmatprep.subr.mxu0 0.0
    %2391 = vmatpush1.msra.mxu0 %v784
    %2392 = vmatprep.subr.mxu0 0.0
    %2393 = vmatpush1.msra.mxu0 %v785
    %2394 = vmatprep.subr.mxu0 0.0
    %2395 = vmatpush1.msra.mxu0 %v786
    %2396 = vmatprep.subr.mxu0 0.0
    %2397 = vmatpush1.msra.mxu0 %v787
    %2398 = vmatprep.subr.mxu0 0.0
    %2399 = vmatpush1.msra.mxu0 %v788
    %2400 = vmatprep.subr.mxu0 0.0
    %2401 = vmatpush1.msra.mxu0 %v789
    %2402 = vmatprep.subr.mxu0 0.0
    %2403 = vmatpush1.msra.mxu0 %v790
    %2404 = vmatprep.subr.mxu0 0.0
    %2405 = vmatpush1.msra.mxu0 %v791
    %2406 = vmatprep.subr.mxu0 0.0
    %2407 = vmatpush1.msra.mxu0 %v792
    %2408 = vmatprep.subr.mxu0 0.0
    %2409 = vmatpush1.msra.mxu0 %v793
    %2410 = vmatprep.subr.mxu0 0.0
    %2411 = vmatpush1.msra.mxu0 %v794
    %2412 = vmatprep.subr.mxu0 0.0
    %2413 = vmatpush1.msra.mxu0 %v795
    %2414 = vmatprep.subr.mxu0 0.0
    %2415 = vmatpush1.msra.mxu0 %v796
    %2416 = vmatprep.subr.mxu0 0.0
    %2417 = vmatpush1.msra.mxu0 %v797
    %2418 = vmatprep.subr.mxu0 0.0
    %2419 = vmatpush1.msra.mxu0 %v798
    %2420 = vmatprep.subr.mxu0 0.0
    %2421 = vmatpush1.msra.mxu0 %v799
    %2422 = vmatprep.subr.mxu0 0.0
    %2423 = vmatpush1.msra.mxu0 %v800
    %2424 = vmatprep.subr.mxu0 0.0
    %2425 = vmatpush1.msra.mxu0 %v801
    %2426 = vmatprep.subr.mxu0 0.0
    %2427 = vmatpush1.msra.mxu0 %v802
    %2428 = vmatprep.subr.mxu0 0.0
    %2429 = vmatpush1.msra.mxu0 %v803
    %2430 = vmatprep.subr.mxu0 0.0
    %2431 = vmatpush1.msra.mxu0 %v804
    %2432 = vmatprep.subr.mxu0 0.0
    %2433 = vmatpush1.msra.mxu0 %v805
    %2434 = vmatprep.subr.mxu0 0.0
    %2435 = vmatpush1.msra.mxu0 %v806
    %2436 = vmatprep.subr.mxu0 0.0
    %2437 = vmatpush1.msra.mxu0 %v807
    %2438 = vmatprep.subr.mxu0 0.0
    %2439 = vmatpush1.msra.mxu0 %v808
    %2440 = vmatprep.subr.mxu0 0.0
    %2441 = vmatpush1.msra.mxu0 %v809
    %2442 = vmatprep.subr.mxu0 0.0
    %2443 = vmatpush1.msra.mxu0 %v810
    %2444 = vmatprep.subr.mxu0 0.0
    %2445 = vmatpush1.msra.mxu0 %v811
    %2446 = vmatprep.subr.mxu0 0.0
    %2447 = vmatpush1.msra.mxu0 %v812
    %2448 = vmatprep.subr.mxu0 0.0
    %2449 = vmatpush1.msra.mxu0 %v813
    %2450 = vmatprep.subr.mxu0 0.0
    %2451 = vmatpush1.msra.mxu0 %v814
    %2452 = vmatprep.mubr.f32.mxu0 %v104
    %2453 = vmatmul.mubr.f32.gmra.mrb[0].mxu0 %v103
    %v2454 = vpop.f32.mrb[0].mxu0
    %v2455 = vadd.f32 %v2385, %v2454
    %v2456 = vpop.f32.mrb[0].mxu0
    %2457 = vdwg.mxu0
    %2458 = vmatprep.subr.mxu0 0.0
    %2459 = vmatpush1.msra.mxu0 %v815
    %2460 = vmatprep.subr.mxu0 0.0
    %2461 = vmatpush1.msra.mxu0 %v816
    %2462 = vmatprep.subr.mxu0 0.0
    %2463 = vmatpush1.msra.mxu0 %v817
    %2464 = vmatprep.subr.mxu0 0.0
    %2465 = vmatpush1.msra.mxu0 %v818
    %2466 = vmatprep.subr.mxu0 0.0
    %2467 = vmatpush1.msra.mxu0 %v819
    %2468 = vmatprep.subr.mxu0 0.0
    %2469 = vmatpush1.msra.mxu0 %v820
    %2470 = vmatprep.subr.mxu0 0.0
    %2471 = vmatpush1.msra.mxu0 %v821
    %2472 = vmatprep.subr.mxu0 0.0
    %2473 = vmatpush1.msra.mxu0 %v822
    %2474 = vmatprep.subr.mxu0 0.0
    %2475 = vmatpush1.msra.mxu0 %v823
    %2476 = vmatprep.subr.mxu0 0.0
    %2477 = vmatpush1.msra.mxu0 %v824
    %2478 = vmatprep.subr.mxu0 0.0
    %2479 = vmatpush1.msra.mxu0 %v825
    %2480 = vmatprep.subr.mxu0 0.0
    %2481 = vmatpush1.msra.mxu0 %v826
    %2482 = vmatprep.subr.mxu0 0.0
    %2483 = vmatpush1.msra.mxu0 %v827
    %2484 = vmatprep.subr.mxu0 0.0
    %2485 = vmatpush1.msra.mxu0 %v828
    %2486 = vmatprep.subr.mxu0 0.0
    %2487 = vmatpush1.msra.mxu0 %v829
    %2488 = vmatprep.subr.mxu0 0.0
    %2489 = vmatpush1.msra.mxu0 %v830
    %2490 = vmatprep.subr.mxu0 0.0
    %2491 = vmatpush1.msra.mxu0 %v831
    %2492 = vmatprep.subr.mxu0 0.0
    %2493 = vmatpush1.msra.mxu0 %v832
    %2494 = vmatprep.subr.mxu0 0.0
    %2495 = vmatpush1.msra.mxu0 %v833
    %2496 = vmatprep.subr.mxu0 0.0
    %2497 = vmatpush1.msra.mxu0 %v834
    %2498 = vmatprep.subr.mxu0 0.0
    %2499 = vmatpush1.msra.mxu0 %v835
    %2500 = vmatprep.subr.mxu0 0.0
    %2501 = vmatpush1.msra.mxu0 %v836
    %2502 = vmatprep.subr.mxu0 0.0
    %2503 = vmatpush1.msra.mxu0 %v837
    %2504 = vmatprep.subr.mxu0 0.0
    %2505 = vmatpush1.msra.mxu0 %v838
    %2506 = vmatprep.subr.mxu0 0.0
    %2507 = vmatpush1.msra.mxu0 %v839
    %2508 = vmatprep.subr.mxu0 0.0
    %2509 = vmatpush1.msra.mxu0 %v840
    %2510 = vmatprep.subr.mxu0 0.0
    %2511 = vmatpush1.msra.mxu0 %v841
    %2512 = vmatprep.subr.mxu0 0.0
    %2513 = vmatpush1.msra.mxu0 %v842
    %2514 = vmatprep.subr.mxu0 0.0
    %2515 = vmatpush1.msra.mxu0 %v843
    %2516 = vmatprep.subr.mxu0 0.0
    %2517 = vmatpush1.msra.mxu0 %v844
    %2518 = vmatprep.subr.mxu0 0.0
    %2519 = vmatpush1.msra.mxu0 %v845
    %2520 = vmatprep.subr.mxu0 0.0
    %2521 = vmatpush1.msra.mxu0 %v846
    %2522 = vmatprep.mubr.f32.mxu0 %v106
    %2523 = vmatmul.mubr.f32.gmra.mrb[0].mxu0 %v105
    %v2524 = vpop.f32.mrb[0].mxu0
    %v2525 = vadd.f32 %v2455, %v2524
    %v2526 = vpop.f32.mrb[0].mxu0
    %2527 = vdwg.mxu0
    %2528 = vmatprep.subr.mxu0 0.0
    %2529 = vmatpush1.msra.mxu0 %v847
    %2530 = vmatprep.subr.mxu0 0.0
    %2531 = vmatpush1.msra.mxu0 %v848
    %2532 = vmatprep.subr.mxu0 0.0
    %2533 = vmatpush1.msra.mxu0 %v849
    %2534 = vmatprep.subr.mxu0 0.0
    %2535 = vmatpush1.msra.mxu0 %v850
    %2536 = vmatprep.subr.mxu0 0.0
    %2537 = vmatpush1.msra.mxu0 %v851
    %2538 = vmatprep.subr.mxu0 0.0
    %2539 = vmatpush1.msra.mxu0 %v852
    %2540 = vmatprep.subr.mxu0 0.0
    %2541 = vmatpush1.msra.mxu0 %v853
    %2542 = vmatprep.subr.mxu0 0.0
    %2543 = vmatpush1.msra.mxu0 %v854
    %2544 = vmatprep.subr.mxu0 0.0
    %2545 = vmatpush1.msra.mxu0 %v855
    %2546 = vmatprep.subr.mxu0 0.0
    %2547 = vmatpush1.msra.mxu0 %v856
    %2548 = vmatprep.subr.mxu0 0.0
    %2549 = vmatpush1.msra.mxu0 %v857
    %2550 = vmatprep.subr.mxu0 0.0
    %2551 = vmatpush1.msra.mxu0 %v858
    %2552 = vmatprep.subr.mxu0 0.0
    %2553 = vmatpush1.msra.mxu0 %v859
    %2554 = vmatprep.subr.mxu0 0.0
    %2555 = vmatpush1.msra.mxu0 %v860
    %2556 = vmatprep.subr.mxu0 0.0
    %2557 = vmatpush1.msra.mxu0 %v861
    %2558 = vmatprep.subr.mxu0 0.0
    %2559 = vmatpush1.msra.mxu0 %v862
    %2560 = vmatprep.subr.mxu0 0.0
    %2561 = vmatpush1.msra.mxu0 %v863
    %2562 = vmatprep.subr.mxu0 0.0
    %2563 = vmatpush1.msra.mxu0 %v864
    %2564 = vmatprep.subr.mxu0 0.0
    %2565 = vmatpush1.msra.mxu0 %v865
    %2566 = vmatprep.subr.mxu0 0.0
    %2567 = vmatpush1.msra.mxu0 %v866
    %2568 = vmatprep.subr.mxu0 0.0
    %2569 = vmatpush1.msra.mxu0 %v867
    %2570 = vmatprep.subr.mxu0 0.0
    %2571 = vmatpush1.msra.mxu0 %v868
    %2572 = vmatprep.subr.mxu0 0.0
    %2573 = vmatpush1.msra.mxu0 %v869
    %2574 = vmatprep.subr.mxu0 0.0
    %2575 = vmatpush1.msra.mxu0 %v870
    %2576 = vmatprep.subr.mxu0 0.0
    %2577 = vmatpush1.msra.mxu0 %v871
    %2578 = vmatprep.subr.mxu0 0.0
    %2579 = vmatpush1.msra.mxu0 %v872
    %2580 = vmatprep.subr.mxu0 0.0
    %2581 = vmatpush1.msra.mxu0 %v873
    %2582 = vmatprep.subr.mxu0 0.0
    %2583 = vmatpush1.msra.mxu0 %v874
    %2584 = vmatprep.subr.mxu0 0.0
    %2585 = vmatpush1.msra.mxu0 %v875
    %2586 = vmatprep.subr.mxu0 0.0
    %2587 = vmatpush1.msra.mxu0 %v876
    %2588 = vmatprep.subr.mxu0 0.0
    %2589 = vmatpush1.msra.mxu0 %v877
    %2590 = vmatprep.subr.mxu0 0.0
    %2591 = vmatpush1.msra.mxu0 %v878
    %2592 = vmatprep.mubr.f32.mxu0 %v108
    %2593 = vmatmul.mubr.f32.gmra.mrb[0].mxu0 %v107
    %v2594 = vpop.f32.mrb[0].mxu0
    %v2595 = vadd.f32 %v2525, %v2594
    %v2596 = vpop.f32.mrb[0].mxu0
    %2597 = vdwg.mxu0
    %2598 = vmatprep.subr.mxu0 0.0
    %2599 = vmatpush1.msra.mxu0 %v879
    %2600 = vmatprep.subr.mxu0 0.0
    %2601 = vmatpush1.msra.mxu0 %v880
    %2602 = vmatprep.subr.mxu0 0.0
    %2603 = vmatpush1.msra.mxu0 %v881
    %2604 = vmatprep.subr.mxu0 0.0
    %2605 = vmatpush1.msra.mxu0 %v882
    %2606 = vmatprep.subr.mxu0 0.0
    %2607 = vmatpush1.msra.mxu0 %v883
    %2608 = vmatprep.subr.mxu0 0.0
    %2609 = vmatpush1.msra.mxu0 %v884
    %2610 = vmatprep.subr.mxu0 0.0
    %2611 = vmatpush1.msra.mxu0 %v885
    %2612 = vmatprep.subr.mxu0 0.0
    %2613 = vmatpush1.msra.mxu0 %v886
    %2614 = vmatprep.subr.mxu0 0.0
    %2615 = vmatpush1.msra.mxu0 %v887
    %2616 = vmatprep.subr.mxu0 0.0
    %2617 = vmatpush1.msra.mxu0 %v888
    %2618 = vmatprep.subr.mxu0 0.0
    %2619 = vmatpush1.msra.mxu0 %v889
    %2620 = vmatprep.subr.mxu0 0.0
    %2621 = vmatpush1.msra.mxu0 %v890
    %2622 = vmatprep.subr.mxu0 0.0
    %2623 = vmatpush1.msra.mxu0 %v891
    %2624 = vmatprep.subr.mxu0 0.0
    %2625 = vmatpush1.msra.mxu0 %v892
    %2626 = vmatprep.subr.mxu0 0.0
    %2627 = vmatpush1.msra.mxu0 %v893
    %2628 = vmatprep.subr.mxu0 0.0
    %2629 = vmatpush1.msra.mxu0 %v894
    %2630 = vmatprep.subr.mxu0 0.0
    %2631 = vmatpush1.msra.mxu0 %v895
    %2632 = vmatprep.subr.mxu0 0.0
    %2633 = vmatpush1.msra.mxu0 %v896
    %2634 = vmatprep.subr.mxu0 0.0
    %2635 = vmatpush1.msra.mxu0 %v897
    %2636 = vmatprep.subr.mxu0 0.0
    %2637 = vmatpush1.msra.mxu0 %v898
    %2638 = vmatprep.subr.mxu0 0.0
    %2639 = vmatpush1.msra.mxu0 %v899
    %2640 = vmatprep.subr.mxu0 0.0
    %2641 = vmatpush1.msra.mxu0 %v900
    %2642 = vmatprep.subr.mxu0 0.0
    %2643 = vmatpush1.msra.mxu0 %v901
    %2644 = vmatprep.subr.mxu0 0.0
    %2645 = vmatpush1.msra.mxu0 %v902
    %2646 = vmatprep.subr.mxu0 0.0
    %2647 = vmatpush1.msra.mxu0 %v903
    %2648 = vmatprep.subr.mxu0 0.0
    %2649 = vmatpush1.msra.mxu0 %v904
    %2650 = vmatprep.subr.mxu0 0.0
    %2651 = vmatpush1.msra.mxu0 %v905
    %2652 = vmatprep.subr.mxu0 0.0
    %2653 = vmatpush1.msra.mxu0 %v906
    %2654 = vmatprep.subr.mxu0 0.0
    %2655 = vmatpush1.msra.mxu0 %v907
    %2656 = vmatprep.subr.mxu0 0.0
    %2657 = vmatpush1.msra.mxu0 %v908
    %2658 = vmatprep.subr.mxu0 0.0
    %2659 = vmatpush1.msra.mxu0 %v909
    %2660 = vmatprep.subr.mxu0 0.0
    %2661 = vmatpush1.msra.mxu0 %v910
    %2662 = vmatprep.mubr.f32.mxu0 %v110
    %2663 = vmatmul.mubr.f32.gmra.mrb[0].mxu0 %v109
    %v2664 = vpop.f32.mrb[0].mxu0
    %v2665 = vadd.f32 %v2595, %v2664
    %v2666 = vpop.f32.mrb[0].mxu0
    %2667 = vdwg.mxu0
    %v2668 = vmax.f32 %v2665, 0.0
    %v2669 = vld [vmem:[#allocation7] sm:$0xff]
    %v2670 = vld [vmem:[#allocation7 + $0x8] sm:$0xff]
    %v2671 = vld [vmem:[#allocation7 + $0x10] sm:$0xff]
    %v2672 = vld [vmem:[#allocation7 + $0x18] sm:$0xff]
    %v2673 = vld [vmem:[#allocation7 + $0x20] sm:$0xff]
    %v2674 = vld [vmem:[#allocation7 + $0x28] sm:$0xff]
    %v2675 = vld [vmem:[#allocation7 + $0x30] sm:$0xff]
    %v2676 = vld [vmem:[#allocation7 + $0x38] sm:$0xff]
    %v2677 = vld [vmem:[#allocation7 + $0x40] sm:$0xff]
    %v2678 = vld [vmem:[#allocation7 + $0x48] sm:$0xff]
    %v2679 = vld [vmem:[#allocation7 + $0x50] sm:$0xff]
    %v2680 = vld [vmem:[#allocation7 + $0x58] sm:$0xff]
    %v2681 = vld [vmem:[#allocation7 + $0x60] sm:$0xff]
    %v2682 = vld [vmem:[#allocation7 + $0x68] sm:$0xff]
    %v2683 = vld [vmem:[#allocation7 + $0x70] sm:$0xff]
    %v2684 = vld [vmem:[#allocation7 + $0x78] sm:$0xff]
    %v2685 = vld [vmem:[#allocation2] sm:$0x1]
    %v2687 = vlaneseq
    %v2688 = vshrl.u32 %v2687, 7
    %v2689 = vsub.s32 0, %v2688
    %v2690 = vrot.slane %v2685, %v2689
    %2692 = vmatprep.subr.mxu0 0.0
    %2693 = vmatpush1.msra.mxu0 %v2669
    %2694 = vmatprep.subr.mxu0 0.0
    %2695 = vmatpush1.msra.mxu0 %v2670
    %2696 = vmatprep.subr.mxu0 0.0
    %2697 = vmatpush1.msra.mxu0 %v2671
    %2698 = vmatprep.subr.mxu0 0.0
    %2699 = vmatpush1.msra.mxu0 %v2672
    %2700 = vmatprep.subr.mxu0 0.0
    %2701 = vmatpush1.msra.mxu0 %v2673
    %2702 = vmatprep.subr.mxu0 0.0
    %2703 = vmatpush1.msra.mxu0 %v2674
    %2704 = vmatprep.subr.mxu0 0.0
    %2705 = vmatpush1.msra.mxu0 %v2675
    %2706 = vmatprep.subr.mxu0 0.0
    %2707 = vmatpush1.msra.mxu0 %v2676
    %2708 = vmatprep.subr.mxu0 0.0
    %2709 = vmatpush1.msra.mxu0 %v2677
    %2710 = vmatprep.subr.mxu0 0.0
    %2711 = vmatpush1.msra.mxu0 %v2678
    %2712 = vmatprep.subr.mxu0 0.0
    %2713 = vmatpush1.msra.mxu0 %v2679
    %2714 = vmatprep.subr.mxu0 0.0
    %2715 = vmatpush1.msra.mxu0 %v2680
    %2716 = vmatprep.subr.mxu0 0.0
    %2717 = vmatpush1.msra.mxu0 %v2681
    %2718 = vmatprep.subr.mxu0 0.0
    %2719 = vmatpush1.msra.mxu0 %v2682
    %2720 = vmatprep.subr.mxu0 0.0
    %2721 = vmatpush1.msra.mxu0 %v2683
    %2722 = vmatprep.subr.mxu0 0.0
    %2723 = vmatpush1.msra.mxu0 %v2684
    %2724 = vmatprep.subr.mxu0 0.0
    %2725 = vmatpush1.msra.mxu0 0.0
    %2726 = vmatprep.subr.mxu0 0.0
    %2727 = vmatpush1.msra.mxu0 0.0
    %2728 = vmatprep.subr.mxu0 0.0
    %2729 = vmatpush1.msra.mxu0 0.0
    %2730 = vmatprep.subr.mxu0 0.0
    %2731 = vmatpush1.msra.mxu0 0.0
    %2732 = vmatprep.subr.mxu0 0.0
    %2733 = vmatpush1.msra.mxu0 0.0
    %2734 = vmatprep.subr.mxu0 0.0
    %2735 = vmatpush1.msra.mxu0 0.0
    %2736 = vmatprep.subr.mxu0 0.0
    %2737 = vmatpush1.msra.mxu0 0.0
    %2738 = vmatprep.subr.mxu0 0.0
    %2739 = vmatpush1.msra.mxu0 0.0
    %2740 = vmatprep.subr.mxu0 0.0
    %2741 = vmatpush1.msra.mxu0 0.0
    %2742 = vmatprep.subr.mxu0 0.0
    %2743 = vmatpush1.msra.mxu0 0.0
    %2744 = vmatprep.subr.mxu0 0.0
    %2745 = vmatpush1.msra.mxu0 0.0
    %2746 = vmatprep.subr.mxu0 0.0
    %2747 = vmatpush1.msra.mxu0 0.0
    %2748 = vmatprep.subr.mxu0 0.0
    %2749 = vmatpush1.msra.mxu0 0.0
    %2750 = vmatprep.subr.mxu0 0.0
    %2751 = vmatpush1.msra.mxu0 0.0
    %2752 = vmatprep.subr.mxu0 0.0
    %2753 = vmatpush1.msra.mxu0 0.0
    %2754 = vmatprep.subr.mxu0 0.0
    %2755 = vmatpush1.msra.mxu0 0.0
    %2756 = vmatprep.mubr.f32.mxu0 0.0
    %2757 = vmatmul.mubr.f32.gmra.mrb[0].mxu0 %v2668
    %v2758 = vpop.f32.mrb[0].mxu0
    %v2759 = vadd.f32 %v2690, %v2758
    %v2760 = vpop.f32.mrb[0].mxu0
    %2761 = vdwg.mxu0
    %vm2762 = vcmask 7168
    %2763 = vst.msk [vmem:[%s5] sm:$0xff] %vm2762, %v2759
    // Predicated region
    $region34: #{_lambda_.3} parent=1 // pred_check
      _
    $region35: #{_lambda_.3} parent=1 // pred_check_branch
      %2765 = sbr.rel (0) target = $region37
    $region36: #{_lambda_.3} parent=1 // pred_region
      _
    $region37: #{_lambda_.3} parent=1 // pred_fallthru
      _
    // Predicated region
    $region38: #{_lambda_.3} parent=1 // pred_check
      _
    $region39: #{_lambda_.3} parent=1 // pred_check_branch
      %2767 = sbr.rel (0) target = $region41
    $region40: #{_lambda_.3} parent=1 // pred_region
      _
    $region41: #{_lambda_.3} parent=1 // pred_fallthru
      _
    %2768 = vsyncpa [#allocation4], 1
    %2769 = vsyncpa [#allocation6], 1

// kernel: _lambda_.2
$region0: #{_lambda_.2}
  #allocation0 [shape = 'u32[]', space=smem, size = 0x4, offset = 0x4, fixed_abs, tag = 'smem constant byte address 0x4 - core index']
  #allocation1 [shape = 'u32[144,128]{1,0:T(1,128)}', space=vmem, size = 0x12000, scoped, tag = 'internal scratch']
  #allocation2 [shape = 'f32[100,64]{1,0:T(8,128)}', space=vmem, size = 0xd000, scoped, tag = 'scratch operand']
  #allocation3 [shape = 'f32[100,192]{1,0:T(8,128)}', space=vmem, size = 0x1a000, scoped, tag = 'scratch operand']
  %s0 = inlined_call_operand.vmem [shape: f32[2,100,5], index: 0, kind: input, shape index: {}]
  %s1 = inlined_call_operand.hbm [shape: f32[100,64], index: 1, kind: input, shape index: {}]
  %s2 = inlined_call_operand.hbm [shape: f32[5,64], index: 2, kind: input, shape index: {}]
  %s3 = inlined_call_operand.hbm [shape: f32[1,64], index: 3, kind: input, shape index: {}]
  %s4 = inlined_call_operand.hbm [shape: f32[64,192], index: 4, kind: input, shape index: {}]
  %s5 = inlined_call_operand.hbm [shape: f32[1,192], index: 5, kind: input, shape index: {}]
  %s6 = inlined_call_operand.hbm [shape: f32[8,64,64], index: 6, kind: input, shape index: {}]
  %s7 = inlined_call_operand.hbm [shape: f32[1,64], index: 7, kind: input, shape index: {}]
  %s8 = inlined_call_operand.vmem [shape: f32[1,64], index: 8, kind: input, shape index: {}, may-alias: {8,14}]
  %s9 = inlined_call_operand.vmem [shape: f32[1,64], index: 9, kind: input, shape index: {}, may-alias: {9,15}]
  %s10 = inlined_call_operand.hbm [shape: f32[64,128], index: 10, kind: input, shape index: {}]
  %s11 = inlined_call_operand.hbm [shape: f32[1,128], index: 11, kind: input, shape index: {}]
  %s12 = inlined_call_operand.hbm [shape: f32[128,64], index: 12, kind: input, shape index: {}]
  %s13 = inlined_call_operand.hbm [shape: f32[1,64], index: 13, kind: input, shape index: {}]
  %s14 = inlined_call_operand.vmem [shape: f32[1,64], index: 14, kind: input, shape index: {}, may-alias: {8,14}]
  %s15 = inlined_call_operand.vmem [shape: f32[1,64], index: 15, kind: input, shape index: {}, may-alias: {9,15}]
  %s16 = inlined_call_operand.vmem [shape: f32[2,100,64], index: 16, kind: output, shape index: {}]
  %s17 = sld [smem:[#allocation0]]
  $region141: #{_lambda_.2} parent=0
    _
  %s19 = ssub.s32 1, %s17
  %s20 = scalar_select 0, %s19, %s17
  $region1: #{_lambda_.2} parent=0
    #allocation4 [shape = 'u8[53248]{0}', space=vmem, size = 0xd000, scoped, tag = 'input window, operand 1, single buffered']
    #allocation5 [shape = 's32[2]{0}', space=sflag, size = 0x8, scoped, tag = 'scoped memory for _lambda_.2']
    #allocation6 [shape = 'u8[4096]{0}', space=vmem, size = 0x1000, scoped, tag = 'input window, operand 2, single buffered']
    #allocation7 [shape = 's32[1]{0}', space=sflag, size = 0x4, scoped, tag = 'scoped memory for _lambda_.2']
    #allocation8 [shape = 'u8[512]{0}', space=vmem, size = 0x400, scoped, tag = 'input window, operand 3, single buffered']
    #allocation9 [shape = 'u8[65536]{0}', space=vmem, size = 0x10000, scoped, tag = 'input window, operand 4, single buffered']
    #allocation10 [shape = 's32[1]{0}', space=sflag, size = 0x4, scoped, tag = 'scoped memory for _lambda_.2']
    #allocation11 [shape = 'u8[1024]{0}', space=vmem, size = 0x400, scoped, tag = 'input window, operand 5, single buffered']
    #allocation12 [shape = 'u8[262144]{0}', space=vmem, size = 0x40000, scoped, tag = 'input window, operand 6, single buffered']
    #allocation13 [shape = 's32[1]{0}', space=sflag, size = 0x4, scoped, tag = 'scoped memory for _lambda_.2']
    #allocation14 [shape = 'u8[512]{0}', space=vmem, size = 0x400, scoped, tag = 'input window, operand 7, single buffered']
    #allocation15 [shape = 'u8[32768]{0}', space=vmem, size = 0x8000, scoped, tag = 'input window, operand 10, single buffered']
    #allocation16 [shape = 's32[1]{0}', space=sflag, size = 0x4, scoped, tag = 'scoped memory for _lambda_.2']
    #allocation17 [shape = 'u8[512]{0}', space=vmem, size = 0x400, scoped, tag = 'input window, operand 11, single buffered']
    #allocation18 [shape = 'u8[65536]{0}', space=vmem, size = 0x10000, scoped, tag = 'input window, operand 12, single buffered']
    #allocation19 [shape = 's32[1]{0}', space=sflag, size = 0x4, scoped, tag = 'scoped memory for _lambda_.2']
    #allocation20 [shape = 'u8[512]{0}', space=vmem, size = 0x400, scoped, tag = 'input window, operand 13, single buffered']
    %21 = vsyncpa [#allocation5], 0
    %22 = vsyncpa [#allocation7], 0
    %23 = vsyncpa [#allocation10], 0
    %24 = vsyncpa [#allocation13], 0
    %25 = vsyncpa [#allocation16], 0
    %26 = vsyncpa [#allocation19], 0
    loop: start=0, step=1, limit=4
    $region2: #{_lambda_.2} parent=1 // loop_pre_header
      _
    $region3: #{_lambda_.2} parent=1 // loop_header
      %s28 = sphi 0, %s32
      %p29 = scmp.ge.s32.totalorder %s28, 4
      %s38 = sphi 0, %s40
      %s41 = sphi 0, %s38
      %s42 = sphi 0, %s41
      %s58 = sphi 0, %s42
      %s62 = sphi 0, %s62
      %s64 = sphi 0, %s62
      %s65 = sphi 0, %s64
      %s79 = sphi 0, %s65
      %s83 = sphi 0, %s83
      %s85 = sphi 0, %s83
      %s86 = sphi 0, %s85
      %s100 = sphi 0, %s86
      %s104 = sphi 0, %s104
      %s106 = sphi 0, %s104
      %s107 = sphi 0, %s106
      %s121 = sphi 0, %s107
      %s125 = sphi 0, %s125
      %s127 = sphi 0, %s125
      %s128 = sphi 0, %s127
      %s142 = sphi 0, %s128
      %s146 = sphi 0, %s146
      %s148 = sphi 0, %s146
      %s149 = sphi 0, %s148
      %s163 = sphi 0, %s149
      %s167 = sphi 0, %s167
      %s169 = sphi 0, %s167
      %s170 = sphi 0, %s169
      %s184 = sphi 0, %s170
      %s188 = sphi 0, %s188
      %s190 = sphi 0, %s188
      %s191 = sphi 0, %s190
      %s205 = sphi 0, %s191
      %s209 = sphi 0, %s209
      %s211 = sphi 0, %s209
      %s212 = sphi 0, %s211
      %s226 = sphi 0, %s212
      %s230 = sphi 0, %s230
      %s232 = sphi 0, %s230
      %s233 = sphi 0, %s232
      %s247 = sphi 0, %s233
      %s251 = sphi 0, %s251
      %s253 = sphi 0, %s251
      %s254 = sphi 0, %s253
      %s268 = sphi 0, %s254
      %s272 = sphi 0, %s272
      %s274 = sphi 0, %s272
      %s275 = sphi 0, %s274
      %s289 = sphi 0, %s275
      %s293 = sphi 0, %s293
      %s295 = sphi 0, %s293
      %s296 = sphi 0, %s295
      %s310 = sphi 0, %s296
      %s314 = sphi 0, %s314
      %s316 = sphi 0, %s314
      %s317 = sphi 0, %s316
      %s331 = sphi 0, %s317
      %s335 = sphi 0, %s335
      %s337 = sphi 0, %s335
      %s338 = sphi 0, %s337
      %s352 = sphi 0, %s338
      %s356 = sphi 0, %s356
      %s358 = sphi 0, %s356
      %s359 = sphi 0, %s358
      %s373 = sphi 0, %s359
      %s379 = sphi 0, %s381
      %s382 = sphi 0, %s379
      %s383 = sphi 0, %s382
      %s399 = sphi 0, %s383
    $region4: #{_lambda_.2} parent=1 // loop_header_branch
      %31 = sbr.rel (%p29) target = $region8
    $region5: #{_lambda_.2} parent=1 // loop_body
      %s33 = ssub.s32 %s28, 1
      %s34 = ssub.s32 %s28, 2
      %s35 = sadd.s32 %s28, 1
      %s36 = ssub.s32 %s28, %s35
      %p37 = scmp.eq.s32.totalorder %s36, 0
      %s39 = sadd.s32 %s38, 1
      %s40 = scalar_select %p37, %s38, %s39
      %p43 = pneg %p37
      %p44 = scmp.eq.s32.totalorder %s28, 1
      %p45 = por %p43, %p44
      %p46 = scmp.ne.s32.totalorder %s38, %s41
      %p47 = scmp.eq.s32.totalorder %s28, 0
      %p48 = por %p46, %p47
      %p49 = scmp.ne.s32.totalorder %s38, %s41
      %p50 = scmp.eq.s32.totalorder %s33, 1
      %p51 = por %p49, %p50
      %p52 = scmp.ne.s32.totalorder %s41, %s42
      %p53 = scmp.eq.s32.totalorder %s33, 0
      %p54 = por %p52, %p53
      %p55 = scmp.ne.s32.totalorder %s41, %s42
      %p56 = scmp.eq.s32.totalorder %s34, 1
      %p57 = por %p55, %p56
      %p59 = scmp.ne.s32.totalorder %s42, %s58
      %p60 = scmp.eq.s32.totalorder %s34, 0
      %p61 = por %p59, %p60
      %s63 = sadd.s32 %s62, 1
      %p66 = scmp.eq.s32.totalorder %s28, 1
      %p67 = scmp.ne.s32.totalorder %s62, %s64
      %p68 = scmp.eq.s32.totalorder %s28, 0
      %p69 = por %p67, %p68
      %p70 = scmp.ne.s32.totalorder %s62, %s64
      %p71 = scmp.eq.s32.totalorder %s33, 1
      %p72 = por %p70, %p71
      %p73 = scmp.ne.s32.totalorder %s64, %s65
      %p74 = scmp.eq.s32.totalorder %s33, 0
      %p75 = por %p73, %p74
      %p76 = scmp.ne.s32.totalorder %s64, %s65
      %p77 = scmp.eq.s32.totalorder %s34, 1
      %p78 = por %p76, %p77
      %p80 = scmp.ne.s32.totalorder %s65, %s79
      %p81 = scmp.eq.s32.totalorder %s34, 0
      %p82 = por %p80, %p81
      %s84 = sadd.s32 %s83, 1
      %p87 = scmp.eq.s32.totalorder %s28, 1
      %p88 = scmp.ne.s32.totalorder %s83, %s85
      %p89 = scmp.eq.s32.totalorder %s28, 0
      %p90 = por %p88, %p89
      %p91 = scmp.ne.s32.totalorder %s83, %s85
      %p92 = scmp.eq.s32.totalorder %s33, 1
      %p93 = por %p91, %p92
      %p94 = scmp.ne.s32.totalorder %s85, %s86
      %p95 = scmp.eq.s32.totalorder %s33, 0
      %p96 = por %p94, %p95
      %p97 = scmp.ne.s32.totalorder %s85, %s86
      %p98 = scmp.eq.s32.totalorder %s34, 1
      %p99 = por %p97, %p98
      %p101 = scmp.ne.s32.totalorder %s86, %s100
      %p102 = scmp.eq.s32.totalorder %s34, 0
      %p103 = por %p101, %p102
      %s105 = sadd.s32 %s104, 1
      %p108 = scmp.eq.s32.totalorder %s28, 1
      %p109 = scmp.ne.s32.totalorder %s104, %s106
      %p110 = scmp.eq.s32.totalorder %s28, 0
      %p111 = por %p109, %p110
      %p112 = scmp.ne.s32.totalorder %s104, %s106
      %p113 = scmp.eq.s32.totalorder %s33, 1
      %p114 = por %p112, %p113
      %p115 = scmp.ne.s32.totalorder %s106, %s107
      %p116 = scmp.eq.s32.totalorder %s33, 0
      %p117 = por %p115, %p116
      %p118 = scmp.ne.s32.totalorder %s106, %s107
      %p119 = scmp.eq.s32.totalorder %s34, 1
      %p120 = por %p118, %p119
      %p122 = scmp.ne.s32.totalorder %s107, %s121
      %p123 = scmp.eq.s32.totalorder %s34, 0
      %p124 = por %p122, %p123
      %s126 = sadd.s32 %s125, 1
      %p129 = scmp.eq.s32.totalorder %s28, 1
      %p130 = scmp.ne.s32.totalorder %s125, %s127
      %p131 = scmp.eq.s32.totalorder %s28, 0
      %p132 = por %p130, %p131
      %p133 = scmp.ne.s32.totalorder %s125, %s127
      %p134 = scmp.eq.s32.totalorder %s33, 1
      %p135 = por %p133, %p134
      %p136 = scmp.ne.s32.totalorder %s127, %s128
      %p137 = scmp.eq.s32.totalorder %s33, 0
      %p138 = por %p136, %p137
      %p139 = scmp.ne.s32.totalorder %s127, %s128
      %p140 = scmp.eq.s32.totalorder %s34, 1
      %p141 = por %p139, %p140
      %p143 = scmp.ne.s32.totalorder %s128, %s142
      %p144 = scmp.eq.s32.totalorder %s34, 0
      %p145 = por %p143, %p144
      %s147 = sadd.s32 %s146, 1
      %p150 = scmp.eq.s32.totalorder %s28, 1
      %p151 = scmp.ne.s32.totalorder %s146, %s148
      %p152 = scmp.eq.s32.totalorder %s28, 0
      %p153 = por %p151, %p152
      %p154 = scmp.ne.s32.totalorder %s146, %s148
      %p155 = scmp.eq.s32.totalorder %s33, 1
      %p156 = por %p154, %p155
      %p157 = scmp.ne.s32.totalorder %s148, %s149
      %p158 = scmp.eq.s32.totalorder %s33, 0
      %p159 = por %p157, %p158
      %p160 = scmp.ne.s32.totalorder %s148, %s149
      %p161 = scmp.eq.s32.totalorder %s34, 1
      %p162 = por %p160, %p161
      %p164 = scmp.ne.s32.totalorder %s149, %s163
      %p165 = scmp.eq.s32.totalorder %s34, 0
      %p166 = por %p164, %p165
      %s168 = sadd.s32 %s167, 1
      %p171 = scmp.eq.s32.totalorder %s28, 1
      %p172 = scmp.ne.s32.totalorder %s167, %s169
      %p173 = scmp.eq.s32.totalorder %s28, 0
      %p174 = por %p172, %p173
      %p175 = scmp.ne.s32.totalorder %s167, %s169
      %p176 = scmp.eq.s32.totalorder %s33, 1
      %p177 = por %p175, %p176
      %p178 = scmp.ne.s32.totalorder %s169, %s170
      %p179 = scmp.eq.s32.totalorder %s33, 0
      %p180 = por %p178, %p179
      %p181 = scmp.ne.s32.totalorder %s169, %s170
      %p182 = scmp.eq.s32.totalorder %s34, 1
      %p183 = por %p181, %p182
      %p185 = scmp.ne.s32.totalorder %s170, %s184
      %p186 = scmp.eq.s32.totalorder %s34, 0
      %p187 = por %p185, %p186
      %s189 = sadd.s32 %s188, 1
      %p192 = scmp.eq.s32.totalorder %s28, 1
      %p193 = scmp.ne.s32.totalorder %s188, %s190
      %p194 = scmp.eq.s32.totalorder %s28, 0
      %p195 = por %p193, %p194
      %p196 = scmp.ne.s32.totalorder %s188, %s190
      %p197 = scmp.eq.s32.totalorder %s33, 1
      %p198 = por %p196, %p197
      %p199 = scmp.ne.s32.totalorder %s190, %s191
      %p200 = scmp.eq.s32.totalorder %s33, 0
      %p201 = por %p199, %p200
      %p202 = scmp.ne.s32.totalorder %s190, %s191
      %p203 = scmp.eq.s32.totalorder %s34, 1
      %p204 = por %p202, %p203
      %p206 = scmp.ne.s32.totalorder %s191, %s205
      %p207 = scmp.eq.s32.totalorder %s34, 0
      %p208 = por %p206, %p207
      %s210 = sadd.s32 %s209, 1
      %p213 = scmp.eq.s32.totalorder %s28, 1
      %p214 = scmp.ne.s32.totalorder %s209, %s211
      %p215 = scmp.eq.s32.totalorder %s28, 0
      %p216 = por %p214, %p215
      %p217 = scmp.ne.s32.totalorder %s209, %s211
      %p218 = scmp.eq.s32.totalorder %s33, 1
      %p219 = por %p217, %p218
      %p220 = scmp.ne.s32.totalorder %s211, %s212
      %p221 = scmp.eq.s32.totalorder %s33, 0
      %p222 = por %p220, %p221
      %p223 = scmp.ne.s32.totalorder %s211, %s212
      %p224 = scmp.eq.s32.totalorder %s34, 1
      %p225 = por %p223, %p224
      %p227 = scmp.ne.s32.totalorder %s212, %s226
      %p228 = scmp.eq.s32.totalorder %s34, 0
      %p229 = por %p227, %p228
      %s231 = sadd.s32 %s230, 1
      %p234 = scmp.eq.s32.totalorder %s28, 1
      %p235 = scmp.ne.s32.totalorder %s230, %s232
      %p236 = scmp.eq.s32.totalorder %s28, 0
      %p237 = por %p235, %p236
      %p238 = scmp.ne.s32.totalorder %s230, %s232
      %p239 = scmp.eq.s32.totalorder %s33, 1
      %p240 = por %p238, %p239
      %p241 = scmp.ne.s32.totalorder %s232, %s233
      %p242 = scmp.eq.s32.totalorder %s33, 0
      %p243 = por %p241, %p242
      %p244 = scmp.ne.s32.totalorder %s232, %s233
      %p245 = scmp.eq.s32.totalorder %s34, 1
      %p246 = por %p244, %p245
      %p248 = scmp.ne.s32.totalorder %s233, %s247
      %p249 = scmp.eq.s32.totalorder %s34, 0
      %p250 = por %p248, %p249
      %s252 = sadd.s32 %s251, 1
      %p255 = scmp.eq.s32.totalorder %s28, 1
      %p256 = scmp.ne.s32.totalorder %s251, %s253
      %p257 = scmp.eq.s32.totalorder %s28, 0
      %p258 = por %p256, %p257
      %p259 = scmp.ne.s32.totalorder %s251, %s253
      %p260 = scmp.eq.s32.totalorder %s33, 1
      %p261 = por %p259, %p260
      %p262 = scmp.ne.s32.totalorder %s253, %s254
      %p263 = scmp.eq.s32.totalorder %s33, 0
      %p264 = por %p262, %p263
      %p265 = scmp.ne.s32.totalorder %s253, %s254
      %p266 = scmp.eq.s32.totalorder %s34, 1
      %p267 = por %p265, %p266
      %p269 = scmp.ne.s32.totalorder %s254, %s268
      %p270 = scmp.eq.s32.totalorder %s34, 0
      %p271 = por %p269, %p270
      %s273 = sadd.s32 %s272, 1
      %p276 = scmp.eq.s32.totalorder %s28, 1
      %p277 = scmp.ne.s32.totalorder %s272, %s274
      %p278 = scmp.eq.s32.totalorder %s28, 0
      %p279 = por %p277, %p278
      %p280 = scmp.ne.s32.totalorder %s272, %s274
      %p281 = scmp.eq.s32.totalorder %s33, 1
      %p282 = por %p280, %p281
      %p283 = scmp.ne.s32.totalorder %s274, %s275
      %p284 = scmp.eq.s32.totalorder %s33, 0
      %p285 = por %p283, %p284
      %p286 = scmp.ne.s32.totalorder %s274, %s275
      %p287 = scmp.eq.s32.totalorder %s34, 1
      %p288 = por %p286, %p287
      %p290 = scmp.ne.s32.totalorder %s275, %s289
      %p291 = scmp.eq.s32.totalorder %s34, 0
      %p292 = por %p290, %p291
      %s294 = sadd.s32 %s293, 1
      %p297 = scmp.eq.s32.totalorder %s28, 1
      %p298 = scmp.ne.s32.totalorder %s293, %s295
      %p299 = scmp.eq.s32.totalorder %s28, 0
      %p300 = por %p298, %p299
      %p301 = scmp.ne.s32.totalorder %s293, %s295
      %p302 = scmp.eq.s32.totalorder %s33, 1
      %p303 = por %p301, %p302
      %p304 = scmp.ne.s32.totalorder %s295, %s296
      %p305 = scmp.eq.s32.totalorder %s33, 0
      %p306 = por %p304, %p305
      %p307 = scmp.ne.s32.totalorder %s295, %s296
      %p308 = scmp.eq.s32.totalorder %s34, 1
      %p309 = por %p307, %p308
      %p311 = scmp.ne.s32.totalorder %s296, %s310
      %p312 = scmp.eq.s32.totalorder %s34, 0
      %p313 = por %p311, %p312
      %s315 = sadd.s32 %s314, 1
      %p318 = scmp.eq.s32.totalorder %s28, 1
      %p319 = scmp.ne.s32.totalorder %s314, %s316
      %p320 = scmp.eq.s32.totalorder %s28, 0
      %p321 = por %p319, %p320
      %p322 = scmp.ne.s32.totalorder %s314, %s316
      %p323 = scmp.eq.s32.totalorder %s33, 1
      %p324 = por %p322, %p323
      %p325 = scmp.ne.s32.totalorder %s316, %s317
      %p326 = scmp.eq.s32.totalorder %s33, 0
      %p327 = por %p325, %p326
      %p328 = scmp.ne.s32.totalorder %s316, %s317
      %p329 = scmp.eq.s32.totalorder %s34, 1
      %p330 = por %p328, %p329
      %p332 = scmp.ne.s32.totalorder %s317, %s331
      %p333 = scmp.eq.s32.totalorder %s34, 0
      %p334 = por %p332, %p333
      %s336 = sadd.s32 %s335, 1
      %p339 = scmp.eq.s32.totalorder %s28, 1
      %p340 = scmp.ne.s32.totalorder %s335, %s337
      %p341 = scmp.eq.s32.totalorder %s28, 0
      %p342 = por %p340, %p341
      %p343 = scmp.ne.s32.totalorder %s335, %s337
      %p344 = scmp.eq.s32.totalorder %s33, 1
      %p345 = por %p343, %p344
      %p346 = scmp.ne.s32.totalorder %s337, %s338
      %p347 = scmp.eq.s32.totalorder %s33, 0
      %p348 = por %p346, %p347
      %p349 = scmp.ne.s32.totalorder %s337, %s338
      %p350 = scmp.eq.s32.totalorder %s34, 1
      %p351 = por %p349, %p350
      %p353 = scmp.ne.s32.totalorder %s338, %s352
      %p354 = scmp.eq.s32.totalorder %s34, 0
      %p355 = por %p353, %p354
      %s357 = sadd.s32 %s356, 1
      %p360 = scmp.eq.s32.totalorder %s28, 1
      %p361 = scmp.ne.s32.totalorder %s356, %s358
      %p362 = scmp.eq.s32.totalorder %s28, 0
      %p363 = por %p361, %p362
      %p364 = scmp.ne.s32.totalorder %s356, %s358
      %p365 = scmp.eq.s32.totalorder %s33, 1
      %p366 = por %p364, %p365
      %p367 = scmp.ne.s32.totalorder %s358, %s359
      %p368 = scmp.eq.s32.totalorder %s33, 0
      %p369 = por %p367, %p368
      %p370 = scmp.ne.s32.totalorder %s358, %s359
      %p371 = scmp.eq.s32.totalorder %s34, 1
      %p372 = por %p370, %p371
      %p374 = scmp.ne.s32.totalorder %s359, %s373
      %p375 = scmp.eq.s32.totalorder %s34, 0
      %p376 = por %p374, %p375
      %s377 = ssub.s32 %s28, %s35
      %p378 = scmp.eq.s32.totalorder %s377, 0
      %s380 = sadd.s32 %s379, 1
      %s381 = scalar_select %p378, %s379, %s380
      %p384 = pneg %p378
      %p385 = scmp.eq.s32.totalorder %s28, 1
      %p386 = por %p384, %p385
      %p387 = scmp.ne.s32.totalorder %s379, %s382
      %p388 = scmp.eq.s32.totalorder %s28, 0
      %p389 = por %p387, %p388
      %p390 = scmp.ne.s32.totalorder %s379, %s382
      %p391 = scmp.eq.s32.totalorder %s33, 1
      %p392 = por %p390, %p391
      %p393 = scmp.ne.s32.totalorder %s382, %s383
      %p394 = scmp.eq.s32.totalorder %s33, 0
      %p395 = por %p393, %p394
      %p396 = scmp.ne.s32.totalorder %s382, %s383
      %p397 = scmp.eq.s32.totalorder %s34, 1
      %p398 = por %p396, %p397
      %p400 = scmp.ne.s32.totalorder %s383, %s399
      %p401 = scmp.eq.s32.totalorder %s34, 0
      %p402 = por %p400, %p401
      %p403 = scmp.le.s32.totalorder 1, %s28
      %p404 = scmp.lt.s32.totalorder %s28, 3
      %p405 = pnand %p403, %p404
      %p406 = pneg %p405
      // Predicated region
      $region9: #{_lambda_.2} parent=5 // pred_check
        _
      $region10: #{_lambda_.2} parent=5 // pred_check_branch
        %408 = sbr.rel (%p405) target = $region12
      $region11: #{_lambda_.2} parent=5 // pred_region
        %s409 = ssub.s32 %s28, 1
        // Predicated region
        $region13: #{_lambda_.2} parent=11 // pred_check
          %p410 = pneg %p75
        $region14: #{_lambda_.2} parent=11 // pred_check_branch
          %412 = sbr.rel (%p410) target = $region16
        $region15: #{_lambda_.2} parent=11 // pred_region
          %s414 = ssub.s32 1664, 1664
          %415 = vsyncadd [#allocation5], %s414
          %s416 = sshll.u32 [#allocation4], 4
          %s417 = int_to_ptr.vmem [resolvable:$true] %s416
          %422 = dma.hbm_to_vmem [thread:$0]  %s1, 1664, %s417, [#allocation5], 128, 128, 8
        $region16: #{_lambda_.2} parent=11 // pred_fallthru
          _
        // Predicated region
        $region17: #{_lambda_.2} parent=11 // pred_check
          %p423 = pneg %p96
        $region18: #{_lambda_.2} parent=11 // pred_check_branch
          %425 = sbr.rel (%p423) target = $region20
        $region19: #{_lambda_.2} parent=11 // pred_region
          %s427 = ssub.s32 128, 128
          %428 = vsyncadd [#allocation7], %s427
          %s430 = sshll.u32 [#allocation6], 4
          %s431 = int_to_ptr.vmem [resolvable:$true] %s430
          %433 = dma.hbm_to_vmem [thread:$0]  %s2, 128, %s431, [#allocation7]
        $region20: #{_lambda_.2} parent=11 // pred_fallthru
          _
        // Predicated region
        $region21: #{_lambda_.2} parent=11 // pred_check
          %p434 = pneg %p117
        $region22: #{_lambda_.2} parent=11 // pred_check_branch
          %436 = sbr.rel (%p434) target = $region24
        $region23: #{_lambda_.2} parent=11 // pred_region
          %s438 = ssub.s32 16, 16
          %439 = vsyncadd [#allocation7], %s438
          %s441 = sshll.u32 [#allocation8], 4
          %s442 = int_to_ptr.vmem [resolvable:$true] %s441
          %444 = dma.hbm_to_vmem [thread:$0]  %s3, 16, %s442, [#allocation7]
        $region24: #{_lambda_.2} parent=11 // pred_fallthru
          _
        // Predicated region
        $region25: #{_lambda_.2} parent=11 // pred_check
          %p445 = pneg %p138
        $region26: #{_lambda_.2} parent=11 // pred_check_branch
          %447 = sbr.rel (%p445) target = $region28
        $region27: #{_lambda_.2} parent=11 // pred_region
          %s449 = ssub.s32 2048, 2048
          %450 = vsyncadd [#allocation10], %s449
          %s451 = sshll.u32 [#allocation9], 4
          %s452 = int_to_ptr.vmem [resolvable:$true] %s451
          %457 = dma.hbm_to_vmem [thread:$0]  %s4, 2048, %s452, [#allocation10], 256, 256, 16
        $region28: #{_lambda_.2} parent=11 // pred_fallthru
          _
        // Predicated region
        $region29: #{_lambda_.2} parent=11 // pred_check
          %p458 = pneg %p159
        $region30: #{_lambda_.2} parent=11 // pred_check_branch
          %460 = sbr.rel (%p458) target = $region32
        $region31: #{_lambda_.2} parent=11 // pred_region
          %s462 = ssub.s32 32, 32
          %463 = vsyncadd [#allocation10], %s462
          %s465 = sshll.u32 [#allocation11], 4
          %s466 = int_to_ptr.vmem [resolvable:$true] %s465
          %468 = dma.hbm_to_vmem [thread:$0]  %s5, 32, %s466, [#allocation10]
        $region32: #{_lambda_.2} parent=11 // pred_fallthru
          _
        // Predicated region
        $region33: #{_lambda_.2} parent=11 // pred_check
          %p469 = pneg %p180
        $region34: #{_lambda_.2} parent=11 // pred_check_branch
          %471 = sbr.rel (%p469) target = $region36
        $region35: #{_lambda_.2} parent=11 // pred_region
          %s473 = ssub.s32 8192, 8192
          %474 = vsyncadd [#allocation13], %s473
          %s475 = sshll.u32 [#allocation12], 4
          %s476 = int_to_ptr.vmem [resolvable:$true] %s475
          %481 = dma.hbm_to_vmem [thread:$0]  %s6, 8192, %s476, [#allocation13], 128, 128, 8
        $region36: #{_lambda_.2} parent=11 // pred_fallthru
          _
        // Predicated region
        $region37: #{_lambda_.2} parent=11 // pred_check
          %p482 = pneg %p201
        $region38: #{_lambda_.2} parent=11 // pred_check_branch
          %484 = sbr.rel (%p482) target = $region40
        $region39: #{_lambda_.2} parent=11 // pred_region
          %s486 = ssub.s32 16, 16
          %487 = vsyncadd [#allocation13], %s486
          %s489 = sshll.u32 [#allocation14], 4
          %s490 = int_to_ptr.vmem [resolvable:$true] %s489
          %492 = dma.hbm_to_vmem [thread:$0]  %s7, 16, %s490, [#allocation13]
        $region40: #{_lambda_.2} parent=11 // pred_fallthru
          _
        // Predicated region
        $region41: #{_lambda_.2} parent=11 // pred_check
          %p493 = pneg %p222
        $region42: #{_lambda_.2} parent=11 // pred_check_branch
          %495 = sbr.rel (%p493) target = $region44
        $region43: #{_lambda_.2} parent=11 // pred_region
          _
        $region44: #{_lambda_.2} parent=11 // pred_fallthru
          _
        // Predicated region
        $region45: #{_lambda_.2} parent=11 // pred_check
          %p496 = pneg %p243
        $region46: #{_lambda_.2} parent=11 // pred_check_branch
          %498 = sbr.rel (%p496) target = $region48
        $region47: #{_lambda_.2} parent=11 // pred_region
          _
        $region48: #{_lambda_.2} parent=11 // pred_fallthru
          _
        // Predicated region
        $region49: #{_lambda_.2} parent=11 // pred_check
          %p499 = pneg %p264
        $region50: #{_lambda_.2} parent=11 // pred_check_branch
          %501 = sbr.rel (%p499) target = $region52
        $region51: #{_lambda_.2} parent=11 // pred_region
          %s503 = ssub.s32 1024, 1024
          %504 = vsyncadd [#allocation16], %s503
          %s505 = sshll.u32 [#allocation15], 4
          %s506 = int_to_ptr.vmem [resolvable:$true] %s505
          %511 = dma.hbm_to_vmem [thread:$0]  %s10, 1024, %s506, [#allocation16], 128, 128, 8
        $region52: #{_lambda_.2} parent=11 // pred_fallthru
          _
        // Predicated region
        $region53: #{_lambda_.2} parent=11 // pred_check
          %p512 = pneg %p285
        $region54: #{_lambda_.2} parent=11 // pred_check_branch
          %514 = sbr.rel (%p512) target = $region56
        $region55: #{_lambda_.2} parent=11 // pred_region
          %s516 = ssub.s32 16, 16
          %517 = vsyncadd [#allocation16], %s516
          %s519 = sshll.u32 [#allocation17], 4
          %s520 = int_to_ptr.vmem [resolvable:$true] %s519
          %522 = dma.hbm_to_vmem [thread:$0]  %s11, 16, %s520, [#allocation16]
        $region56: #{_lambda_.2} parent=11 // pred_fallthru
          _
        // Predicated region
        $region57: #{_lambda_.2} parent=11 // pred_check
          %p523 = pneg %p306
        $region58: #{_lambda_.2} parent=11 // pred_check_branch
          %525 = sbr.rel (%p523) target = $region60
        $region59: #{_lambda_.2} parent=11 // pred_region
          %s527 = ssub.s32 2048, 2048
          %528 = vsyncadd [#allocation19], %s527
          %s529 = sshll.u32 [#allocation18], 4
          %s530 = int_to_ptr.vmem [resolvable:$true] %s529
          %535 = dma.hbm_to_vmem [thread:$0]  %s12, 2048, %s530, [#allocation19], 128, 128, 8
        $region60: #{_lambda_.2} parent=11 // pred_fallthru
          _
        // Predicated region
        $region61: #{_lambda_.2} parent=11 // pred_check
          %p536 = pneg %p327
        $region62: #{_lambda_.2} parent=11 // pred_check_branch
          %538 = sbr.rel (%p536) target = $region64
        $region63: #{_lambda_.2} parent=11 // pred_region
          %s540 = ssub.s32 16, 16
          %541 = vsyncadd [#allocation19], %s540
          %s543 = sshll.u32 [#allocation20], 4
          %s544 = int_to_ptr.vmem [resolvable:$true] %s543
          %546 = dma.hbm_to_vmem [thread:$0]  %s13, 16, %s544, [#allocation19]
        $region64: #{_lambda_.2} parent=11 // pred_fallthru
          _
        // Predicated region
        $region65: #{_lambda_.2} parent=11 // pred_check
          %p547 = pneg %p348
        $region66: #{_lambda_.2} parent=11 // pred_check_branch
          %549 = sbr.rel (%p547) target = $region68
        $region67: #{_lambda_.2} parent=11 // pred_region
          _
        $region68: #{_lambda_.2} parent=11 // pred_fallthru
          _
        // Predicated region
        $region69: #{_lambda_.2} parent=11 // pred_check
          %p550 = pneg %p369
        $region70: #{_lambda_.2} parent=11 // pred_check_branch
          %552 = sbr.rel (%p550) target = $region72
        $region71: #{_lambda_.2} parent=11 // pred_region
          _
        $region72: #{_lambda_.2} parent=11 // pred_fallthru
          _
      $region12: #{_lambda_.2} parent=5 // pred_fallthru
        _
      %p553 = scmp.lt.s32.totalorder %s28, 2
      // Predicated region
      $region73: #{_lambda_.2} parent=5 // pred_check
        %p554 = pneg %p553
      $region74: #{_lambda_.2} parent=5 // pred_check_branch
        %556 = sbr.rel (%p554) target = $region76
      $region75: #{_lambda_.2} parent=5 // pred_region
        // Predicated region
        $region77: #{_lambda_.2} parent=75 // pred_check
          %p557 = pneg %p48
        $region78: #{_lambda_.2} parent=75 // pred_check_branch
          %559 = sbr.rel (%p557) target = $region80
        $region79: #{_lambda_.2} parent=75 // pred_region
          %p560 = scmp.lt.s32.totalorder %s28, 1
          %s561 = scalar_select %p560, %s28, 1
          %s562 = smul.addr %s561, 13
          %s563 = smul.addr %s562, 8
          %s564 = scalar_lea.vmem %s0, %s563
        $region80: #{_lambda_.2} parent=75 // pred_fallthru
          _
      $region76: #{_lambda_.2} parent=5 // pred_fallthru
        _
      %p565 = scmp.le.s32.totalorder 1, %s28
      %p566 = scmp.lt.s32.totalorder %s28, 3
      %p567 = pnand %p565, %p566
      %p568 = pneg %p567
      // Predicated region
      $region81: #{_lambda_.2} parent=5 // pred_check
        _
      $region82: #{_lambda_.2} parent=5 // pred_check_branch
        %570 = sbr.rel (%p567) target = $region84
      $region83: #{_lambda_.2} parent=5 // pred_region
        %s571 = ssub.s32 %s28, 1
        // Predicated region
        $region85: #{_lambda_.2} parent=83 // pred_check
          %p572 = pneg %p75
        $region86: #{_lambda_.2} parent=83 // pred_check_branch
          %574 = sbr.rel (%p572) target = $region88
        $region87: #{_lambda_.2} parent=83 // pred_region
          %575 = dma.done [#allocation5], 1664
        $region88: #{_lambda_.2} parent=83 // pred_fallthru
          _
        // Predicated region
        $region89: #{_lambda_.2} parent=83 // pred_check
          %p576 = pneg %p96
        $region90: #{_lambda_.2} parent=83 // pred_check_branch
          %578 = sbr.rel (%p576) target = $region92
        $region91: #{_lambda_.2} parent=83 // pred_region
          %579 = dma.done [#allocation7], 128
        $region92: #{_lambda_.2} parent=83 // pred_fallthru
          _
        // Predicated region
        $region93: #{_lambda_.2} parent=83 // pred_check
          %p580 = pneg %p117
        $region94: #{_lambda_.2} parent=83 // pred_check_branch
          %582 = sbr.rel (%p580) target = $region96
        $region95: #{_lambda_.2} parent=83 // pred_region
          %583 = dma.done [#allocation7], 16
        $region96: #{_lambda_.2} parent=83 // pred_fallthru
          _
        // Predicated region
        $region97: #{_lambda_.2} parent=83 // pred_check
          %p584 = pneg %p138
        $region98: #{_lambda_.2} parent=83 // pred_check_branch
          %586 = sbr.rel (%p584) target = $region100
        $region99: #{_lambda_.2} parent=83 // pred_region
          %587 = dma.done [#allocation10], 2048
        $region100: #{_lambda_.2} parent=83 // pred_fallthru
          _
        // Predicated region
        $region101: #{_lambda_.2} parent=83 // pred_check
          %p588 = pneg %p159
        $region102: #{_lambda_.2} parent=83 // pred_check_branch
          %590 = sbr.rel (%p588) target = $region104
        $region103: #{_lambda_.2} parent=83 // pred_region
          %591 = dma.done [#allocation10], 32
        $region104: #{_lambda_.2} parent=83 // pred_fallthru
          _
        // Predicated region
        $region105: #{_lambda_.2} parent=83 // pred_check
          %p592 = pneg %p180
        $region106: #{_lambda_.2} parent=83 // pred_check_branch
          %594 = sbr.rel (%p592) target = $region108
        $region107: #{_lambda_.2} parent=83 // pred_region
          %595 = dma.done [#allocation13], 8192
        $region108: #{_lambda_.2} parent=83 // pred_fallthru
          _
        // Predicated region
        $region109: #{_lambda_.2} parent=83 // pred_check
          %p596 = pneg %p201
        $region110: #{_lambda_.2} parent=83 // pred_check_branch
          %598 = sbr.rel (%p596) target = $region112
        $region111: #{_lambda_.2} parent=83 // pred_region
          %599 = dma.done [#allocation13], 16
        $region112: #{_lambda_.2} parent=83 // pred_fallthru
          _
        // Predicated region
        $region113: #{_lambda_.2} parent=83 // pred_check
          %p600 = pneg %p264
        $region114: #{_lambda_.2} parent=83 // pred_check_branch
          %602 = sbr.rel (%p600) target = $region116
        $region115: #{_lambda_.2} parent=83 // pred_region
          %603 = dma.done [#allocation16], 1024
        $region116: #{_lambda_.2} parent=83 // pred_fallthru
          _
        // Predicated region
        $region117: #{_lambda_.2} parent=83 // pred_check
          %p604 = pneg %p285
        $region118: #{_lambda_.2} parent=83 // pred_check_branch
          %606 = sbr.rel (%p604) target = $region120
        $region119: #{_lambda_.2} parent=83 // pred_region
          %607 = dma.done [#allocation16], 16
        $region120: #{_lambda_.2} parent=83 // pred_fallthru
          _
        // Predicated region
        $region121: #{_lambda_.2} parent=83 // pred_check
          %p608 = pneg %p306
        $region122: #{_lambda_.2} parent=83 // pred_check_branch
          %610 = sbr.rel (%p608) target = $region124
        $region123: #{_lambda_.2} parent=83 // pred_region
          %611 = dma.done [#allocation19], 2048
        $region124: #{_lambda_.2} parent=83 // pred_fallthru
          _
        // Predicated region
        $region125: #{_lambda_.2} parent=83 // pred_check
          %p612 = pneg %p327
        $region126: #{_lambda_.2} parent=83 // pred_check_branch
          %614 = sbr.rel (%p612) target = $region128
        $region127: #{_lambda_.2} parent=83 // pred_region
          %615 = dma.done [#allocation19], 16
        $region128: #{_lambda_.2} parent=83 // pred_fallthru
          _
        %p616 = scmp.lt.s32.totalorder %s33, 1
        %s617 = scalar_select %p616, %s33, 1
        %s618 = smul.addr %s617, 13
        %s619 = smul.addr %s618, 8
        %s620 = scalar_lea.vmem %s0, %s619
        %p621 = pneg %p54
        %p622 = pneg %p51
        %p623 = pneg %p75
        %p624 = pneg %p72
        %p625 = pneg %p96
        %p626 = pneg %p93
        %p627 = pneg %p117
        %p628 = pneg %p114
        %p629 = pneg %p138
        %p630 = pneg %p135
        %p631 = pneg %p159
        %p632 = pneg %p156
        %p633 = pneg %p180
        %p634 = pneg %p177
        %p635 = pneg %p201
        %p636 = pneg %p198
        %p637 = pneg %p222
        %p638 = pneg %p219
        %p639 = pneg %p243
        %p640 = pneg %p240
        %p641 = pneg %p264
        %p642 = pneg %p261
        %p643 = pneg %p285
        %p644 = pneg %p282
        %p645 = pneg %p306
        %p646 = pneg %p303
        %p647 = pneg %p327
        %p648 = pneg %p324
        %p649 = pneg %p348
        %p650 = pneg %p345
        %p651 = pneg %p369
        %p652 = pneg %p366
        %p653 = pneg %p395
        %p654 = pneg %p392
        %p655 = scmp.lt.s32.totalorder %s33, 1
        %s656 = scalar_select %p655, %s33, 1
        %s657 = smul.addr %s656, 13
        %s658 = smul.addr %s657, 8
        %s659 = scalar_lea.vmem %s16, %s658
        %p660 = scmp.lt.s32.totalorder %s33, 1
        %s661 = scalar_select %p660, %s33, 1
        %s662 = smul.addr %s661, 13
        %s663 = smul.addr %s662, 8
        %s664 = scalar_lea.vmem %s0, %s663
        %p665 = scmp.lt.s32.totalorder %s33, 1
        %s666 = scalar_select %p665, %s33, 1
        %s667 = smul.addr %s666, 13
        %s668 = smul.addr %s667, 8
        %s669 = scalar_lea.vmem %s16, %s668
        %v670 = vld [vmem:[%s664] sm:$0xff]
        %v671 = vld [vmem:[%s664 + $0x8] sm:$0xff]
        %v672 = vld [vmem:[%s664 + $0x10] sm:$0xff]
        %v673 = vld [vmem:[%s664 + $0x18] sm:$0xff]
        %v674 = vld [vmem:[%s664 + $0x20] sm:$0xff]
        %v675 = vld [vmem:[%s664 + $0x28] sm:$0xff]
        %v676 = vld [vmem:[%s664 + $0x30] sm:$0xff]
        %v677 = vld [vmem:[%s664 + $0x38] sm:$0xff]
        %v678 = vld [vmem:[%s664 + $0x40] sm:$0xff]
        %v679 = vld [vmem:[%s664 + $0x48] sm:$0xff]
        %v680 = vld [vmem:[%s664 + $0x50] sm:$0xff]
        %v681 = vld [vmem:[%s664 + $0x58] sm:$0xff]
        %v682 = vld [vmem:[%s664 + $0x60] sm:$0xf]
        %v683 = vld [vmem:[#allocation6] sm:$0x1f]
        %v684 = vld [vmem:[#allocation8] sm:$0x1]
        %v686 = vlaneseq
        %v687 = vshrl.u32 %v686, 7
        %v688 = vsub.s32 0, %v687
        %v689 = vrot.slane %v684, %v688
        %vm691 = vcmask 39936
        %v693 = vsel %vm691, %v670, 0
        %v696 = vsel %vm691, %v671, 0
        %v699 = vsel %vm691, %v672, 0
        %v702 = vsel %vm691, %v673, 0
        %v705 = vsel %vm691, %v674, 0
        %v708 = vsel %vm691, %v675, 0
        %v711 = vsel %vm691, %v676, 0
        %v714 = vsel %vm691, %v677, 0
        %v717 = vsel %vm691, %v678, 0
        %v720 = vsel %vm691, %v679, 0
        %v723 = vsel %vm691, %v680, 0
        %v726 = vsel %vm691, %v681, 0
        %v729 = vsel %vm691, %v682, 0
        %vm731 = vcmask 1044480
        %v733 = vsel %vm731, %v683, 0
        %735 = vmatprep.subr.mxu0 0.0
        %736 = vmatpush1.msra.mxu0 %v733
        %737 = vmatprep.subr.mxu0 0.0
        %738 = vmatpush1.msra.mxu0 0.0
        %739 = vmatprep.subr.mxu0 0.0
        %740 = vmatpush1.msra.mxu0 0.0
        %741 = vmatprep.subr.mxu0 0.0
        %742 = vmatpush1.msra.mxu0 0.0
        %743 = vmatprep.subr.mxu0 0.0
        %744 = vmatpush1.msra.mxu0 0.0
        %745 = vmatprep.subr.mxu0 0.0
        %746 = vmatpush1.msra.mxu0 0.0
        %747 = vmatprep.subr.mxu0 0.0
        %748 = vmatpush1.msra.mxu0 0.0
        %749 = vmatprep.subr.mxu0 0.0
        %750 = vmatpush1.msra.mxu0 0.0
        %751 = vmatprep.subr.mxu0 0.0
        %752 = vmatpush1.msra.mxu0 0.0
        %753 = vmatprep.subr.mxu0 0.0
        %754 = vmatpush1.msra.mxu0 0.0
        %755 = vmatprep.subr.mxu0 0.0
        %756 = vmatpush1.msra.mxu0 0.0
        %757 = vmatprep.subr.mxu0 0.0
        %758 = vmatpush1.msra.mxu0 0.0
        %759 = vmatprep.subr.mxu0 0.0
        %760 = vmatpush1.msra.mxu0 0.0
        %761 = vmatprep.subr.mxu0 0.0
        %762 = vmatpush1.msra.mxu0 0.0
        %763 = vmatprep.subr.mxu0 0.0
        %764 = vmatpush1.msra.mxu0 0.0
        %765 = vmatprep.subr.mxu0 0.0
        %766 = vmatpush1.msra.mxu0 0.0
        %767 = vmatprep.subr.mxu0 0.0
        %768 = vmatpush1.msra.mxu0 0.0
        %769 = vmatprep.subr.mxu0 0.0
        %770 = vmatpush1.msra.mxu0 0.0
        %771 = vmatprep.subr.mxu0 0.0
        %772 = vmatpush1.msra.mxu0 0.0
        %773 = vmatprep.subr.mxu0 0.0
        %774 = vmatpush1.msra.mxu0 0.0
        %775 = vmatprep.subr.mxu0 0.0
        %776 = vmatpush1.msra.mxu0 0.0
        %777 = vmatprep.subr.mxu0 0.0
        %778 = vmatpush1.msra.mxu0 0.0
        %779 = vmatprep.subr.mxu0 0.0
        %780 = vmatpush1.msra.mxu0 0.0
        %781 = vmatprep.subr.mxu0 0.0
        %782 = vmatpush1.msra.mxu0 0.0
        %783 = vmatprep.subr.mxu0 0.0
        %784 = vmatpush1.msra.mxu0 0.0
        %785 = vmatprep.subr.mxu0 0.0
        %786 = vmatpush1.msra.mxu0 0.0
        %787 = vmatprep.subr.mxu0 0.0
        %788 = vmatpush1.msra.mxu0 0.0
        %789 = vmatprep.subr.mxu0 0.0
        %790 = vmatpush1.msra.mxu0 0.0
        %791 = vmatprep.subr.mxu0 0.0
        %792 = vmatpush1.msra.mxu0 0.0
        %793 = vmatprep.subr.mxu0 0.0
        %794 = vmatpush1.msra.mxu0 0.0
        %795 = vmatprep.subr.mxu0 0.0
        %796 = vmatpush1.msra.mxu0 0.0
        %797 = vmatprep.subr.mxu0 0.0
        %798 = vmatpush1.msra.mxu0 0.0
        %799 = vmatprep.mubr.f32.mxu0 0.0
        %800 = vmatmul.mubr.f32.gmra.mrb[0].mxu0 %v693
        %v801 = vpop.f32.mrb[0].mxu0
        %v802 = vadd.f32 %v689, %v801
        %v803 = vpop.f32.mrb[0].mxu0
        %804 = vmatprep.mubr.f32.mxu0 0.0
        %805 = vmatmul.mubr.f32.gmra.mrb[0].mxu0 %v696
        %v806 = vpop.f32.mrb[0].mxu0
        %v807 = vadd.f32 %v689, %v806
        %v808 = vpop.f32.mrb[0].mxu0
        %809 = vmatprep.mubr.f32.mxu0 0.0
        %810 = vmatmul.mubr.f32.gmra.mrb[0].mxu0 %v699
        %v811 = vpop.f32.mrb[0].mxu0
        %v812 = vadd.f32 %v689, %v811
        %v813 = vpop.f32.mrb[0].mxu0
        %814 = vmatprep.mubr.f32.mxu0 0.0
        %815 = vmatmul.mubr.f32.gmra.mrb[0].mxu0 %v702
        %v816 = vpop.f32.mrb[0].mxu0
        %v817 = vadd.f32 %v689, %v816
        %v818 = vpop.f32.mrb[0].mxu0
        %819 = vmatprep.mubr.f32.mxu0 0.0
        %820 = vmatmul.mubr.f32.gmra.mrb[0].mxu0 %v705
        %v821 = vpop.f32.mrb[0].mxu0
        %v822 = vadd.f32 %v689, %v821
        %v823 = vpop.f32.mrb[0].mxu0
        %824 = vmatprep.mubr.f32.mxu0 0.0
        %825 = vmatmul.mubr.f32.gmra.mrb[0].mxu0 %v708
        %v826 = vpop.f32.mrb[0].mxu0
        %v827 = vadd.f32 %v689, %v826
        %v828 = vpop.f32.mrb[0].mxu0
        %829 = vmatprep.mubr.f32.mxu0 0.0
        %830 = vmatmul.mubr.f32.gmra.mrb[0].mxu0 %v711
        %v831 = vpop.f32.mrb[0].mxu0
        %v832 = vadd.f32 %v689, %v831
        %v833 = vpop.f32.mrb[0].mxu0
        %834 = vmatprep.mubr.f32.mxu0 0.0
        %835 = vmatmul.mubr.f32.gmra.mrb[0].mxu0 %v714
        %v836 = vpop.f32.mrb[0].mxu0
        %v837 = vadd.f32 %v689, %v836
        %v838 = vpop.f32.mrb[0].mxu0
        %839 = vmatprep.mubr.f32.mxu0 0.0
        %840 = vmatmul.mubr.f32.gmra.mrb[0].mxu0 %v717
        %v841 = vpop.f32.mrb[0].mxu0
        %v842 = vadd.f32 %v689, %v841
        %v843 = vpop.f32.mrb[0].mxu0
        %844 = vmatprep.mubr.f32.mxu0 0.0
        %845 = vmatmul.mubr.f32.gmra.mrb[0].mxu0 %v720
        %v846 = vpop.f32.mrb[0].mxu0
        %v847 = vadd.f32 %v689, %v846
        %v848 = vpop.f32.mrb[0].mxu0
        %849 = vmatprep.mubr.f32.mxu0 0.0
        %850 = vmatmul.mubr.f32.gmra.mrb[0].mxu0 %v723
        %v851 = vpop.f32.mrb[0].mxu0
        %v852 = vadd.f32 %v689, %v851
        %v853 = vpop.f32.mrb[0].mxu0
        %854 = vmatprep.mubr.f32.mxu0 0.0
        %855 = vmatmul.mubr.f32.gmra.mrb[0].mxu0 %v726
        %v856 = vpop.f32.mrb[0].mxu0
        %v857 = vadd.f32 %v689, %v856
        %v858 = vpop.f32.mrb[0].mxu0
        %859 = vmatprep.mubr.f32.mxu0 0.0
        %860 = vmatmul.mubr.f32.gmra.mrb[0].mxu0 %v729
        %v861 = vpop.f32.mrb[0].mxu0
        %v862 = vadd.f32 %v689, %v861
        %v863 = vpop.f32.mrb[0].mxu0
        %864 = vdwg.mxu0
        %v865 = vld [vmem:[#allocation4] sm:$0xff]
        %v866 = vld [vmem:[#allocation4 + $0x8] sm:$0xff]
        %v867 = vld [vmem:[#allocation4 + $0x10] sm:$0xff]
        %v868 = vld [vmem:[#allocation4 + $0x18] sm:$0xff]
        %v869 = vld [vmem:[#allocation4 + $0x20] sm:$0xff]
        %v870 = vld [vmem:[#allocation4 + $0x28] sm:$0xff]
        %v871 = vld [vmem:[#allocation4 + $0x30] sm:$0xff]
        %v872 = vld [vmem:[#allocation4 + $0x38] sm:$0xff]
        %v873 = vld [vmem:[#allocation4 + $0x40] sm:$0xff]
        %v874 = vld [vmem:[#allocation4 + $0x48] sm:$0xff]
        %v875 = vld [vmem:[#allocation4 + $0x50] sm:$0xff]
        %v876 = vld [vmem:[#allocation4 + $0x58] sm:$0xff]
        %v877 = vld [vmem:[#allocation4 + $0x60] sm:$0xf]
        %v878 = vadd.f32 %v802, %v865
        %v879 = vadd.f32 %v807, %v866
        %v880 = vadd.f32 %v812, %v867
        %v881 = vadd.f32 %v817, %v868
        %v882 = vadd.f32 %v822, %v869
        %v883 = vadd.f32 %v827, %v870
        %v884 = vadd.f32 %v832, %v871
        %v885 = vadd.f32 %v837, %v872
        %v886 = vadd.f32 %v842, %v873
        %v887 = vadd.f32 %v847, %v874
        %v888 = vadd.f32 %v852, %v875
        %v889 = vadd.f32 %v857, %v876
        %v890 = vadd.f32 %v862, %v877
        %vm891 = vcmask 523264
        %892 = vst.msk [vmem:[#allocation2] sm:$0xff] %vm891, %v878
        %893 = vst.msk [vmem:[#allocation2 + $0x8] sm:$0xff] %vm891, %v879
        %894 = vst.msk [vmem:[#allocation2 + $0x10] sm:$0xff] %vm891, %v880
        %895 = vst.msk [vmem:[#allocation2 + $0x18] sm:$0xff] %vm891, %v881
        %896 = vst.msk [vmem:[#allocation2 + $0x20] sm:$0xff] %vm891, %v882
        %897 = vst.msk [vmem:[#allocation2 + $0x28] sm:$0xff] %vm891, %v883
        %898 = vst.msk [vmem:[#allocation2 + $0x30] sm:$0xff] %vm891, %v884
        %899 = vst.msk [vmem:[#allocation2 + $0x38] sm:$0xff] %vm891, %v885
        %900 = vst.msk [vmem:[#allocation2 + $0x40] sm:$0xff] %vm891, %v886
        %901 = vst.msk [vmem:[#allocation2 + $0x48] sm:$0xff] %vm891, %v887
        %902 = vst.msk [vmem:[#allocation2 + $0x50] sm:$0xff] %vm891, %v888
        %903 = vst.msk [vmem:[#allocation2 + $0x58] sm:$0xff] %vm891, %v889
        %vm904 = vcmask 519168
        %905 = vst.msk [vmem:[#allocation2 + $0x60] sm:$0xf] %vm904, %v890
        %v906 = vld [vmem:[#allocation2] sm:$0xff]
        %v907 = vld [vmem:[#allocation2 + $0x8] sm:$0xff]
        %v908 = vld [vmem:[#allocation2 + $0x10] sm:$0xff]
        %v909 = vld [vmem:[#allocation2 + $0x18] sm:$0xff]
        %v910 = vld [vmem:[#allocation2 + $0x20] sm:$0xff]
        %v911 = vld [vmem:[#allocation2 + $0x28] sm:$0xff]
        %v912 = vld [vmem:[#allocation2 + $0x30] sm:$0xff]
        %v913 = vld [vmem:[#allocation2 + $0x38] sm:$0xff]
        %v914 = vld [vmem:[#allocation2 + $0x40] sm:$0xff]
        %v915 = vld [vmem:[#allocation2 + $0x48] sm:$0xff]
        %v916 = vld [vmem:[#allocation2 + $0x50] sm:$0xff]
        %v917 = vld [vmem:[#allocation2 + $0x58] sm:$0xff]
        %v918 = vld [vmem:[#allocation2 + $0x60] sm:$0xf]
        %v919 = vld [vmem:[#allocation9] sm:$0xff]
        %v920 = vld [vmem:[#allocation9 + $0x8] sm:$0xff]
        %v921 = vld [vmem:[#allocation9 + $0x10] sm:$0xff]
        %v922 = vld [vmem:[#allocation9 + $0x18] sm:$0xff]
        %v923 = vld [vmem:[#allocation9 + $0x20] sm:$0xff]
        %v924 = vld [vmem:[#allocation9 + $0x28] sm:$0xff]
        %v925 = vld [vmem:[#allocation9 + $0x30] sm:$0xff]
        %v926 = vld [vmem:[#allocation9 + $0x38] sm:$0xff]
        %v927 = vld [vmem:[#allocation9 + $0x40] sm:$0xff]
        %v928 = vld [vmem:[#allocation9 + $0x48] sm:$0xff]
        %v929 = vld [vmem:[#allocation9 + $0x50] sm:$0xff]
        %v930 = vld [vmem:[#allocation9 + $0x58] sm:$0xff]
        %v931 = vld [vmem:[#allocation9 + $0x60] sm:$0xff]
        %v932 = vld [vmem:[#allocation9 + $0x68] sm:$0xff]
        %v933 = vld [vmem:[#allocation9 + $0x70] sm:$0xff]
        %v934 = vld [vmem:[#allocation9 + $0x78] sm:$0xff]
        %v935 = vld [vmem:[#allocation11] sm:$0x3]
        %v937 = vlaneseq
        %v938 = vshrl.u32 %v937, 7
        %v939 = vsub.s32 0, %v938
        %v940 = vrot.slane %v935, %v939
        %v941 = vlaneseq
        %v942 = vshrl.u32 %v941, 7
        %v943 = vsub.s32 1, %v942
        %v944 = vrot.slane %v935, %v943
        %v948 = vsel %vm891, %v906, 0
        %v951 = vsel %vm891, %v907, 0
        %v954 = vsel %vm891, %v908, 0
        %v957 = vsel %vm891, %v909, 0
        %v960 = vsel %vm891, %v910, 0
        %v963 = vsel %vm891, %v911, 0
        %v966 = vsel %vm891, %v912, 0
        %v969 = vsel %vm891, %v913, 0
        %v972 = vsel %vm891, %v914, 0
        %v975 = vsel %vm891, %v915, 0
        %v978 = vsel %vm891, %v916, 0
        %v981 = vsel %vm891, %v917, 0
        %v984 = vsel %vm891, %v918, 0
        %986 = vmatprep.subr.mxu0 %v920
        %987 = vmatpush1.msra.mxu0 %v919
        %988 = vmatprep.subr.mxu0 %v922
        %989 = vmatpush1.msra.mxu0 %v921
        %990 = vmatprep.subr.mxu0 %v924
        %991 = vmatpush1.msra.mxu0 %v923
        %992 = vmatprep.subr.mxu0 %v926
        %993 = vmatpush1.msra.mxu0 %v925
        %994 = vmatprep.subr.mxu0 %v928
        %995 = vmatpush1.msra.mxu0 %v927
        %996 = vmatprep.subr.mxu0 %v930
        %997 = vmatpush1.msra.mxu0 %v929
        %998 = vmatprep.subr.mxu0 %v932
        %999 = vmatpush1.msra.mxu0 %v931
        %1000 = vmatprep.subr.mxu0 %v934
        %1001 = vmatpush1.msra.mxu0 %v933
        %1002 = vmatprep.subr.mxu0 0.0
        %1003 = vmatpush1.msra.mxu0 0.0
        %1004 = vmatprep.subr.mxu0 0.0
        %1005 = vmatpush1.msra.mxu0 0.0
        %1006 = vmatprep.subr.mxu0 0.0
        %1007 = vmatpush1.msra.mxu0 0.0
        %1008 = vmatprep.subr.mxu0 0.0
        %1009 = vmatpush1.msra.mxu0 0.0
        %1010 = vmatprep.subr.mxu0 0.0
        %1011 = vmatpush1.msra.mxu0 0.0
        %1012 = vmatprep.subr.mxu0 0.0
        %1013 = vmatpush1.msra.mxu0 0.0
        %1014 = vmatprep.subr.mxu0 0.0
        %1015 = vmatpush1.msra.mxu0 0.0
        %1016 = vmatprep.subr.mxu0 0.0
        %1017 = vmatpush1.msra.mxu0 0.0
        %1018 = vmatprep.subr.mxu0 0.0
        %1019 = vmatpush1.msra.mxu0 0.0
        %1020 = vmatprep.subr.mxu0 0.0
        %1021 = vmatpush1.msra.mxu0 0.0
        %1022 = vmatprep.subr.mxu0 0.0
        %1023 = vmatpush1.msra.mxu0 0.0
        %1024 = vmatprep.subr.mxu0 0.0
        %1025 = vmatpush1.msra.mxu0 0.0
        %1026 = vmatprep.subr.mxu0 0.0
        %1027 = vmatpush1.msra.mxu0 0.0
        %1028 = vmatprep.subr.mxu0 0.0
        %1029 = vmatpush1.msra.mxu0 0.0
        %1030 = vmatprep.subr.mxu0 0.0
        %1031 = vmatpush1.msra.mxu0 0.0
        %1032 = vmatprep.subr.mxu0 0.0
        %1033 = vmatpush1.msra.mxu0 0.0
        %1034 = vmatprep.subr.mxu0 0.0
        %1035 = vmatpush1.msra.mxu0 0.0
        %1036 = vmatprep.subr.mxu0 0.0
        %1037 = vmatpush1.msra.mxu0 0.0
        %1038 = vmatprep.subr.mxu0 0.0
        %1039 = vmatpush1.msra.mxu0 0.0
        %1040 = vmatprep.subr.mxu0 0.0
        %1041 = vmatpush1.msra.mxu0 0.0
        %1042 = vmatprep.subr.mxu0 0.0
        %1043 = vmatpush1.msra.mxu0 0.0
        %1044 = vmatprep.subr.mxu0 0.0
        %1045 = vmatpush1.msra.mxu0 0.0
        %1046 = vmatprep.subr.mxu0 0.0
        %1047 = vmatpush1.msra.mxu0 0.0
        %1048 = vmatprep.subr.mxu0 0.0
        %1049 = vmatpush1.msra.mxu0 0.0
        %1050 = vmatprep.mubr.f32.mxu0 0.0
        %1051 = vmatmul.mubr.f32.gmra.mrb[0].mxu0 %v948
        %v1052 = vpop.f32.mrb[0].mxu0
        %v1053 = vadd.f32 %v940, %v1052
        %v1054 = vpop.f32.mrb[0].mxu0
        %v1055 = vadd.f32 %v944, %v1054
        %1056 = vmatprep.mubr.f32.mxu0 0.0
        %1057 = vmatmul.mubr.f32.gmra.mrb[0].mxu0 %v951
        %v1058 = vpop.f32.mrb[0].mxu0
        %v1059 = vadd.f32 %v940, %v1058
        %v1060 = vpop.f32.mrb[0].mxu0
        %v1061 = vadd.f32 %v944, %v1060
        %1062 = vmatprep.mubr.f32.mxu0 0.0
        %1063 = vmatmul.mubr.f32.gmra.mrb[0].mxu0 %v954
        %v1064 = vpop.f32.mrb[0].mxu0
        %v1065 = vadd.f32 %v940, %v1064
        %v1066 = vpop.f32.mrb[0].mxu0
        %v1067 = vadd.f32 %v944, %v1066
        %1068 = vmatprep.mubr.f32.mxu0 0.0
        %1069 = vmatmul.mubr.f32.gmra.mrb[0].mxu0 %v957
        %v1070 = vpop.f32.mrb[0].mxu0
        %v1071 = vadd.f32 %v940, %v1070
        %v1072 = vpop.f32.mrb[0].mxu0
        %v1073 = vadd.f32 %v944, %v1072
        %1074 = vmatprep.mubr.f32.mxu0 0.0
        %1075 = vmatmul.mubr.f32.gmra.mrb[0].mxu0 %v960
        %v1076 = vpop.f32.mrb[0].mxu0
        %v1077 = vadd.f32 %v940, %v1076
        %v1078 = vpop.f32.mrb[0].mxu0
        %v1079 = vadd.f32 %v944, %v1078
        %1080 = vmatprep.mubr.f32.mxu0 0.0
        %1081 = vmatmul.mubr.f32.gmra.mrb[0].mxu0 %v963
        %v1082 = vpop.f32.mrb[0].mxu0
        %v1083 = vadd.f32 %v940, %v1082
        %v1084 = vpop.f32.mrb[0].mxu0
        %v1085 = vadd.f32 %v944, %v1084
        %1086 = vmatprep.mubr.f32.mxu0 0.0
        %1087 = vmatmul.mubr.f32.gmra.mrb[0].mxu0 %v966
        %v1088 = vpop.f32.mrb[0].mxu0
        %v1089 = vadd.f32 %v940, %v1088
        %v1090 = vpop.f32.mrb[0].mxu0
        %v1091 = vadd.f32 %v944, %v1090
        %1092 = vmatprep.mubr.f32.mxu0 0.0
        %1093 = vmatmul.mubr.f32.gmra.mrb[0].mxu0 %v969
        %v1094 = vpop.f32.mrb[0].mxu0
        %v1095 = vadd.f32 %v940, %v1094
        %v1096 = vpop.f32.mrb[0].mxu0
        %v1097 = vadd.f32 %v944, %v1096
        %1098 = vmatprep.mubr.f32.mxu0 0.0
        %1099 = vmatmul.mubr.f32.gmra.mrb[0].mxu0 %v972
        %v1100 = vpop.f32.mrb[0].mxu0
        %v1101 = vadd.f32 %v940, %v1100
        %v1102 = vpop.f32.mrb[0].mxu0
        %v1103 = vadd.f32 %v944, %v1102
        %1104 = vmatprep.mubr.f32.mxu0 0.0
        %1105 = vmatmul.mubr.f32.gmra.mrb[0].mxu0 %v975
        %v1106 = vpop.f32.mrb[0].mxu0
        %v1107 = vadd.f32 %v940, %v1106
        %v1108 = vpop.f32.mrb[0].mxu0
        %v1109 = vadd.f32 %v944, %v1108
        %1110 = vmatprep.mubr.f32.mxu0 0.0
        %1111 = vmatmul.mubr.f32.gmra.mrb[0].mxu0 %v978
        %v1112 = vpop.f32.mrb[0].mxu0
        %v1113 = vadd.f32 %v940, %v1112
        %v1114 = vpop.f32.mrb[0].mxu0
        %v1115 = vadd.f32 %v944, %v1114
        %1116 = vmatprep.mubr.f32.mxu0 0.0
        %1117 = vmatmul.mubr.f32.gmra.mrb[0].mxu0 %v981
        %v1118 = vpop.f32.mrb[0].mxu0
        %v1119 = vadd.f32 %v940, %v1118
        %v1120 = vpop.f32.mrb[0].mxu0
        %v1121 = vadd.f32 %v944, %v1120
        %1122 = vmatprep.mubr.f32.mxu0 0.0
        %1123 = vmatmul.mubr.f32.gmra.mrb[0].mxu0 %v984
        %v1124 = vpop.f32.mrb[0].mxu0
        %v1125 = vadd.f32 %v940, %v1124
        %v1126 = vpop.f32.mrb[0].mxu0
        %v1127 = vadd.f32 %v944, %v1126
        %1128 = vdwg.mxu0
        %1129 = vst [vmem:[#allocation3] sm:$0xff] %v1053
        %1130 = vst.msk [vmem:[#allocation3 + $0x8] sm:$0xff] %vm891, %v1055
        %1131 = vst [vmem:[#allocation3 + $0x10] sm:$0xff] %v1059
        %1132 = vst.msk [vmem:[#allocation3 + $0x18] sm:$0xff] %vm891, %v1061
        %1133 = vst [vmem:[#allocation3 + $0x20] sm:$0xff] %v1065
        %1134 = vst.msk [vmem:[#allocation3 + $0x28] sm:$0xff] %vm891, %v1067
        %1135 = vst [vmem:[#allocation3 + $0x30] sm:$0xff] %v1071
        %1136 = vst.msk [vmem:[#allocation3 + $0x38] sm:$0xff] %vm891, %v1073
        %1137 = vst [vmem:[#allocation3 + $0x40] sm:$0xff] %v1077
        %1138 = vst.msk [vmem:[#allocation3 + $0x48] sm:$0xff] %vm891, %v1079
        %1139 = vst [vmem:[#allocation3 + $0x50] sm:$0xff] %v1083
        %1140 = vst.msk [vmem:[#allocation3 + $0x58] sm:$0xff] %vm891, %v1085
        %1141 = vst [vmem:[#allocation3 + $0x60] sm:$0xff] %v1089
        %1142 = vst.msk [vmem:[#allocation3 + $0x68] sm:$0xff] %vm891, %v1091
        %1143 = vst [vmem:[#allocation3 + $0x70] sm:$0xff] %v1095
        %1144 = vst.msk [vmem:[#allocation3 + $0x78] sm:$0xff] %vm891, %v1097
        %1145 = vst [vmem:[#allocation3 + $0x80] sm:$0xff] %v1101
        %1146 = vst.msk [vmem:[#allocation3 + $0x88] sm:$0xff] %vm891, %v1103
        %1147 = vst [vmem:[#allocation3 + $0x90] sm:$0xff] %v1107
        %1148 = vst.msk [vmem:[#allocation3 + $0x98] sm:$0xff] %vm891, %v1109
        %1149 = vst [vmem:[#allocation3 + $0xa0] sm:$0xff] %v1113
        %1150 = vst.msk [vmem:[#allocation3 + $0xa8] sm:$0xff] %vm891, %v1115
        %1151 = vst [vmem:[#allocation3 + $0xb0] sm:$0xff] %v1119
        %1152 = vst.msk [vmem:[#allocation3 + $0xb8] sm:$0xff] %vm891, %v1121
        %1153 = vst [vmem:[#allocation3 + $0xc0] sm:$0xf] %v1125
        %1154 = vst.msk [vmem:[#allocation3 + $0xc8] sm:$0xf] %vm904, %v1127
        %v1155 = vld [vmem:[#allocation3] sm:$0xff]
        %v1156 = vld [vmem:[#allocation3 + $0x10] sm:$0xff]
        %v1157 = vld [vmem:[#allocation3 + $0x20] sm:$0xff]
        %v1158 = vld [vmem:[#allocation3 + $0x30] sm:$0xff]
        %v1159 = vld [vmem:[#allocation3 + $0x40] sm:$0xff]
        %v1160 = vld [vmem:[#allocation3 + $0x50] sm:$0xff]
        %v1161 = vld [vmem:[#allocation3 + $0x60] sm:$0xff]
        %v1162 = vld [vmem:[#allocation3 + $0x70] sm:$0xff]
        %v1163 = vld [vmem:[#allocation3 + $0x80] sm:$0xff]
        %v1164 = vld [vmem:[#allocation3 + $0x90] sm:$0xff]
        %v1165 = vld [vmem:[#allocation3 + $0xa0] sm:$0xff]
        %v1166 = vld [vmem:[#allocation3 + $0xb0] sm:$0xff]
        %v1167 = vld [vmem:[#allocation3 + $0xc0] sm:$0xf]
        %1181 = vrot.lane.b32.xlu0 %v1155, 64
        %v1182 = vpop.permute.xlu0 %1181
        %1183 = vrot.lane.b32.xlu0 %v1156, 64
        %v1184 = vpop.permute.xlu0 %1183
        %1185 = vrot.lane.b32.xlu0 %v1157, 64
        %v1186 = vpop.permute.xlu0 %1185
        %1187 = vrot.lane.b32.xlu0 %v1158, 64
        %v1188 = vpop.permute.xlu0 %1187
        %1189 = vrot.lane.b32.xlu0 %v1159, 64
        %v1190 = vpop.permute.xlu0 %1189
        %1191 = vrot.lane.b32.xlu0 %v1160, 64
        %v1192 = vpop.permute.xlu0 %1191
        %1193 = vrot.lane.b32.xlu0 %v1161, 64
        %v1194 = vpop.permute.xlu0 %1193
        %1195 = vrot.lane.b32.xlu0 %v1162, 64
        %v1196 = vpop.permute.xlu0 %1195
        %1197 = vrot.lane.b32.xlu0 %v1163, 64
        %v1198 = vpop.permute.xlu0 %1197
        %1199 = vrot.lane.b32.xlu0 %v1164, 64
        %v1200 = vpop.permute.xlu0 %1199
        %1201 = vrot.lane.b32.xlu0 %v1165, 64
        %v1202 = vpop.permute.xlu0 %1201
        %1203 = vrot.lane.b32.xlu0 %v1166, 64
        %v1204 = vpop.permute.xlu0 %1203
        %1205 = vrot.lane.b32.xlu0 %v1167, 64
        %v1206 = vpop.permute.xlu0 %1205
        %vm1207 = vcmask 64512
        %v1208 = vsel %vm1207, %v1155, 0
        %v1210 = vsel %vm1207, %v1156, 0
        %v1212 = vsel %vm1207, %v1157, 0
        %v1214 = vsel %vm1207, %v1158, 0
        %v1216 = vsel %vm1207, %v1159, 0
        %v1218 = vsel %vm1207, %v1160, 0
        %v1220 = vsel %vm1207, %v1161, 0
        %v1222 = vsel %vm1207, %v1162, 0
        %v1224 = vsel %vm1207, %v1163, 0
        %v1226 = vsel %vm1207, %v1164, 0
        %v1228 = vsel %vm1207, %v1165, 0
        %v1230 = vsel %vm1207, %v1166, 0
        %v1232 = vsel %vm1207, %v1167, 0
        %v1234 = vsel %vm1207, %v1182, 0
        %v1236 = vsel %vm1207, %v1184, 0
        %v1238 = vsel %vm1207, %v1186, 0
        %v1240 = vsel %vm1207, %v1188, 0
        %v1242 = vsel %vm1207, %v1190, 0
        %v1244 = vsel %vm1207, %v1192, 0
        %v1246 = vsel %vm1207, %v1194, 0
        %v1248 = vsel %vm1207, %v1196, 0
        %v1250 = vsel %vm1207, %v1198, 0
        %v1252 = vsel %vm1207, %v1200, 0
        %v1254 = vsel %vm1207, %v1202, 0
        %v1256 = vsel %vm1207, %v1204, 0
        %v1258 = vsel %vm1207, %v1206, 0
        %1260 = vmatprep.subr.mxu0 0.0
        %1261 = vmatpush1.xpose.msra.mxu0 %v1234
        %1262 = vmatprep.subr.mxu0 0.0
        %1263 = vmatpush1.xpose.msra.mxu0 %v1236
        %1264 = vmatprep.subr.mxu0 0.0
        %1265 = vmatpush1.xpose.msra.mxu0 %v1238
        %1266 = vmatprep.subr.mxu0 0.0
        %1267 = vmatpush1.xpose.msra.mxu0 %v1240
        %1268 = vmatprep.subr.mxu0 0.0
        %1269 = vmatpush1.xpose.msra.mxu0 %v1242
        %1270 = vmatprep.subr.mxu0 0.0
        %1271 = vmatpush1.xpose.msra.mxu0 %v1244
        %1272 = vmatprep.subr.mxu0 0.0
        %1273 = vmatpush1.xpose.msra.mxu0 %v1246
        %1274 = vmatprep.subr.mxu0 0.0
        %1275 = vmatpush1.xpose.msra.mxu0 %v1248
        %1276 = vmatprep.subr.mxu0 0.0
        %1277 = vmatpush1.xpose.msra.mxu0 %v1250
        %1278 = vmatprep.subr.mxu0 0.0
        %1279 = vmatpush1.xpose.msra.mxu0 %v1252
        %1280 = vmatprep.subr.mxu0 0.0
        %1281 = vmatpush1.xpose.msra.mxu0 %v1254
        %1282 = vmatprep.subr.mxu0 0.0
        %1283 = vmatpush1.xpose.msra.mxu0 %v1256
        %1284 = vmatprep.subr.mxu0 0.0
        %1285 = vmatpush1.xpose.msra.mxu0 %v1258
        %1286 = vmatprep.subr.mxu0 0.0
        %1287 = vmatpush1.xpose.msra.mxu0 0.0
        %1288 = vmatprep.subr.mxu0 0.0
        %1289 = vmatpush1.xpose.msra.mxu0 0.0
        %1290 = vmatprep.subr.mxu0 0.0
        %1291 = vmatpush1.xpose.msra.mxu0 0.0
        %1292 = vmatprep.subr.mxu0 0.0
        %1293 = vmatpush1.xpose.msra.mxu0 0.0
        %1294 = vmatprep.subr.mxu0 0.0
        %1295 = vmatpush1.xpose.msra.mxu0 0.0
        %1296 = vmatprep.subr.mxu0 0.0
        %1297 = vmatpush1.xpose.msra.mxu0 0.0
        %1298 = vmatprep.subr.mxu0 0.0
        %1299 = vmatpush1.xpose.msra.mxu0 0.0
        %1300 = vmatprep.subr.mxu0 0.0
        %1301 = vmatpush1.xpose.msra.mxu0 0.0
        %1302 = vmatprep.subr.mxu0 0.0
        %1303 = vmatpush1.xpose.msra.mxu0 0.0
        %1304 = vmatprep.subr.mxu0 0.0
        %1305 = vmatpush1.xpose.msra.mxu0 0.0
        %1306 = vmatprep.subr.mxu0 0.0
        %1307 = vmatpush1.xpose.msra.mxu0 0.0
        %1308 = vmatprep.subr.mxu0 0.0
        %1309 = vmatpush1.xpose.msra.mxu0 0.0
        %1310 = vmatprep.subr.mxu0 0.0
        %1311 = vmatpush1.xpose.msra.mxu0 0.0
        %1312 = vmatprep.subr.mxu0 0.0
        %1313 = vmatpush1.xpose.msra.mxu0 0.0
        %1314 = vmatprep.subr.mxu0 0.0
        %1315 = vmatpush1.xpose.msra.mxu0 0.0
        %1316 = vmatprep.subr.mxu0 0.0
        %1317 = vmatpush1.xpose.msra.mxu0 0.0
        %1318 = vmatprep.subr.mxu0 0.0
        %1319 = vmatpush1.xpose.msra.mxu0 0.0
        %1320 = vmatprep.subr.mxu0 0.0
        %1321 = vmatpush1.xpose.msra.mxu0 0.0
        %1322 = vmatprep.subr.mxu0 0.0
        %1323 = vmatpush1.xpose.msra.mxu0 0.0
        %1324 = vmatprep.mubr.f32.mxu0 0.0
        %1325 = vmatmul.mubr.f32.gmra.mrb[0].mxu0 %v1208
        %v1326 = vpop.f32.mrb[0].mxu0
        %v1327 = vadd.f32 0.0, %v1326
        %v1328 = vpop.f32.mrb[0].mxu0
        %1329 = vmatprep.mubr.f32.mxu0 0.0
        %1330 = vmatmul.mubr.f32.gmra.mrb[0].mxu0 %v1210
        %v1331 = vpop.f32.mrb[0].mxu0
        %v1332 = vadd.f32 0.0, %v1331
        %v1333 = vpop.f32.mrb[0].mxu0
        %1334 = vmatprep.mubr.f32.mxu0 0.0
        %1335 = vmatmul.mubr.f32.gmra.mrb[0].mxu0 %v1212
        %v1336 = vpop.f32.mrb[0].mxu0
        %v1337 = vadd.f32 0.0, %v1336
        %v1338 = vpop.f32.mrb[0].mxu0
        %1339 = vmatprep.mubr.f32.mxu0 0.0
        %1340 = vmatmul.mubr.f32.gmra.mrb[0].mxu0 %v1214
        %v1341 = vpop.f32.mrb[0].mxu0
        %v1342 = vadd.f32 0.0, %v1341
        %v1343 = vpop.f32.mrb[0].mxu0
        %1344 = vmatprep.mubr.f32.mxu0 0.0
        %1345 = vmatmul.mubr.f32.gmra.mrb[0].mxu0 %v1216
        %v1346 = vpop.f32.mrb[0].mxu0
        %v1347 = vadd.f32 0.0, %v1346
        %v1348 = vpop.f32.mrb[0].mxu0
        %1349 = vmatprep.mubr.f32.mxu0 0.0
        %1350 = vmatmul.mubr.f32.gmra.mrb[0].mxu0 %v1218
        %v1351 = vpop.f32.mrb[0].mxu0
        %v1352 = vadd.f32 0.0, %v1351
        %v1353 = vpop.f32.mrb[0].mxu0
        %1354 = vmatprep.mubr.f32.mxu0 0.0
        %1355 = vmatmul.mubr.f32.gmra.mrb[0].mxu0 %v1220
        %v1356 = vpop.f32.mrb[0].mxu0
        %v1357 = vadd.f32 0.0, %v1356
        %v1358 = vpop.f32.mrb[0].mxu0
        %1359 = vmatprep.mubr.f32.mxu0 0.0
        %1360 = vmatmul.mubr.f32.gmra.mrb[0].mxu0 %v1222
        %v1361 = vpop.f32.mrb[0].mxu0
        %v1362 = vadd.f32 0.0, %v1361
        %v1363 = vpop.f32.mrb[0].mxu0
        %1364 = vmatprep.mubr.f32.mxu0 0.0
        %1365 = vmatmul.mubr.f32.gmra.mrb[0].mxu0 %v1224
        %v1366 = vpop.f32.mrb[0].mxu0
        %v1367 = vadd.f32 0.0, %v1366
        %v1368 = vpop.f32.mrb[0].mxu0
        %1369 = vmatprep.mubr.f32.mxu0 0.0
        %1370 = vmatmul.mubr.f32.gmra.mrb[0].mxu0 %v1226
        %v1371 = vpop.f32.mrb[0].mxu0
        %v1372 = vadd.f32 0.0, %v1371
        %v1373 = vpop.f32.mrb[0].mxu0
        %1374 = vmatprep.mubr.f32.mxu0 0.0
        %1375 = vmatmul.mubr.f32.gmra.mrb[0].mxu0 %v1228
        %v1376 = vpop.f32.mrb[0].mxu0
        %v1377 = vadd.f32 0.0, %v1376
        %v1378 = vpop.f32.mrb[0].mxu0
        %1379 = vmatprep.mubr.f32.mxu0 0.0
        %1380 = vmatmul.mubr.f32.gmra.mrb[0].mxu0 %v1230
        %v1381 = vpop.f32.mrb[0].mxu0
        %v1382 = vadd.f32 0.0, %v1381
        %v1383 = vpop.f32.mrb[0].mxu0
        %1384 = vmatprep.mubr.f32.mxu0 0.0
        %1385 = vmatmul.mubr.f32.gmra.mrb[0].mxu0 %v1232
        %v1386 = vpop.f32.mrb[0].mxu0
        %v1387 = vadd.f32 0.0, %v1386
        %v1388 = vpop.f32.mrb[0].mxu0
        %1389 = vdwg.mxu0
        %vm1390 = vcmask 818176
        %v1391 = vsel %vm1390, %v1327, -inf
        %1392 = vmax.xlane.f32.xlu0 %v1391
        %v1393 = vpop.xlane.xlu0 %1392
        %v1394 = vsel %vm1390, %v1332, -inf
        %1395 = vmax.xlane.f32.xlu0 %v1394
        %v1396 = vpop.xlane.xlu0 %1395
        %v1397 = vsel %vm1390, %v1337, -inf
        %1398 = vmax.xlane.f32.xlu0 %v1397
        %v1399 = vpop.xlane.xlu0 %1398
        %v1400 = vsel %vm1390, %v1342, -inf
        %1401 = vmax.xlane.f32.xlu0 %v1400
        %v1402 = vpop.xlane.xlu0 %1401
        %v1403 = vsel %vm1390, %v1347, -inf
        %1404 = vmax.xlane.f32.xlu0 %v1403
        %v1405 = vpop.xlane.xlu0 %1404
        %v1406 = vsel %vm1390, %v1352, -inf
        %1407 = vmax.xlane.f32.xlu0 %v1406
        %v1408 = vpop.xlane.xlu0 %1407
        %v1409 = vsel %vm1390, %v1357, -inf
        %1410 = vmax.xlane.f32.xlu0 %v1409
        %v1411 = vpop.xlane.xlu0 %1410
        %v1412 = vsel %vm1390, %v1362, -inf
        %1413 = vmax.xlane.f32.xlu0 %v1412
        %v1414 = vpop.xlane.xlu0 %1413
        %v1415 = vsel %vm1390, %v1367, -inf
        %1416 = vmax.xlane.f32.xlu0 %v1415
        %v1417 = vpop.xlane.xlu0 %1416
        %v1418 = vsel %vm1390, %v1372, -inf
        %1419 = vmax.xlane.f32.xlu0 %v1418
        %v1420 = vpop.xlane.xlu0 %1419
        %v1421 = vsel %vm1390, %v1377, -inf
        %1422 = vmax.xlane.f32.xlu0 %v1421
        %v1423 = vpop.xlane.xlu0 %1422
        %v1424 = vsel %vm1390, %v1382, -inf
        %1425 = vmax.xlane.f32.xlu0 %v1424
        %v1426 = vpop.xlane.xlu0 %1425
        %vm1427 = vcmask 814080
        %v1428 = vsel %vm1427, %v1387, -inf
        %1429 = vmax.xlane.f32.xlu0 %v1428
        %v1430 = vpop.xlane.xlu0 %1429
        %v1431 = vsub.f32 %v1327, %v1393
        %v1432 = vsub.f32 %v1332, %v1396
        %v1433 = vsub.f32 %v1337, %v1399
        %v1434 = vsub.f32 %v1342, %v1402
        %v1435 = vsub.f32 %v1347, %v1405
        %v1436 = vsub.f32 %v1352, %v1408
        %v1437 = vsub.f32 %v1357, %v1411
        %v1438 = vsub.f32 %v1362, %v1414
        %v1439 = vsub.f32 %v1367, %v1417
        %v1440 = vsub.f32 %v1372, %v1420
        %v1441 = vsub.f32 %v1377, %v1423
        %v1442 = vsub.f32 %v1382, %v1426
        %v1443 = vsub.f32 %v1387, %v1430
        %v1444 = vmul.f32 %v1431, 1.442695
        %v1445 = vpow.pop %v1444
        %v1446 = vmul.f32 %v1432, 1.442695
        %v1447 = vpow.pop %v1446
        %v1448 = vmul.f32 %v1433, 1.442695
        %v1449 = vpow.pop %v1448
        %v1450 = vmul.f32 %v1434, 1.442695
        %v1451 = vpow.pop %v1450
        %v1452 = vmul.f32 %v1435, 1.442695
        %v1453 = vpow.pop %v1452
        %v1454 = vmul.f32 %v1436, 1.442695
        %v1455 = vpow.pop %v1454
        %v1456 = vmul.f32 %v1437, 1.442695
        %v1457 = vpow.pop %v1456
        %v1458 = vmul.f32 %v1438, 1.442695
        %v1459 = vpow.pop %v1458
        %v1460 = vmul.f32 %v1439, 1.442695
        %v1461 = vpow.pop %v1460
        %v1462 = vmul.f32 %v1440, 1.442695
        %v1463 = vpow.pop %v1462
        %v1464 = vmul.f32 %v1441, 1.442695
        %v1465 = vpow.pop %v1464
        %v1466 = vmul.f32 %v1442, 1.442695
        %v1467 = vpow.pop %v1466
        %v1468 = vmul.f32 %v1443, 1.442695
        %v1469 = vpow.pop %v1468
        %v1470 = vsel %vm1390, %v1445, 0.0
        %1471 = vadd.xlane.f32.xlu0 %v1470
        %v1472 = vpop.xlane.xlu0 %1471
        %v1473 = vsel %vm1390, %v1447, 0.0
        %1474 = vadd.xlane.f32.xlu0 %v1473
        %v1475 = vpop.xlane.xlu0 %1474
        %v1476 = vsel %vm1390, %v1449, 0.0
        %1477 = vadd.xlane.f32.xlu0 %v1476
        %v1478 = vpop.xlane.xlu0 %1477
        %v1479 = vsel %vm1390, %v1451, 0.0
        %1480 = vadd.xlane.f32.xlu0 %v1479
        %v1481 = vpop.xlane.xlu0 %1480
        %v1482 = vsel %vm1390, %v1453, 0.0
        %1483 = vadd.xlane.f32.xlu0 %v1482
        %v1484 = vpop.xlane.xlu0 %1483
        %v1485 = vsel %vm1390, %v1455, 0.0
        %1486 = vadd.xlane.f32.xlu0 %v1485
        %v1487 = vpop.xlane.xlu0 %1486
        %v1488 = vsel %vm1390, %v1457, 0.0
        %1489 = vadd.xlane.f32.xlu0 %v1488
        %v1490 = vpop.xlane.xlu0 %1489
        %v1491 = vsel %vm1390, %v1459, 0.0
        %1492 = vadd.xlane.f32.xlu0 %v1491
        %v1493 = vpop.xlane.xlu0 %1492
        %v1494 = vsel %vm1390, %v1461, 0.0
        %1495 = vadd.xlane.f32.xlu0 %v1494
        %v1496 = vpop.xlane.xlu0 %1495
        %v1497 = vsel %vm1390, %v1463, 0.0
        %1498 = vadd.xlane.f32.xlu0 %v1497
        %v1499 = vpop.xlane.xlu0 %1498
        %v1500 = vsel %vm1390, %v1465, 0.0
        %1501 = vadd.xlane.f32.xlu0 %v1500
        %v1502 = vpop.xlane.xlu0 %1501
        %v1503 = vsel %vm1390, %v1467, 0.0
        %1504 = vadd.xlane.f32.xlu0 %v1503
        %v1505 = vpop.xlane.xlu0 %1504
        %v1506 = vsel %vm1427, %v1469, 0.0
        %1507 = vadd.xlane.f32.xlu0 %v1506
        %v1508 = vpop.xlane.xlu0 %1507
        %v1509 = vrcp.pop %v1472
        %v1510 = vrcp.pop %v1475
        %v1511 = vrcp.pop %v1478
        %v1512 = vrcp.pop %v1481
        %v1513 = vrcp.pop %v1484
        %v1514 = vrcp.pop %v1487
        %v1515 = vrcp.pop %v1490
        %v1516 = vrcp.pop %v1493
        %v1517 = vrcp.pop %v1496
        %v1518 = vrcp.pop %v1499
        %v1519 = vrcp.pop %v1502
        %v1520 = vrcp.pop %v1505
        %v1521 = vrcp.pop %v1508
        %v1522 = vmul.f32 %v1445, %v1509
        %v1523 = vmul.f32 %v1447, %v1510
        %v1524 = vmul.f32 %v1449, %v1511
        %v1525 = vmul.f32 %v1451, %v1512
        %v1526 = vmul.f32 %v1453, %v1513
        %v1527 = vmul.f32 %v1455, %v1514
        %v1528 = vmul.f32 %v1457, %v1515
        %v1529 = vmul.f32 %v1459, %v1516
        %v1530 = vmul.f32 %v1461, %v1517
        %v1531 = vmul.f32 %v1463, %v1518
        %v1532 = vmul.f32 %v1465, %v1519
        %v1533 = vmul.f32 %v1467, %v1520
        %v1534 = vmul.f32 %v1469, %v1521
        %v1535 = vld [vmem:[#allocation3 + $0x8] sm:$0xff]
        %v1536 = vld [vmem:[#allocation3 + $0x18] sm:$0xff]
        %v1537 = vld [vmem:[#allocation3 + $0x28] sm:$0xff]
        %v1538 = vld [vmem:[#allocation3 + $0x38] sm:$0xff]
        %v1539 = vld [vmem:[#allocation3 + $0x48] sm:$0xff]
        %v1540 = vld [vmem:[#allocation3 + $0x58] sm:$0xff]
        %v1541 = vld [vmem:[#allocation3 + $0x68] sm:$0xff]
        %v1542 = vld [vmem:[#allocation3 + $0x78] sm:$0xff]
        %v1543 = vld [vmem:[#allocation3 + $0x88] sm:$0xff]
        %v1544 = vld [vmem:[#allocation3 + $0x98] sm:$0xff]
        %v1545 = vld [vmem:[#allocation3 + $0xa8] sm:$0xff]
        %v1546 = vld [vmem:[#allocation3 + $0xb8] sm:$0xff]
        %v1547 = vld [vmem:[#allocation3 + $0xc8] sm:$0xf]
        %v1548 = vld [vmem:[#allocation12] sm:$0xff]
        %v1549 = vld [vmem:[#allocation12 + $0x8] sm:$0xff]
        %v1550 = vld [vmem:[#allocation12 + $0x10] sm:$0xff]
        %v1551 = vld [vmem:[#allocation12 + $0x18] sm:$0xff]
        %v1552 = vld [vmem:[#allocation12 + $0x20] sm:$0xff]
        %v1553 = vld [vmem:[#allocation12 + $0x28] sm:$0xff]
        %v1554 = vld [vmem:[#allocation12 + $0x30] sm:$0xff]
        %v1555 = vld [vmem:[#allocation12 + $0x38] sm:$0xff]
        %v1557 = vsel %vm891, %v1535, 0
        %v1560 = vsel %vm891, %v1536, 0
        %v1563 = vsel %vm891, %v1537, 0
        %v1566 = vsel %vm891, %v1538, 0
        %v1569 = vsel %vm891, %v1539, 0
        %v1572 = vsel %vm891, %v1540, 0
        %v1575 = vsel %vm891, %v1541, 0
        %v1578 = vsel %vm891, %v1542, 0
        %v1581 = vsel %vm891, %v1543, 0
        %v1584 = vsel %vm891, %v1544, 0
        %v1587 = vsel %vm891, %v1545, 0
        %v1590 = vsel %vm891, %v1546, 0
        %v1593 = vsel %vm891, %v1547, 0
        %1595 = vmatprep.subr.mxu0 0.0
        %1596 = vmatpush1.msra.mxu0 %v1548
        %1597 = vmatprep.subr.mxu0 0.0
        %1598 = vmatpush1.msra.mxu0 %v1549
        %1599 = vmatprep.subr.mxu0 0.0
        %1600 = vmatpush1.msra.mxu0 %v1550
        %1601 = vmatprep.subr.mxu0 0.0
        %1602 = vmatpush1.msra.mxu0 %v1551
        %1603 = vmatprep.subr.mxu0 0.0
        %1604 = vmatpush1.msra.mxu0 %v1552
        %1605 = vmatprep.subr.mxu0 0.0
        %1606 = vmatpush1.msra.mxu0 %v1553
        %1607 = vmatprep.subr.mxu0 0.0
        %1608 = vmatpush1.msra.mxu0 %v1554
        %1609 = vmatprep.subr.mxu0 0.0
        %1610 = vmatpush1.msra.mxu0 %v1555
        %1611 = vmatprep.subr.mxu0 0.0
        %1612 = vmatpush1.msra.mxu0 0.0
        %1613 = vmatprep.subr.mxu0 0.0
        %1614 = vmatpush1.msra.mxu0 0.0
        %1615 = vmatprep.subr.mxu0 0.0
        %1616 = vmatpush1.msra.mxu0 0.0
        %1617 = vmatprep.subr.mxu0 0.0
        %1618 = vmatpush1.msra.mxu0 0.0
        %1619 = vmatprep.subr.mxu0 0.0
        %1620 = vmatpush1.msra.mxu0 0.0
        %1621 = vmatprep.subr.mxu0 0.0
        %1622 = vmatpush1.msra.mxu0 0.0
        %1623 = vmatprep.subr.mxu0 0.0
        %1624 = vmatpush1.msra.mxu0 0.0
        %1625 = vmatprep.subr.mxu0 0.0
        %1626 = vmatpush1.msra.mxu0 0.0
        %1627 = vmatprep.subr.mxu0 0.0
        %1628 = vmatpush1.msra.mxu0 0.0
        %1629 = vmatprep.subr.mxu0 0.0
        %1630 = vmatpush1.msra.mxu0 0.0
        %1631 = vmatprep.subr.mxu0 0.0
        %1632 = vmatpush1.msra.mxu0 0.0
        %1633 = vmatprep.subr.mxu0 0.0
        %1634 = vmatpush1.msra.mxu0 0.0
        %1635 = vmatprep.subr.mxu0 0.0
        %1636 = vmatpush1.msra.mxu0 0.0
        %1637 = vmatprep.subr.mxu0 0.0
        %1638 = vmatpush1.msra.mxu0 0.0
        %1639 = vmatprep.subr.mxu0 0.0
        %1640 = vmatpush1.msra.mxu0 0.0
        %1641 = vmatprep.subr.mxu0 0.0
        %1642 = vmatpush1.msra.mxu0 0.0
        %1643 = vmatprep.subr.mxu0 0.0
        %1644 = vmatpush1.msra.mxu0 0.0
        %1645 = vmatprep.subr.mxu0 0.0
        %1646 = vmatpush1.msra.mxu0 0.0
        %1647 = vmatprep.subr.mxu0 0.0
        %1648 = vmatpush1.msra.mxu0 0.0
        %1649 = vmatprep.subr.mxu0 0.0
        %1650 = vmatpush1.msra.mxu0 0.0
        %1651 = vmatprep.subr.mxu0 0.0
        %1652 = vmatpush1.msra.mxu0 0.0
        %1653 = vmatprep.subr.mxu0 0.0
        %1654 = vmatpush1.msra.mxu0 0.0
        %1655 = vmatprep.subr.mxu0 0.0
        %1656 = vmatpush1.msra.mxu0 0.0
        %1657 = vmatprep.subr.mxu0 0.0
        %1658 = vmatpush1.msra.mxu0 0.0
        %1659 = vmatprep.mubr.f32.mxu0 0.0
        %1660 = vmatmul.mubr.f32.gmra.mrb[0].mxu0 %v1557
        %v1661 = vpop.f32.mrb[0].mxu0
        %v1662 = vadd.f32 0.0, %v1661
        %v1663 = vpop.f32.mrb[0].mxu0
        %1664 = vmatprep.mubr.f32.mxu0 0.0
        %1665 = vmatmul.mubr.f32.gmra.mrb[0].mxu0 %v1560
        %v1666 = vpop.f32.mrb[0].mxu0
        %v1667 = vadd.f32 0.0, %v1666
        %v1668 = vpop.f32.mrb[0].mxu0
        %1669 = vmatprep.mubr.f32.mxu0 0.0
        %1670 = vmatmul.mubr.f32.gmra.mrb[0].mxu0 %v1563
        %v1671 = vpop.f32.mrb[0].mxu0
        %v1672 = vadd.f32 0.0, %v1671
        %v1673 = vpop.f32.mrb[0].mxu0
        %1674 = vmatprep.mubr.f32.mxu0 0.0
        %1675 = vmatmul.mubr.f32.gmra.mrb[0].mxu0 %v1566
        %v1676 = vpop.f32.mrb[0].mxu0
        %v1677 = vadd.f32 0.0, %v1676
        %v1678 = vpop.f32.mrb[0].mxu0
        %1679 = vmatprep.mubr.f32.mxu0 0.0
        %1680 = vmatmul.mubr.f32.gmra.mrb[0].mxu0 %v1569
        %v1681 = vpop.f32.mrb[0].mxu0
        %v1682 = vadd.f32 0.0, %v1681
        %v1683 = vpop.f32.mrb[0].mxu0
        %1684 = vmatprep.mubr.f32.mxu0 0.0
        %1685 = vmatmul.mubr.f32.gmra.mrb[0].mxu0 %v1572
        %v1686 = vpop.f32.mrb[0].mxu0
        %v1687 = vadd.f32 0.0, %v1686
        %v1688 = vpop.f32.mrb[0].mxu0
        %1689 = vmatprep.mubr.f32.mxu0 0.0
        %1690 = vmatmul.mubr.f32.gmra.mrb[0].mxu0 %v1575
        %v1691 = vpop.f32.mrb[0].mxu0
        %v1692 = vadd.f32 0.0, %v1691
        %v1693 = vpop.f32.mrb[0].mxu0
        %1694 = vmatprep.mubr.f32.mxu0 0.0
        %1695 = vmatmul.mubr.f32.gmra.mrb[0].mxu0 %v1578
        %v1696 = vpop.f32.mrb[0].mxu0
        %v1697 = vadd.f32 0.0, %v1696
        %v1698 = vpop.f32.mrb[0].mxu0
        %1699 = vmatprep.mubr.f32.mxu0 0.0
        %1700 = vmatmul.mubr.f32.gmra.mrb[0].mxu0 %v1581
        %v1701 = vpop.f32.mrb[0].mxu0
        %v1702 = vadd.f32 0.0, %v1701
        %v1703 = vpop.f32.mrb[0].mxu0
        %1704 = vmatprep.mubr.f32.mxu0 0.0
        %1705 = vmatmul.mubr.f32.gmra.mrb[0].mxu0 %v1584
        %v1706 = vpop.f32.mrb[0].mxu0
        %v1707 = vadd.f32 0.0, %v1706
        %v1708 = vpop.f32.mrb[0].mxu0
        %1709 = vmatprep.mubr.f32.mxu0 0.0
        %1710 = vmatmul.mubr.f32.gmra.mrb[0].mxu0 %v1587
        %v1711 = vpop.f32.mrb[0].mxu0
        %v1712 = vadd.f32 0.0, %v1711
        %v1713 = vpop.f32.mrb[0].mxu0
        %1714 = vmatprep.mubr.f32.mxu0 0.0
        %1715 = vmatmul.mubr.f32.gmra.mrb[0].mxu0 %v1590
        %v1716 = vpop.f32.mrb[0].mxu0
        %v1717 = vadd.f32 0.0, %v1716
        %v1718 = vpop.f32.mrb[0].mxu0
        %1719 = vmatprep.mubr.f32.mxu0 0.0
        %1720 = vmatmul.mubr.f32.gmra.mrb[0].mxu0 %v1593
        %v1721 = vpop.f32.mrb[0].mxu0
        %v1722 = vadd.f32 0.0, %v1721
        %v1723 = vpop.f32.mrb[0].mxu0
        %1724 = vdwg.mxu0
        %1725 = vrot.lane.b32.xlu0 %v1155, 120
        %v1726 = vpop.permute.xlu0 %1725
        %1727 = vrot.lane.b32.xlu0 %v1156, 120
        %v1728 = vpop.permute.xlu0 %1727
        %1729 = vrot.lane.b32.xlu0 %v1157, 120
        %v1730 = vpop.permute.xlu0 %1729
        %1731 = vrot.lane.b32.xlu0 %v1158, 120
        %v1732 = vpop.permute.xlu0 %1731
        %1733 = vrot.lane.b32.xlu0 %v1159, 120
        %v1734 = vpop.permute.xlu0 %1733
        %1735 = vrot.lane.b32.xlu0 %v1160, 120
        %v1736 = vpop.permute.xlu0 %1735
        %1737 = vrot.lane.b32.xlu0 %v1161, 120
        %v1738 = vpop.permute.xlu0 %1737
        %1739 = vrot.lane.b32.xlu0 %v1162, 120
        %v1740 = vpop.permute.xlu0 %1739
        %1741 = vrot.lane.b32.xlu0 %v1163, 120
        %v1742 = vpop.permute.xlu0 %1741
        %1743 = vrot.lane.b32.xlu0 %v1164, 120
        %v1744 = vpop.permute.xlu0 %1743
        %1745 = vrot.lane.b32.xlu0 %v1165, 120
        %v1746 = vpop.permute.xlu0 %1745
        %1747 = vrot.lane.b32.xlu0 %v1166, 120
        %v1748 = vpop.permute.xlu0 %1747
        %1749 = vrot.lane.b32.xlu0 %v1167, 120
        %v1750 = vpop.permute.xlu0 %1749
        %1751 = vrot.lane.b32.xlu0 %v1155, 56
        %v1752 = vpop.permute.xlu0 %1751
        %1753 = vrot.lane.b32.xlu0 %v1156, 56
        %v1754 = vpop.permute.xlu0 %1753
        %1755 = vrot.lane.b32.xlu0 %v1157, 56
        %v1756 = vpop.permute.xlu0 %1755
        %1757 = vrot.lane.b32.xlu0 %v1158, 56
        %v1758 = vpop.permute.xlu0 %1757
        %1759 = vrot.lane.b32.xlu0 %v1159, 56
        %v1760 = vpop.permute.xlu0 %1759
        %1761 = vrot.lane.b32.xlu0 %v1160, 56
        %v1762 = vpop.permute.xlu0 %1761
        %1763 = vrot.lane.b32.xlu0 %v1161, 56
        %v1764 = vpop.permute.xlu0 %1763
        %1765 = vrot.lane.b32.xlu0 %v1162, 56
        %v1766 = vpop.permute.xlu0 %1765
        %1767 = vrot.lane.b32.xlu0 %v1163, 56
        %v1768 = vpop.permute.xlu0 %1767
        %1769 = vrot.lane.b32.xlu0 %v1164, 56
        %v1770 = vpop.permute.xlu0 %1769
        %1771 = vrot.lane.b32.xlu0 %v1165, 56
        %v1772 = vpop.permute.xlu0 %1771
        %1773 = vrot.lane.b32.xlu0 %v1166, 56
        %v1774 = vpop.permute.xlu0 %1773
        %1775 = vrot.lane.b32.xlu0 %v1167, 56
        %v1776 = vpop.permute.xlu0 %1775
        %v1777 = vsel %vm1207, %v1726, 0
        %v1779 = vsel %vm1207, %v1728, 0
        %v1781 = vsel %vm1207, %v1730, 0
        %v1783 = vsel %vm1207, %v1732, 0
        %v1785 = vsel %vm1207, %v1734, 0
        %v1787 = vsel %vm1207, %v1736, 0
        %v1789 = vsel %vm1207, %v1738, 0
        %v1791 = vsel %vm1207, %v1740, 0
        %v1793 = vsel %vm1207, %v1742, 0
        %v1795 = vsel %vm1207, %v1744, 0
        %v1797 = vsel %vm1207, %v1746, 0
        %v1799 = vsel %vm1207, %v1748, 0
        %v1801 = vsel %vm1207, %v1750, 0
        %v1803 = vsel %vm1207, %v1752, 0
        %v1805 = vsel %vm1207, %v1754, 0
        %v1807 = vsel %vm1207, %v1756, 0
        %v1809 = vsel %vm1207, %v1758, 0
        %v1811 = vsel %vm1207, %v1760, 0
        %v1813 = vsel %vm1207, %v1762, 0
        %v1815 = vsel %vm1207, %v1764, 0
        %v1817 = vsel %vm1207, %v1766, 0
        %v1819 = vsel %vm1207, %v1768, 0
        %v1821 = vsel %vm1207, %v1770, 0
        %v1823 = vsel %vm1207, %v1772, 0
        %v1825 = vsel %vm1207, %v1774, 0
        %v1827 = vsel %vm1207, %v1776, 0
        %1829 = vmatprep.subr.mxu0 0.0
        %1830 = vmatpush1.xpose.msra.mxu0 %v1803
        %1831 = vmatprep.subr.mxu0 0.0
        %1832 = vmatpush1.xpose.msra.mxu0 %v1805
        %1833 = vmatprep.subr.mxu0 0.0
        %1834 = vmatpush1.xpose.msra.mxu0 %v1807
        %1835 = vmatprep.subr.mxu0 0.0
        %1836 = vmatpush1.xpose.msra.mxu0 %v1809
        %1837 = vmatprep.subr.mxu0 0.0
        %1838 = vmatpush1.xpose.msra.mxu0 %v1811
        %1839 = vmatprep.subr.mxu0 0.0
        %1840 = vmatpush1.xpose.msra.mxu0 %v1813
        %1841 = vmatprep.subr.mxu0 0.0
        %1842 = vmatpush1.xpose.msra.mxu0 %v1815
        %1843 = vmatprep.subr.mxu0 0.0
        %1844 = vmatpush1.xpose.msra.mxu0 %v1817
        %1845 = vmatprep.subr.mxu0 0.0
        %1846 = vmatpush1.xpose.msra.mxu0 %v1819
        %1847 = vmatprep.subr.mxu0 0.0
        %1848 = vmatpush1.xpose.msra.mxu0 %v1821
        %1849 = vmatprep.subr.mxu0 0.0
        %1850 = vmatpush1.xpose.msra.mxu0 %v1823
        %1851 = vmatprep.subr.mxu0 0.0
        %1852 = vmatpush1.xpose.msra.mxu0 %v1825
        %1853 = vmatprep.subr.mxu0 0.0
        %1854 = vmatpush1.xpose.msra.mxu0 %v1827
        %1855 = vmatprep.subr.mxu0 0.0
        %1856 = vmatpush1.xpose.msra.mxu0 0.0
        %1857 = vmatprep.subr.mxu0 0.0
        %1858 = vmatpush1.xpose.msra.mxu0 0.0
        %1859 = vmatprep.subr.mxu0 0.0
        %1860 = vmatpush1.xpose.msra.mxu0 0.0
        %1861 = vmatprep.subr.mxu0 0.0
        %1862 = vmatpush1.xpose.msra.mxu0 0.0
        %1863 = vmatprep.subr.mxu0 0.0
        %1864 = vmatpush1.xpose.msra.mxu0 0.0
        %1865 = vmatprep.subr.mxu0 0.0
        %1866 = vmatpush1.xpose.msra.mxu0 0.0
        %1867 = vmatprep.subr.mxu0 0.0
        %1868 = vmatpush1.xpose.msra.mxu0 0.0
        %1869 = vmatprep.subr.mxu0 0.0
        %1870 = vmatpush1.xpose.msra.mxu0 0.0
        %1871 = vmatprep.subr.mxu0 0.0
        %1872 = vmatpush1.xpose.msra.mxu0 0.0
        %1873 = vmatprep.subr.mxu0 0.0
        %1874 = vmatpush1.xpose.msra.mxu0 0.0
        %1875 = vmatprep.subr.mxu0 0.0
        %1876 = vmatpush1.xpose.msra.mxu0 0.0
        %1877 = vmatprep.subr.mxu0 0.0
        %1878 = vmatpush1.xpose.msra.mxu0 0.0
        %1879 = vmatprep.subr.mxu0 0.0
        %1880 = vmatpush1.xpose.msra.mxu0 0.0
        %1881 = vmatprep.subr.mxu0 0.0
        %1882 = vmatpush1.xpose.msra.mxu0 0.0
        %1883 = vmatprep.subr.mxu0 0.0
        %1884 = vmatpush1.xpose.msra.mxu0 0.0
        %1885 = vmatprep.subr.mxu0 0.0
        %1886 = vmatpush1.xpose.msra.mxu0 0.0
        %1887 = vmatprep.subr.mxu0 0.0
        %1888 = vmatpush1.xpose.msra.mxu0 0.0
        %1889 = vmatprep.subr.mxu0 0.0
        %1890 = vmatpush1.xpose.msra.mxu0 0.0
        %1891 = vmatprep.subr.mxu0 0.0
        %1892 = vmatpush1.xpose.msra.mxu0 0.0
        %1893 = vmatprep.mubr.f32.mxu0 0.0
        %1894 = vmatmul.mubr.f32.gmra.mrb[0].mxu0 %v1777
        %v1895 = vpop.f32.mrb[0].mxu0
        %v1896 = vadd.f32 0.0, %v1895
        %v1897 = vpop.f32.mrb[0].mxu0
        %1898 = vmatprep.mubr.f32.mxu0 0.0
        %1899 = vmatmul.mubr.f32.gmra.mrb[0].mxu0 %v1779
        %v1900 = vpop.f32.mrb[0].mxu0
        %v1901 = vadd.f32 0.0, %v1900
        %v1902 = vpop.f32.mrb[0].mxu0
        %1903 = vmatprep.mubr.f32.mxu0 0.0
        %1904 = vmatmul.mubr.f32.gmra.mrb[0].mxu0 %v1781
        %v1905 = vpop.f32.mrb[0].mxu0
        %v1906 = vadd.f32 0.0, %v1905
        %v1907 = vpop.f32.mrb[0].mxu0
        %1908 = vmatprep.mubr.f32.mxu0 0.0
        %1909 = vmatmul.mubr.f32.gmra.mrb[0].mxu0 %v1783
        %v1910 = vpop.f32.mrb[0].mxu0
        %v1911 = vadd.f32 0.0, %v1910
        %v1912 = vpop.f32.mrb[0].mxu0
        %1913 = vmatprep.mubr.f32.mxu0 0.0
        %1914 = vmatmul.mubr.f32.gmra.mrb[0].mxu0 %v1785
        %v1915 = vpop.f32.mrb[0].mxu0
        %v1916 = vadd.f32 0.0, %v1915
        %v1917 = vpop.f32.mrb[0].mxu0
        %1918 = vmatprep.mubr.f32.mxu0 0.0
        %1919 = vmatmul.mubr.f32.gmra.mrb[0].mxu0 %v1787
        %v1920 = vpop.f32.mrb[0].mxu0
        %v1921 = vadd.f32 0.0, %v1920
        %v1922 = vpop.f32.mrb[0].mxu0
        %1923 = vmatprep.mubr.f32.mxu0 0.0
        %1924 = vmatmul.mubr.f32.gmra.mrb[0].mxu0 %v1789
        %v1925 = vpop.f32.mrb[0].mxu0
        %v1926 = vadd.f32 0.0, %v1925
        %v1927 = vpop.f32.mrb[0].mxu0
        %1928 = vmatprep.mubr.f32.mxu0 0.0
        %1929 = vmatmul.mubr.f32.gmra.mrb[0].mxu0 %v1791
        %v1930 = vpop.f32.mrb[0].mxu0
        %v1931 = vadd.f32 0.0, %v1930
        %v1932 = vpop.f32.mrb[0].mxu0
        %1933 = vmatprep.mubr.f32.mxu0 0.0
        %1934 = vmatmul.mubr.f32.gmra.mrb[0].mxu0 %v1793
        %v1935 = vpop.f32.mrb[0].mxu0
        %v1936 = vadd.f32 0.0, %v1935
        %v1937 = vpop.f32.mrb[0].mxu0
        %1938 = vmatprep.mubr.f32.mxu0 0.0
        %1939 = vmatmul.mubr.f32.gmra.mrb[0].mxu0 %v1795
        %v1940 = vpop.f32.mrb[0].mxu0
        %v1941 = vadd.f32 0.0, %v1940
        %v1942 = vpop.f32.mrb[0].mxu0
        %1943 = vmatprep.mubr.f32.mxu0 0.0
        %1944 = vmatmul.mubr.f32.gmra.mrb[0].mxu0 %v1797
        %v1945 = vpop.f32.mrb[0].mxu0
        %v1946 = vadd.f32 0.0, %v1945
        %v1947 = vpop.f32.mrb[0].mxu0
        %1948 = vmatprep.mubr.f32.mxu0 0.0
        %1949 = vmatmul.mubr.f32.gmra.mrb[0].mxu0 %v1799
        %v1950 = vpop.f32.mrb[0].mxu0
        %v1951 = vadd.f32 0.0, %v1950
        %v1952 = vpop.f32.mrb[0].mxu0
        %1953 = vmatprep.mubr.f32.mxu0 0.0
        %1954 = vmatmul.mubr.f32.gmra.mrb[0].mxu0 %v1801
        %v1955 = vpop.f32.mrb[0].mxu0
        %v1956 = vadd.f32 0.0, %v1955
        %v1957 = vpop.f32.mrb[0].mxu0
        %1958 = vdwg.mxu0
        %v1959 = vsel %vm1390, %v1896, -inf
        %1960 = vmax.xlane.f32.xlu0 %v1959
        %v1961 = vpop.xlane.xlu0 %1960
        %v1962 = vsel %vm1390, %v1901, -inf
        %1963 = vmax.xlane.f32.xlu0 %v1962
        %v1964 = vpop.xlane.xlu0 %1963
        %v1965 = vsel %vm1390, %v1906, -inf
        %1966 = vmax.xlane.f32.xlu0 %v1965
        %v1967 = vpop.xlane.xlu0 %1966
        %v1968 = vsel %vm1390, %v1911, -inf
        %1969 = vmax.xlane.f32.xlu0 %v1968
        %v1970 = vpop.xlane.xlu0 %1969
        %v1971 = vsel %vm1390, %v1916, -inf
        %1972 = vmax.xlane.f32.xlu0 %v1971
        %v1973 = vpop.xlane.xlu0 %1972
        %v1974 = vsel %vm1390, %v1921, -inf
        %1975 = vmax.xlane.f32.xlu0 %v1974
        %v1976 = vpop.xlane.xlu0 %1975
        %v1977 = vsel %vm1390, %v1926, -inf
        %1978 = vmax.xlane.f32.xlu0 %v1977
        %v1979 = vpop.xlane.xlu0 %1978
        %v1980 = vsel %vm1390, %v1931, -inf
        %1981 = vmax.xlane.f32.xlu0 %v1980
        %v1982 = vpop.xlane.xlu0 %1981
        %v1983 = vsel %vm1390, %v1936, -inf
        %1984 = vmax.xlane.f32.xlu0 %v1983
        %v1985 = vpop.xlane.xlu0 %1984
        %v1986 = vsel %vm1390, %v1941, -inf
        %1987 = vmax.xlane.f32.xlu0 %v1986
        %v1988 = vpop.xlane.xlu0 %1987
        %v1989 = vsel %vm1390, %v1946, -inf
        %1990 = vmax.xlane.f32.xlu0 %v1989
        %v1991 = vpop.xlane.xlu0 %1990
        %v1992 = vsel %vm1390, %v1951, -inf
        %1993 = vmax.xlane.f32.xlu0 %v1992
        %v1994 = vpop.xlane.xlu0 %1993
        %v1995 = vsel %vm1427, %v1956, -inf
        %1996 = vmax.xlane.f32.xlu0 %v1995
        %v1997 = vpop.xlane.xlu0 %1996
        %v1998 = vsub.f32 %v1896, %v1961
        %v1999 = vsub.f32 %v1901, %v1964
        %v2000 = vsub.f32 %v1906, %v1967
        %v2001 = vsub.f32 %v1911, %v1970
        %v2002 = vsub.f32 %v1916, %v1973
        %v2003 = vsub.f32 %v1921, %v1976
        %v2004 = vsub.f32 %v1926, %v1979
        %v2005 = vsub.f32 %v1931, %v1982
        %v2006 = vsub.f32 %v1936, %v1985
        %v2007 = vsub.f32 %v1941, %v1988
        %v2008 = vsub.f32 %v1946, %v1991
        %v2009 = vsub.f32 %v1951, %v1994
        %v2010 = vsub.f32 %v1956, %v1997
        %v2011 = vmul.f32 %v1998, 1.442695
        %v2012 = vpow.pop %v2011
        %v2013 = vmul.f32 %v1999, 1.442695
        %v2014 = vpow.pop %v2013
        %v2015 = vmul.f32 %v2000, 1.442695
        %v2016 = vpow.pop %v2015
        %v2017 = vmul.f32 %v2001, 1.442695
        %v2018 = vpow.pop %v2017
        %v2019 = vmul.f32 %v2002, 1.442695
        %v2020 = vpow.pop %v2019
        %v2021 = vmul.f32 %v2003, 1.442695
        %v2022 = vpow.pop %v2021
        %v2023 = vmul.f32 %v2004, 1.442695
        %v2024 = vpow.pop %v2023
        %v2025 = vmul.f32 %v2005, 1.442695
        %v2026 = vpow.pop %v2025
        %v2027 = vmul.f32 %v2006, 1.442695
        %v2028 = vpow.pop %v2027
        %v2029 = vmul.f32 %v2007, 1.442695
        %v2030 = vpow.pop %v2029
        %v2031 = vmul.f32 %v2008, 1.442695
        %v2032 = vpow.pop %v2031
        %v2033 = vmul.f32 %v2009, 1.442695
        %v2034 = vpow.pop %v2033
        %v2035 = vmul.f32 %v2010, 1.442695
        %v2036 = vpow.pop %v2035
        %v2037 = vsel %vm1390, %v2012, 0.0
        %2038 = vadd.xlane.f32.xlu0 %v2037
        %v2039 = vpop.xlane.xlu0 %2038
        %v2040 = vsel %vm1390, %v2014, 0.0
        %2041 = vadd.xlane.f32.xlu0 %v2040
        %v2042 = vpop.xlane.xlu0 %2041
        %v2043 = vsel %vm1390, %v2016, 0.0
        %2044 = vadd.xlane.f32.xlu0 %v2043
        %v2045 = vpop.xlane.xlu0 %2044
        %v2046 = vsel %vm1390, %v2018, 0.0
        %2047 = vadd.xlane.f32.xlu0 %v2046
        %v2048 = vpop.xlane.xlu0 %2047
        %v2049 = vsel %vm1390, %v2020, 0.0
        %2050 = vadd.xlane.f32.xlu0 %v2049
        %v2051 = vpop.xlane.xlu0 %2050
        %v2052 = vsel %vm1390, %v2022, 0.0
        %2053 = vadd.xlane.f32.xlu0 %v2052
        %v2054 = vpop.xlane.xlu0 %2053
        %v2055 = vsel %vm1390, %v2024, 0.0
        %2056 = vadd.xlane.f32.xlu0 %v2055
        %v2057 = vpop.xlane.xlu0 %2056
        %v2058 = vsel %vm1390, %v2026, 0.0
        %2059 = vadd.xlane.f32.xlu0 %v2058
        %v2060 = vpop.xlane.xlu0 %2059
        %v2061 = vsel %vm1390, %v2028, 0.0
        %2062 = vadd.xlane.f32.xlu0 %v2061
        %v2063 = vpop.xlane.xlu0 %2062
        %v2064 = vsel %vm1390, %v2030, 0.0
        %2065 = vadd.xlane.f32.xlu0 %v2064
        %v2066 = vpop.xlane.xlu0 %2065
        %v2067 = vsel %vm1390, %v2032, 0.0
        %2068 = vadd.xlane.f32.xlu0 %v2067
        %v2069 = vpop.xlane.xlu0 %2068
        %v2070 = vsel %vm1390, %v2034, 0.0
        %2071 = vadd.xlane.f32.xlu0 %v2070
        %v2072 = vpop.xlane.xlu0 %2071
        %v2073 = vsel %vm1427, %v2036, 0.0
        %2074 = vadd.xlane.f32.xlu0 %v2073
        %v2075 = vpop.xlane.xlu0 %2074
        %v2076 = vrcp.pop %v2039
        %v2077 = vrcp.pop %v2042
        %v2078 = vrcp.pop %v2045
        %v2079 = vrcp.pop %v2048
        %v2080 = vrcp.pop %v2051
        %v2081 = vrcp.pop %v2054
        %v2082 = vrcp.pop %v2057
        %v2083 = vrcp.pop %v2060
        %v2084 = vrcp.pop %v2063
        %v2085 = vrcp.pop %v2066
        %v2086 = vrcp.pop %v2069
        %v2087 = vrcp.pop %v2072
        %v2088 = vrcp.pop %v2075
        %v2089 = vmul.f32 %v2012, %v2076
        %v2090 = vmul.f32 %v2014, %v2077
        %v2091 = vmul.f32 %v2016, %v2078
        %v2092 = vmul.f32 %v2018, %v2079
        %v2093 = vmul.f32 %v2020, %v2080
        %v2094 = vmul.f32 %v2022, %v2081
        %v2095 = vmul.f32 %v2024, %v2082
        %v2096 = vmul.f32 %v2026, %v2083
        %v2097 = vmul.f32 %v2028, %v2084
        %v2098 = vmul.f32 %v2030, %v2085
        %v2099 = vmul.f32 %v2032, %v2086
        %v2100 = vmul.f32 %v2034, %v2087
        %v2101 = vmul.f32 %v2036, %v2088
        %s2102 = scalar_lea.vmem [#allocation12], 64
        %v2103 = vld [vmem:[%s2102] sm:$0xff]
        %v2104 = vld [vmem:[%s2102 + $0x8] sm:$0xff]
        %v2105 = vld [vmem:[%s2102 + $0x10] sm:$0xff]
        %v2106 = vld [vmem:[%s2102 + $0x18] sm:$0xff]
        %v2107 = vld [vmem:[%s2102 + $0x20] sm:$0xff]
        %v2108 = vld [vmem:[%s2102 + $0x28] sm:$0xff]
        %v2109 = vld [vmem:[%s2102 + $0x30] sm:$0xff]
        %v2110 = vld [vmem:[%s2102 + $0x38] sm:$0xff]
        %2111 = vmatprep.subr.mxu0 0.0
        %2112 = vmatpush1.msra.mxu0 %v2103
        %2113 = vmatprep.subr.mxu0 0.0
        %2114 = vmatpush1.msra.mxu0 %v2104
        %2115 = vmatprep.subr.mxu0 0.0
        %2116 = vmatpush1.msra.mxu0 %v2105
        %2117 = vmatprep.subr.mxu0 0.0
        %2118 = vmatpush1.msra.mxu0 %v2106
        %2119 = vmatprep.subr.mxu0 0.0
        %2120 = vmatpush1.msra.mxu0 %v2107
        %2121 = vmatprep.subr.mxu0 0.0
        %2122 = vmatpush1.msra.mxu0 %v2108
        %2123 = vmatprep.subr.mxu0 0.0
        %2124 = vmatpush1.msra.mxu0 %v2109
        %2125 = vmatprep.subr.mxu0 0.0
        %2126 = vmatpush1.msra.mxu0 %v2110
        %2127 = vmatprep.subr.mxu0 0.0
        %2128 = vmatpush1.msra.mxu0 0.0
        %2129 = vmatprep.subr.mxu0 0.0
        %2130 = vmatpush1.msra.mxu0 0.0
        %2131 = vmatprep.subr.mxu0 0.0
        %2132 = vmatpush1.msra.mxu0 0.0
        %2133 = vmatprep.subr.mxu0 0.0
        %2134 = vmatpush1.msra.mxu0 0.0
        %2135 = vmatprep.subr.mxu0 0.0
        %2136 = vmatpush1.msra.mxu0 0.0
        %2137 = vmatprep.subr.mxu0 0.0
        %2138 = vmatpush1.msra.mxu0 0.0
        %2139 = vmatprep.subr.mxu0 0.0
        %2140 = vmatpush1.msra.mxu0 0.0
        %2141 = vmatprep.subr.mxu0 0.0
        %2142 = vmatpush1.msra.mxu0 0.0
        %2143 = vmatprep.subr.mxu0 0.0
        %2144 = vmatpush1.msra.mxu0 0.0
        %2145 = vmatprep.subr.mxu0 0.0
        %2146 = vmatpush1.msra.mxu0 0.0
        %2147 = vmatprep.subr.mxu0 0.0
        %2148 = vmatpush1.msra.mxu0 0.0
        %2149 = vmatprep.subr.mxu0 0.0
        %2150 = vmatpush1.msra.mxu0 0.0
        %2151 = vmatprep.subr.mxu0 0.0
        %2152 = vmatpush1.msra.mxu0 0.0
        %2153 = vmatprep.subr.mxu0 0.0
        %2154 = vmatpush1.msra.mxu0 0.0
        %2155 = vmatprep.subr.mxu0 0.0
        %2156 = vmatpush1.msra.mxu0 0.0
        %2157 = vmatprep.subr.mxu0 0.0
        %2158 = vmatpush1.msra.mxu0 0.0
        %2159 = vmatprep.subr.mxu0 0.0
        %2160 = vmatpush1.msra.mxu0 0.0
        %2161 = vmatprep.subr.mxu0 0.0
        %2162 = vmatpush1.msra.mxu0 0.0
        %2163 = vmatprep.subr.mxu0 0.0
        %2164 = vmatpush1.msra.mxu0 0.0
        %2165 = vmatprep.subr.mxu0 0.0
        %2166 = vmatpush1.msra.mxu0 0.0
        %2167 = vmatprep.subr.mxu0 0.0
        %2168 = vmatpush1.msra.mxu0 0.0
        %2169 = vmatprep.subr.mxu0 0.0
        %2170 = vmatpush1.msra.mxu0 0.0
        %2171 = vmatprep.subr.mxu0 0.0
        %2172 = vmatpush1.msra.mxu0 0.0
        %2173 = vmatprep.subr.mxu0 0.0
        %2174 = vmatpush1.msra.mxu0 0.0
        %2175 = vmatprep.mubr.f32.mxu0 0.0
        %2176 = vmatmul.mubr.f32.gmra.mrb[0].mxu0 %v1557
        %v2177 = vpop.f32.mrb[0].mxu0
        %v2178 = vadd.f32 0.0, %v2177
        %v2179 = vpop.f32.mrb[0].mxu0
        %2180 = vmatprep.mubr.f32.mxu0 0.0
        %2181 = vmatmul.mubr.f32.gmra.mrb[0].mxu0 %v1560
        %v2182 = vpop.f32.mrb[0].mxu0
        %v2183 = vadd.f32 0.0, %v2182
        %v2184 = vpop.f32.mrb[0].mxu0
        %2185 = vmatprep.mubr.f32.mxu0 0.0
        %2186 = vmatmul.mubr.f32.gmra.mrb[0].mxu0 %v1563
        %v2187 = vpop.f32.mrb[0].mxu0
        %v2188 = vadd.f32 0.0, %v2187
        %v2189 = vpop.f32.mrb[0].mxu0
        %2190 = vmatprep.mubr.f32.mxu0 0.0
        %2191 = vmatmul.mubr.f32.gmra.mrb[0].mxu0 %v1566
        %v2192 = vpop.f32.mrb[0].mxu0
        %v2193 = vadd.f32 0.0, %v2192
        %v2194 = vpop.f32.mrb[0].mxu0
        %2195 = vmatprep.mubr.f32.mxu0 0.0
        %2196 = vmatmul.mubr.f32.gmra.mrb[0].mxu0 %v1569
        %v2197 = vpop.f32.mrb[0].mxu0
        %v2198 = vadd.f32 0.0, %v2197
        %v2199 = vpop.f32.mrb[0].mxu0
        %2200 = vmatprep.mubr.f32.mxu0 0.0
        %2201 = vmatmul.mubr.f32.gmra.mrb[0].mxu0 %v1572
        %v2202 = vpop.f32.mrb[0].mxu0
        %v2203 = vadd.f32 0.0, %v2202
        %v2204 = vpop.f32.mrb[0].mxu0
        %2205 = vmatprep.mubr.f32.mxu0 0.0
        %2206 = vmatmul.mubr.f32.gmra.mrb[0].mxu0 %v1575
        %v2207 = vpop.f32.mrb[0].mxu0
        %v2208 = vadd.f32 0.0, %v2207
        %v2209 = vpop.f32.mrb[0].mxu0
        %2210 = vmatprep.mubr.f32.mxu0 0.0
        %2211 = vmatmul.mubr.f32.gmra.mrb[0].mxu0 %v1578
        %v2212 = vpop.f32.mrb[0].mxu0
        %v2213 = vadd.f32 0.0, %v2212
        %v2214 = vpop.f32.mrb[0].mxu0
        %2215 = vmatprep.mubr.f32.mxu0 0.0
        %2216 = vmatmul.mubr.f32.gmra.mrb[0].mxu0 %v1581
        %v2217 = vpop.f32.mrb[0].mxu0
        %v2218 = vadd.f32 0.0, %v2217
        %v2219 = vpop.f32.mrb[0].mxu0
        %2220 = vmatprep.mubr.f32.mxu0 0.0
        %2221 = vmatmul.mubr.f32.gmra.mrb[0].mxu0 %v1584
        %v2222 = vpop.f32.mrb[0].mxu0
        %v2223 = vadd.f32 0.0, %v2222
        %v2224 = vpop.f32.mrb[0].mxu0
        %2225 = vmatprep.mubr.f32.mxu0 0.0
        %2226 = vmatmul.mubr.f32.gmra.mrb[0].mxu0 %v1587
        %v2227 = vpop.f32.mrb[0].mxu0
        %v2228 = vadd.f32 0.0, %v2227
        %v2229 = vpop.f32.mrb[0].mxu0
        %2230 = vmatprep.mubr.f32.mxu0 0.0
        %2231 = vmatmul.mubr.f32.gmra.mrb[0].mxu0 %v1590
        %v2232 = vpop.f32.mrb[0].mxu0
        %v2233 = vadd.f32 0.0, %v2232
        %v2234 = vpop.f32.mrb[0].mxu0
        %2235 = vmatprep.mubr.f32.mxu0 0.0
        %2236 = vmatmul.mubr.f32.gmra.mrb[0].mxu0 %v1593
        %v2237 = vpop.f32.mrb[0].mxu0
        %v2238 = vadd.f32 0.0, %v2237
        %v2239 = vpop.f32.mrb[0].mxu0
        %2240 = vdwg.mxu0
        %v2242 = vsel %vm1390, %v2089, 0
        %v2245 = vsel %vm1390, %v2090, 0
        %v2248 = vsel %vm1390, %v2091, 0
        %v2251 = vsel %vm1390, %v2092, 0
        %v2254 = vsel %vm1390, %v2093, 0
        %v2257 = vsel %vm1390, %v2094, 0
        %v2260 = vsel %vm1390, %v2095, 0
        %v2263 = vsel %vm1390, %v2096, 0
        %v2266 = vsel %vm1390, %v2097, 0
        %v2269 = vsel %vm1390, %v2098, 0
        %v2272 = vsel %vm1390, %v2099, 0
        %v2275 = vsel %vm1390, %v2100, 0
        %v2278 = vsel %vm1390, %v2101, 0
        %vm2280 = vcmask 1043456
        %v2282 = vsel %vm2280, %v2238, 0
        %2284 = vmatprep.subr.mxu0 0.0
        %2285 = vmatpush1.msra.mxu0 %v2178
        %2286 = vmatprep.subr.mxu0 0.0
        %2287 = vmatpush1.msra.mxu0 %v2183
        %2288 = vmatprep.subr.mxu0 0.0
        %2289 = vmatpush1.msra.mxu0 %v2188
        %2290 = vmatprep.subr.mxu0 0.0
        %2291 = vmatpush1.msra.mxu0 %v2193
        %2292 = vmatprep.subr.mxu0 0.0
        %2293 = vmatpush1.msra.mxu0 %v2198
        %2294 = vmatprep.subr.mxu0 0.0
        %2295 = vmatpush1.msra.mxu0 %v2203
        %2296 = vmatprep.subr.mxu0 0.0
        %2297 = vmatpush1.msra.mxu0 %v2208
        %2298 = vmatprep.subr.mxu0 0.0
        %2299 = vmatpush1.msra.mxu0 %v2213
        %2300 = vmatprep.subr.mxu0 0.0
        %2301 = vmatpush1.msra.mxu0 %v2218
        %2302 = vmatprep.subr.mxu0 0.0
        %2303 = vmatpush1.msra.mxu0 %v2223
        %2304 = vmatprep.subr.mxu0 0.0
        %2305 = vmatpush1.msra.mxu0 %v2228
        %2306 = vmatprep.subr.mxu0 0.0
        %2307 = vmatpush1.msra.mxu0 %v2233
        %2308 = vmatprep.subr.mxu0 0.0
        %2309 = vmatpush1.msra.mxu0 %v2282
        %2310 = vmatprep.subr.mxu0 0.0
        %2311 = vmatpush1.msra.mxu0 0.0
        %2312 = vmatprep.subr.mxu0 0.0
        %2313 = vmatpush1.msra.mxu0 0.0
        %2314 = vmatprep.subr.mxu0 0.0
        %2315 = vmatpush1.msra.mxu0 0.0
        %2316 = vmatprep.subr.mxu0 0.0
        %2317 = vmatpush1.msra.mxu0 0.0
        %2318 = vmatprep.subr.mxu0 0.0
        %2319 = vmatpush1.msra.mxu0 0.0
        %2320 = vmatprep.subr.mxu0 0.0
        %2321 = vmatpush1.msra.mxu0 0.0
        %2322 = vmatprep.subr.mxu0 0.0
        %2323 = vmatpush1.msra.mxu0 0.0
        %2324 = vmatprep.subr.mxu0 0.0
        %2325 = vmatpush1.msra.mxu0 0.0
        %2326 = vmatprep.subr.mxu0 0.0
        %2327 = vmatpush1.msra.mxu0 0.0
        %2328 = vmatprep.subr.mxu0 0.0
        %2329 = vmatpush1.msra.mxu0 0.0
        %2330 = vmatprep.subr.mxu0 0.0
        %2331 = vmatpush1.msra.mxu0 0.0
        %2332 = vmatprep.subr.mxu0 0.0
        %2333 = vmatpush1.msra.mxu0 0.0
        %2334 = vmatprep.subr.mxu0 0.0
        %2335 = vmatpush1.msra.mxu0 0.0
        %2336 = vmatprep.subr.mxu0 0.0
        %2337 = vmatpush1.msra.mxu0 0.0
        %2338 = vmatprep.subr.mxu0 0.0
        %2339 = vmatpush1.msra.mxu0 0.0
        %2340 = vmatprep.subr.mxu0 0.0
        %2341 = vmatpush1.msra.mxu0 0.0
        %2342 = vmatprep.subr.mxu0 0.0
        %2343 = vmatpush1.msra.mxu0 0.0
        %2344 = vmatprep.subr.mxu0 0.0
        %2345 = vmatpush1.msra.mxu0 0.0
        %2346 = vmatprep.subr.mxu0 0.0
        %2347 = vmatpush1.msra.mxu0 0.0
        %2348 = vmatprep.mubr.f32.mxu0 0.0
        %2349 = vmatmul.mubr.f32.gmra.mrb[0].mxu0 %v2242
        %v2350 = vpop.f32.mrb[0].mxu0
        %v2351 = vadd.f32 0.0, %v2350
        %v2352 = vpop.f32.mrb[0].mxu0
        %2353 = vmatprep.mubr.f32.mxu0 0.0
        %2354 = vmatmul.mubr.f32.gmra.mrb[0].mxu0 %v2245
        %v2355 = vpop.f32.mrb[0].mxu0
        %v2356 = vadd.f32 0.0, %v2355
        %v2357 = vpop.f32.mrb[0].mxu0
        %2358 = vmatprep.mubr.f32.mxu0 0.0
        %2359 = vmatmul.mubr.f32.gmra.mrb[0].mxu0 %v2248
        %v2360 = vpop.f32.mrb[0].mxu0
        %v2361 = vadd.f32 0.0, %v2360
        %v2362 = vpop.f32.mrb[0].mxu0
        %2363 = vmatprep.mubr.f32.mxu0 0.0
        %2364 = vmatmul.mubr.f32.gmra.mrb[0].mxu0 %v2251
        %v2365 = vpop.f32.mrb[0].mxu0
        %v2366 = vadd.f32 0.0, %v2365
        %v2367 = vpop.f32.mrb[0].mxu0
        %2368 = vmatprep.mubr.f32.mxu0 0.0
        %2369 = vmatmul.mubr.f32.gmra.mrb[0].mxu0 %v2254
        %v2370 = vpop.f32.mrb[0].mxu0
        %v2371 = vadd.f32 0.0, %v2370
        %v2372 = vpop.f32.mrb[0].mxu0
        %2373 = vmatprep.mubr.f32.mxu0 0.0
        %2374 = vmatmul.mubr.f32.gmra.mrb[0].mxu0 %v2257
        %v2375 = vpop.f32.mrb[0].mxu0
        %v2376 = vadd.f32 0.0, %v2375
        %v2377 = vpop.f32.mrb[0].mxu0
        %2378 = vmatprep.mubr.f32.mxu0 0.0
        %2379 = vmatmul.mubr.f32.gmra.mrb[0].mxu0 %v2260
        %v2380 = vpop.f32.mrb[0].mxu0
        %v2381 = vadd.f32 0.0, %v2380
        %v2382 = vpop.f32.mrb[0].mxu0
        %2383 = vmatprep.mubr.f32.mxu0 0.0
        %2384 = vmatmul.mubr.f32.gmra.mrb[0].mxu0 %v2263
        %v2385 = vpop.f32.mrb[0].mxu0
        %v2386 = vadd.f32 0.0, %v2385
        %v2387 = vpop.f32.mrb[0].mxu0
        %2388 = vmatprep.mubr.f32.mxu0 0.0
        %2389 = vmatmul.mubr.f32.gmra.mrb[0].mxu0 %v2266
        %v2390 = vpop.f32.mrb[0].mxu0
        %v2391 = vadd.f32 0.0, %v2390
        %v2392 = vpop.f32.mrb[0].mxu0
        %2393 = vmatprep.mubr.f32.mxu0 0.0
        %2394 = vmatmul.mubr.f32.gmra.mrb[0].mxu0 %v2269
        %v2395 = vpop.f32.mrb[0].mxu0
        %v2396 = vadd.f32 0.0, %v2395
        %v2397 = vpop.f32.mrb[0].mxu0
        %2398 = vmatprep.mubr.f32.mxu0 0.0
        %2399 = vmatmul.mubr.f32.gmra.mrb[0].mxu0 %v2272
        %v2400 = vpop.f32.mrb[0].mxu0
        %v2401 = vadd.f32 0.0, %v2400
        %v2402 = vpop.f32.mrb[0].mxu0
        %2403 = vmatprep.mubr.f32.mxu0 0.0
        %2404 = vmatmul.mubr.f32.gmra.mrb[0].mxu0 %v2275
        %v2405 = vpop.f32.mrb[0].mxu0
        %v2406 = vadd.f32 0.0, %v2405
        %v2407 = vpop.f32.mrb[0].mxu0
        %2408 = vmatprep.mubr.f32.mxu0 0.0
        %2409 = vmatmul.mubr.f32.gmra.mrb[0].mxu0 %v2278
        %v2410 = vpop.f32.mrb[0].mxu0
        %v2411 = vadd.f32 0.0, %v2410
        %v2412 = vpop.f32.mrb[0].mxu0
        %2413 = vdwg.mxu0
        %v2415 = vsel %vm1390, %v1522, 0
        %v2418 = vsel %vm1390, %v1523, 0
        %v2421 = vsel %vm1390, %v1524, 0
        %v2424 = vsel %vm1390, %v1525, 0
        %v2427 = vsel %vm1390, %v1526, 0
        %v2430 = vsel %vm1390, %v1527, 0
        %v2433 = vsel %vm1390, %v1528, 0
        %v2436 = vsel %vm1390, %v1529, 0
        %v2439 = vsel %vm1390, %v1530, 0
        %v2442 = vsel %vm1390, %v1531, 0
        %v2445 = vsel %vm1390, %v1532, 0
        %v2448 = vsel %vm1390, %v1533, 0
        %v2451 = vsel %vm1390, %v1534, 0
        %v2454 = vsel %vm2280, %v1722, 0
        %2456 = vmatprep.subr.mxu0 0.0
        %2457 = vmatpush1.msra.mxu0 %v1662
        %2458 = vmatprep.subr.mxu0 0.0
        %2459 = vmatpush1.msra.mxu0 %v1667
        %2460 = vmatprep.subr.mxu0 0.0
        %2461 = vmatpush1.msra.mxu0 %v1672
        %2462 = vmatprep.subr.mxu0 0.0
        %2463 = vmatpush1.msra.mxu0 %v1677
        %2464 = vmatprep.subr.mxu0 0.0
        %2465 = vmatpush1.msra.mxu0 %v1682
        %2466 = vmatprep.subr.mxu0 0.0
        %2467 = vmatpush1.msra.mxu0 %v1687
        %2468 = vmatprep.subr.mxu0 0.0
        %2469 = vmatpush1.msra.mxu0 %v1692
        %2470 = vmatprep.subr.mxu0 0.0
        %2471 = vmatpush1.msra.mxu0 %v1697
        %2472 = vmatprep.subr.mxu0 0.0
        %2473 = vmatpush1.msra.mxu0 %v1702
        %2474 = vmatprep.subr.mxu0 0.0
        %2475 = vmatpush1.msra.mxu0 %v1707
        %2476 = vmatprep.subr.mxu0 0.0
        %2477 = vmatpush1.msra.mxu0 %v1712
        %2478 = vmatprep.subr.mxu0 0.0
        %2479 = vmatpush1.msra.mxu0 %v1717
        %2480 = vmatprep.subr.mxu0 0.0
        %2481 = vmatpush1.msra.mxu0 %v2454
        %2482 = vmatprep.subr.mxu0 0.0
        %2483 = vmatpush1.msra.mxu0 0.0
        %2484 = vmatprep.subr.mxu0 0.0
        %2485 = vmatpush1.msra.mxu0 0.0
        %2486 = vmatprep.subr.mxu0 0.0
        %2487 = vmatpush1.msra.mxu0 0.0
        %2488 = vmatprep.subr.mxu0 0.0
        %2489 = vmatpush1.msra.mxu0 0.0
        %2490 = vmatprep.subr.mxu0 0.0
        %2491 = vmatpush1.msra.mxu0 0.0
        %2492 = vmatprep.subr.mxu0 0.0
        %2493 = vmatpush1.msra.mxu0 0.0
        %2494 = vmatprep.subr.mxu0 0.0
        %2495 = vmatpush1.msra.mxu0 0.0
        %2496 = vmatprep.subr.mxu0 0.0
        %2497 = vmatpush1.msra.mxu0 0.0
        %2498 = vmatprep.subr.mxu0 0.0
        %2499 = vmatpush1.msra.mxu0 0.0
        %2500 = vmatprep.subr.mxu0 0.0
        %2501 = vmatpush1.msra.mxu0 0.0
        %2502 = vmatprep.subr.mxu0 0.0
        %2503 = vmatpush1.msra.mxu0 0.0
        %2504 = vmatprep.subr.mxu0 0.0
        %2505 = vmatpush1.msra.mxu0 0.0
        %2506 = vmatprep.subr.mxu0 0.0
        %2507 = vmatpush1.msra.mxu0 0.0
        %2508 = vmatprep.subr.mxu0 0.0
        %2509 = vmatpush1.msra.mxu0 0.0
        %2510 = vmatprep.subr.mxu0 0.0
        %2511 = vmatpush1.msra.mxu0 0.0
        %2512 = vmatprep.subr.mxu0 0.0
        %2513 = vmatpush1.msra.mxu0 0.0
        %2514 = vmatprep.subr.mxu0 0.0
        %2515 = vmatpush1.msra.mxu0 0.0
        %2516 = vmatprep.subr.mxu0 0.0
        %2517 = vmatpush1.msra.mxu0 0.0
        %2518 = vmatprep.subr.mxu0 0.0
        %2519 = vmatpush1.msra.mxu0 0.0
        %2520 = vmatprep.mubr.f32.mxu0 0.0
        %2521 = vmatmul.mubr.f32.gmra.mrb[0].mxu0 %v2415
        %v2522 = vpop.f32.mrb[0].mxu0
        %v2523 = vadd.f32 %v2351, %v2522
        %v2524 = vpop.f32.mrb[0].mxu0
        %2525 = vmatprep.mubr.f32.mxu0 0.0
        %2526 = vmatmul.mubr.f32.gmra.mrb[0].mxu0 %v2418
        %v2527 = vpop.f32.mrb[0].mxu0
        %v2528 = vadd.f32 %v2356, %v2527
        %v2529 = vpop.f32.mrb[0].mxu0
        %2530 = vmatprep.mubr.f32.mxu0 0.0
        %2531 = vmatmul.mubr.f32.gmra.mrb[0].mxu0 %v2421
        %v2532 = vpop.f32.mrb[0].mxu0
        %v2533 = vadd.f32 %v2361, %v2532
        %v2534 = vpop.f32.mrb[0].mxu0
        %2535 = vmatprep.mubr.f32.mxu0 0.0
        %2536 = vmatmul.mubr.f32.gmra.mrb[0].mxu0 %v2424
        %v2537 = vpop.f32.mrb[0].mxu0
        %v2538 = vadd.f32 %v2366, %v2537
        %v2539 = vpop.f32.mrb[0].mxu0
        %2540 = vmatprep.mubr.f32.mxu0 0.0
        %2541 = vmatmul.mubr.f32.gmra.mrb[0].mxu0 %v2427
        %v2542 = vpop.f32.mrb[0].mxu0
        %v2543 = vadd.f32 %v2371, %v2542
        %v2544 = vpop.f32.mrb[0].mxu0
        %2545 = vmatprep.mubr.f32.mxu0 0.0
        %2546 = vmatmul.mubr.f32.gmra.mrb[0].mxu0 %v2430
        %v2547 = vpop.f32.mrb[0].mxu0
        %v2548 = vadd.f32 %v2376, %v2547
        %v2549 = vpop.f32.mrb[0].mxu0
        %2550 = vmatprep.mubr.f32.mxu0 0.0
        %2551 = vmatmul.mubr.f32.gmra.mrb[0].mxu0 %v2433
        %v2552 = vpop.f32.mrb[0].mxu0
        %v2553 = vadd.f32 %v2381, %v2552
        %v2554 = vpop.f32.mrb[0].mxu0
        %2555 = vmatprep.mubr.f32.mxu0 0.0
        %2556 = vmatmul.mubr.f32.gmra.mrb[0].mxu0 %v2436
        %v2557 = vpop.f32.mrb[0].mxu0
        %v2558 = vadd.f32 %v2386, %v2557
        %v2559 = vpop.f32.mrb[0].mxu0
        %2560 = vmatprep.mubr.f32.mxu0 0.0
        %2561 = vmatmul.mubr.f32.gmra.mrb[0].mxu0 %v2439
        %v2562 = vpop.f32.mrb[0].mxu0
        %v2563 = vadd.f32 %v2391, %v2562
        %v2564 = vpop.f32.mrb[0].mxu0
        %2565 = vmatprep.mubr.f32.mxu0 0.0
        %2566 = vmatmul.mubr.f32.gmra.mrb[0].mxu0 %v2442
        %v2567 = vpop.f32.mrb[0].mxu0
        %v2568 = vadd.f32 %v2396, %v2567
        %v2569 = vpop.f32.mrb[0].mxu0
        %2570 = vmatprep.mubr.f32.mxu0 0.0
        %2571 = vmatmul.mubr.f32.gmra.mrb[0].mxu0 %v2445
        %v2572 = vpop.f32.mrb[0].mxu0
        %v2573 = vadd.f32 %v2401, %v2572
        %v2574 = vpop.f32.mrb[0].mxu0
        %2575 = vmatprep.mubr.f32.mxu0 0.0
        %2576 = vmatmul.mubr.f32.gmra.mrb[0].mxu0 %v2448
        %v2577 = vpop.f32.mrb[0].mxu0
        %v2578 = vadd.f32 %v2406, %v2577
        %v2579 = vpop.f32.mrb[0].mxu0
        %2580 = vmatprep.mubr.f32.mxu0 0.0
        %2581 = vmatmul.mubr.f32.gmra.mrb[0].mxu0 %v2451
        %v2582 = vpop.f32.mrb[0].mxu0
        %v2583 = vadd.f32 %v2411, %v2582
        %v2584 = vpop.f32.mrb[0].mxu0
        %2585 = vdwg.mxu0
        %2586 = vrot.lane.b32.xlu0 %v1155, 112
        %v2587 = vpop.permute.xlu0 %2586
        %2588 = vrot.lane.b32.xlu0 %v1156, 112
        %v2589 = vpop.permute.xlu0 %2588
        %2590 = vrot.lane.b32.xlu0 %v1157, 112
        %v2591 = vpop.permute.xlu0 %2590
        %2592 = vrot.lane.b32.xlu0 %v1158, 112
        %v2593 = vpop.permute.xlu0 %2592
        %2594 = vrot.lane.b32.xlu0 %v1159, 112
        %v2595 = vpop.permute.xlu0 %2594
        %2596 = vrot.lane.b32.xlu0 %v1160, 112
        %v2597 = vpop.permute.xlu0 %2596
        %2598 = vrot.lane.b32.xlu0 %v1161, 112
        %v2599 = vpop.permute.xlu0 %2598
        %2600 = vrot.lane.b32.xlu0 %v1162, 112
        %v2601 = vpop.permute.xlu0 %2600
        %2602 = vrot.lane.b32.xlu0 %v1163, 112
        %v2603 = vpop.permute.xlu0 %2602
        %2604 = vrot.lane.b32.xlu0 %v1164, 112
        %v2605 = vpop.permute.xlu0 %2604
        %2606 = vrot.lane.b32.xlu0 %v1165, 112
        %v2607 = vpop.permute.xlu0 %2606
        %2608 = vrot.lane.b32.xlu0 %v1166, 112
        %v2609 = vpop.permute.xlu0 %2608
        %2610 = vrot.lane.b32.xlu0 %v1167, 112
        %v2611 = vpop.permute.xlu0 %2610
        %2612 = vrot.lane.b32.xlu0 %v1155, 48
        %v2613 = vpop.permute.xlu0 %2612
        %2614 = vrot.lane.b32.xlu0 %v1156, 48
        %v2615 = vpop.permute.xlu0 %2614
        %2616 = vrot.lane.b32.xlu0 %v1157, 48
        %v2617 = vpop.permute.xlu0 %2616
        %2618 = vrot.lane.b32.xlu0 %v1158, 48
        %v2619 = vpop.permute.xlu0 %2618
        %2620 = vrot.lane.b32.xlu0 %v1159, 48
        %v2621 = vpop.permute.xlu0 %2620
        %2622 = vrot.lane.b32.xlu0 %v1160, 48
        %v2623 = vpop.permute.xlu0 %2622
        %2624 = vrot.lane.b32.xlu0 %v1161, 48
        %v2625 = vpop.permute.xlu0 %2624
        %2626 = vrot.lane.b32.xlu0 %v1162, 48
        %v2627 = vpop.permute.xlu0 %2626
        %2628 = vrot.lane.b32.xlu0 %v1163, 48
        %v2629 = vpop.permute.xlu0 %2628
        %2630 = vrot.lane.b32.xlu0 %v1164, 48
        %v2631 = vpop.permute.xlu0 %2630
        %2632 = vrot.lane.b32.xlu0 %v1165, 48
        %v2633 = vpop.permute.xlu0 %2632
        %2634 = vrot.lane.b32.xlu0 %v1166, 48
        %v2635 = vpop.permute.xlu0 %2634
        %2636 = vrot.lane.b32.xlu0 %v1167, 48
        %v2637 = vpop.permute.xlu0 %2636
        %v2638 = vsel %vm1207, %v2587, 0
        %v2640 = vsel %vm1207, %v2589, 0
        %v2642 = vsel %vm1207, %v2591, 0
        %v2644 = vsel %vm1207, %v2593, 0
        %v2646 = vsel %vm1207, %v2595, 0
        %v2648 = vsel %vm1207, %v2597, 0
        %v2650 = vsel %vm1207, %v2599, 0
        %v2652 = vsel %vm1207, %v2601, 0
        %v2654 = vsel %vm1207, %v2603, 0
        %v2656 = vsel %vm1207, %v2605, 0
        %v2658 = vsel %vm1207, %v2607, 0
        %v2660 = vsel %vm1207, %v2609, 0
        %v2662 = vsel %vm1207, %v2611, 0
        %v2664 = vsel %vm1207, %v2613, 0
        %v2666 = vsel %vm1207, %v2615, 0
        %v2668 = vsel %vm1207, %v2617, 0
        %v2670 = vsel %vm1207, %v2619, 0
        %v2672 = vsel %vm1207, %v2621, 0
        %v2674 = vsel %vm1207, %v2623, 0
        %v2676 = vsel %vm1207, %v2625, 0
        %v2678 = vsel %vm1207, %v2627, 0
        %v2680 = vsel %vm1207, %v2629, 0
        %v2682 = vsel %vm1207, %v2631, 0
        %v2684 = vsel %vm1207, %v2633, 0
        %v2686 = vsel %vm1207, %v2635, 0
        %v2688 = vsel %vm1207, %v2637, 0
        %2690 = vmatprep.subr.mxu0 0.0
        %2691 = vmatpush1.xpose.msra.mxu0 %v2664
        %2692 = vmatprep.subr.mxu0 0.0
        %2693 = vmatpush1.xpose.msra.mxu0 %v2666
        %2694 = vmatprep.subr.mxu0 0.0
        %2695 = vmatpush1.xpose.msra.mxu0 %v2668
        %2696 = vmatprep.subr.mxu0 0.0
        %2697 = vmatpush1.xpose.msra.mxu0 %v2670
        %2698 = vmatprep.subr.mxu0 0.0
        %2699 = vmatpush1.xpose.msra.mxu0 %v2672
        %2700 = vmatprep.subr.mxu0 0.0
        %2701 = vmatpush1.xpose.msra.mxu0 %v2674
        %2702 = vmatprep.subr.mxu0 0.0
        %2703 = vmatpush1.xpose.msra.mxu0 %v2676
        %2704 = vmatprep.subr.mxu0 0.0
        %2705 = vmatpush1.xpose.msra.mxu0 %v2678
        %2706 = vmatprep.subr.mxu0 0.0
        %2707 = vmatpush1.xpose.msra.mxu0 %v2680
        %2708 = vmatprep.subr.mxu0 0.0
        %2709 = vmatpush1.xpose.msra.mxu0 %v2682
        %2710 = vmatprep.subr.mxu0 0.0
        %2711 = vmatpush1.xpose.msra.mxu0 %v2684
        %2712 = vmatprep.subr.mxu0 0.0
        %2713 = vmatpush1.xpose.msra.mxu0 %v2686
        %2714 = vmatprep.subr.mxu0 0.0
        %2715 = vmatpush1.xpose.msra.mxu0 %v2688
        %2716 = vmatprep.subr.mxu0 0.0
        %2717 = vmatpush1.xpose.msra.mxu0 0.0
        %2718 = vmatprep.subr.mxu0 0.0
        %2719 = vmatpush1.xpose.msra.mxu0 0.0
        %2720 = vmatprep.subr.mxu0 0.0
        %2721 = vmatpush1.xpose.msra.mxu0 0.0
        %2722 = vmatprep.subr.mxu0 0.0
        %2723 = vmatpush1.xpose.msra.mxu0 0.0
        %2724 = vmatprep.subr.mxu0 0.0
        %2725 = vmatpush1.xpose.msra.mxu0 0.0
        %2726 = vmatprep.subr.mxu0 0.0
        %2727 = vmatpush1.xpose.msra.mxu0 0.0
        %2728 = vmatprep.subr.mxu0 0.0
        %2729 = vmatpush1.xpose.msra.mxu0 0.0
        %2730 = vmatprep.subr.mxu0 0.0
        %2731 = vmatpush1.xpose.msra.mxu0 0.0
        %2732 = vmatprep.subr.mxu0 0.0
        %2733 = vmatpush1.xpose.msra.mxu0 0.0
        %2734 = vmatprep.subr.mxu0 0.0
        %2735 = vmatpush1.xpose.msra.mxu0 0.0
        %2736 = vmatprep.subr.mxu0 0.0
        %2737 = vmatpush1.xpose.msra.mxu0 0.0
        %2738 = vmatprep.subr.mxu0 0.0
        %2739 = vmatpush1.xpose.msra.mxu0 0.0
        %2740 = vmatprep.subr.mxu0 0.0
        %2741 = vmatpush1.xpose.msra.mxu0 0.0
        %2742 = vmatprep.subr.mxu0 0.0
        %2743 = vmatpush1.xpose.msra.mxu0 0.0
        %2744 = vmatprep.subr.mxu0 0.0
        %2745 = vmatpush1.xpose.msra.mxu0 0.0
        %2746 = vmatprep.subr.mxu0 0.0
        %2747 = vmatpush1.xpose.msra.mxu0 0.0
        %2748 = vmatprep.subr.mxu0 0.0
        %2749 = vmatpush1.xpose.msra.mxu0 0.0
        %2750 = vmatprep.subr.mxu0 0.0
        %2751 = vmatpush1.xpose.msra.mxu0 0.0
        %2752 = vmatprep.subr.mxu0 0.0
        %2753 = vmatpush1.xpose.msra.mxu0 0.0
        %2754 = vmatprep.mubr.f32.mxu0 0.0
        %2755 = vmatmul.mubr.f32.gmra.mrb[0].mxu0 %v2638
        %v2756 = vpop.f32.mrb[0].mxu0
        %v2757 = vadd.f32 0.0, %v2756
        %v2758 = vpop.f32.mrb[0].mxu0
        %2759 = vmatprep.mubr.f32.mxu0 0.0
        %2760 = vmatmul.mubr.f32.gmra.mrb[0].mxu0 %v2640
        %v2761 = vpop.f32.mrb[0].mxu0
        %v2762 = vadd.f32 0.0, %v2761
        %v2763 = vpop.f32.mrb[0].mxu0
        %2764 = vmatprep.mubr.f32.mxu0 0.0
        %2765 = vmatmul.mubr.f32.gmra.mrb[0].mxu0 %v2642
        %v2766 = vpop.f32.mrb[0].mxu0
        %v2767 = vadd.f32 0.0, %v2766
        %v2768 = vpop.f32.mrb[0].mxu0
        %2769 = vmatprep.mubr.f32.mxu0 0.0
        %2770 = vmatmul.mubr.f32.gmra.mrb[0].mxu0 %v2644
        %v2771 = vpop.f32.mrb[0].mxu0
        %v2772 = vadd.f32 0.0, %v2771
        %v2773 = vpop.f32.mrb[0].mxu0
        %2774 = vmatprep.mubr.f32.mxu0 0.0
        %2775 = vmatmul.mubr.f32.gmra.mrb[0].mxu0 %v2646
        %v2776 = vpop.f32.mrb[0].mxu0
        %v2777 = vadd.f32 0.0, %v2776
        %v2778 = vpop.f32.mrb[0].mxu0
        %2779 = vmatprep.mubr.f32.mxu0 0.0
        %2780 = vmatmul.mubr.f32.gmra.mrb[0].mxu0 %v2648
        %v2781 = vpop.f32.mrb[0].mxu0
        %v2782 = vadd.f32 0.0, %v2781
        %v2783 = vpop.f32.mrb[0].mxu0
        %2784 = vmatprep.mubr.f32.mxu0 0.0
        %2785 = vmatmul.mubr.f32.gmra.mrb[0].mxu0 %v2650
        %v2786 = vpop.f32.mrb[0].mxu0
        %v2787 = vadd.f32 0.0, %v2786
        %v2788 = vpop.f32.mrb[0].mxu0
        %2789 = vmatprep.mubr.f32.mxu0 0.0
        %2790 = vmatmul.mubr.f32.gmra.mrb[0].mxu0 %v2652
        %v2791 = vpop.f32.mrb[0].mxu0
        %v2792 = vadd.f32 0.0, %v2791
        %v2793 = vpop.f32.mrb[0].mxu0
        %2794 = vmatprep.mubr.f32.mxu0 0.0
        %2795 = vmatmul.mubr.f32.gmra.mrb[0].mxu0 %v2654
        %v2796 = vpop.f32.mrb[0].mxu0
        %v2797 = vadd.f32 0.0, %v2796
        %v2798 = vpop.f32.mrb[0].mxu0
        %2799 = vmatprep.mubr.f32.mxu0 0.0
        %2800 = vmatmul.mubr.f32.gmra.mrb[0].mxu0 %v2656
        %v2801 = vpop.f32.mrb[0].mxu0
        %v2802 = vadd.f32 0.0, %v2801
        %v2803 = vpop.f32.mrb[0].mxu0
        %2804 = vmatprep.mubr.f32.mxu0 0.0
        %2805 = vmatmul.mubr.f32.gmra.mrb[0].mxu0 %v2658
        %v2806 = vpop.f32.mrb[0].mxu0
        %v2807 = vadd.f32 0.0, %v2806
        %v2808 = vpop.f32.mrb[0].mxu0
        %2809 = vmatprep.mubr.f32.mxu0 0.0
        %2810 = vmatmul.mubr.f32.gmra.mrb[0].mxu0 %v2660
        %v2811 = vpop.f32.mrb[0].mxu0
        %v2812 = vadd.f32 0.0, %v2811
        %v2813 = vpop.f32.mrb[0].mxu0
        %2814 = vmatprep.mubr.f32.mxu0 0.0
        %2815 = vmatmul.mubr.f32.gmra.mrb[0].mxu0 %v2662
        %v2816 = vpop.f32.mrb[0].mxu0
        %v2817 = vadd.f32 0.0, %v2816
        %v2818 = vpop.f32.mrb[0].mxu0
        %2819 = vdwg.mxu0
        %v2820 = vsel %vm1390, %v2757, -inf
        %2821 = vmax.xlane.f32.xlu0 %v2820
        %v2822 = vpop.xlane.xlu0 %2821
        %v2823 = vsel %vm1390, %v2762, -inf
        %2824 = vmax.xlane.f32.xlu0 %v2823
        %v2825 = vpop.xlane.xlu0 %2824
        %v2826 = vsel %vm1390, %v2767, -inf
        %2827 = vmax.xlane.f32.xlu0 %v2826
        %v2828 = vpop.xlane.xlu0 %2827
        %v2829 = vsel %vm1390, %v2772, -inf
        %2830 = vmax.xlane.f32.xlu0 %v2829
        %v2831 = vpop.xlane.xlu0 %2830
        %v2832 = vsel %vm1390, %v2777, -inf
        %2833 = vmax.xlane.f32.xlu0 %v2832
        %v2834 = vpop.xlane.xlu0 %2833
        %v2835 = vsel %vm1390, %v2782, -inf
        %2836 = vmax.xlane.f32.xlu0 %v2835
        %v2837 = vpop.xlane.xlu0 %2836
        %v2838 = vsel %vm1390, %v2787, -inf
        %2839 = vmax.xlane.f32.xlu0 %v2838
        %v2840 = vpop.xlane.xlu0 %2839
        %v2841 = vsel %vm1390, %v2792, -inf
        %2842 = vmax.xlane.f32.xlu0 %v2841
        %v2843 = vpop.xlane.xlu0 %2842
        %v2844 = vsel %vm1390, %v2797, -inf
        %2845 = vmax.xlane.f32.xlu0 %v2844
        %v2846 = vpop.xlane.xlu0 %2845
        %v2847 = vsel %vm1390, %v2802, -inf
        %2848 = vmax.xlane.f32.xlu0 %v2847
        %v2849 = vpop.xlane.xlu0 %2848
        %v2850 = vsel %vm1390, %v2807, -inf
        %2851 = vmax.xlane.f32.xlu0 %v2850
        %v2852 = vpop.xlane.xlu0 %2851
        %v2853 = vsel %vm1390, %v2812, -inf
        %2854 = vmax.xlane.f32.xlu0 %v2853
        %v2855 = vpop.xlane.xlu0 %2854
        %v2856 = vsel %vm1427, %v2817, -inf
        %2857 = vmax.xlane.f32.xlu0 %v2856
        %v2858 = vpop.xlane.xlu0 %2857
        %v2859 = vsub.f32 %v2757, %v2822
        %v2860 = vsub.f32 %v2762, %v2825
        %v2861 = vsub.f32 %v2767, %v2828
        %v2862 = vsub.f32 %v2772, %v2831
        %v2863 = vsub.f32 %v2777, %v2834
        %v2864 = vsub.f32 %v2782, %v2837
        %v2865 = vsub.f32 %v2787, %v2840
        %v2866 = vsub.f32 %v2792, %v2843
        %v2867 = vsub.f32 %v2797, %v2846
        %v2868 = vsub.f32 %v2802, %v2849
        %v2869 = vsub.f32 %v2807, %v2852
        %v2870 = vsub.f32 %v2812, %v2855
        %v2871 = vsub.f32 %v2817, %v2858
        %v2872 = vmul.f32 %v2859, 1.442695
        %v2873 = vpow.pop %v2872
        %v2874 = vmul.f32 %v2860, 1.442695
        %v2875 = vpow.pop %v2874
        %v2876 = vmul.f32 %v2861, 1.442695
        %v2877 = vpow.pop %v2876
        %v2878 = vmul.f32 %v2862, 1.442695
        %v2879 = vpow.pop %v2878
        %v2880 = vmul.f32 %v2863, 1.442695
        %v2881 = vpow.pop %v2880
        %v2882 = vmul.f32 %v2864, 1.442695
        %v2883 = vpow.pop %v2882
        %v2884 = vmul.f32 %v2865, 1.442695
        %v2885 = vpow.pop %v2884
        %v2886 = vmul.f32 %v2866, 1.442695
        %v2887 = vpow.pop %v2886
        %v2888 = vmul.f32 %v2867, 1.442695
        %v2889 = vpow.pop %v2888
        %v2890 = vmul.f32 %v2868, 1.442695
        %v2891 = vpow.pop %v2890
        %v2892 = vmul.f32 %v2869, 1.442695
        %v2893 = vpow.pop %v2892
        %v2894 = vmul.f32 %v2870, 1.442695
        %v2895 = vpow.pop %v2894
        %v2896 = vmul.f32 %v2871, 1.442695
        %v2897 = vpow.pop %v2896
        %v2898 = vsel %vm1390, %v2873, 0.0
        %2899 = vadd.xlane.f32.xlu0 %v2898
        %v2900 = vpop.xlane.xlu0 %2899
        %v2901 = vsel %vm1390, %v2875, 0.0
        %2902 = vadd.xlane.f32.xlu0 %v2901
        %v2903 = vpop.xlane.xlu0 %2902
        %v2904 = vsel %vm1390, %v2877, 0.0
        %2905 = vadd.xlane.f32.xlu0 %v2904
        %v2906 = vpop.xlane.xlu0 %2905
        %v2907 = vsel %vm1390, %v2879, 0.0
        %2908 = vadd.xlane.f32.xlu0 %v2907
        %v2909 = vpop.xlane.xlu0 %2908
        %v2910 = vsel %vm1390, %v2881, 0.0
        %2911 = vadd.xlane.f32.xlu0 %v2910
        %v2912 = vpop.xlane.xlu0 %2911
        %v2913 = vsel %vm1390, %v2883, 0.0
        %2914 = vadd.xlane.f32.xlu0 %v2913
        %v2915 = vpop.xlane.xlu0 %2914
        %v2916 = vsel %vm1390, %v2885, 0.0
        %2917 = vadd.xlane.f32.xlu0 %v2916
        %v2918 = vpop.xlane.xlu0 %2917
        %v2919 = vsel %vm1390, %v2887, 0.0
        %2920 = vadd.xlane.f32.xlu0 %v2919
        %v2921 = vpop.xlane.xlu0 %2920
        %v2922 = vsel %vm1390, %v2889, 0.0
        %2923 = vadd.xlane.f32.xlu0 %v2922
        %v2924 = vpop.xlane.xlu0 %2923
        %v2925 = vsel %vm1390, %v2891, 0.0
        %2926 = vadd.xlane.f32.xlu0 %v2925
        %v2927 = vpop.xlane.xlu0 %2926
        %v2928 = vsel %vm1390, %v2893, 0.0
        %2929 = vadd.xlane.f32.xlu0 %v2928
        %v2930 = vpop.xlane.xlu0 %2929
        %v2931 = vsel %vm1390, %v2895, 0.0
        %2932 = vadd.xlane.f32.xlu0 %v2931
        %v2933 = vpop.xlane.xlu0 %2932
        %v2934 = vsel %vm1427, %v2897, 0.0
        %2935 = vadd.xlane.f32.xlu0 %v2934
        %v2936 = vpop.xlane.xlu0 %2935
        %v2937 = vrcp.pop %v2900
        %v2938 = vrcp.pop %v2903
        %v2939 = vrcp.pop %v2906
        %v2940 = vrcp.pop %v2909
        %v2941 = vrcp.pop %v2912
        %v2942 = vrcp.pop %v2915
        %v2943 = vrcp.pop %v2918
        %v2944 = vrcp.pop %v2921
        %v2945 = vrcp.pop %v2924
        %v2946 = vrcp.pop %v2927
        %v2947 = vrcp.pop %v2930
        %v2948 = vrcp.pop %v2933
        %v2949 = vrcp.pop %v2936
        %v2950 = vmul.f32 %v2873, %v2937
        %v2951 = vmul.f32 %v2875, %v2938
        %v2952 = vmul.f32 %v2877, %v2939
        %v2953 = vmul.f32 %v2879, %v2940
        %v2954 = vmul.f32 %v2881, %v2941
        %v2955 = vmul.f32 %v2883, %v2942
        %v2956 = vmul.f32 %v2885, %v2943
        %v2957 = vmul.f32 %v2887, %v2944
        %v2958 = vmul.f32 %v2889, %v2945
        %v2959 = vmul.f32 %v2891, %v2946
        %v2960 = vmul.f32 %v2893, %v2947
        %v2961 = vmul.f32 %v2895, %v2948
        %v2962 = vmul.f32 %v2897, %v2949
        %s2963 = scalar_lea.vmem [#allocation12], 128
        %v2964 = vld [vmem:[%s2963] sm:$0xff]
        %v2965 = vld [vmem:[%s2963 + $0x8] sm:$0xff]
        %v2966 = vld [vmem:[%s2963 + $0x10] sm:$0xff]
        %v2967 = vld [vmem:[%s2963 + $0x18] sm:$0xff]
        %v2968 = vld [vmem:[%s2963 + $0x20] sm:$0xff]
        %v2969 = vld [vmem:[%s2963 + $0x28] sm:$0xff]
        %v2970 = vld [vmem:[%s2963 + $0x30] sm:$0xff]
        %v2971 = vld [vmem:[%s2963 + $0x38] sm:$0xff]
        %2972 = vmatprep.subr.mxu0 0.0
        %2973 = vmatpush1.msra.mxu0 %v2964
        %2974 = vmatprep.subr.mxu0 0.0
        %2975 = vmatpush1.msra.mxu0 %v2965
        %2976 = vmatprep.subr.mxu0 0.0
        %2977 = vmatpush1.msra.mxu0 %v2966
        %2978 = vmatprep.subr.mxu0 0.0
        %2979 = vmatpush1.msra.mxu0 %v2967
        %2980 = vmatprep.subr.mxu0 0.0
        %2981 = vmatpush1.msra.mxu0 %v2968
        %2982 = vmatprep.subr.mxu0 0.0
        %2983 = vmatpush1.msra.mxu0 %v2969
        %2984 = vmatprep.subr.mxu0 0.0
        %2985 = vmatpush1.msra.mxu0 %v2970
        %2986 = vmatprep.subr.mxu0 0.0
        %2987 = vmatpush1.msra.mxu0 %v2971
        %2988 = vmatprep.subr.mxu0 0.0
        %2989 = vmatpush1.msra.mxu0 0.0
        %2990 = vmatprep.subr.mxu0 0.0
        %2991 = vmatpush1.msra.mxu0 0.0
        %2992 = vmatprep.subr.mxu0 0.0
        %2993 = vmatpush1.msra.mxu0 0.0
        %2994 = vmatprep.subr.mxu0 0.0
        %2995 = vmatpush1.msra.mxu0 0.0
        %2996 = vmatprep.subr.mxu0 0.0
        %2997 = vmatpush1.msra.mxu0 0.0
        %2998 = vmatprep.subr.mxu0 0.0
        %2999 = vmatpush1.msra.mxu0 0.0
        %3000 = vmatprep.subr.mxu0 0.0
        %3001 = vmatpush1.msra.mxu0 0.0
        %3002 = vmatprep.subr.mxu0 0.0
        %3003 = vmatpush1.msra.mxu0 0.0
        %3004 = vmatprep.subr.mxu0 0.0
        %3005 = vmatpush1.msra.mxu0 0.0
        %3006 = vmatprep.subr.mxu0 0.0
        %3007 = vmatpush1.msra.mxu0 0.0
        %3008 = vmatprep.subr.mxu0 0.0
        %3009 = vmatpush1.msra.mxu0 0.0
        %3010 = vmatprep.subr.mxu0 0.0
        %3011 = vmatpush1.msra.mxu0 0.0
        %3012 = vmatprep.subr.mxu0 0.0
        %3013 = vmatpush1.msra.mxu0 0.0
        %3014 = vmatprep.subr.mxu0 0.0
        %3015 = vmatpush1.msra.mxu0 0.0
        %3016 = vmatprep.subr.mxu0 0.0
        %3017 = vmatpush1.msra.mxu0 0.0
        %3018 = vmatprep.subr.mxu0 0.0
        %3019 = vmatpush1.msra.mxu0 0.0
        %3020 = vmatprep.subr.mxu0 0.0
        %3021 = vmatpush1.msra.mxu0 0.0
        %3022 = vmatprep.subr.mxu0 0.0
        %3023 = vmatpush1.msra.mxu0 0.0
        %3024 = vmatprep.subr.mxu0 0.0
        %3025 = vmatpush1.msra.mxu0 0.0
        %3026 = vmatprep.subr.mxu0 0.0
        %3027 = vmatpush1.msra.mxu0 0.0
        %3028 = vmatprep.subr.mxu0 0.0
        %3029 = vmatpush1.msra.mxu0 0.0
        %3030 = vmatprep.subr.mxu0 0.0
        %3031 = vmatpush1.msra.mxu0 0.0
        %3032 = vmatprep.subr.mxu0 0.0
        %3033 = vmatpush1.msra.mxu0 0.0
        %3034 = vmatprep.subr.mxu0 0.0
        %3035 = vmatpush1.msra.mxu0 0.0
        %3036 = vmatprep.mubr.f32.mxu0 0.0
        %3037 = vmatmul.mubr.f32.gmra.mrb[0].mxu0 %v1557
        %v3038 = vpop.f32.mrb[0].mxu0
        %v3039 = vadd.f32 0.0, %v3038
        %v3040 = vpop.f32.mrb[0].mxu0
        %3041 = vmatprep.mubr.f32.mxu0 0.0
        %3042 = vmatmul.mubr.f32.gmra.mrb[0].mxu0 %v1560
        %v3043 = vpop.f32.mrb[0].mxu0
        %v3044 = vadd.f32 0.0, %v3043
        %v3045 = vpop.f32.mrb[0].mxu0
        %3046 = vmatprep.mubr.f32.mxu0 0.0
        %3047 = vmatmul.mubr.f32.gmra.mrb[0].mxu0 %v1563
        %v3048 = vpop.f32.mrb[0].mxu0
        %v3049 = vadd.f32 0.0, %v3048
        %v3050 = vpop.f32.mrb[0].mxu0
        %3051 = vmatprep.mubr.f32.mxu0 0.0
        %3052 = vmatmul.mubr.f32.gmra.mrb[0].mxu0 %v1566
        %v3053 = vpop.f32.mrb[0].mxu0
        %v3054 = vadd.f32 0.0, %v3053
        %v3055 = vpop.f32.mrb[0].mxu0
        %3056 = vmatprep.mubr.f32.mxu0 0.0
        %3057 = vmatmul.mubr.f32.gmra.mrb[0].mxu0 %v1569
        %v3058 = vpop.f32.mrb[0].mxu0
        %v3059 = vadd.f32 0.0, %v3058
        %v3060 = vpop.f32.mrb[0].mxu0
        %3061 = vmatprep.mubr.f32.mxu0 0.0
        %3062 = vmatmul.mubr.f32.gmra.mrb[0].mxu0 %v1572
        %v3063 = vpop.f32.mrb[0].mxu0
        %v3064 = vadd.f32 0.0, %v3063
        %v3065 = vpop.f32.mrb[0].mxu0
        %3066 = vmatprep.mubr.f32.mxu0 0.0
        %3067 = vmatmul.mubr.f32.gmra.mrb[0].mxu0 %v1575
        %v3068 = vpop.f32.mrb[0].mxu0
        %v3069 = vadd.f32 0.0, %v3068
        %v3070 = vpop.f32.mrb[0].mxu0
        %3071 = vmatprep.mubr.f32.mxu0 0.0
        %3072 = vmatmul.mubr.f32.gmra.mrb[0].mxu0 %v1578
        %v3073 = vpop.f32.mrb[0].mxu0
        %v3074 = vadd.f32 0.0, %v3073
        %v3075 = vpop.f32.mrb[0].mxu0
        %3076 = vmatprep.mubr.f32.mxu0 0.0
        %3077 = vmatmul.mubr.f32.gmra.mrb[0].mxu0 %v1581
        %v3078 = vpop.f32.mrb[0].mxu0
        %v3079 = vadd.f32 0.0, %v3078
        %v3080 = vpop.f32.mrb[0].mxu0
        %3081 = vmatprep.mubr.f32.mxu0 0.0
        %3082 = vmatmul.mubr.f32.gmra.mrb[0].mxu0 %v1584
        %v3083 = vpop.f32.mrb[0].mxu0
        %v3084 = vadd.f32 0.0, %v3083
        %v3085 = vpop.f32.mrb[0].mxu0
        %3086 = vmatprep.mubr.f32.mxu0 0.0
        %3087 = vmatmul.mubr.f32.gmra.mrb[0].mxu0 %v1587
        %v3088 = vpop.f32.mrb[0].mxu0
        %v3089 = vadd.f32 0.0, %v3088
        %v3090 = vpop.f32.mrb[0].mxu0
        %3091 = vmatprep.mubr.f32.mxu0 0.0
        %3092 = vmatmul.mubr.f32.gmra.mrb[0].mxu0 %v1590
        %v3093 = vpop.f32.mrb[0].mxu0
        %v3094 = vadd.f32 0.0, %v3093
        %v3095 = vpop.f32.mrb[0].mxu0
        %3096 = vmatprep.mubr.f32.mxu0 0.0
        %3097 = vmatmul.mubr.f32.gmra.mrb[0].mxu0 %v1593
        %v3098 = vpop.f32.mrb[0].mxu0
        %v3099 = vadd.f32 0.0, %v3098
        %v3100 = vpop.f32.mrb[0].mxu0
        %3101 = vdwg.mxu0
        %v3103 = vsel %vm1390, %v2950, 0
        %v3106 = vsel %vm1390, %v2951, 0
        %v3109 = vsel %vm1390, %v2952, 0
        %v3112 = vsel %vm1390, %v2953, 0
        %v3115 = vsel %vm1390, %v2954, 0
        %v3118 = vsel %vm1390, %v2955, 0
        %v3121 = vsel %vm1390, %v2956, 0
        %v3124 = vsel %vm1390, %v2957, 0
        %v3127 = vsel %vm1390, %v2958, 0
        %v3130 = vsel %vm1390, %v2959, 0
        %v3133 = vsel %vm1390, %v2960, 0
        %v3136 = vsel %vm1390, %v2961, 0
        %v3139 = vsel %vm1390, %v2962, 0
        %v3142 = vsel %vm2280, %v3099, 0
        %3144 = vmatprep.subr.mxu0 0.0
        %3145 = vmatpush1.msra.mxu0 %v3039
        %3146 = vmatprep.subr.mxu0 0.0
        %3147 = vmatpush1.msra.mxu0 %v3044
        %3148 = vmatprep.subr.mxu0 0.0
        %3149 = vmatpush1.msra.mxu0 %v3049
        %3150 = vmatprep.subr.mxu0 0.0
        %3151 = vmatpush1.msra.mxu0 %v3054
        %3152 = vmatprep.subr.mxu0 0.0
        %3153 = vmatpush1.msra.mxu0 %v3059
        %3154 = vmatprep.subr.mxu0 0.0
        %3155 = vmatpush1.msra.mxu0 %v3064
        %3156 = vmatprep.subr.mxu0 0.0
        %3157 = vmatpush1.msra.mxu0 %v3069
        %3158 = vmatprep.subr.mxu0 0.0
        %3159 = vmatpush1.msra.mxu0 %v3074
        %3160 = vmatprep.subr.mxu0 0.0
        %3161 = vmatpush1.msra.mxu0 %v3079
        %3162 = vmatprep.subr.mxu0 0.0
        %3163 = vmatpush1.msra.mxu0 %v3084
        %3164 = vmatprep.subr.mxu0 0.0
        %3165 = vmatpush1.msra.mxu0 %v3089
        %3166 = vmatprep.subr.mxu0 0.0
        %3167 = vmatpush1.msra.mxu0 %v3094
        %3168 = vmatprep.subr.mxu0 0.0
        %3169 = vmatpush1.msra.mxu0 %v3142
        %3170 = vmatprep.subr.mxu0 0.0
        %3171 = vmatpush1.msra.mxu0 0.0
        %3172 = vmatprep.subr.mxu0 0.0
        %3173 = vmatpush1.msra.mxu0 0.0
        %3174 = vmatprep.subr.mxu0 0.0
        %3175 = vmatpush1.msra.mxu0 0.0
        %3176 = vmatprep.subr.mxu0 0.0
        %3177 = vmatpush1.msra.mxu0 0.0
        %3178 = vmatprep.subr.mxu0 0.0
        %3179 = vmatpush1.msra.mxu0 0.0
        %3180 = vmatprep.subr.mxu0 0.0
        %3181 = vmatpush1.msra.mxu0 0.0
        %3182 = vmatprep.subr.mxu0 0.0
        %3183 = vmatpush1.msra.mxu0 0.0
        %3184 = vmatprep.subr.mxu0 0.0
        %3185 = vmatpush1.msra.mxu0 0.0
        %3186 = vmatprep.subr.mxu0 0.0
        %3187 = vmatpush1.msra.mxu0 0.0
        %3188 = vmatprep.subr.mxu0 0.0
        %3189 = vmatpush1.msra.mxu0 0.0
        %3190 = vmatprep.subr.mxu0 0.0
        %3191 = vmatpush1.msra.mxu0 0.0
        %3192 = vmatprep.subr.mxu0 0.0
        %3193 = vmatpush1.msra.mxu0 0.0
        %3194 = vmatprep.subr.mxu0 0.0
        %3195 = vmatpush1.msra.mxu0 0.0
        %3196 = vmatprep.subr.mxu0 0.0
        %3197 = vmatpush1.msra.mxu0 0.0
        %3198 = vmatprep.subr.mxu0 0.0
        %3199 = vmatpush1.msra.mxu0 0.0
        %3200 = vmatprep.subr.mxu0 0.0
        %3201 = vmatpush1.msra.mxu0 0.0
        %3202 = vmatprep.subr.mxu0 0.0
        %3203 = vmatpush1.msra.mxu0 0.0
        %3204 = vmatprep.subr.mxu0 0.0
        %3205 = vmatpush1.msra.mxu0 0.0
        %3206 = vmatprep.subr.mxu0 0.0
        %3207 = vmatpush1.msra.mxu0 0.0
        %3208 = vmatprep.mubr.f32.mxu0 0.0
        %3209 = vmatmul.mubr.f32.gmra.mrb[0].mxu0 %v3103
        %v3210 = vpop.f32.mrb[0].mxu0
        %v3211 = vadd.f32 0.0, %v3210
        %v3212 = vpop.f32.mrb[0].mxu0
        %3213 = vmatprep.mubr.f32.mxu0 0.0
        %3214 = vmatmul.mubr.f32.gmra.mrb[0].mxu0 %v3106
        %v3215 = vpop.f32.mrb[0].mxu0
        %v3216 = vadd.f32 0.0, %v3215
        %v3217 = vpop.f32.mrb[0].mxu0
        %3218 = vmatprep.mubr.f32.mxu0 0.0
        %3219 = vmatmul.mubr.f32.gmra.mrb[0].mxu0 %v3109
        %v3220 = vpop.f32.mrb[0].mxu0
        %v3221 = vadd.f32 0.0, %v3220
        %v3222 = vpop.f32.mrb[0].mxu0
        %3223 = vmatprep.mubr.f32.mxu0 0.0
        %3224 = vmatmul.mubr.f32.gmra.mrb[0].mxu0 %v3112
        %v3225 = vpop.f32.mrb[0].mxu0
        %v3226 = vadd.f32 0.0, %v3225
        %v3227 = vpop.f32.mrb[0].mxu0
        %3228 = vmatprep.mubr.f32.mxu0 0.0
        %3229 = vmatmul.mubr.f32.gmra.mrb[0].mxu0 %v3115
        %v3230 = vpop.f32.mrb[0].mxu0
        %v3231 = vadd.f32 0.0, %v3230
        %v3232 = vpop.f32.mrb[0].mxu0
        %3233 = vmatprep.mubr.f32.mxu0 0.0
        %3234 = vmatmul.mubr.f32.gmra.mrb[0].mxu0 %v3118
        %v3235 = vpop.f32.mrb[0].mxu0
        %v3236 = vadd.f32 0.0, %v3235
        %v3237 = vpop.f32.mrb[0].mxu0
        %3238 = vmatprep.mubr.f32.mxu0 0.0
        %3239 = vmatmul.mubr.f32.gmra.mrb[0].mxu0 %v3121
        %v3240 = vpop.f32.mrb[0].mxu0
        %v3241 = vadd.f32 0.0, %v3240
        %v3242 = vpop.f32.mrb[0].mxu0
        %3243 = vmatprep.mubr.f32.mxu0 0.0
        %3244 = vmatmul.mubr.f32.gmra.mrb[0].mxu0 %v3124
        %v3245 = vpop.f32.mrb[0].mxu0
        %v3246 = vadd.f32 0.0, %v3245
        %v3247 = vpop.f32.mrb[0].mxu0
        %3248 = vmatprep.mubr.f32.mxu0 0.0
        %3249 = vmatmul.mubr.f32.gmra.mrb[0].mxu0 %v3127
        %v3250 = vpop.f32.mrb[0].mxu0
        %v3251 = vadd.f32 0.0, %v3250
        %v3252 = vpop.f32.mrb[0].mxu0
        %3253 = vmatprep.mubr.f32.mxu0 0.0
        %3254 = vmatmul.mubr.f32.gmra.mrb[0].mxu0 %v3130
        %v3255 = vpop.f32.mrb[0].mxu0
        %v3256 = vadd.f32 0.0, %v3255
        %v3257 = vpop.f32.mrb[0].mxu0
        %3258 = vmatprep.mubr.f32.mxu0 0.0
        %3259 = vmatmul.mubr.f32.gmra.mrb[0].mxu0 %v3133
        %v3260 = vpop.f32.mrb[0].mxu0
        %v3261 = vadd.f32 0.0, %v3260
        %v3262 = vpop.f32.mrb[0].mxu0
        %3263 = vmatprep.mubr.f32.mxu0 0.0
        %3264 = vmatmul.mubr.f32.gmra.mrb[0].mxu0 %v3136
        %v3265 = vpop.f32.mrb[0].mxu0
        %v3266 = vadd.f32 0.0, %v3265
        %v3267 = vpop.f32.mrb[0].mxu0
        %3268 = vmatprep.mubr.f32.mxu0 0.0
        %3269 = vmatmul.mubr.f32.gmra.mrb[0].mxu0 %v3139
        %v3270 = vpop.f32.mrb[0].mxu0
        %v3271 = vadd.f32 0.0, %v3270
        %v3272 = vpop.f32.mrb[0].mxu0
        %3273 = vdwg.mxu0
        %v3274 = vadd.f32 %v2523, %v3211
        %v3275 = vadd.f32 %v2528, %v3216
        %v3276 = vadd.f32 %v2533, %v3221
        %v3277 = vadd.f32 %v2538, %v3226
        %v3278 = vadd.f32 %v2543, %v3231
        %v3279 = vadd.f32 %v2548, %v3236
        %v3280 = vadd.f32 %v2553, %v3241
        %v3281 = vadd.f32 %v2558, %v3246
        %v3282 = vadd.f32 %v2563, %v3251
        %v3283 = vadd.f32 %v2568, %v3256
        %v3284 = vadd.f32 %v2573, %v3261
        %v3285 = vadd.f32 %v2578, %v3266
        %v3286 = vadd.f32 %v2583, %v3271
        %3287 = vrot.lane.b32.xlu0 %v1155, 104
        %v3288 = vpop.permute.xlu0 %3287
        %3289 = vrot.lane.b32.xlu0 %v1156, 104
        %v3290 = vpop.permute.xlu0 %3289
        %3291 = vrot.lane.b32.xlu0 %v1157, 104
        %v3292 = vpop.permute.xlu0 %3291
        %3293 = vrot.lane.b32.xlu0 %v1158, 104
        %v3294 = vpop.permute.xlu0 %3293
        %3295 = vrot.lane.b32.xlu0 %v1159, 104
        %v3296 = vpop.permute.xlu0 %3295
        %3297 = vrot.lane.b32.xlu0 %v1160, 104
        %v3298 = vpop.permute.xlu0 %3297
        %3299 = vrot.lane.b32.xlu0 %v1161, 104
        %v3300 = vpop.permute.xlu0 %3299
        %3301 = vrot.lane.b32.xlu0 %v1162, 104
        %v3302 = vpop.permute.xlu0 %3301
        %3303 = vrot.lane.b32.xlu0 %v1163, 104
        %v3304 = vpop.permute.xlu0 %3303
        %3305 = vrot.lane.b32.xlu0 %v1164, 104
        %v3306 = vpop.permute.xlu0 %3305
        %3307 = vrot.lane.b32.xlu0 %v1165, 104
        %v3308 = vpop.permute.xlu0 %3307
        %3309 = vrot.lane.b32.xlu0 %v1166, 104
        %v3310 = vpop.permute.xlu0 %3309
        %3311 = vrot.lane.b32.xlu0 %v1167, 104
        %v3312 = vpop.permute.xlu0 %3311
        %3313 = vrot.lane.b32.xlu0 %v1155, 40
        %v3314 = vpop.permute.xlu0 %3313
        %3315 = vrot.lane.b32.xlu0 %v1156, 40
        %v3316 = vpop.permute.xlu0 %3315
        %3317 = vrot.lane.b32.xlu0 %v1157, 40
        %v3318 = vpop.permute.xlu0 %3317
        %3319 = vrot.lane.b32.xlu0 %v1158, 40
        %v3320 = vpop.permute.xlu0 %3319
        %3321 = vrot.lane.b32.xlu0 %v1159, 40
        %v3322 = vpop.permute.xlu0 %3321
        %3323 = vrot.lane.b32.xlu0 %v1160, 40
        %v3324 = vpop.permute.xlu0 %3323
        %3325 = vrot.lane.b32.xlu0 %v1161, 40
        %v3326 = vpop.permute.xlu0 %3325
        %3327 = vrot.lane.b32.xlu0 %v1162, 40
        %v3328 = vpop.permute.xlu0 %3327
        %3329 = vrot.lane.b32.xlu0 %v1163, 40
        %v3330 = vpop.permute.xlu0 %3329
        %3331 = vrot.lane.b32.xlu0 %v1164, 40
        %v3332 = vpop.permute.xlu0 %3331
        %3333 = vrot.lane.b32.xlu0 %v1165, 40
        %v3334 = vpop.permute.xlu0 %3333
        %3335 = vrot.lane.b32.xlu0 %v1166, 40
        %v3336 = vpop.permute.xlu0 %3335
        %3337 = vrot.lane.b32.xlu0 %v1167, 40
        %v3338 = vpop.permute.xlu0 %3337
        %v3339 = vsel %vm1207, %v3288, 0
        %v3341 = vsel %vm1207, %v3290, 0
        %v3343 = vsel %vm1207, %v3292, 0
        %v3345 = vsel %vm1207, %v3294, 0
        %v3347 = vsel %vm1207, %v3296, 0
        %v3349 = vsel %vm1207, %v3298, 0
        %v3351 = vsel %vm1207, %v3300, 0
        %v3353 = vsel %vm1207, %v3302, 0
        %v3355 = vsel %vm1207, %v3304, 0
        %v3357 = vsel %vm1207, %v3306, 0
        %v3359 = vsel %vm1207, %v3308, 0
        %v3361 = vsel %vm1207, %v3310, 0
        %v3363 = vsel %vm1207, %v3312, 0
        %v3365 = vsel %vm1207, %v3314, 0
        %v3367 = vsel %vm1207, %v3316, 0
        %v3369 = vsel %vm1207, %v3318, 0
        %v3371 = vsel %vm1207, %v3320, 0
        %v3373 = vsel %vm1207, %v3322, 0
        %v3375 = vsel %vm1207, %v3324, 0
        %v3377 = vsel %vm1207, %v3326, 0
        %v3379 = vsel %vm1207, %v3328, 0
        %v3381 = vsel %vm1207, %v3330, 0
        %v3383 = vsel %vm1207, %v3332, 0
        %v3385 = vsel %vm1207, %v3334, 0
        %v3387 = vsel %vm1207, %v3336, 0
        %v3389 = vsel %vm1207, %v3338, 0
        %3391 = vmatprep.subr.mxu0 0.0
        %3392 = vmatpush1.xpose.msra.mxu0 %v3365
        %3393 = vmatprep.subr.mxu0 0.0
        %3394 = vmatpush1.xpose.msra.mxu0 %v3367
        %3395 = vmatprep.subr.mxu0 0.0
        %3396 = vmatpush1.xpose.msra.mxu0 %v3369
        %3397 = vmatprep.subr.mxu0 0.0
        %3398 = vmatpush1.xpose.msra.mxu0 %v3371
        %3399 = vmatprep.subr.mxu0 0.0
        %3400 = vmatpush1.xpose.msra.mxu0 %v3373
        %3401 = vmatprep.subr.mxu0 0.0
        %3402 = vmatpush1.xpose.msra.mxu0 %v3375
        %3403 = vmatprep.subr.mxu0 0.0
        %3404 = vmatpush1.xpose.msra.mxu0 %v3377
        %3405 = vmatprep.subr.mxu0 0.0
        %3406 = vmatpush1.xpose.msra.mxu0 %v3379
        %3407 = vmatprep.subr.mxu0 0.0
        %3408 = vmatpush1.xpose.msra.mxu0 %v3381
        %3409 = vmatprep.subr.mxu0 0.0
        %3410 = vmatpush1.xpose.msra.mxu0 %v3383
        %3411 = vmatprep.subr.mxu0 0.0
        %3412 = vmatpush1.xpose.msra.mxu0 %v3385
        %3413 = vmatprep.subr.mxu0 0.0
        %3414 = vmatpush1.xpose.msra.mxu0 %v3387
        %3415 = vmatprep.subr.mxu0 0.0
        %3416 = vmatpush1.xpose.msra.mxu0 %v3389
        %3417 = vmatprep.subr.mxu0 0.0
        %3418 = vmatpush1.xpose.msra.mxu0 0.0
        %3419 = vmatprep.subr.mxu0 0.0
        %3420 = vmatpush1.xpose.msra.mxu0 0.0
        %3421 = vmatprep.subr.mxu0 0.0
        %3422 = vmatpush1.xpose.msra.mxu0 0.0
        %3423 = vmatprep.subr.mxu0 0.0
        %3424 = vmatpush1.xpose.msra.mxu0 0.0
        %3425 = vmatprep.subr.mxu0 0.0
        %3426 = vmatpush1.xpose.msra.mxu0 0.0
        %3427 = vmatprep.subr.mxu0 0.0
        %3428 = vmatpush1.xpose.msra.mxu0 0.0
        %3429 = vmatprep.subr.mxu0 0.0
        %3430 = vmatpush1.xpose.msra.mxu0 0.0
        %3431 = vmatprep.subr.mxu0 0.0
        %3432 = vmatpush1.xpose.msra.mxu0 0.0
        %3433 = vmatprep.subr.mxu0 0.0
        %3434 = vmatpush1.xpose.msra.mxu0 0.0
        %3435 = vmatprep.subr.mxu0 0.0
        %3436 = vmatpush1.xpose.msra.mxu0 0.0
        %3437 = vmatprep.subr.mxu0 0.0
        %3438 = vmatpush1.xpose.msra.mxu0 0.0
        %3439 = vmatprep.subr.mxu0 0.0
        %3440 = vmatpush1.xpose.msra.mxu0 0.0
        %3441 = vmatprep.subr.mxu0 0.0
        %3442 = vmatpush1.xpose.msra.mxu0 0.0
        %3443 = vmatprep.subr.mxu0 0.0
        %3444 = vmatpush1.xpose.msra.mxu0 0.0
        %3445 = vmatprep.subr.mxu0 0.0
        %3446 = vmatpush1.xpose.msra.mxu0 0.0
        %3447 = vmatprep.subr.mxu0 0.0
        %3448 = vmatpush1.xpose.msra.mxu0 0.0
        %3449 = vmatprep.subr.mxu0 0.0
        %3450 = vmatpush1.xpose.msra.mxu0 0.0
        %3451 = vmatprep.subr.mxu0 0.0
        %3452 = vmatpush1.xpose.msra.mxu0 0.0
        %3453 = vmatprep.subr.mxu0 0.0
        %3454 = vmatpush1.xpose.msra.mxu0 0.0
        %3455 = vmatprep.mubr.f32.mxu0 0.0
        %3456 = vmatmul.mubr.f32.gmra.mrb[0].mxu0 %v3339
        %v3457 = vpop.f32.mrb[0].mxu0
        %v3458 = vadd.f32 0.0, %v3457
        %v3459 = vpop.f32.mrb[0].mxu0
        %3460 = vmatprep.mubr.f32.mxu0 0.0
        %3461 = vmatmul.mubr.f32.gmra.mrb[0].mxu0 %v3341
        %v3462 = vpop.f32.mrb[0].mxu0
        %v3463 = vadd.f32 0.0, %v3462
        %v3464 = vpop.f32.mrb[0].mxu0
        %3465 = vmatprep.mubr.f32.mxu0 0.0
        %3466 = vmatmul.mubr.f32.gmra.mrb[0].mxu0 %v3343
        %v3467 = vpop.f32.mrb[0].mxu0
        %v3468 = vadd.f32 0.0, %v3467
        %v3469 = vpop.f32.mrb[0].mxu0
        %3470 = vmatprep.mubr.f32.mxu0 0.0
        %3471 = vmatmul.mubr.f32.gmra.mrb[0].mxu0 %v3345
        %v3472 = vpop.f32.mrb[0].mxu0
        %v3473 = vadd.f32 0.0, %v3472
        %v3474 = vpop.f32.mrb[0].mxu0
        %3475 = vmatprep.mubr.f32.mxu0 0.0
        %3476 = vmatmul.mubr.f32.gmra.mrb[0].mxu0 %v3347
        %v3477 = vpop.f32.mrb[0].mxu0
        %v3478 = vadd.f32 0.0, %v3477
        %v3479 = vpop.f32.mrb[0].mxu0
        %3480 = vmatprep.mubr.f32.mxu0 0.0
        %3481 = vmatmul.mubr.f32.gmra.mrb[0].mxu0 %v3349
        %v3482 = vpop.f32.mrb[0].mxu0
        %v3483 = vadd.f32 0.0, %v3482
        %v3484 = vpop.f32.mrb[0].mxu0
        %3485 = vmatprep.mubr.f32.mxu0 0.0
        %3486 = vmatmul.mubr.f32.gmra.mrb[0].mxu0 %v3351
        %v3487 = vpop.f32.mrb[0].mxu0
        %v3488 = vadd.f32 0.0, %v3487
        %v3489 = vpop.f32.mrb[0].mxu0
        %3490 = vmatprep.mubr.f32.mxu0 0.0
        %3491 = vmatmul.mubr.f32.gmra.mrb[0].mxu0 %v3353
        %v3492 = vpop.f32.mrb[0].mxu0
        %v3493 = vadd.f32 0.0, %v3492
        %v3494 = vpop.f32.mrb[0].mxu0
        %3495 = vmatprep.mubr.f32.mxu0 0.0
        %3496 = vmatmul.mubr.f32.gmra.mrb[0].mxu0 %v3355
        %v3497 = vpop.f32.mrb[0].mxu0
        %v3498 = vadd.f32 0.0, %v3497
        %v3499 = vpop.f32.mrb[0].mxu0
        %3500 = vmatprep.mubr.f32.mxu0 0.0
        %3501 = vmatmul.mubr.f32.gmra.mrb[0].mxu0 %v3357
        %v3502 = vpop.f32.mrb[0].mxu0
        %v3503 = vadd.f32 0.0, %v3502
        %v3504 = vpop.f32.mrb[0].mxu0
        %3505 = vmatprep.mubr.f32.mxu0 0.0
        %3506 = vmatmul.mubr.f32.gmra.mrb[0].mxu0 %v3359
        %v3507 = vpop.f32.mrb[0].mxu0
        %v3508 = vadd.f32 0.0, %v3507
        %v3509 = vpop.f32.mrb[0].mxu0
        %3510 = vmatprep.mubr.f32.mxu0 0.0
        %3511 = vmatmul.mubr.f32.gmra.mrb[0].mxu0 %v3361
        %v3512 = vpop.f32.mrb[0].mxu0
        %v3513 = vadd.f32 0.0, %v3512
        %v3514 = vpop.f32.mrb[0].mxu0
        %3515 = vmatprep.mubr.f32.mxu0 0.0
        %3516 = vmatmul.mubr.f32.gmra.mrb[0].mxu0 %v3363
        %v3517 = vpop.f32.mrb[0].mxu0
        %v3518 = vadd.f32 0.0, %v3517
        %v3519 = vpop.f32.mrb[0].mxu0
        %3520 = vdwg.mxu0
        %v3521 = vsel %vm1390, %v3458, -inf
        %3522 = vmax.xlane.f32.xlu0 %v3521
        %v3523 = vpop.xlane.xlu0 %3522
        %v3524 = vsel %vm1390, %v3463, -inf
        %3525 = vmax.xlane.f32.xlu0 %v3524
        %v3526 = vpop.xlane.xlu0 %3525
        %v3527 = vsel %vm1390, %v3468, -inf
        %3528 = vmax.xlane.f32.xlu0 %v3527
        %v3529 = vpop.xlane.xlu0 %3528
        %v3530 = vsel %vm1390, %v3473, -inf
        %3531 = vmax.xlane.f32.xlu0 %v3530
        %v3532 = vpop.xlane.xlu0 %3531
        %v3533 = vsel %vm1390, %v3478, -inf
        %3534 = vmax.xlane.f32.xlu0 %v3533
        %v3535 = vpop.xlane.xlu0 %3534
        %v3536 = vsel %vm1390, %v3483, -inf
        %3537 = vmax.xlane.f32.xlu0 %v3536
        %v3538 = vpop.xlane.xlu0 %3537
        %v3539 = vsel %vm1390, %v3488, -inf
        %3540 = vmax.xlane.f32.xlu0 %v3539
        %v3541 = vpop.xlane.xlu0 %3540
        %v3542 = vsel %vm1390, %v3493, -inf
        %3543 = vmax.xlane.f32.xlu0 %v3542
        %v3544 = vpop.xlane.xlu0 %3543
        %v3545 = vsel %vm1390, %v3498, -inf
        %3546 = vmax.xlane.f32.xlu0 %v3545
        %v3547 = vpop.xlane.xlu0 %3546
        %v3548 = vsel %vm1390, %v3503, -inf
        %3549 = vmax.xlane.f32.xlu0 %v3548
        %v3550 = vpop.xlane.xlu0 %3549
        %v3551 = vsel %vm1390, %v3508, -inf
        %3552 = vmax.xlane.f32.xlu0 %v3551
        %v3553 = vpop.xlane.xlu0 %3552
        %v3554 = vsel %vm1390, %v3513, -inf
        %3555 = vmax.xlane.f32.xlu0 %v3554
        %v3556 = vpop.xlane.xlu0 %3555
        %v3557 = vsel %vm1427, %v3518, -inf
        %3558 = vmax.xlane.f32.xlu0 %v3557
        %v3559 = vpop.xlane.xlu0 %3558
        %v3560 = vsub.f32 %v3458, %v3523
        %v3561 = vsub.f32 %v3463, %v3526
        %v3562 = vsub.f32 %v3468, %v3529
        %v3563 = vsub.f32 %v3473, %v3532
        %v3564 = vsub.f32 %v3478, %v3535
        %v3565 = vsub.f32 %v3483, %v3538
        %v3566 = vsub.f32 %v3488, %v3541
        %v3567 = vsub.f32 %v3493, %v3544
        %v3568 = vsub.f32 %v3498, %v3547
        %v3569 = vsub.f32 %v3503, %v3550
        %v3570 = vsub.f32 %v3508, %v3553
        %v3571 = vsub.f32 %v3513, %v3556
        %v3572 = vsub.f32 %v3518, %v3559
        %v3573 = vmul.f32 %v3560, 1.442695
        %v3574 = vpow.pop %v3573
        %v3575 = vmul.f32 %v3561, 1.442695
        %v3576 = vpow.pop %v3575
        %v3577 = vmul.f32 %v3562, 1.442695
        %v3578 = vpow.pop %v3577
        %v3579 = vmul.f32 %v3563, 1.442695
        %v3580 = vpow.pop %v3579
        %v3581 = vmul.f32 %v3564, 1.442695
        %v3582 = vpow.pop %v3581
        %v3583 = vmul.f32 %v3565, 1.442695
        %v3584 = vpow.pop %v3583
        %v3585 = vmul.f32 %v3566, 1.442695
        %v3586 = vpow.pop %v3585
        %v3587 = vmul.f32 %v3567, 1.442695
        %v3588 = vpow.pop %v3587
        %v3589 = vmul.f32 %v3568, 1.442695
        %v3590 = vpow.pop %v3589
        %v3591 = vmul.f32 %v3569, 1.442695
        %v3592 = vpow.pop %v3591
        %v3593 = vmul.f32 %v3570, 1.442695
        %v3594 = vpow.pop %v3593
        %v3595 = vmul.f32 %v3571, 1.442695
        %v3596 = vpow.pop %v3595
        %v3597 = vmul.f32 %v3572, 1.442695
        %v3598 = vpow.pop %v3597
        %v3599 = vsel %vm1390, %v3574, 0.0
        %3600 = vadd.xlane.f32.xlu0 %v3599
        %v3601 = vpop.xlane.xlu0 %3600
        %v3602 = vsel %vm1390, %v3576, 0.0
        %3603 = vadd.xlane.f32.xlu0 %v3602
        %v3604 = vpop.xlane.xlu0 %3603
        %v3605 = vsel %vm1390, %v3578, 0.0
        %3606 = vadd.xlane.f32.xlu0 %v3605
        %v3607 = vpop.xlane.xlu0 %3606
        %v3608 = vsel %vm1390, %v3580, 0.0
        %3609 = vadd.xlane.f32.xlu0 %v3608
        %v3610 = vpop.xlane.xlu0 %3609
        %v3611 = vsel %vm1390, %v3582, 0.0
        %3612 = vadd.xlane.f32.xlu0 %v3611
        %v3613 = vpop.xlane.xlu0 %3612
        %v3614 = vsel %vm1390, %v3584, 0.0
        %3615 = vadd.xlane.f32.xlu0 %v3614
        %v3616 = vpop.xlane.xlu0 %3615
        %v3617 = vsel %vm1390, %v3586, 0.0
        %3618 = vadd.xlane.f32.xlu0 %v3617
        %v3619 = vpop.xlane.xlu0 %3618
        %v3620 = vsel %vm1390, %v3588, 0.0
        %3621 = vadd.xlane.f32.xlu0 %v3620
        %v3622 = vpop.xlane.xlu0 %3621
        %v3623 = vsel %vm1390, %v3590, 0.0
        %3624 = vadd.xlane.f32.xlu0 %v3623
        %v3625 = vpop.xlane.xlu0 %3624
        %v3626 = vsel %vm1390, %v3592, 0.0
        %3627 = vadd.xlane.f32.xlu0 %v3626
        %v3628 = vpop.xlane.xlu0 %3627
        %v3629 = vsel %vm1390, %v3594, 0.0
        %3630 = vadd.xlane.f32.xlu0 %v3629
        %v3631 = vpop.xlane.xlu0 %3630
        %v3632 = vsel %vm1390, %v3596, 0.0
        %3633 = vadd.xlane.f32.xlu0 %v3632
        %v3634 = vpop.xlane.xlu0 %3633
        %v3635 = vsel %vm1427, %v3598, 0.0
        %3636 = vadd.xlane.f32.xlu0 %v3635
        %v3637 = vpop.xlane.xlu0 %3636
        %v3638 = vrcp.pop %v3601
        %v3639 = vrcp.pop %v3604
        %v3640 = vrcp.pop %v3607
        %v3641 = vrcp.pop %v3610
        %v3642 = vrcp.pop %v3613
        %v3643 = vrcp.pop %v3616
        %v3644 = vrcp.pop %v3619
        %v3645 = vrcp.pop %v3622
        %v3646 = vrcp.pop %v3625
        %v3647 = vrcp.pop %v3628
        %v3648 = vrcp.pop %v3631
        %v3649 = vrcp.pop %v3634
        %v3650 = vrcp.pop %v3637
        %v3651 = vmul.f32 %v3574, %v3638
        %v3652 = vmul.f32 %v3576, %v3639
        %v3653 = vmul.f32 %v3578, %v3640
        %v3654 = vmul.f32 %v3580, %v3641
        %v3655 = vmul.f32 %v3582, %v3642
        %v3656 = vmul.f32 %v3584, %v3643
        %v3657 = vmul.f32 %v3586, %v3644
        %v3658 = vmul.f32 %v3588, %v3645
        %v3659 = vmul.f32 %v3590, %v3646
        %v3660 = vmul.f32 %v3592, %v3647
        %v3661 = vmul.f32 %v3594, %v3648
        %v3662 = vmul.f32 %v3596, %v3649
        %v3663 = vmul.f32 %v3598, %v3650
        %s3664 = scalar_lea.vmem [#allocation12], 192
        %v3665 = vld [vmem:[%s3664] sm:$0xff]
        %v3666 = vld [vmem:[%s3664 + $0x8] sm:$0xff]
        %v3667 = vld [vmem:[%s3664 + $0x10] sm:$0xff]
        %v3668 = vld [vmem:[%s3664 + $0x18] sm:$0xff]
        %v3669 = vld [vmem:[%s3664 + $0x20] sm:$0xff]
        %v3670 = vld [vmem:[%s3664 + $0x28] sm:$0xff]
        %v3671 = vld [vmem:[%s3664 + $0x30] sm:$0xff]
        %v3672 = vld [vmem:[%s3664 + $0x38] sm:$0xff]
        %3673 = vmatprep.subr.mxu0 0.0
        %3674 = vmatpush1.msra.mxu0 %v3665
        %3675 = vmatprep.subr.mxu0 0.0
        %3676 = vmatpush1.msra.mxu0 %v3666
        %3677 = vmatprep.subr.mxu0 0.0
        %3678 = vmatpush1.msra.mxu0 %v3667
        %3679 = vmatprep.subr.mxu0 0.0
        %3680 = vmatpush1.msra.mxu0 %v3668
        %3681 = vmatprep.subr.mxu0 0.0
        %3682 = vmatpush1.msra.mxu0 %v3669
        %3683 = vmatprep.subr.mxu0 0.0
        %3684 = vmatpush1.msra.mxu0 %v3670
        %3685 = vmatprep.subr.mxu0 0.0
        %3686 = vmatpush1.msra.mxu0 %v3671
        %3687 = vmatprep.subr.mxu0 0.0
        %3688 = vmatpush1.msra.mxu0 %v3672
        %3689 = vmatprep.subr.mxu0 0.0
        %3690 = vmatpush1.msra.mxu0 0.0
        %3691 = vmatprep.subr.mxu0 0.0
        %3692 = vmatpush1.msra.mxu0 0.0
        %3693 = vmatprep.subr.mxu0 0.0
        %3694 = vmatpush1.msra.mxu0 0.0
        %3695 = vmatprep.subr.mxu0 0.0
        %3696 = vmatpush1.msra.mxu0 0.0
        %3697 = vmatprep.subr.mxu0 0.0
        %3698 = vmatpush1.msra.mxu0 0.0
        %3699 = vmatprep.subr.mxu0 0.0
        %3700 = vmatpush1.msra.mxu0 0.0
        %3701 = vmatprep.subr.mxu0 0.0
        %3702 = vmatpush1.msra.mxu0 0.0
        %3703 = vmatprep.subr.mxu0 0.0
        %3704 = vmatpush1.msra.mxu0 0.0
        %3705 = vmatprep.subr.mxu0 0.0
        %3706 = vmatpush1.msra.mxu0 0.0
        %3707 = vmatprep.subr.mxu0 0.0
        %3708 = vmatpush1.msra.mxu0 0.0
        %3709 = vmatprep.subr.mxu0 0.0
        %3710 = vmatpush1.msra.mxu0 0.0
        %3711 = vmatprep.subr.mxu0 0.0
        %3712 = vmatpush1.msra.mxu0 0.0
        %3713 = vmatprep.subr.mxu0 0.0
        %3714 = vmatpush1.msra.mxu0 0.0
        %3715 = vmatprep.subr.mxu0 0.0
        %3716 = vmatpush1.msra.mxu0 0.0
        %3717 = vmatprep.subr.mxu0 0.0
        %3718 = vmatpush1.msra.mxu0 0.0
        %3719 = vmatprep.subr.mxu0 0.0
        %3720 = vmatpush1.msra.mxu0 0.0
        %3721 = vmatprep.subr.mxu0 0.0
        %3722 = vmatpush1.msra.mxu0 0.0
        %3723 = vmatprep.subr.mxu0 0.0
        %3724 = vmatpush1.msra.mxu0 0.0
        %3725 = vmatprep.subr.mxu0 0.0
        %3726 = vmatpush1.msra.mxu0 0.0
        %3727 = vmatprep.subr.mxu0 0.0
        %3728 = vmatpush1.msra.mxu0 0.0
        %3729 = vmatprep.subr.mxu0 0.0
        %3730 = vmatpush1.msra.mxu0 0.0
        %3731 = vmatprep.subr.mxu0 0.0
        %3732 = vmatpush1.msra.mxu0 0.0
        %3733 = vmatprep.subr.mxu0 0.0
        %3734 = vmatpush1.msra.mxu0 0.0
        %3735 = vmatprep.subr.mxu0 0.0
        %3736 = vmatpush1.msra.mxu0 0.0
        %3737 = vmatprep.mubr.f32.mxu0 0.0
        %3738 = vmatmul.mubr.f32.gmra.mrb[0].mxu0 %v1557
        %v3739 = vpop.f32.mrb[0].mxu0
        %v3740 = vadd.f32 0.0, %v3739
        %v3741 = vpop.f32.mrb[0].mxu0
        %3742 = vmatprep.mubr.f32.mxu0 0.0
        %3743 = vmatmul.mubr.f32.gmra.mrb[0].mxu0 %v1560
        %v3744 = vpop.f32.mrb[0].mxu0
        %v3745 = vadd.f32 0.0, %v3744
        %v3746 = vpop.f32.mrb[0].mxu0
        %3747 = vmatprep.mubr.f32.mxu0 0.0
        %3748 = vmatmul.mubr.f32.gmra.mrb[0].mxu0 %v1563
        %v3749 = vpop.f32.mrb[0].mxu0
        %v3750 = vadd.f32 0.0, %v3749
        %v3751 = vpop.f32.mrb[0].mxu0
        %3752 = vmatprep.mubr.f32.mxu0 0.0
        %3753 = vmatmul.mubr.f32.gmra.mrb[0].mxu0 %v1566
        %v3754 = vpop.f32.mrb[0].mxu0
        %v3755 = vadd.f32 0.0, %v3754
        %v3756 = vpop.f32.mrb[0].mxu0
        %3757 = vmatprep.mubr.f32.mxu0 0.0
        %3758 = vmatmul.mubr.f32.gmra.mrb[0].mxu0 %v1569
        %v3759 = vpop.f32.mrb[0].mxu0
        %v3760 = vadd.f32 0.0, %v3759
        %v3761 = vpop.f32.mrb[0].mxu0
        %3762 = vmatprep.mubr.f32.mxu0 0.0
        %3763 = vmatmul.mubr.f32.gmra.mrb[0].mxu0 %v1572
        %v3764 = vpop.f32.mrb[0].mxu0
        %v3765 = vadd.f32 0.0, %v3764
        %v3766 = vpop.f32.mrb[0].mxu0
        %3767 = vmatprep.mubr.f32.mxu0 0.0
        %3768 = vmatmul.mubr.f32.gmra.mrb[0].mxu0 %v1575
        %v3769 = vpop.f32.mrb[0].mxu0
        %v3770 = vadd.f32 0.0, %v3769
        %v3771 = vpop.f32.mrb[0].mxu0
        %3772 = vmatprep.mubr.f32.mxu0 0.0
        %3773 = vmatmul.mubr.f32.gmra.mrb[0].mxu0 %v1578
        %v3774 = vpop.f32.mrb[0].mxu0
        %v3775 = vadd.f32 0.0, %v3774
        %v3776 = vpop.f32.mrb[0].mxu0
        %3777 = vmatprep.mubr.f32.mxu0 0.0
        %3778 = vmatmul.mubr.f32.gmra.mrb[0].mxu0 %v1581
        %v3779 = vpop.f32.mrb[0].mxu0
        %v3780 = vadd.f32 0.0, %v3779
        %v3781 = vpop.f32.mrb[0].mxu0
        %3782 = vmatprep.mubr.f32.mxu0 0.0
        %3783 = vmatmul.mubr.f32.gmra.mrb[0].mxu0 %v1584
        %v3784 = vpop.f32.mrb[0].mxu0
        %v3785 = vadd.f32 0.0, %v3784
        %v3786 = vpop.f32.mrb[0].mxu0
        %3787 = vmatprep.mubr.f32.mxu0 0.0
        %3788 = vmatmul.mubr.f32.gmra.mrb[0].mxu0 %v1587
        %v3789 = vpop.f32.mrb[0].mxu0
        %v3790 = vadd.f32 0.0, %v3789
        %v3791 = vpop.f32.mrb[0].mxu0
        %3792 = vmatprep.mubr.f32.mxu0 0.0
        %3793 = vmatmul.mubr.f32.gmra.mrb[0].mxu0 %v1590
        %v3794 = vpop.f32.mrb[0].mxu0
        %v3795 = vadd.f32 0.0, %v3794
        %v3796 = vpop.f32.mrb[0].mxu0
        %3797 = vmatprep.mubr.f32.mxu0 0.0
        %3798 = vmatmul.mubr.f32.gmra.mrb[0].mxu0 %v1593
        %v3799 = vpop.f32.mrb[0].mxu0
        %v3800 = vadd.f32 0.0, %v3799
        %v3801 = vpop.f32.mrb[0].mxu0
        %3802 = vdwg.mxu0
        %v3804 = vsel %vm1390, %v3651, 0
        %v3807 = vsel %vm1390, %v3652, 0
        %v3810 = vsel %vm1390, %v3653, 0
        %v3813 = vsel %vm1390, %v3654, 0
        %v3816 = vsel %vm1390, %v3655, 0
        %v3819 = vsel %vm1390, %v3656, 0
        %v3822 = vsel %vm1390, %v3657, 0
        %v3825 = vsel %vm1390, %v3658, 0
        %v3828 = vsel %vm1390, %v3659, 0
        %v3831 = vsel %vm1390, %v3660, 0
        %v3834 = vsel %vm1390, %v3661, 0
        %v3837 = vsel %vm1390, %v3662, 0
        %v3840 = vsel %vm1390, %v3663, 0
        %v3843 = vsel %vm2280, %v3800, 0
        %3845 = vmatprep.subr.mxu0 0.0
        %3846 = vmatpush1.msra.mxu0 %v3740
        %3847 = vmatprep.subr.mxu0 0.0
        %3848 = vmatpush1.msra.mxu0 %v3745
        %3849 = vmatprep.subr.mxu0 0.0
        %3850 = vmatpush1.msra.mxu0 %v3750
        %3851 = vmatprep.subr.mxu0 0.0
        %3852 = vmatpush1.msra.mxu0 %v3755
        %3853 = vmatprep.subr.mxu0 0.0
        %3854 = vmatpush1.msra.mxu0 %v3760
        %3855 = vmatprep.subr.mxu0 0.0
        %3856 = vmatpush1.msra.mxu0 %v3765
        %3857 = vmatprep.subr.mxu0 0.0
        %3858 = vmatpush1.msra.mxu0 %v3770
        %3859 = vmatprep.subr.mxu0 0.0
        %3860 = vmatpush1.msra.mxu0 %v3775
        %3861 = vmatprep.subr.mxu0 0.0
        %3862 = vmatpush1.msra.mxu0 %v3780
        %3863 = vmatprep.subr.mxu0 0.0
        %3864 = vmatpush1.msra.mxu0 %v3785
        %3865 = vmatprep.subr.mxu0 0.0
        %3866 = vmatpush1.msra.mxu0 %v3790
        %3867 = vmatprep.subr.mxu0 0.0
        %3868 = vmatpush1.msra.mxu0 %v3795
        %3869 = vmatprep.subr.mxu0 0.0
        %3870 = vmatpush1.msra.mxu0 %v3843
        %3871 = vmatprep.subr.mxu0 0.0
        %3872 = vmatpush1.msra.mxu0 0.0
        %3873 = vmatprep.subr.mxu0 0.0
        %3874 = vmatpush1.msra.mxu0 0.0
        %3875 = vmatprep.subr.mxu0 0.0
        %3876 = vmatpush1.msra.mxu0 0.0
        %3877 = vmatprep.subr.mxu0 0.0
        %3878 = vmatpush1.msra.mxu0 0.0
        %3879 = vmatprep.subr.mxu0 0.0
        %3880 = vmatpush1.msra.mxu0 0.0
        %3881 = vmatprep.subr.mxu0 0.0
        %3882 = vmatpush1.msra.mxu0 0.0
        %3883 = vmatprep.subr.mxu0 0.0
        %3884 = vmatpush1.msra.mxu0 0.0
        %3885 = vmatprep.subr.mxu0 0.0
        %3886 = vmatpush1.msra.mxu0 0.0
        %3887 = vmatprep.subr.mxu0 0.0
        %3888 = vmatpush1.msra.mxu0 0.0
        %3889 = vmatprep.subr.mxu0 0.0
        %3890 = vmatpush1.msra.mxu0 0.0
        %3891 = vmatprep.subr.mxu0 0.0
        %3892 = vmatpush1.msra.mxu0 0.0
        %3893 = vmatprep.subr.mxu0 0.0
        %3894 = vmatpush1.msra.mxu0 0.0
        %3895 = vmatprep.subr.mxu0 0.0
        %3896 = vmatpush1.msra.mxu0 0.0
        %3897 = vmatprep.subr.mxu0 0.0
        %3898 = vmatpush1.msra.mxu0 0.0
        %3899 = vmatprep.subr.mxu0 0.0
        %3900 = vmatpush1.msra.mxu0 0.0
        %3901 = vmatprep.subr.mxu0 0.0
        %3902 = vmatpush1.msra.mxu0 0.0
        %3903 = vmatprep.subr.mxu0 0.0
        %3904 = vmatpush1.msra.mxu0 0.0
        %3905 = vmatprep.subr.mxu0 0.0
        %3906 = vmatpush1.msra.mxu0 0.0
        %3907 = vmatprep.subr.mxu0 0.0
        %3908 = vmatpush1.msra.mxu0 0.0
        %3909 = vmatprep.mubr.f32.mxu0 0.0
        %3910 = vmatmul.mubr.f32.gmra.mrb[0].mxu0 %v3804
        %v3911 = vpop.f32.mrb[0].mxu0
        %v3912 = vadd.f32 0.0, %v3911
        %v3913 = vpop.f32.mrb[0].mxu0
        %3914 = vmatprep.mubr.f32.mxu0 0.0
        %3915 = vmatmul.mubr.f32.gmra.mrb[0].mxu0 %v3807
        %v3916 = vpop.f32.mrb[0].mxu0
        %v3917 = vadd.f32 0.0, %v3916
        %v3918 = vpop.f32.mrb[0].mxu0
        %3919 = vmatprep.mubr.f32.mxu0 0.0
        %3920 = vmatmul.mubr.f32.gmra.mrb[0].mxu0 %v3810
        %v3921 = vpop.f32.mrb[0].mxu0
        %v3922 = vadd.f32 0.0, %v3921
        %v3923 = vpop.f32.mrb[0].mxu0
        %3924 = vmatprep.mubr.f32.mxu0 0.0
        %3925 = vmatmul.mubr.f32.gmra.mrb[0].mxu0 %v3813
        %v3926 = vpop.f32.mrb[0].mxu0
        %v3927 = vadd.f32 0.0, %v3926
        %v3928 = vpop.f32.mrb[0].mxu0
        %3929 = vmatprep.mubr.f32.mxu0 0.0
        %3930 = vmatmul.mubr.f32.gmra.mrb[0].mxu0 %v3816
        %v3931 = vpop.f32.mrb[0].mxu0
        %v3932 = vadd.f32 0.0, %v3931
        %v3933 = vpop.f32.mrb[0].mxu0
        %3934 = vmatprep.mubr.f32.mxu0 0.0
        %3935 = vmatmul.mubr.f32.gmra.mrb[0].mxu0 %v3819
        %v3936 = vpop.f32.mrb[0].mxu0
        %v3937 = vadd.f32 0.0, %v3936
        %v3938 = vpop.f32.mrb[0].mxu0
        %3939 = vmatprep.mubr.f32.mxu0 0.0
        %3940 = vmatmul.mubr.f32.gmra.mrb[0].mxu0 %v3822
        %v3941 = vpop.f32.mrb[0].mxu0
        %v3942 = vadd.f32 0.0, %v3941
        %v3943 = vpop.f32.mrb[0].mxu0
        %3944 = vmatprep.mubr.f32.mxu0 0.0
        %3945 = vmatmul.mubr.f32.gmra.mrb[0].mxu0 %v3825
        %v3946 = vpop.f32.mrb[0].mxu0
        %v3947 = vadd.f32 0.0, %v3946
        %v3948 = vpop.f32.mrb[0].mxu0
        %3949 = vmatprep.mubr.f32.mxu0 0.0
        %3950 = vmatmul.mubr.f32.gmra.mrb[0].mxu0 %v3828
        %v3951 = vpop.f32.mrb[0].mxu0
        %v3952 = vadd.f32 0.0, %v3951
        %v3953 = vpop.f32.mrb[0].mxu0
        %3954 = vmatprep.mubr.f32.mxu0 0.0
        %3955 = vmatmul.mubr.f32.gmra.mrb[0].mxu0 %v3831
        %v3956 = vpop.f32.mrb[0].mxu0
        %v3957 = vadd.f32 0.0, %v3956
        %v3958 = vpop.f32.mrb[0].mxu0
        %3959 = vmatprep.mubr.f32.mxu0 0.0
        %3960 = vmatmul.mubr.f32.gmra.mrb[0].mxu0 %v3834
        %v3961 = vpop.f32.mrb[0].mxu0
        %v3962 = vadd.f32 0.0, %v3961
        %v3963 = vpop.f32.mrb[0].mxu0
        %3964 = vmatprep.mubr.f32.mxu0 0.0
        %3965 = vmatmul.mubr.f32.gmra.mrb[0].mxu0 %v3837
        %v3966 = vpop.f32.mrb[0].mxu0
        %v3967 = vadd.f32 0.0, %v3966
        %v3968 = vpop.f32.mrb[0].mxu0
        %3969 = vmatprep.mubr.f32.mxu0 0.0
        %3970 = vmatmul.mubr.f32.gmra.mrb[0].mxu0 %v3840
        %v3971 = vpop.f32.mrb[0].mxu0
        %v3972 = vadd.f32 0.0, %v3971
        %v3973 = vpop.f32.mrb[0].mxu0
        %3974 = vdwg.mxu0
        %v3975 = vadd.f32 %v3274, %v3912
        %v3976 = vadd.f32 %v3275, %v3917
        %v3977 = vadd.f32 %v3276, %v3922
        %v3978 = vadd.f32 %v3277, %v3927
        %v3979 = vadd.f32 %v3278, %v3932
        %v3980 = vadd.f32 %v3279, %v3937
        %v3981 = vadd.f32 %v3280, %v3942
        %v3982 = vadd.f32 %v3281, %v3947
        %v3983 = vadd.f32 %v3282, %v3952
        %v3984 = vadd.f32 %v3283, %v3957
        %v3985 = vadd.f32 %v3284, %v3962
        %v3986 = vadd.f32 %v3285, %v3967
        %v3987 = vadd.f32 %v3286, %v3972
        %3988 = vrot.lane.b32.xlu0 %v1155, 96
        %v3989 = vpop.permute.xlu0 %3988
        %3990 = vrot.lane.b32.xlu0 %v1156, 96
        %v3991 = vpop.permute.xlu0 %3990
        %3992 = vrot.lane.b32.xlu0 %v1157, 96
        %v3993 = vpop.permute.xlu0 %3992
        %3994 = vrot.lane.b32.xlu0 %v1158, 96
        %v3995 = vpop.permute.xlu0 %3994
        %3996 = vrot.lane.b32.xlu0 %v1159, 96
        %v3997 = vpop.permute.xlu0 %3996
        %3998 = vrot.lane.b32.xlu0 %v1160, 96
        %v3999 = vpop.permute.xlu0 %3998
        %4000 = vrot.lane.b32.xlu0 %v1161, 96
        %v4001 = vpop.permute.xlu0 %4000
        %4002 = vrot.lane.b32.xlu0 %v1162, 96
        %v4003 = vpop.permute.xlu0 %4002
        %4004 = vrot.lane.b32.xlu0 %v1163, 96
        %v4005 = vpop.permute.xlu0 %4004
        %4006 = vrot.lane.b32.xlu0 %v1164, 96
        %v4007 = vpop.permute.xlu0 %4006
        %4008 = vrot.lane.b32.xlu0 %v1165, 96
        %v4009 = vpop.permute.xlu0 %4008
        %4010 = vrot.lane.b32.xlu0 %v1166, 96
        %v4011 = vpop.permute.xlu0 %4010
        %4012 = vrot.lane.b32.xlu0 %v1167, 96
        %v4013 = vpop.permute.xlu0 %4012
        %4014 = vrot.lane.b32.xlu0 %v1155, 32
        %v4015 = vpop.permute.xlu0 %4014
        %4016 = vrot.lane.b32.xlu0 %v1156, 32
        %v4017 = vpop.permute.xlu0 %4016
        %4018 = vrot.lane.b32.xlu0 %v1157, 32
        %v4019 = vpop.permute.xlu0 %4018
        %4020 = vrot.lane.b32.xlu0 %v1158, 32
        %v4021 = vpop.permute.xlu0 %4020
        %4022 = vrot.lane.b32.xlu0 %v1159, 32
        %v4023 = vpop.permute.xlu0 %4022
        %4024 = vrot.lane.b32.xlu0 %v1160, 32
        %v4025 = vpop.permute.xlu0 %4024
        %4026 = vrot.lane.b32.xlu0 %v1161, 32
        %v4027 = vpop.permute.xlu0 %4026
        %4028 = vrot.lane.b32.xlu0 %v1162, 32
        %v4029 = vpop.permute.xlu0 %4028
        %4030 = vrot.lane.b32.xlu0 %v1163, 32
        %v4031 = vpop.permute.xlu0 %4030
        %4032 = vrot.lane.b32.xlu0 %v1164, 32
        %v4033 = vpop.permute.xlu0 %4032
        %4034 = vrot.lane.b32.xlu0 %v1165, 32
        %v4035 = vpop.permute.xlu0 %4034
        %4036 = vrot.lane.b32.xlu0 %v1166, 32
        %v4037 = vpop.permute.xlu0 %4036
        %4038 = vrot.lane.b32.xlu0 %v1167, 32
        %v4039 = vpop.permute.xlu0 %4038
        %v4040 = vsel %vm1207, %v3989, 0
        %v4042 = vsel %vm1207, %v3991, 0
        %v4044 = vsel %vm1207, %v3993, 0
        %v4046 = vsel %vm1207, %v3995, 0
        %v4048 = vsel %vm1207, %v3997, 0
        %v4050 = vsel %vm1207, %v3999, 0
        %v4052 = vsel %vm1207, %v4001, 0
        %v4054 = vsel %vm1207, %v4003, 0
        %v4056 = vsel %vm1207, %v4005, 0
        %v4058 = vsel %vm1207, %v4007, 0
        %v4060 = vsel %vm1207, %v4009, 0
        %v4062 = vsel %vm1207, %v4011, 0
        %v4064 = vsel %vm1207, %v4013, 0
        %v4066 = vsel %vm1207, %v4015, 0
        %v4068 = vsel %vm1207, %v4017, 0
        %v4070 = vsel %vm1207, %v4019, 0
        %v4072 = vsel %vm1207, %v4021, 0
        %v4074 = vsel %vm1207, %v4023, 0
        %v4076 = vsel %vm1207, %v4025, 0
        %v4078 = vsel %vm1207, %v4027, 0
        %v4080 = vsel %vm1207, %v4029, 0
        %v4082 = vsel %vm1207, %v4031, 0
        %v4084 = vsel %vm1207, %v4033, 0
        %v4086 = vsel %vm1207, %v4035, 0
        %v4088 = vsel %vm1207, %v4037, 0
        %v4090 = vsel %vm1207, %v4039, 0
        %4092 = vmatprep.subr.mxu0 0.0
        %4093 = vmatpush1.xpose.msra.mxu0 %v4066
        %4094 = vmatprep.subr.mxu0 0.0
        %4095 = vmatpush1.xpose.msra.mxu0 %v4068
        %4096 = vmatprep.subr.mxu0 0.0
        %4097 = vmatpush1.xpose.msra.mxu0 %v4070
        %4098 = vmatprep.subr.mxu0 0.0
        %4099 = vmatpush1.xpose.msra.mxu0 %v4072
        %4100 = vmatprep.subr.mxu0 0.0
        %4101 = vmatpush1.xpose.msra.mxu0 %v4074
        %4102 = vmatprep.subr.mxu0 0.0
        %4103 = vmatpush1.xpose.msra.mxu0 %v4076
        %4104 = vmatprep.subr.mxu0 0.0
        %4105 = vmatpush1.xpose.msra.mxu0 %v4078
        %4106 = vmatprep.subr.mxu0 0.0
        %4107 = vmatpush1.xpose.msra.mxu0 %v4080
        %4108 = vmatprep.subr.mxu0 0.0
        %4109 = vmatpush1.xpose.msra.mxu0 %v4082
        %4110 = vmatprep.subr.mxu0 0.0
        %4111 = vmatpush1.xpose.msra.mxu0 %v4084
        %4112 = vmatprep.subr.mxu0 0.0
        %4113 = vmatpush1.xpose.msra.mxu0 %v4086
        %4114 = vmatprep.subr.mxu0 0.0
        %4115 = vmatpush1.xpose.msra.mxu0 %v4088
        %4116 = vmatprep.subr.mxu0 0.0
        %4117 = vmatpush1.xpose.msra.mxu0 %v4090
        %4118 = vmatprep.subr.mxu0 0.0
        %4119 = vmatpush1.xpose.msra.mxu0 0.0
        %4120 = vmatprep.subr.mxu0 0.0
        %4121 = vmatpush1.xpose.msra.mxu0 0.0
        %4122 = vmatprep.subr.mxu0 0.0
        %4123 = vmatpush1.xpose.msra.mxu0 0.0
        %4124 = vmatprep.subr.mxu0 0.0
        %4125 = vmatpush1.xpose.msra.mxu0 0.0
        %4126 = vmatprep.subr.mxu0 0.0
        %4127 = vmatpush1.xpose.msra.mxu0 0.0
        %4128 = vmatprep.subr.mxu0 0.0
        %4129 = vmatpush1.xpose.msra.mxu0 0.0
        %4130 = vmatprep.subr.mxu0 0.0
        %4131 = vmatpush1.xpose.msra.mxu0 0.0
        %4132 = vmatprep.subr.mxu0 0.0
        %4133 = vmatpush1.xpose.msra.mxu0 0.0
        %4134 = vmatprep.subr.mxu0 0.0
        %4135 = vmatpush1.xpose.msra.mxu0 0.0
        %4136 = vmatprep.subr.mxu0 0.0
        %4137 = vmatpush1.xpose.msra.mxu0 0.0
        %4138 = vmatprep.subr.mxu0 0.0
        %4139 = vmatpush1.xpose.msra.mxu0 0.0
        %4140 = vmatprep.subr.mxu0 0.0
        %4141 = vmatpush1.xpose.msra.mxu0 0.0
        %4142 = vmatprep.subr.mxu0 0.0
        %4143 = vmatpush1.xpose.msra.mxu0 0.0
        %4144 = vmatprep.subr.mxu0 0.0
        %4145 = vmatpush1.xpose.msra.mxu0 0.0
        %4146 = vmatprep.subr.mxu0 0.0
        %4147 = vmatpush1.xpose.msra.mxu0 0.0
        %4148 = vmatprep.subr.mxu0 0.0
        %4149 = vmatpush1.xpose.msra.mxu0 0.0
        %4150 = vmatprep.subr.mxu0 0.0
        %4151 = vmatpush1.xpose.msra.mxu0 0.0
        %4152 = vmatprep.subr.mxu0 0.0
        %4153 = vmatpush1.xpose.msra.mxu0 0.0
        %4154 = vmatprep.subr.mxu0 0.0
        %4155 = vmatpush1.xpose.msra.mxu0 0.0
        %4156 = vmatprep.mubr.f32.mxu0 0.0
        %4157 = vmatmul.mubr.f32.gmra.mrb[0].mxu0 %v4040
        %v4158 = vpop.f32.mrb[0].mxu0
        %v4159 = vadd.f32 0.0, %v4158
        %v4160 = vpop.f32.mrb[0].mxu0
        %4161 = vmatprep.mubr.f32.mxu0 0.0
        %4162 = vmatmul.mubr.f32.gmra.mrb[0].mxu0 %v4042
        %v4163 = vpop.f32.mrb[0].mxu0
        %v4164 = vadd.f32 0.0, %v4163
        %v4165 = vpop.f32.mrb[0].mxu0
        %4166 = vmatprep.mubr.f32.mxu0 0.0
        %4167 = vmatmul.mubr.f32.gmra.mrb[0].mxu0 %v4044
        %v4168 = vpop.f32.mrb[0].mxu0
        %v4169 = vadd.f32 0.0, %v4168
        %v4170 = vpop.f32.mrb[0].mxu0
        %4171 = vmatprep.mubr.f32.mxu0 0.0
        %4172 = vmatmul.mubr.f32.gmra.mrb[0].mxu0 %v4046
        %v4173 = vpop.f32.mrb[0].mxu0
        %v4174 = vadd.f32 0.0, %v4173
        %v4175 = vpop.f32.mrb[0].mxu0
        %4176 = vmatprep.mubr.f32.mxu0 0.0
        %4177 = vmatmul.mubr.f32.gmra.mrb[0].mxu0 %v4048
        %v4178 = vpop.f32.mrb[0].mxu0
        %v4179 = vadd.f32 0.0, %v4178
        %v4180 = vpop.f32.mrb[0].mxu0
        %4181 = vmatprep.mubr.f32.mxu0 0.0
        %4182 = vmatmul.mubr.f32.gmra.mrb[0].mxu0 %v4050
        %v4183 = vpop.f32.mrb[0].mxu0
        %v4184 = vadd.f32 0.0, %v4183
        %v4185 = vpop.f32.mrb[0].mxu0
        %4186 = vmatprep.mubr.f32.mxu0 0.0
        %4187 = vmatmul.mubr.f32.gmra.mrb[0].mxu0 %v4052
        %v4188 = vpop.f32.mrb[0].mxu0
        %v4189 = vadd.f32 0.0, %v4188
        %v4190 = vpop.f32.mrb[0].mxu0
        %4191 = vmatprep.mubr.f32.mxu0 0.0
        %4192 = vmatmul.mubr.f32.gmra.mrb[0].mxu0 %v4054
        %v4193 = vpop.f32.mrb[0].mxu0
        %v4194 = vadd.f32 0.0, %v4193
        %v4195 = vpop.f32.mrb[0].mxu0
        %4196 = vmatprep.mubr.f32.mxu0 0.0
        %4197 = vmatmul.mubr.f32.gmra.mrb[0].mxu0 %v4056
        %v4198 = vpop.f32.mrb[0].mxu0
        %v4199 = vadd.f32 0.0, %v4198
        %v4200 = vpop.f32.mrb[0].mxu0
        %4201 = vmatprep.mubr.f32.mxu0 0.0
        %4202 = vmatmul.mubr.f32.gmra.mrb[0].mxu0 %v4058
        %v4203 = vpop.f32.mrb[0].mxu0
        %v4204 = vadd.f32 0.0, %v4203
        %v4205 = vpop.f32.mrb[0].mxu0
        %4206 = vmatprep.mubr.f32.mxu0 0.0
        %4207 = vmatmul.mubr.f32.gmra.mrb[0].mxu0 %v4060
        %v4208 = vpop.f32.mrb[0].mxu0
        %v4209 = vadd.f32 0.0, %v4208
        %v4210 = vpop.f32.mrb[0].mxu0
        %4211 = vmatprep.mubr.f32.mxu0 0.0
        %4212 = vmatmul.mubr.f32.gmra.mrb[0].mxu0 %v4062
        %v4213 = vpop.f32.mrb[0].mxu0
        %v4214 = vadd.f32 0.0, %v4213
        %v4215 = vpop.f32.mrb[0].mxu0
        %4216 = vmatprep.mubr.f32.mxu0 0.0
        %4217 = vmatmul.mubr.f32.gmra.mrb[0].mxu0 %v4064
        %v4218 = vpop.f32.mrb[0].mxu0
        %v4219 = vadd.f32 0.0, %v4218
        %v4220 = vpop.f32.mrb[0].mxu0
        %4221 = vdwg.mxu0
        %v4222 = vsel %vm1390, %v4159, -inf
        %4223 = vmax.xlane.f32.xlu0 %v4222
        %v4224 = vpop.xlane.xlu0 %4223
        %v4225 = vsel %vm1390, %v4164, -inf
        %4226 = vmax.xlane.f32.xlu0 %v4225
        %v4227 = vpop.xlane.xlu0 %4226
        %v4228 = vsel %vm1390, %v4169, -inf
        %4229 = vmax.xlane.f32.xlu0 %v4228
        %v4230 = vpop.xlane.xlu0 %4229
        %v4231 = vsel %vm1390, %v4174, -inf
        %4232 = vmax.xlane.f32.xlu0 %v4231
        %v4233 = vpop.xlane.xlu0 %4232
        %v4234 = vsel %vm1390, %v4179, -inf
        %4235 = vmax.xlane.f32.xlu0 %v4234
        %v4236 = vpop.xlane.xlu0 %4235
        %v4237 = vsel %vm1390, %v4184, -inf
        %4238 = vmax.xlane.f32.xlu0 %v4237
        %v4239 = vpop.xlane.xlu0 %4238
        %v4240 = vsel %vm1390, %v4189, -inf
        %4241 = vmax.xlane.f32.xlu0 %v4240
        %v4242 = vpop.xlane.xlu0 %4241
        %v4243 = vsel %vm1390, %v4194, -inf
        %4244 = vmax.xlane.f32.xlu0 %v4243
        %v4245 = vpop.xlane.xlu0 %4244
        %v4246 = vsel %vm1390, %v4199, -inf
        %4247 = vmax.xlane.f32.xlu0 %v4246
        %v4248 = vpop.xlane.xlu0 %4247
        %v4249 = vsel %vm1390, %v4204, -inf
        %4250 = vmax.xlane.f32.xlu0 %v4249
        %v4251 = vpop.xlane.xlu0 %4250
        %v4252 = vsel %vm1390, %v4209, -inf
        %4253 = vmax.xlane.f32.xlu0 %v4252
        %v4254 = vpop.xlane.xlu0 %4253
        %v4255 = vsel %vm1390, %v4214, -inf
        %4256 = vmax.xlane.f32.xlu0 %v4255
        %v4257 = vpop.xlane.xlu0 %4256
        %v4258 = vsel %vm1427, %v4219, -inf
        %4259 = vmax.xlane.f32.xlu0 %v4258
        %v4260 = vpop.xlane.xlu0 %4259
        %v4261 = vsub.f32 %v4159, %v4224
        %v4262 = vsub.f32 %v4164, %v4227
        %v4263 = vsub.f32 %v4169, %v4230
        %v4264 = vsub.f32 %v4174, %v4233
        %v4265 = vsub.f32 %v4179, %v4236
        %v4266 = vsub.f32 %v4184, %v4239
        %v4267 = vsub.f32 %v4189, %v4242
        %v4268 = vsub.f32 %v4194, %v4245
        %v4269 = vsub.f32 %v4199, %v4248
        %v4270 = vsub.f32 %v4204, %v4251
        %v4271 = vsub.f32 %v4209, %v4254
        %v4272 = vsub.f32 %v4214, %v4257
        %v4273 = vsub.f32 %v4219, %v4260
        %v4274 = vmul.f32 %v4261, 1.442695
        %v4275 = vpow.pop %v4274
        %v4276 = vmul.f32 %v4262, 1.442695
        %v4277 = vpow.pop %v4276
        %v4278 = vmul.f32 %v4263, 1.442695
        %v4279 = vpow.pop %v4278
        %v4280 = vmul.f32 %v4264, 1.442695
        %v4281 = vpow.pop %v4280
        %v4282 = vmul.f32 %v4265, 1.442695
        %v4283 = vpow.pop %v4282
        %v4284 = vmul.f32 %v4266, 1.442695
        %v4285 = vpow.pop %v4284
        %v4286 = vmul.f32 %v4267, 1.442695
        %v4287 = vpow.pop %v4286
        %v4288 = vmul.f32 %v4268, 1.442695
        %v4289 = vpow.pop %v4288
        %v4290 = vmul.f32 %v4269, 1.442695
        %v4291 = vpow.pop %v4290
        %v4292 = vmul.f32 %v4270, 1.442695
        %v4293 = vpow.pop %v4292
        %v4294 = vmul.f32 %v4271, 1.442695
        %v4295 = vpow.pop %v4294
        %v4296 = vmul.f32 %v4272, 1.442695
        %v4297 = vpow.pop %v4296
        %v4298 = vmul.f32 %v4273, 1.442695
        %v4299 = vpow.pop %v4298
        %v4300 = vsel %vm1390, %v4275, 0.0
        %4301 = vadd.xlane.f32.xlu0 %v4300
        %v4302 = vpop.xlane.xlu0 %4301
        %v4303 = vsel %vm1390, %v4277, 0.0
        %4304 = vadd.xlane.f32.xlu0 %v4303
        %v4305 = vpop.xlane.xlu0 %4304
        %v4306 = vsel %vm1390, %v4279, 0.0
        %4307 = vadd.xlane.f32.xlu0 %v4306
        %v4308 = vpop.xlane.xlu0 %4307
        %v4309 = vsel %vm1390, %v4281, 0.0
        %4310 = vadd.xlane.f32.xlu0 %v4309
        %v4311 = vpop.xlane.xlu0 %4310
        %v4312 = vsel %vm1390, %v4283, 0.0
        %4313 = vadd.xlane.f32.xlu0 %v4312
        %v4314 = vpop.xlane.xlu0 %4313
        %v4315 = vsel %vm1390, %v4285, 0.0
        %4316 = vadd.xlane.f32.xlu0 %v4315
        %v4317 = vpop.xlane.xlu0 %4316
        %v4318 = vsel %vm1390, %v4287, 0.0
        %4319 = vadd.xlane.f32.xlu0 %v4318
        %v4320 = vpop.xlane.xlu0 %4319
        %v4321 = vsel %vm1390, %v4289, 0.0
        %4322 = vadd.xlane.f32.xlu0 %v4321
        %v4323 = vpop.xlane.xlu0 %4322
        %v4324 = vsel %vm1390, %v4291, 0.0
        %4325 = vadd.xlane.f32.xlu0 %v4324
        %v4326 = vpop.xlane.xlu0 %4325
        %v4327 = vsel %vm1390, %v4293, 0.0
        %4328 = vadd.xlane.f32.xlu0 %v4327
        %v4329 = vpop.xlane.xlu0 %4328
        %v4330 = vsel %vm1390, %v4295, 0.0
        %4331 = vadd.xlane.f32.xlu0 %v4330
        %v4332 = vpop.xlane.xlu0 %4331
        %v4333 = vsel %vm1390, %v4297, 0.0
        %4334 = vadd.xlane.f32.xlu0 %v4333
        %v4335 = vpop.xlane.xlu0 %4334
        %v4336 = vsel %vm1427, %v4299, 0.0
        %4337 = vadd.xlane.f32.xlu0 %v4336
        %v4338 = vpop.xlane.xlu0 %4337
        %v4339 = vrcp.pop %v4302
        %v4340 = vrcp.pop %v4305
        %v4341 = vrcp.pop %v4308
        %v4342 = vrcp.pop %v4311
        %v4343 = vrcp.pop %v4314
        %v4344 = vrcp.pop %v4317
        %v4345 = vrcp.pop %v4320
        %v4346 = vrcp.pop %v4323
        %v4347 = vrcp.pop %v4326
        %v4348 = vrcp.pop %v4329
        %v4349 = vrcp.pop %v4332
        %v4350 = vrcp.pop %v4335
        %v4351 = vrcp.pop %v4338
        %v4352 = vmul.f32 %v4275, %v4339
        %v4353 = vmul.f32 %v4277, %v4340
        %v4354 = vmul.f32 %v4279, %v4341
        %v4355 = vmul.f32 %v4281, %v4342
        %v4356 = vmul.f32 %v4283, %v4343
        %v4357 = vmul.f32 %v4285, %v4344
        %v4358 = vmul.f32 %v4287, %v4345
        %v4359 = vmul.f32 %v4289, %v4346
        %v4360 = vmul.f32 %v4291, %v4347
        %v4361 = vmul.f32 %v4293, %v4348
        %v4362 = vmul.f32 %v4295, %v4349
        %v4363 = vmul.f32 %v4297, %v4350
        %v4364 = vmul.f32 %v4299, %v4351
        %s4365 = scalar_lea.vmem [#allocation12], 256
        %v4366 = vld [vmem:[%s4365] sm:$0xff]
        %v4367 = vld [vmem:[%s4365 + $0x8] sm:$0xff]
        %v4368 = vld [vmem:[%s4365 + $0x10] sm:$0xff]
        %v4369 = vld [vmem:[%s4365 + $0x18] sm:$0xff]
        %v4370 = vld [vmem:[%s4365 + $0x20] sm:$0xff]
        %v4371 = vld [vmem:[%s4365 + $0x28] sm:$0xff]
        %v4372 = vld [vmem:[%s4365 + $0x30] sm:$0xff]
        %v4373 = vld [vmem:[%s4365 + $0x38] sm:$0xff]
        %4374 = vmatprep.subr.mxu0 0.0
        %4375 = vmatpush1.msra.mxu0 %v4366
        %4376 = vmatprep.subr.mxu0 0.0
        %4377 = vmatpush1.msra.mxu0 %v4367
        %4378 = vmatprep.subr.mxu0 0.0
        %4379 = vmatpush1.msra.mxu0 %v4368
        %4380 = vmatprep.subr.mxu0 0.0
        %4381 = vmatpush1.msra.mxu0 %v4369
        %4382 = vmatprep.subr.mxu0 0.0
        %4383 = vmatpush1.msra.mxu0 %v4370
        %4384 = vmatprep.subr.mxu0 0.0
        %4385 = vmatpush1.msra.mxu0 %v4371
        %4386 = vmatprep.subr.mxu0 0.0
        %4387 = vmatpush1.msra.mxu0 %v4372
        %4388 = vmatprep.subr.mxu0 0.0
        %4389 = vmatpush1.msra.mxu0 %v4373
        %4390 = vmatprep.subr.mxu0 0.0
        %4391 = vmatpush1.msra.mxu0 0.0
        %4392 = vmatprep.subr.mxu0 0.0
        %4393 = vmatpush1.msra.mxu0 0.0
        %4394 = vmatprep.subr.mxu0 0.0
        %4395 = vmatpush1.msra.mxu0 0.0
        %4396 = vmatprep.subr.mxu0 0.0
        %4397 = vmatpush1.msra.mxu0 0.0
        %4398 = vmatprep.subr.mxu0 0.0
        %4399 = vmatpush1.msra.mxu0 0.0
        %4400 = vmatprep.subr.mxu0 0.0
        %4401 = vmatpush1.msra.mxu0 0.0
        %4402 = vmatprep.subr.mxu0 0.0
        %4403 = vmatpush1.msra.mxu0 0.0
        %4404 = vmatprep.subr.mxu0 0.0
        %4405 = vmatpush1.msra.mxu0 0.0
        %4406 = vmatprep.subr.mxu0 0.0
        %4407 = vmatpush1.msra.mxu0 0.0
        %4408 = vmatprep.subr.mxu0 0.0
        %4409 = vmatpush1.msra.mxu0 0.0
        %4410 = vmatprep.subr.mxu0 0.0
        %4411 = vmatpush1.msra.mxu0 0.0
        %4412 = vmatprep.subr.mxu0 0.0
        %4413 = vmatpush1.msra.mxu0 0.0
        %4414 = vmatprep.subr.mxu0 0.0
        %4415 = vmatpush1.msra.mxu0 0.0
        %4416 = vmatprep.subr.mxu0 0.0
        %4417 = vmatpush1.msra.mxu0 0.0
        %4418 = vmatprep.subr.mxu0 0.0
        %4419 = vmatpush1.msra.mxu0 0.0
        %4420 = vmatprep.subr.mxu0 0.0
        %4421 = vmatpush1.msra.mxu0 0.0
        %4422 = vmatprep.subr.mxu0 0.0
        %4423 = vmatpush1.msra.mxu0 0.0
        %4424 = vmatprep.subr.mxu0 0.0
        %4425 = vmatpush1.msra.mxu0 0.0
        %4426 = vmatprep.subr.mxu0 0.0
        %4427 = vmatpush1.msra.mxu0 0.0
        %4428 = vmatprep.subr.mxu0 0.0
        %4429 = vmatpush1.msra.mxu0 0.0
        %4430 = vmatprep.subr.mxu0 0.0
        %4431 = vmatpush1.msra.mxu0 0.0
        %4432 = vmatprep.subr.mxu0 0.0
        %4433 = vmatpush1.msra.mxu0 0.0
        %4434 = vmatprep.subr.mxu0 0.0
        %4435 = vmatpush1.msra.mxu0 0.0
        %4436 = vmatprep.subr.mxu0 0.0
        %4437 = vmatpush1.msra.mxu0 0.0
        %4438 = vmatprep.mubr.f32.mxu0 0.0
        %4439 = vmatmul.mubr.f32.gmra.mrb[0].mxu0 %v1557
        %v4440 = vpop.f32.mrb[0].mxu0
        %v4441 = vadd.f32 0.0, %v4440
        %v4442 = vpop.f32.mrb[0].mxu0
        %4443 = vmatprep.mubr.f32.mxu0 0.0
        %4444 = vmatmul.mubr.f32.gmra.mrb[0].mxu0 %v1560
        %v4445 = vpop.f32.mrb[0].mxu0
        %v4446 = vadd.f32 0.0, %v4445
        %v4447 = vpop.f32.mrb[0].mxu0
        %4448 = vmatprep.mubr.f32.mxu0 0.0
        %4449 = vmatmul.mubr.f32.gmra.mrb[0].mxu0 %v1563
        %v4450 = vpop.f32.mrb[0].mxu0
        %v4451 = vadd.f32 0.0, %v4450
        %v4452 = vpop.f32.mrb[0].mxu0
        %4453 = vmatprep.mubr.f32.mxu0 0.0
        %4454 = vmatmul.mubr.f32.gmra.mrb[0].mxu0 %v1566
        %v4455 = vpop.f32.mrb[0].mxu0
        %v4456 = vadd.f32 0.0, %v4455
        %v4457 = vpop.f32.mrb[0].mxu0
        %4458 = vmatprep.mubr.f32.mxu0 0.0
        %4459 = vmatmul.mubr.f32.gmra.mrb[0].mxu0 %v1569
        %v4460 = vpop.f32.mrb[0].mxu0
        %v4461 = vadd.f32 0.0, %v4460
        %v4462 = vpop.f32.mrb[0].mxu0
        %4463 = vmatprep.mubr.f32.mxu0 0.0
        %4464 = vmatmul.mubr.f32.gmra.mrb[0].mxu0 %v1572
        %v4465 = vpop.f32.mrb[0].mxu0
        %v4466 = vadd.f32 0.0, %v4465
        %v4467 = vpop.f32.mrb[0].mxu0
        %4468 = vmatprep.mubr.f32.mxu0 0.0
        %4469 = vmatmul.mubr.f32.gmra.mrb[0].mxu0 %v1575
        %v4470 = vpop.f32.mrb[0].mxu0
        %v4471 = vadd.f32 0.0, %v4470
        %v4472 = vpop.f32.mrb[0].mxu0
        %4473 = vmatprep.mubr.f32.mxu0 0.0
        %4474 = vmatmul.mubr.f32.gmra.mrb[0].mxu0 %v1578
        %v4475 = vpop.f32.mrb[0].mxu0
        %v4476 = vadd.f32 0.0, %v4475
        %v4477 = vpop.f32.mrb[0].mxu0
        %4478 = vmatprep.mubr.f32.mxu0 0.0
        %4479 = vmatmul.mubr.f32.gmra.mrb[0].mxu0 %v1581
        %v4480 = vpop.f32.mrb[0].mxu0
        %v4481 = vadd.f32 0.0, %v4480
        %v4482 = vpop.f32.mrb[0].mxu0
        %4483 = vmatprep.mubr.f32.mxu0 0.0
        %4484 = vmatmul.mubr.f32.gmra.mrb[0].mxu0 %v1584
        %v4485 = vpop.f32.mrb[0].mxu0
        %v4486 = vadd.f32 0.0, %v4485
        %v4487 = vpop.f32.mrb[0].mxu0
        %4488 = vmatprep.mubr.f32.mxu0 0.0
        %4489 = vmatmul.mubr.f32.gmra.mrb[0].mxu0 %v1587
        %v4490 = vpop.f32.mrb[0].mxu0
        %v4491 = vadd.f32 0.0, %v4490
        %v4492 = vpop.f32.mrb[0].mxu0
        %4493 = vmatprep.mubr.f32.mxu0 0.0
        %4494 = vmatmul.mubr.f32.gmra.mrb[0].mxu0 %v1590
        %v4495 = vpop.f32.mrb[0].mxu0
        %v4496 = vadd.f32 0.0, %v4495
        %v4497 = vpop.f32.mrb[0].mxu0
        %4498 = vmatprep.mubr.f32.mxu0 0.0
        %4499 = vmatmul.mubr.f32.gmra.mrb[0].mxu0 %v1593
        %v4500 = vpop.f32.mrb[0].mxu0
        %v4501 = vadd.f32 0.0, %v4500
        %v4502 = vpop.f32.mrb[0].mxu0
        %4503 = vdwg.mxu0
        %v4505 = vsel %vm1390, %v4352, 0
        %v4508 = vsel %vm1390, %v4353, 0
        %v4511 = vsel %vm1390, %v4354, 0
        %v4514 = vsel %vm1390, %v4355, 0
        %v4517 = vsel %vm1390, %v4356, 0
        %v4520 = vsel %vm1390, %v4357, 0
        %v4523 = vsel %vm1390, %v4358, 0
        %v4526 = vsel %vm1390, %v4359, 0
        %v4529 = vsel %vm1390, %v4360, 0
        %v4532 = vsel %vm1390, %v4361, 0
        %v4535 = vsel %vm1390, %v4362, 0
        %v4538 = vsel %vm1390, %v4363, 0
        %v4541 = vsel %vm1390, %v4364, 0
        %v4544 = vsel %vm2280, %v4501, 0
        %4546 = vmatprep.subr.mxu0 0.0
        %4547 = vmatpush1.msra.mxu0 %v4441
        %4548 = vmatprep.subr.mxu0 0.0
        %4549 = vmatpush1.msra.mxu0 %v4446
        %4550 = vmatprep.subr.mxu0 0.0
        %4551 = vmatpush1.msra.mxu0 %v4451
        %4552 = vmatprep.subr.mxu0 0.0
        %4553 = vmatpush1.msra.mxu0 %v4456
        %4554 = vmatprep.subr.mxu0 0.0
        %4555 = vmatpush1.msra.mxu0 %v4461
        %4556 = vmatprep.subr.mxu0 0.0
        %4557 = vmatpush1.msra.mxu0 %v4466
        %4558 = vmatprep.subr.mxu0 0.0
        %4559 = vmatpush1.msra.mxu0 %v4471
        %4560 = vmatprep.subr.mxu0 0.0
        %4561 = vmatpush1.msra.mxu0 %v4476
        %4562 = vmatprep.subr.mxu0 0.0
        %4563 = vmatpush1.msra.mxu0 %v4481
        %4564 = vmatprep.subr.mxu0 0.0
        %4565 = vmatpush1.msra.mxu0 %v4486
        %4566 = vmatprep.subr.mxu0 0.0
        %4567 = vmatpush1.msra.mxu0 %v4491
        %4568 = vmatprep.subr.mxu0 0.0
        %4569 = vmatpush1.msra.mxu0 %v4496
        %4570 = vmatprep.subr.mxu0 0.0
        %4571 = vmatpush1.msra.mxu0 %v4544
        %4572 = vmatprep.subr.mxu0 0.0
        %4573 = vmatpush1.msra.mxu0 0.0
        %4574 = vmatprep.subr.mxu0 0.0
        %4575 = vmatpush1.msra.mxu0 0.0
        %4576 = vmatprep.subr.mxu0 0.0
        %4577 = vmatpush1.msra.mxu0 0.0
        %4578 = vmatprep.subr.mxu0 0.0
        %4579 = vmatpush1.msra.mxu0 0.0
        %4580 = vmatprep.subr.mxu0 0.0
        %4581 = vmatpush1.msra.mxu0 0.0
        %4582 = vmatprep.subr.mxu0 0.0
        %4583 = vmatpush1.msra.mxu0 0.0
        %4584 = vmatprep.subr.mxu0 0.0
        %4585 = vmatpush1.msra.mxu0 0.0
        %4586 = vmatprep.subr.mxu0 0.0
        %4587 = vmatpush1.msra.mxu0 0.0
        %4588 = vmatprep.subr.mxu0 0.0
        %4589 = vmatpush1.msra.mxu0 0.0
        %4590 = vmatprep.subr.mxu0 0.0
        %4591 = vmatpush1.msra.mxu0 0.0
        %4592 = vmatprep.subr.mxu0 0.0
        %4593 = vmatpush1.msra.mxu0 0.0
        %4594 = vmatprep.subr.mxu0 0.0
        %4595 = vmatpush1.msra.mxu0 0.0
        %4596 = vmatprep.subr.mxu0 0.0
        %4597 = vmatpush1.msra.mxu0 0.0
        %4598 = vmatprep.subr.mxu0 0.0
        %4599 = vmatpush1.msra.mxu0 0.0
        %4600 = vmatprep.subr.mxu0 0.0
        %4601 = vmatpush1.msra.mxu0 0.0
        %4602 = vmatprep.subr.mxu0 0.0
        %4603 = vmatpush1.msra.mxu0 0.0
        %4604 = vmatprep.subr.mxu0 0.0
        %4605 = vmatpush1.msra.mxu0 0.0
        %4606 = vmatprep.subr.mxu0 0.0
        %4607 = vmatpush1.msra.mxu0 0.0
        %4608 = vmatprep.subr.mxu0 0.0
        %4609 = vmatpush1.msra.mxu0 0.0
        %4610 = vmatprep.mubr.f32.mxu0 0.0
        %4611 = vmatmul.mubr.f32.gmra.mrb[0].mxu0 %v4505
        %v4612 = vpop.f32.mrb[0].mxu0
        %v4613 = vadd.f32 0.0, %v4612
        %v4614 = vpop.f32.mrb[0].mxu0
        %4615 = vmatprep.mubr.f32.mxu0 0.0
        %4616 = vmatmul.mubr.f32.gmra.mrb[0].mxu0 %v4508
        %v4617 = vpop.f32.mrb[0].mxu0
        %v4618 = vadd.f32 0.0, %v4617
        %v4619 = vpop.f32.mrb[0].mxu0
        %4620 = vmatprep.mubr.f32.mxu0 0.0
        %4621 = vmatmul.mubr.f32.gmra.mrb[0].mxu0 %v4511
        %v4622 = vpop.f32.mrb[0].mxu0
        %v4623 = vadd.f32 0.0, %v4622
        %v4624 = vpop.f32.mrb[0].mxu0
        %4625 = vmatprep.mubr.f32.mxu0 0.0
        %4626 = vmatmul.mubr.f32.gmra.mrb[0].mxu0 %v4514
        %v4627 = vpop.f32.mrb[0].mxu0
        %v4628 = vadd.f32 0.0, %v4627
        %v4629 = vpop.f32.mrb[0].mxu0
        %4630 = vmatprep.mubr.f32.mxu0 0.0
        %4631 = vmatmul.mubr.f32.gmra.mrb[0].mxu0 %v4517
        %v4632 = vpop.f32.mrb[0].mxu0
        %v4633 = vadd.f32 0.0, %v4632
        %v4634 = vpop.f32.mrb[0].mxu0
        %4635 = vmatprep.mubr.f32.mxu0 0.0
        %4636 = vmatmul.mubr.f32.gmra.mrb[0].mxu0 %v4520
        %v4637 = vpop.f32.mrb[0].mxu0
        %v4638 = vadd.f32 0.0, %v4637
        %v4639 = vpop.f32.mrb[0].mxu0
        %4640 = vmatprep.mubr.f32.mxu0 0.0
        %4641 = vmatmul.mubr.f32.gmra.mrb[0].mxu0 %v4523
        %v4642 = vpop.f32.mrb[0].mxu0
        %v4643 = vadd.f32 0.0, %v4642
        %v4644 = vpop.f32.mrb[0].mxu0
        %4645 = vmatprep.mubr.f32.mxu0 0.0
        %4646 = vmatmul.mubr.f32.gmra.mrb[0].mxu0 %v4526
        %v4647 = vpop.f32.mrb[0].mxu0
        %v4648 = vadd.f32 0.0, %v4647
        %v4649 = vpop.f32.mrb[0].mxu0
        %4650 = vmatprep.mubr.f32.mxu0 0.0
        %4651 = vmatmul.mubr.f32.gmra.mrb[0].mxu0 %v4529
        %v4652 = vpop.f32.mrb[0].mxu0
        %v4653 = vadd.f32 0.0, %v4652
        %v4654 = vpop.f32.mrb[0].mxu0
        %4655 = vmatprep.mubr.f32.mxu0 0.0
        %4656 = vmatmul.mubr.f32.gmra.mrb[0].mxu0 %v4532
        %v4657 = vpop.f32.mrb[0].mxu0
        %v4658 = vadd.f32 0.0, %v4657
        %v4659 = vpop.f32.mrb[0].mxu0
        %4660 = vmatprep.mubr.f32.mxu0 0.0
        %4661 = vmatmul.mubr.f32.gmra.mrb[0].mxu0 %v4535
        %v4662 = vpop.f32.mrb[0].mxu0
        %v4663 = vadd.f32 0.0, %v4662
        %v4664 = vpop.f32.mrb[0].mxu0
        %4665 = vmatprep.mubr.f32.mxu0 0.0
        %4666 = vmatmul.mubr.f32.gmra.mrb[0].mxu0 %v4538
        %v4667 = vpop.f32.mrb[0].mxu0
        %v4668 = vadd.f32 0.0, %v4667
        %v4669 = vpop.f32.mrb[0].mxu0
        %4670 = vmatprep.mubr.f32.mxu0 0.0
        %4671 = vmatmul.mubr.f32.gmra.mrb[0].mxu0 %v4541
        %v4672 = vpop.f32.mrb[0].mxu0
        %v4673 = vadd.f32 0.0, %v4672
        %v4674 = vpop.f32.mrb[0].mxu0
        %4675 = vdwg.mxu0
        %v4676 = vadd.f32 %v3975, %v4613
        %v4677 = vadd.f32 %v3976, %v4618
        %v4678 = vadd.f32 %v3977, %v4623
        %v4679 = vadd.f32 %v3978, %v4628
        %v4680 = vadd.f32 %v3979, %v4633
        %v4681 = vadd.f32 %v3980, %v4638
        %v4682 = vadd.f32 %v3981, %v4643
        %v4683 = vadd.f32 %v3982, %v4648
        %v4684 = vadd.f32 %v3983, %v4653
        %v4685 = vadd.f32 %v3984, %v4658
        %v4686 = vadd.f32 %v3985, %v4663
        %v4687 = vadd.f32 %v3986, %v4668
        %v4688 = vadd.f32 %v3987, %v4673
        %4689 = vrot.lane.b32.xlu0 %v1155, 88
        %v4690 = vpop.permute.xlu0 %4689
        %4691 = vrot.lane.b32.xlu0 %v1156, 88
        %v4692 = vpop.permute.xlu0 %4691
        %4693 = vrot.lane.b32.xlu0 %v1157, 88
        %v4694 = vpop.permute.xlu0 %4693
        %4695 = vrot.lane.b32.xlu0 %v1158, 88
        %v4696 = vpop.permute.xlu0 %4695
        %4697 = vrot.lane.b32.xlu0 %v1159, 88
        %v4698 = vpop.permute.xlu0 %4697
        %4699 = vrot.lane.b32.xlu0 %v1160, 88
        %v4700 = vpop.permute.xlu0 %4699
        %4701 = vrot.lane.b32.xlu0 %v1161, 88
        %v4702 = vpop.permute.xlu0 %4701
        %4703 = vrot.lane.b32.xlu0 %v1162, 88
        %v4704 = vpop.permute.xlu0 %4703
        %4705 = vrot.lane.b32.xlu0 %v1163, 88
        %v4706 = vpop.permute.xlu0 %4705
        %4707 = vrot.lane.b32.xlu0 %v1164, 88
        %v4708 = vpop.permute.xlu0 %4707
        %4709 = vrot.lane.b32.xlu0 %v1165, 88
        %v4710 = vpop.permute.xlu0 %4709
        %4711 = vrot.lane.b32.xlu0 %v1166, 88
        %v4712 = vpop.permute.xlu0 %4711
        %4713 = vrot.lane.b32.xlu0 %v1167, 88
        %v4714 = vpop.permute.xlu0 %4713
        %4715 = vrot.lane.b32.xlu0 %v1155, 24
        %v4716 = vpop.permute.xlu0 %4715
        %4717 = vrot.lane.b32.xlu0 %v1156, 24
        %v4718 = vpop.permute.xlu0 %4717
        %4719 = vrot.lane.b32.xlu0 %v1157, 24
        %v4720 = vpop.permute.xlu0 %4719
        %4721 = vrot.lane.b32.xlu0 %v1158, 24
        %v4722 = vpop.permute.xlu0 %4721
        %4723 = vrot.lane.b32.xlu0 %v1159, 24
        %v4724 = vpop.permute.xlu0 %4723
        %4725 = vrot.lane.b32.xlu0 %v1160, 24
        %v4726 = vpop.permute.xlu0 %4725
        %4727 = vrot.lane.b32.xlu0 %v1161, 24
        %v4728 = vpop.permute.xlu0 %4727
        %4729 = vrot.lane.b32.xlu0 %v1162, 24
        %v4730 = vpop.permute.xlu0 %4729
        %4731 = vrot.lane.b32.xlu0 %v1163, 24
        %v4732 = vpop.permute.xlu0 %4731
        %4733 = vrot.lane.b32.xlu0 %v1164, 24
        %v4734 = vpop.permute.xlu0 %4733
        %4735 = vrot.lane.b32.xlu0 %v1165, 24
        %v4736 = vpop.permute.xlu0 %4735
        %4737 = vrot.lane.b32.xlu0 %v1166, 24
        %v4738 = vpop.permute.xlu0 %4737
        %4739 = vrot.lane.b32.xlu0 %v1167, 24
        %v4740 = vpop.permute.xlu0 %4739
        %v4741 = vsel %vm1207, %v4690, 0
        %v4743 = vsel %vm1207, %v4692, 0
        %v4745 = vsel %vm1207, %v4694, 0
        %v4747 = vsel %vm1207, %v4696, 0
        %v4749 = vsel %vm1207, %v4698, 0
        %v4751 = vsel %vm1207, %v4700, 0
        %v4753 = vsel %vm1207, %v4702, 0
        %v4755 = vsel %vm1207, %v4704, 0
        %v4757 = vsel %vm1207, %v4706, 0
        %v4759 = vsel %vm1207, %v4708, 0
        %v4761 = vsel %vm1207, %v4710, 0
        %v4763 = vsel %vm1207, %v4712, 0
        %v4765 = vsel %vm1207, %v4714, 0
        %v4767 = vsel %vm1207, %v4716, 0
        %v4769 = vsel %vm1207, %v4718, 0
        %v4771 = vsel %vm1207, %v4720, 0
        %v4773 = vsel %vm1207, %v4722, 0
        %v4775 = vsel %vm1207, %v4724, 0
        %v4777 = vsel %vm1207, %v4726, 0
        %v4779 = vsel %vm1207, %v4728, 0
        %v4781 = vsel %vm1207, %v4730, 0
        %v4783 = vsel %vm1207, %v4732, 0
        %v4785 = vsel %vm1207, %v4734, 0
        %v4787 = vsel %vm1207, %v4736, 0
        %v4789 = vsel %vm1207, %v4738, 0
        %v4791 = vsel %vm1207, %v4740, 0
        %4793 = vmatprep.subr.mxu0 0.0
        %4794 = vmatpush1.xpose.msra.mxu0 %v4767
        %4795 = vmatprep.subr.mxu0 0.0
        %4796 = vmatpush1.xpose.msra.mxu0 %v4769
        %4797 = vmatprep.subr.mxu0 0.0
        %4798 = vmatpush1.xpose.msra.mxu0 %v4771
        %4799 = vmatprep.subr.mxu0 0.0
        %4800 = vmatpush1.xpose.msra.mxu0 %v4773
        %4801 = vmatprep.subr.mxu0 0.0
        %4802 = vmatpush1.xpose.msra.mxu0 %v4775
        %4803 = vmatprep.subr.mxu0 0.0
        %4804 = vmatpush1.xpose.msra.mxu0 %v4777
        %4805 = vmatprep.subr.mxu0 0.0
        %4806 = vmatpush1.xpose.msra.mxu0 %v4779
        %4807 = vmatprep.subr.mxu0 0.0
        %4808 = vmatpush1.xpose.msra.mxu0 %v4781
        %4809 = vmatprep.subr.mxu0 0.0
        %4810 = vmatpush1.xpose.msra.mxu0 %v4783
        %4811 = vmatprep.subr.mxu0 0.0
        %4812 = vmatpush1.xpose.msra.mxu0 %v4785
        %4813 = vmatprep.subr.mxu0 0.0
        %4814 = vmatpush1.xpose.msra.mxu0 %v4787
        %4815 = vmatprep.subr.mxu0 0.0
        %4816 = vmatpush1.xpose.msra.mxu0 %v4789
        %4817 = vmatprep.subr.mxu0 0.0
        %4818 = vmatpush1.xpose.msra.mxu0 %v4791
        %4819 = vmatprep.subr.mxu0 0.0
        %4820 = vmatpush1.xpose.msra.mxu0 0.0
        %4821 = vmatprep.subr.mxu0 0.0
        %4822 = vmatpush1.xpose.msra.mxu0 0.0
        %4823 = vmatprep.subr.mxu0 0.0
        %4824 = vmatpush1.xpose.msra.mxu0 0.0
        %4825 = vmatprep.subr.mxu0 0.0
        %4826 = vmatpush1.xpose.msra.mxu0 0.0
        %4827 = vmatprep.subr.mxu0 0.0
        %4828 = vmatpush1.xpose.msra.mxu0 0.0
        %4829 = vmatprep.subr.mxu0 0.0
        %4830 = vmatpush1.xpose.msra.mxu0 0.0
        %4831 = vmatprep.subr.mxu0 0.0
        %4832 = vmatpush1.xpose.msra.mxu0 0.0
        %4833 = vmatprep.subr.mxu0 0.0
        %4834 = vmatpush1.xpose.msra.mxu0 0.0
        %4835 = vmatprep.subr.mxu0 0.0
        %4836 = vmatpush1.xpose.msra.mxu0 0.0
        %4837 = vmatprep.subr.mxu0 0.0
        %4838 = vmatpush1.xpose.msra.mxu0 0.0
        %4839 = vmatprep.subr.mxu0 0.0
        %4840 = vmatpush1.xpose.msra.mxu0 0.0
        %4841 = vmatprep.subr.mxu0 0.0
        %4842 = vmatpush1.xpose.msra.mxu0 0.0
        %4843 = vmatprep.subr.mxu0 0.0
        %4844 = vmatpush1.xpose.msra.mxu0 0.0
        %4845 = vmatprep.subr.mxu0 0.0
        %4846 = vmatpush1.xpose.msra.mxu0 0.0
        %4847 = vmatprep.subr.mxu0 0.0
        %4848 = vmatpush1.xpose.msra.mxu0 0.0
        %4849 = vmatprep.subr.mxu0 0.0
        %4850 = vmatpush1.xpose.msra.mxu0 0.0
        %4851 = vmatprep.subr.mxu0 0.0
        %4852 = vmatpush1.xpose.msra.mxu0 0.0
        %4853 = vmatprep.subr.mxu0 0.0
        %4854 = vmatpush1.xpose.msra.mxu0 0.0
        %4855 = vmatprep.subr.mxu0 0.0
        %4856 = vmatpush1.xpose.msra.mxu0 0.0
        %4857 = vmatprep.mubr.f32.mxu0 0.0
        %4858 = vmatmul.mubr.f32.gmra.mrb[0].mxu0 %v4741
        %v4859 = vpop.f32.mrb[0].mxu0
        %v4860 = vadd.f32 0.0, %v4859
        %v4861 = vpop.f32.mrb[0].mxu0
        %4862 = vmatprep.mubr.f32.mxu0 0.0
        %4863 = vmatmul.mubr.f32.gmra.mrb[0].mxu0 %v4743
        %v4864 = vpop.f32.mrb[0].mxu0
        %v4865 = vadd.f32 0.0, %v4864
        %v4866 = vpop.f32.mrb[0].mxu0
        %4867 = vmatprep.mubr.f32.mxu0 0.0
        %4868 = vmatmul.mubr.f32.gmra.mrb[0].mxu0 %v4745
        %v4869 = vpop.f32.mrb[0].mxu0
        %v4870 = vadd.f32 0.0, %v4869
        %v4871 = vpop.f32.mrb[0].mxu0
        %4872 = vmatprep.mubr.f32.mxu0 0.0
        %4873 = vmatmul.mubr.f32.gmra.mrb[0].mxu0 %v4747
        %v4874 = vpop.f32.mrb[0].mxu0
        %v4875 = vadd.f32 0.0, %v4874
        %v4876 = vpop.f32.mrb[0].mxu0
        %4877 = vmatprep.mubr.f32.mxu0 0.0
        %4878 = vmatmul.mubr.f32.gmra.mrb[0].mxu0 %v4749
        %v4879 = vpop.f32.mrb[0].mxu0
        %v4880 = vadd.f32 0.0, %v4879
        %v4881 = vpop.f32.mrb[0].mxu0
        %4882 = vmatprep.mubr.f32.mxu0 0.0
        %4883 = vmatmul.mubr.f32.gmra.mrb[0].mxu0 %v4751
        %v4884 = vpop.f32.mrb[0].mxu0
        %v4885 = vadd.f32 0.0, %v4884
        %v4886 = vpop.f32.mrb[0].mxu0
        %4887 = vmatprep.mubr.f32.mxu0 0.0
        %4888 = vmatmul.mubr.f32.gmra.mrb[0].mxu0 %v4753
        %v4889 = vpop.f32.mrb[0].mxu0
        %v4890 = vadd.f32 0.0, %v4889
        %v4891 = vpop.f32.mrb[0].mxu0
        %4892 = vmatprep.mubr.f32.mxu0 0.0
        %4893 = vmatmul.mubr.f32.gmra.mrb[0].mxu0 %v4755
        %v4894 = vpop.f32.mrb[0].mxu0
        %v4895 = vadd.f32 0.0, %v4894
        %v4896 = vpop.f32.mrb[0].mxu0
        %4897 = vmatprep.mubr.f32.mxu0 0.0
        %4898 = vmatmul.mubr.f32.gmra.mrb[0].mxu0 %v4757
        %v4899 = vpop.f32.mrb[0].mxu0
        %v4900 = vadd.f32 0.0, %v4899
        %v4901 = vpop.f32.mrb[0].mxu0
        %4902 = vmatprep.mubr.f32.mxu0 0.0
        %4903 = vmatmul.mubr.f32.gmra.mrb[0].mxu0 %v4759
        %v4904 = vpop.f32.mrb[0].mxu0
        %v4905 = vadd.f32 0.0, %v4904
        %v4906 = vpop.f32.mrb[0].mxu0
        %4907 = vmatprep.mubr.f32.mxu0 0.0
        %4908 = vmatmul.mubr.f32.gmra.mrb[0].mxu0 %v4761
        %v4909 = vpop.f32.mrb[0].mxu0
        %v4910 = vadd.f32 0.0, %v4909
        %v4911 = vpop.f32.mrb[0].mxu0
        %4912 = vmatprep.mubr.f32.mxu0 0.0
        %4913 = vmatmul.mubr.f32.gmra.mrb[0].mxu0 %v4763
        %v4914 = vpop.f32.mrb[0].mxu0
        %v4915 = vadd.f32 0.0, %v4914
        %v4916 = vpop.f32.mrb[0].mxu0
        %4917 = vmatprep.mubr.f32.mxu0 0.0
        %4918 = vmatmul.mubr.f32.gmra.mrb[0].mxu0 %v4765
        %v4919 = vpop.f32.mrb[0].mxu0
        %v4920 = vadd.f32 0.0, %v4919
        %v4921 = vpop.f32.mrb[0].mxu0
        %4922 = vdwg.mxu0
        %v4923 = vsel %vm1390, %v4860, -inf
        %4924 = vmax.xlane.f32.xlu0 %v4923
        %v4925 = vpop.xlane.xlu0 %4924
        %v4926 = vsel %vm1390, %v4865, -inf
        %4927 = vmax.xlane.f32.xlu0 %v4926
        %v4928 = vpop.xlane.xlu0 %4927
        %v4929 = vsel %vm1390, %v4870, -inf
        %4930 = vmax.xlane.f32.xlu0 %v4929
        %v4931 = vpop.xlane.xlu0 %4930
        %v4932 = vsel %vm1390, %v4875, -inf
        %4933 = vmax.xlane.f32.xlu0 %v4932
        %v4934 = vpop.xlane.xlu0 %4933
        %v4935 = vsel %vm1390, %v4880, -inf
        %4936 = vmax.xlane.f32.xlu0 %v4935
        %v4937 = vpop.xlane.xlu0 %4936
        %v4938 = vsel %vm1390, %v4885, -inf
        %4939 = vmax.xlane.f32.xlu0 %v4938
        %v4940 = vpop.xlane.xlu0 %4939
        %v4941 = vsel %vm1390, %v4890, -inf
        %4942 = vmax.xlane.f32.xlu0 %v4941
        %v4943 = vpop.xlane.xlu0 %4942
        %v4944 = vsel %vm1390, %v4895, -inf
        %4945 = vmax.xlane.f32.xlu0 %v4944
        %v4946 = vpop.xlane.xlu0 %4945
        %v4947 = vsel %vm1390, %v4900, -inf
        %4948 = vmax.xlane.f32.xlu0 %v4947
        %v4949 = vpop.xlane.xlu0 %4948
        %v4950 = vsel %vm1390, %v4905, -inf
        %4951 = vmax.xlane.f32.xlu0 %v4950
        %v4952 = vpop.xlane.xlu0 %4951
        %v4953 = vsel %vm1390, %v4910, -inf
        %4954 = vmax.xlane.f32.xlu0 %v4953
        %v4955 = vpop.xlane.xlu0 %4954
        %v4956 = vsel %vm1390, %v4915, -inf
        %4957 = vmax.xlane.f32.xlu0 %v4956
        %v4958 = vpop.xlane.xlu0 %4957
        %v4959 = vsel %vm1427, %v4920, -inf
        %4960 = vmax.xlane.f32.xlu0 %v4959
        %v4961 = vpop.xlane.xlu0 %4960
        %v4962 = vsub.f32 %v4860, %v4925
        %v4963 = vsub.f32 %v4865, %v4928
        %v4964 = vsub.f32 %v4870, %v4931
        %v4965 = vsub.f32 %v4875, %v4934
        %v4966 = vsub.f32 %v4880, %v4937
        %v4967 = vsub.f32 %v4885, %v4940
        %v4968 = vsub.f32 %v4890, %v4943
        %v4969 = vsub.f32 %v4895, %v4946
        %v4970 = vsub.f32 %v4900, %v4949
        %v4971 = vsub.f32 %v4905, %v4952
        %v4972 = vsub.f32 %v4910, %v4955
        %v4973 = vsub.f32 %v4915, %v4958
        %v4974 = vsub.f32 %v4920, %v4961
        %v4975 = vmul.f32 %v4962, 1.442695
        %v4976 = vpow.pop %v4975
        %v4977 = vmul.f32 %v4963, 1.442695
        %v4978 = vpow.pop %v4977
        %v4979 = vmul.f32 %v4964, 1.442695
        %v4980 = vpow.pop %v4979
        %v4981 = vmul.f32 %v4965, 1.442695
        %v4982 = vpow.pop %v4981
        %v4983 = vmul.f32 %v4966, 1.442695
        %v4984 = vpow.pop %v4983
        %v4985 = vmul.f32 %v4967, 1.442695
        %v4986 = vpow.pop %v4985
        %v4987 = vmul.f32 %v4968, 1.442695
        %v4988 = vpow.pop %v4987
        %v4989 = vmul.f32 %v4969, 1.442695
        %v4990 = vpow.pop %v4989
        %v4991 = vmul.f32 %v4970, 1.442695
        %v4992 = vpow.pop %v4991
        %v4993 = vmul.f32 %v4971, 1.442695
        %v4994 = vpow.pop %v4993
        %v4995 = vmul.f32 %v4972, 1.442695
        %v4996 = vpow.pop %v4995
        %v4997 = vmul.f32 %v4973, 1.442695
        %v4998 = vpow.pop %v4997
        %v4999 = vmul.f32 %v4974, 1.442695
        %v5000 = vpow.pop %v4999
        %v5001 = vsel %vm1390, %v4976, 0.0
        %5002 = vadd.xlane.f32.xlu0 %v5001
        %v5003 = vpop.xlane.xlu0 %5002
        %v5004 = vsel %vm1390, %v4978, 0.0
        %5005 = vadd.xlane.f32.xlu0 %v5004
        %v5006 = vpop.xlane.xlu0 %5005
        %v5007 = vsel %vm1390, %v4980, 0.0
        %5008 = vadd.xlane.f32.xlu0 %v5007
        %v5009 = vpop.xlane.xlu0 %5008
        %v5010 = vsel %vm1390, %v4982, 0.0
        %5011 = vadd.xlane.f32.xlu0 %v5010
        %v5012 = vpop.xlane.xlu0 %5011
        %v5013 = vsel %vm1390, %v4984, 0.0
        %5014 = vadd.xlane.f32.xlu0 %v5013
        %v5015 = vpop.xlane.xlu0 %5014
        %v5016 = vsel %vm1390, %v4986, 0.0
        %5017 = vadd.xlane.f32.xlu0 %v5016
        %v5018 = vpop.xlane.xlu0 %5017
        %v5019 = vsel %vm1390, %v4988, 0.0
        %5020 = vadd.xlane.f32.xlu0 %v5019
        %v5021 = vpop.xlane.xlu0 %5020
        %v5022 = vsel %vm1390, %v4990, 0.0
        %5023 = vadd.xlane.f32.xlu0 %v5022
        %v5024 = vpop.xlane.xlu0 %5023
        %v5025 = vsel %vm1390, %v4992, 0.0
        %5026 = vadd.xlane.f32.xlu0 %v5025
        %v5027 = vpop.xlane.xlu0 %5026
        %v5028 = vsel %vm1390, %v4994, 0.0
        %5029 = vadd.xlane.f32.xlu0 %v5028
        %v5030 = vpop.xlane.xlu0 %5029
        %v5031 = vsel %vm1390, %v4996, 0.0
        %5032 = vadd.xlane.f32.xlu0 %v5031
        %v5033 = vpop.xlane.xlu0 %5032
        %v5034 = vsel %vm1390, %v4998, 0.0
        %5035 = vadd.xlane.f32.xlu0 %v5034
        %v5036 = vpop.xlane.xlu0 %5035
        %v5037 = vsel %vm1427, %v5000, 0.0
        %5038 = vadd.xlane.f32.xlu0 %v5037
        %v5039 = vpop.xlane.xlu0 %5038
        %v5040 = vrcp.pop %v5003
        %v5041 = vrcp.pop %v5006
        %v5042 = vrcp.pop %v5009
        %v5043 = vrcp.pop %v5012
        %v5044 = vrcp.pop %v5015
        %v5045 = vrcp.pop %v5018
        %v5046 = vrcp.pop %v5021
        %v5047 = vrcp.pop %v5024
        %v5048 = vrcp.pop %v5027
        %v5049 = vrcp.pop %v5030
        %v5050 = vrcp.pop %v5033
        %v5051 = vrcp.pop %v5036
        %v5052 = vrcp.pop %v5039
        %v5053 = vmul.f32 %v4976, %v5040
        %v5054 = vmul.f32 %v4978, %v5041
        %v5055 = vmul.f32 %v4980, %v5042
        %v5056 = vmul.f32 %v4982, %v5043
        %v5057 = vmul.f32 %v4984, %v5044
        %v5058 = vmul.f32 %v4986, %v5045
        %v5059 = vmul.f32 %v4988, %v5046
        %v5060 = vmul.f32 %v4990, %v5047
        %v5061 = vmul.f32 %v4992, %v5048
        %v5062 = vmul.f32 %v4994, %v5049
        %v5063 = vmul.f32 %v4996, %v5050
        %v5064 = vmul.f32 %v4998, %v5051
        %v5065 = vmul.f32 %v5000, %v5052
        %s5066 = scalar_lea.vmem [#allocation12], 320
        %v5067 = vld [vmem:[%s5066] sm:$0xff]
        %v5068 = vld [vmem:[%s5066 + $0x8] sm:$0xff]
        %v5069 = vld [vmem:[%s5066 + $0x10] sm:$0xff]
        %v5070 = vld [vmem:[%s5066 + $0x18] sm:$0xff]
        %v5071 = vld [vmem:[%s5066 + $0x20] sm:$0xff]
        %v5072 = vld [vmem:[%s5066 + $0x28] sm:$0xff]
        %v5073 = vld [vmem:[%s5066 + $0x30] sm:$0xff]
        %v5074 = vld [vmem:[%s5066 + $0x38] sm:$0xff]
        %5075 = vmatprep.subr.mxu0 0.0
        %5076 = vmatpush1.msra.mxu0 %v5067
        %5077 = vmatprep.subr.mxu0 0.0
        %5078 = vmatpush1.msra.mxu0 %v5068
        %5079 = vmatprep.subr.mxu0 0.0
        %5080 = vmatpush1.msra.mxu0 %v5069
        %5081 = vmatprep.subr.mxu0 0.0
        %5082 = vmatpush1.msra.mxu0 %v5070
        %5083 = vmatprep.subr.mxu0 0.0
        %5084 = vmatpush1.msra.mxu0 %v5071
        %5085 = vmatprep.subr.mxu0 0.0
        %5086 = vmatpush1.msra.mxu0 %v5072
        %5087 = vmatprep.subr.mxu0 0.0
        %5088 = vmatpush1.msra.mxu0 %v5073
        %5089 = vmatprep.subr.mxu0 0.0
        %5090 = vmatpush1.msra.mxu0 %v5074
        %5091 = vmatprep.subr.mxu0 0.0
        %5092 = vmatpush1.msra.mxu0 0.0
        %5093 = vmatprep.subr.mxu0 0.0
        %5094 = vmatpush1.msra.mxu0 0.0
        %5095 = vmatprep.subr.mxu0 0.0
        %5096 = vmatpush1.msra.mxu0 0.0
        %5097 = vmatprep.subr.mxu0 0.0
        %5098 = vmatpush1.msra.mxu0 0.0
        %5099 = vmatprep.subr.mxu0 0.0
        %5100 = vmatpush1.msra.mxu0 0.0
        %5101 = vmatprep.subr.mxu0 0.0
        %5102 = vmatpush1.msra.mxu0 0.0
        %5103 = vmatprep.subr.mxu0 0.0
        %5104 = vmatpush1.msra.mxu0 0.0
        %5105 = vmatprep.subr.mxu0 0.0
        %5106 = vmatpush1.msra.mxu0 0.0
        %5107 = vmatprep.subr.mxu0 0.0
        %5108 = vmatpush1.msra.mxu0 0.0
        %5109 = vmatprep.subr.mxu0 0.0
        %5110 = vmatpush1.msra.mxu0 0.0
        %5111 = vmatprep.subr.mxu0 0.0
        %5112 = vmatpush1.msra.mxu0 0.0
        %5113 = vmatprep.subr.mxu0 0.0
        %5114 = vmatpush1.msra.mxu0 0.0
        %5115 = vmatprep.subr.mxu0 0.0
        %5116 = vmatpush1.msra.mxu0 0.0
        %5117 = vmatprep.subr.mxu0 0.0
        %5118 = vmatpush1.msra.mxu0 0.0
        %5119 = vmatprep.subr.mxu0 0.0
        %5120 = vmatpush1.msra.mxu0 0.0
        %5121 = vmatprep.subr.mxu0 0.0
        %5122 = vmatpush1.msra.mxu0 0.0
        %5123 = vmatprep.subr.mxu0 0.0
        %5124 = vmatpush1.msra.mxu0 0.0
        %5125 = vmatprep.subr.mxu0 0.0
        %5126 = vmatpush1.msra.mxu0 0.0
        %5127 = vmatprep.subr.mxu0 0.0
        %5128 = vmatpush1.msra.mxu0 0.0
        %5129 = vmatprep.subr.mxu0 0.0
        %5130 = vmatpush1.msra.mxu0 0.0
        %5131 = vmatprep.subr.mxu0 0.0
        %5132 = vmatpush1.msra.mxu0 0.0
        %5133 = vmatprep.subr.mxu0 0.0
        %5134 = vmatpush1.msra.mxu0 0.0
        %5135 = vmatprep.subr.mxu0 0.0
        %5136 = vmatpush1.msra.mxu0 0.0
        %5137 = vmatprep.subr.mxu0 0.0
        %5138 = vmatpush1.msra.mxu0 0.0
        %5139 = vmatprep.mubr.f32.mxu0 0.0
        %5140 = vmatmul.mubr.f32.gmra.mrb[0].mxu0 %v1557
        %v5141 = vpop.f32.mrb[0].mxu0
        %v5142 = vadd.f32 0.0, %v5141
        %v5143 = vpop.f32.mrb[0].mxu0
        %5144 = vmatprep.mubr.f32.mxu0 0.0
        %5145 = vmatmul.mubr.f32.gmra.mrb[0].mxu0 %v1560
        %v5146 = vpop.f32.mrb[0].mxu0
        %v5147 = vadd.f32 0.0, %v5146
        %v5148 = vpop.f32.mrb[0].mxu0
        %5149 = vmatprep.mubr.f32.mxu0 0.0
        %5150 = vmatmul.mubr.f32.gmra.mrb[0].mxu0 %v1563
        %v5151 = vpop.f32.mrb[0].mxu0
        %v5152 = vadd.f32 0.0, %v5151
        %v5153 = vpop.f32.mrb[0].mxu0
        %5154 = vmatprep.mubr.f32.mxu0 0.0
        %5155 = vmatmul.mubr.f32.gmra.mrb[0].mxu0 %v1566
        %v5156 = vpop.f32.mrb[0].mxu0
        %v5157 = vadd.f32 0.0, %v5156
        %v5158 = vpop.f32.mrb[0].mxu0
        %5159 = vmatprep.mubr.f32.mxu0 0.0
        %5160 = vmatmul.mubr.f32.gmra.mrb[0].mxu0 %v1569
        %v5161 = vpop.f32.mrb[0].mxu0
        %v5162 = vadd.f32 0.0, %v5161
        %v5163 = vpop.f32.mrb[0].mxu0
        %5164 = vmatprep.mubr.f32.mxu0 0.0
        %5165 = vmatmul.mubr.f32.gmra.mrb[0].mxu0 %v1572
        %v5166 = vpop.f32.mrb[0].mxu0
        %v5167 = vadd.f32 0.0, %v5166
        %v5168 = vpop.f32.mrb[0].mxu0
        %5169 = vmatprep.mubr.f32.mxu0 0.0
        %5170 = vmatmul.mubr.f32.gmra.mrb[0].mxu0 %v1575
        %v5171 = vpop.f32.mrb[0].mxu0
        %v5172 = vadd.f32 0.0, %v5171
        %v5173 = vpop.f32.mrb[0].mxu0
        %5174 = vmatprep.mubr.f32.mxu0 0.0
        %5175 = vmatmul.mubr.f32.gmra.mrb[0].mxu0 %v1578
        %v5176 = vpop.f32.mrb[0].mxu0
        %v5177 = vadd.f32 0.0, %v5176
        %v5178 = vpop.f32.mrb[0].mxu0
        %5179 = vmatprep.mubr.f32.mxu0 0.0
        %5180 = vmatmul.mubr.f32.gmra.mrb[0].mxu0 %v1581
        %v5181 = vpop.f32.mrb[0].mxu0
        %v5182 = vadd.f32 0.0, %v5181
        %v5183 = vpop.f32.mrb[0].mxu0
        %5184 = vmatprep.mubr.f32.mxu0 0.0
        %5185 = vmatmul.mubr.f32.gmra.mrb[0].mxu0 %v1584
        %v5186 = vpop.f32.mrb[0].mxu0
        %v5187 = vadd.f32 0.0, %v5186
        %v5188 = vpop.f32.mrb[0].mxu0
        %5189 = vmatprep.mubr.f32.mxu0 0.0
        %5190 = vmatmul.mubr.f32.gmra.mrb[0].mxu0 %v1587
        %v5191 = vpop.f32.mrb[0].mxu0
        %v5192 = vadd.f32 0.0, %v5191
        %v5193 = vpop.f32.mrb[0].mxu0
        %5194 = vmatprep.mubr.f32.mxu0 0.0
        %5195 = vmatmul.mubr.f32.gmra.mrb[0].mxu0 %v1590
        %v5196 = vpop.f32.mrb[0].mxu0
        %v5197 = vadd.f32 0.0, %v5196
        %v5198 = vpop.f32.mrb[0].mxu0
        %5199 = vmatprep.mubr.f32.mxu0 0.0
        %5200 = vmatmul.mubr.f32.gmra.mrb[0].mxu0 %v1593
        %v5201 = vpop.f32.mrb[0].mxu0
        %v5202 = vadd.f32 0.0, %v5201
        %v5203 = vpop.f32.mrb[0].mxu0
        %5204 = vdwg.mxu0
        %v5206 = vsel %vm1390, %v5053, 0
        %v5209 = vsel %vm1390, %v5054, 0
        %v5212 = vsel %vm1390, %v5055, 0
        %v5215 = vsel %vm1390, %v5056, 0
        %v5218 = vsel %vm1390, %v5057, 0
        %v5221 = vsel %vm1390, %v5058, 0
        %v5224 = vsel %vm1390, %v5059, 0
        %v5227 = vsel %vm1390, %v5060, 0
        %v5230 = vsel %vm1390, %v5061, 0
        %v5233 = vsel %vm1390, %v5062, 0
        %v5236 = vsel %vm1390, %v5063, 0
        %v5239 = vsel %vm1390, %v5064, 0
        %v5242 = vsel %vm1390, %v5065, 0
        %v5245 = vsel %vm2280, %v5202, 0
        %5247 = vmatprep.subr.mxu0 0.0
        %5248 = vmatpush1.msra.mxu0 %v5142
        %5249 = vmatprep.subr.mxu0 0.0
        %5250 = vmatpush1.msra.mxu0 %v5147
        %5251 = vmatprep.subr.mxu0 0.0
        %5252 = vmatpush1.msra.mxu0 %v5152
        %5253 = vmatprep.subr.mxu0 0.0
        %5254 = vmatpush1.msra.mxu0 %v5157
        %5255 = vmatprep.subr.mxu0 0.0
        %5256 = vmatpush1.msra.mxu0 %v5162
        %5257 = vmatprep.subr.mxu0 0.0
        %5258 = vmatpush1.msra.mxu0 %v5167
        %5259 = vmatprep.subr.mxu0 0.0
        %5260 = vmatpush1.msra.mxu0 %v5172
        %5261 = vmatprep.subr.mxu0 0.0
        %5262 = vmatpush1.msra.mxu0 %v5177
        %5263 = vmatprep.subr.mxu0 0.0
        %5264 = vmatpush1.msra.mxu0 %v5182
        %5265 = vmatprep.subr.mxu0 0.0
        %5266 = vmatpush1.msra.mxu0 %v5187
        %5267 = vmatprep.subr.mxu0 0.0
        %5268 = vmatpush1.msra.mxu0 %v5192
        %5269 = vmatprep.subr.mxu0 0.0
        %5270 = vmatpush1.msra.mxu0 %v5197
        %5271 = vmatprep.subr.mxu0 0.0
        %5272 = vmatpush1.msra.mxu0 %v5245
        %5273 = vmatprep.subr.mxu0 0.0
        %5274 = vmatpush1.msra.mxu0 0.0
        %5275 = vmatprep.subr.mxu0 0.0
        %5276 = vmatpush1.msra.mxu0 0.0
        %5277 = vmatprep.subr.mxu0 0.0
        %5278 = vmatpush1.msra.mxu0 0.0
        %5279 = vmatprep.subr.mxu0 0.0
        %5280 = vmatpush1.msra.mxu0 0.0
        %5281 = vmatprep.subr.mxu0 0.0
        %5282 = vmatpush1.msra.mxu0 0.0
        %5283 = vmatprep.subr.mxu0 0.0
        %5284 = vmatpush1.msra.mxu0 0.0
        %5285 = vmatprep.subr.mxu0 0.0
        %5286 = vmatpush1.msra.mxu0 0.0
        %5287 = vmatprep.subr.mxu0 0.0
        %5288 = vmatpush1.msra.mxu0 0.0
        %5289 = vmatprep.subr.mxu0 0.0
        %5290 = vmatpush1.msra.mxu0 0.0
        %5291 = vmatprep.subr.mxu0 0.0
        %5292 = vmatpush1.msra.mxu0 0.0
        %5293 = vmatprep.subr.mxu0 0.0
        %5294 = vmatpush1.msra.mxu0 0.0
        %5295 = vmatprep.subr.mxu0 0.0
        %5296 = vmatpush1.msra.mxu0 0.0
        %5297 = vmatprep.subr.mxu0 0.0
        %5298 = vmatpush1.msra.mxu0 0.0
        %5299 = vmatprep.subr.mxu0 0.0
        %5300 = vmatpush1.msra.mxu0 0.0
        %5301 = vmatprep.subr.mxu0 0.0
        %5302 = vmatpush1.msra.mxu0 0.0
        %5303 = vmatprep.subr.mxu0 0.0
        %5304 = vmatpush1.msra.mxu0 0.0
        %5305 = vmatprep.subr.mxu0 0.0
        %5306 = vmatpush1.msra.mxu0 0.0
        %5307 = vmatprep.subr.mxu0 0.0
        %5308 = vmatpush1.msra.mxu0 0.0
        %5309 = vmatprep.subr.mxu0 0.0
        %5310 = vmatpush1.msra.mxu0 0.0
        %5311 = vmatprep.mubr.f32.mxu0 0.0
        %5312 = vmatmul.mubr.f32.gmra.mrb[0].mxu0 %v5206
        %v5313 = vpop.f32.mrb[0].mxu0
        %v5314 = vadd.f32 0.0, %v5313
        %v5315 = vpop.f32.mrb[0].mxu0
        %5316 = vmatprep.mubr.f32.mxu0 0.0
        %5317 = vmatmul.mubr.f32.gmra.mrb[0].mxu0 %v5209
        %v5318 = vpop.f32.mrb[0].mxu0
        %v5319 = vadd.f32 0.0, %v5318
        %v5320 = vpop.f32.mrb[0].mxu0
        %5321 = vmatprep.mubr.f32.mxu0 0.0
        %5322 = vmatmul.mubr.f32.gmra.mrb[0].mxu0 %v5212
        %v5323 = vpop.f32.mrb[0].mxu0
        %v5324 = vadd.f32 0.0, %v5323
        %v5325 = vpop.f32.mrb[0].mxu0
        %5326 = vmatprep.mubr.f32.mxu0 0.0
        %5327 = vmatmul.mubr.f32.gmra.mrb[0].mxu0 %v5215
        %v5328 = vpop.f32.mrb[0].mxu0
        %v5329 = vadd.f32 0.0, %v5328
        %v5330 = vpop.f32.mrb[0].mxu0
        %5331 = vmatprep.mubr.f32.mxu0 0.0
        %5332 = vmatmul.mubr.f32.gmra.mrb[0].mxu0 %v5218
        %v5333 = vpop.f32.mrb[0].mxu0
        %v5334 = vadd.f32 0.0, %v5333
        %v5335 = vpop.f32.mrb[0].mxu0
        %5336 = vmatprep.mubr.f32.mxu0 0.0
        %5337 = vmatmul.mubr.f32.gmra.mrb[0].mxu0 %v5221
        %v5338 = vpop.f32.mrb[0].mxu0
        %v5339 = vadd.f32 0.0, %v5338
        %v5340 = vpop.f32.mrb[0].mxu0
        %5341 = vmatprep.mubr.f32.mxu0 0.0
        %5342 = vmatmul.mubr.f32.gmra.mrb[0].mxu0 %v5224
        %v5343 = vpop.f32.mrb[0].mxu0
        %v5344 = vadd.f32 0.0, %v5343
        %v5345 = vpop.f32.mrb[0].mxu0
        %5346 = vmatprep.mubr.f32.mxu0 0.0
        %5347 = vmatmul.mubr.f32.gmra.mrb[0].mxu0 %v5227
        %v5348 = vpop.f32.mrb[0].mxu0
        %v5349 = vadd.f32 0.0, %v5348
        %v5350 = vpop.f32.mrb[0].mxu0
        %5351 = vmatprep.mubr.f32.mxu0 0.0
        %5352 = vmatmul.mubr.f32.gmra.mrb[0].mxu0 %v5230
        %v5353 = vpop.f32.mrb[0].mxu0
        %v5354 = vadd.f32 0.0, %v5353
        %v5355 = vpop.f32.mrb[0].mxu0
        %5356 = vmatprep.mubr.f32.mxu0 0.0
        %5357 = vmatmul.mubr.f32.gmra.mrb[0].mxu0 %v5233
        %v5358 = vpop.f32.mrb[0].mxu0
        %v5359 = vadd.f32 0.0, %v5358
        %v5360 = vpop.f32.mrb[0].mxu0
        %5361 = vmatprep.mubr.f32.mxu0 0.0
        %5362 = vmatmul.mubr.f32.gmra.mrb[0].mxu0 %v5236
        %v5363 = vpop.f32.mrb[0].mxu0
        %v5364 = vadd.f32 0.0, %v5363
        %v5365 = vpop.f32.mrb[0].mxu0
        %5366 = vmatprep.mubr.f32.mxu0 0.0
        %5367 = vmatmul.mubr.f32.gmra.mrb[0].mxu0 %v5239
        %v5368 = vpop.f32.mrb[0].mxu0
        %v5369 = vadd.f32 0.0, %v5368
        %v5370 = vpop.f32.mrb[0].mxu0
        %5371 = vmatprep.mubr.f32.mxu0 0.0
        %5372 = vmatmul.mubr.f32.gmra.mrb[0].mxu0 %v5242
        %v5373 = vpop.f32.mrb[0].mxu0
        %v5374 = vadd.f32 0.0, %v5373
        %v5375 = vpop.f32.mrb[0].mxu0
        %5376 = vdwg.mxu0
        %v5377 = vadd.f32 %v4676, %v5314
        %v5378 = vadd.f32 %v4677, %v5319
        %v5379 = vadd.f32 %v4678, %v5324
        %v5380 = vadd.f32 %v4679, %v5329
        %v5381 = vadd.f32 %v4680, %v5334
        %v5382 = vadd.f32 %v4681, %v5339
        %v5383 = vadd.f32 %v4682, %v5344
        %v5384 = vadd.f32 %v4683, %v5349
        %v5385 = vadd.f32 %v4684, %v5354
        %v5386 = vadd.f32 %v4685, %v5359
        %v5387 = vadd.f32 %v4686, %v5364
        %v5388 = vadd.f32 %v4687, %v5369
        %v5389 = vadd.f32 %v4688, %v5374
        %5390 = vrot.lane.b32.xlu0 %v1155, 80
        %v5391 = vpop.permute.xlu0 %5390
        %5392 = vrot.lane.b32.xlu0 %v1156, 80
        %v5393 = vpop.permute.xlu0 %5392
        %5394 = vrot.lane.b32.xlu0 %v1157, 80
        %v5395 = vpop.permute.xlu0 %5394
        %5396 = vrot.lane.b32.xlu0 %v1158, 80
        %v5397 = vpop.permute.xlu0 %5396
        %5398 = vrot.lane.b32.xlu0 %v1159, 80
        %v5399 = vpop.permute.xlu0 %5398
        %5400 = vrot.lane.b32.xlu0 %v1160, 80
        %v5401 = vpop.permute.xlu0 %5400
        %5402 = vrot.lane.b32.xlu0 %v1161, 80
        %v5403 = vpop.permute.xlu0 %5402
        %5404 = vrot.lane.b32.xlu0 %v1162, 80
        %v5405 = vpop.permute.xlu0 %5404
        %5406 = vrot.lane.b32.xlu0 %v1163, 80
        %v5407 = vpop.permute.xlu0 %5406
        %5408 = vrot.lane.b32.xlu0 %v1164, 80
        %v5409 = vpop.permute.xlu0 %5408
        %5410 = vrot.lane.b32.xlu0 %v1165, 80
        %v5411 = vpop.permute.xlu0 %5410
        %5412 = vrot.lane.b32.xlu0 %v1166, 80
        %v5413 = vpop.permute.xlu0 %5412
        %5414 = vrot.lane.b32.xlu0 %v1167, 80
        %v5415 = vpop.permute.xlu0 %5414
        %5416 = vrot.lane.b32.xlu0 %v1155, 16
        %v5417 = vpop.permute.xlu0 %5416
        %5418 = vrot.lane.b32.xlu0 %v1156, 16
        %v5419 = vpop.permute.xlu0 %5418
        %5420 = vrot.lane.b32.xlu0 %v1157, 16
        %v5421 = vpop.permute.xlu0 %5420
        %5422 = vrot.lane.b32.xlu0 %v1158, 16
        %v5423 = vpop.permute.xlu0 %5422
        %5424 = vrot.lane.b32.xlu0 %v1159, 16
        %v5425 = vpop.permute.xlu0 %5424
        %5426 = vrot.lane.b32.xlu0 %v1160, 16
        %v5427 = vpop.permute.xlu0 %5426
        %5428 = vrot.lane.b32.xlu0 %v1161, 16
        %v5429 = vpop.permute.xlu0 %5428
        %5430 = vrot.lane.b32.xlu0 %v1162, 16
        %v5431 = vpop.permute.xlu0 %5430
        %5432 = vrot.lane.b32.xlu0 %v1163, 16
        %v5433 = vpop.permute.xlu0 %5432
        %5434 = vrot.lane.b32.xlu0 %v1164, 16
        %v5435 = vpop.permute.xlu0 %5434
        %5436 = vrot.lane.b32.xlu0 %v1165, 16
        %v5437 = vpop.permute.xlu0 %5436
        %5438 = vrot.lane.b32.xlu0 %v1166, 16
        %v5439 = vpop.permute.xlu0 %5438
        %5440 = vrot.lane.b32.xlu0 %v1167, 16
        %v5441 = vpop.permute.xlu0 %5440
        %v5442 = vsel %vm1207, %v5391, 0
        %v5444 = vsel %vm1207, %v5393, 0
        %v5446 = vsel %vm1207, %v5395, 0
        %v5448 = vsel %vm1207, %v5397, 0
        %v5450 = vsel %vm1207, %v5399, 0
        %v5452 = vsel %vm1207, %v5401, 0
        %v5454 = vsel %vm1207, %v5403, 0
        %v5456 = vsel %vm1207, %v5405, 0
        %v5458 = vsel %vm1207, %v5407, 0
        %v5460 = vsel %vm1207, %v5409, 0
        %v5462 = vsel %vm1207, %v5411, 0
        %v5464 = vsel %vm1207, %v5413, 0
        %v5466 = vsel %vm1207, %v5415, 0
        %v5468 = vsel %vm1207, %v5417, 0
        %v5470 = vsel %vm1207, %v5419, 0
        %v5472 = vsel %vm1207, %v5421, 0
        %v5474 = vsel %vm1207, %v5423, 0
        %v5476 = vsel %vm1207, %v5425, 0
        %v5478 = vsel %vm1207, %v5427, 0
        %v5480 = vsel %vm1207, %v5429, 0
        %v5482 = vsel %vm1207, %v5431, 0
        %v5484 = vsel %vm1207, %v5433, 0
        %v5486 = vsel %vm1207, %v5435, 0
        %v5488 = vsel %vm1207, %v5437, 0
        %v5490 = vsel %vm1207, %v5439, 0
        %v5492 = vsel %vm1207, %v5441, 0
        %5494 = vmatprep.subr.mxu0 0.0
        %5495 = vmatpush1.xpose.msra.mxu0 %v5468
        %5496 = vmatprep.subr.mxu0 0.0
        %5497 = vmatpush1.xpose.msra.mxu0 %v5470
        %5498 = vmatprep.subr.mxu0 0.0
        %5499 = vmatpush1.xpose.msra.mxu0 %v5472
        %5500 = vmatprep.subr.mxu0 0.0
        %5501 = vmatpush1.xpose.msra.mxu0 %v5474
        %5502 = vmatprep.subr.mxu0 0.0
        %5503 = vmatpush1.xpose.msra.mxu0 %v5476
        %5504 = vmatprep.subr.mxu0 0.0
        %5505 = vmatpush1.xpose.msra.mxu0 %v5478
        %5506 = vmatprep.subr.mxu0 0.0
        %5507 = vmatpush1.xpose.msra.mxu0 %v5480
        %5508 = vmatprep.subr.mxu0 0.0
        %5509 = vmatpush1.xpose.msra.mxu0 %v5482
        %5510 = vmatprep.subr.mxu0 0.0
        %5511 = vmatpush1.xpose.msra.mxu0 %v5484
        %5512 = vmatprep.subr.mxu0 0.0
        %5513 = vmatpush1.xpose.msra.mxu0 %v5486
        %5514 = vmatprep.subr.mxu0 0.0
        %5515 = vmatpush1.xpose.msra.mxu0 %v5488
        %5516 = vmatprep.subr.mxu0 0.0
        %5517 = vmatpush1.xpose.msra.mxu0 %v5490
        %5518 = vmatprep.subr.mxu0 0.0
        %5519 = vmatpush1.xpose.msra.mxu0 %v5492
        %5520 = vmatprep.subr.mxu0 0.0
        %5521 = vmatpush1.xpose.msra.mxu0 0.0
        %5522 = vmatprep.subr.mxu0 0.0
        %5523 = vmatpush1.xpose.msra.mxu0 0.0
        %5524 = vmatprep.subr.mxu0 0.0
        %5525 = vmatpush1.xpose.msra.mxu0 0.0
        %5526 = vmatprep.subr.mxu0 0.0
        %5527 = vmatpush1.xpose.msra.mxu0 0.0
        %5528 = vmatprep.subr.mxu0 0.0
        %5529 = vmatpush1.xpose.msra.mxu0 0.0
        %5530 = vmatprep.subr.mxu0 0.0
        %5531 = vmatpush1.xpose.msra.mxu0 0.0
        %5532 = vmatprep.subr.mxu0 0.0
        %5533 = vmatpush1.xpose.msra.mxu0 0.0
        %5534 = vmatprep.subr.mxu0 0.0
        %5535 = vmatpush1.xpose.msra.mxu0 0.0
        %5536 = vmatprep.subr.mxu0 0.0
        %5537 = vmatpush1.xpose.msra.mxu0 0.0
        %5538 = vmatprep.subr.mxu0 0.0
        %5539 = vmatpush1.xpose.msra.mxu0 0.0
        %5540 = vmatprep.subr.mxu0 0.0
        %5541 = vmatpush1.xpose.msra.mxu0 0.0
        %5542 = vmatprep.subr.mxu0 0.0
        %5543 = vmatpush1.xpose.msra.mxu0 0.0
        %5544 = vmatprep.subr.mxu0 0.0
        %5545 = vmatpush1.xpose.msra.mxu0 0.0
        %5546 = vmatprep.subr.mxu0 0.0
        %5547 = vmatpush1.xpose.msra.mxu0 0.0
        %5548 = vmatprep.subr.mxu0 0.0
        %5549 = vmatpush1.xpose.msra.mxu0 0.0
        %5550 = vmatprep.subr.mxu0 0.0
        %5551 = vmatpush1.xpose.msra.mxu0 0.0
        %5552 = vmatprep.subr.mxu0 0.0
        %5553 = vmatpush1.xpose.msra.mxu0 0.0
        %5554 = vmatprep.subr.mxu0 0.0
        %5555 = vmatpush1.xpose.msra.mxu0 0.0
        %5556 = vmatprep.subr.mxu0 0.0
        %5557 = vmatpush1.xpose.msra.mxu0 0.0
        %5558 = vmatprep.mubr.f32.mxu0 0.0
        %5559 = vmatmul.mubr.f32.gmra.mrb[0].mxu0 %v5442
        %v5560 = vpop.f32.mrb[0].mxu0
        %v5561 = vadd.f32 0.0, %v5560
        %v5562 = vpop.f32.mrb[0].mxu0
        %5563 = vmatprep.mubr.f32.mxu0 0.0
        %5564 = vmatmul.mubr.f32.gmra.mrb[0].mxu0 %v5444
        %v5565 = vpop.f32.mrb[0].mxu0
        %v5566 = vadd.f32 0.0, %v5565
        %v5567 = vpop.f32.mrb[0].mxu0
        %5568 = vmatprep.mubr.f32.mxu0 0.0
        %5569 = vmatmul.mubr.f32.gmra.mrb[0].mxu0 %v5446
        %v5570 = vpop.f32.mrb[0].mxu0
        %v5571 = vadd.f32 0.0, %v5570
        %v5572 = vpop.f32.mrb[0].mxu0
        %5573 = vmatprep.mubr.f32.mxu0 0.0
        %5574 = vmatmul.mubr.f32.gmra.mrb[0].mxu0 %v5448
        %v5575 = vpop.f32.mrb[0].mxu0
        %v5576 = vadd.f32 0.0, %v5575
        %v5577 = vpop.f32.mrb[0].mxu0
        %5578 = vmatprep.mubr.f32.mxu0 0.0
        %5579 = vmatmul.mubr.f32.gmra.mrb[0].mxu0 %v5450
        %v5580 = vpop.f32.mrb[0].mxu0
        %v5581 = vadd.f32 0.0, %v5580
        %v5582 = vpop.f32.mrb[0].mxu0
        %5583 = vmatprep.mubr.f32.mxu0 0.0
        %5584 = vmatmul.mubr.f32.gmra.mrb[0].mxu0 %v5452
        %v5585 = vpop.f32.mrb[0].mxu0
        %v5586 = vadd.f32 0.0, %v5585
        %v5587 = vpop.f32.mrb[0].mxu0
        %5588 = vmatprep.mubr.f32.mxu0 0.0
        %5589 = vmatmul.mubr.f32.gmra.mrb[0].mxu0 %v5454
        %v5590 = vpop.f32.mrb[0].mxu0
        %v5591 = vadd.f32 0.0, %v5590
        %v5592 = vpop.f32.mrb[0].mxu0
        %5593 = vmatprep.mubr.f32.mxu0 0.0
        %5594 = vmatmul.mubr.f32.gmra.mrb[0].mxu0 %v5456
        %v5595 = vpop.f32.mrb[0].mxu0
        %v5596 = vadd.f32 0.0, %v5595
        %v5597 = vpop.f32.mrb[0].mxu0
        %5598 = vmatprep.mubr.f32.mxu0 0.0
        %5599 = vmatmul.mubr.f32.gmra.mrb[0].mxu0 %v5458
        %v5600 = vpop.f32.mrb[0].mxu0
        %v5601 = vadd.f32 0.0, %v5600
        %v5602 = vpop.f32.mrb[0].mxu0
        %5603 = vmatprep.mubr.f32.mxu0 0.0
        %5604 = vmatmul.mubr.f32.gmra.mrb[0].mxu0 %v5460
        %v5605 = vpop.f32.mrb[0].mxu0
        %v5606 = vadd.f32 0.0, %v5605
        %v5607 = vpop.f32.mrb[0].mxu0
        %5608 = vmatprep.mubr.f32.mxu0 0.0
        %5609 = vmatmul.mubr.f32.gmra.mrb[0].mxu0 %v5462
        %v5610 = vpop.f32.mrb[0].mxu0
        %v5611 = vadd.f32 0.0, %v5610
        %v5612 = vpop.f32.mrb[0].mxu0
        %5613 = vmatprep.mubr.f32.mxu0 0.0
        %5614 = vmatmul.mubr.f32.gmra.mrb[0].mxu0 %v5464
        %v5615 = vpop.f32.mrb[0].mxu0
        %v5616 = vadd.f32 0.0, %v5615
        %v5617 = vpop.f32.mrb[0].mxu0
        %5618 = vmatprep.mubr.f32.mxu0 0.0
        %5619 = vmatmul.mubr.f32.gmra.mrb[0].mxu0 %v5466
        %v5620 = vpop.f32.mrb[0].mxu0
        %v5621 = vadd.f32 0.0, %v5620
        %v5622 = vpop.f32.mrb[0].mxu0
        %5623 = vdwg.mxu0
        %v5624 = vsel %vm1390, %v5561, -inf
        %5625 = vmax.xlane.f32.xlu0 %v5624
        %v5626 = vpop.xlane.xlu0 %5625
        %v5627 = vsel %vm1390, %v5566, -inf
        %5628 = vmax.xlane.f32.xlu0 %v5627
        %v5629 = vpop.xlane.xlu0 %5628
        %v5630 = vsel %vm1390, %v5571, -inf
        %5631 = vmax.xlane.f32.xlu0 %v5630
        %v5632 = vpop.xlane.xlu0 %5631
        %v5633 = vsel %vm1390, %v5576, -inf
        %5634 = vmax.xlane.f32.xlu0 %v5633
        %v5635 = vpop.xlane.xlu0 %5634
        %v5636 = vsel %vm1390, %v5581, -inf
        %5637 = vmax.xlane.f32.xlu0 %v5636
        %v5638 = vpop.xlane.xlu0 %5637
        %v5639 = vsel %vm1390, %v5586, -inf
        %5640 = vmax.xlane.f32.xlu0 %v5639
        %v5641 = vpop.xlane.xlu0 %5640
        %v5642 = vsel %vm1390, %v5591, -inf
        %5643 = vmax.xlane.f32.xlu0 %v5642
        %v5644 = vpop.xlane.xlu0 %5643
        %v5645 = vsel %vm1390, %v5596, -inf
        %5646 = vmax.xlane.f32.xlu0 %v5645
        %v5647 = vpop.xlane.xlu0 %5646
        %v5648 = vsel %vm1390, %v5601, -inf
        %5649 = vmax.xlane.f32.xlu0 %v5648
        %v5650 = vpop.xlane.xlu0 %5649
        %v5651 = vsel %vm1390, %v5606, -inf
        %5652 = vmax.xlane.f32.xlu0 %v5651
        %v5653 = vpop.xlane.xlu0 %5652
        %v5654 = vsel %vm1390, %v5611, -inf
        %5655 = vmax.xlane.f32.xlu0 %v5654
        %v5656 = vpop.xlane.xlu0 %5655
        %v5657 = vsel %vm1390, %v5616, -inf
        %5658 = vmax.xlane.f32.xlu0 %v5657
        %v5659 = vpop.xlane.xlu0 %5658
        %v5660 = vsel %vm1427, %v5621, -inf
        %5661 = vmax.xlane.f32.xlu0 %v5660
        %v5662 = vpop.xlane.xlu0 %5661
        %v5663 = vsub.f32 %v5561, %v5626
        %v5664 = vsub.f32 %v5566, %v5629
        %v5665 = vsub.f32 %v5571, %v5632
        %v5666 = vsub.f32 %v5576, %v5635
        %v5667 = vsub.f32 %v5581, %v5638
        %v5668 = vsub.f32 %v5586, %v5641
        %v5669 = vsub.f32 %v5591, %v5644
        %v5670 = vsub.f32 %v5596, %v5647
        %v5671 = vsub.f32 %v5601, %v5650
        %v5672 = vsub.f32 %v5606, %v5653
        %v5673 = vsub.f32 %v5611, %v5656
        %v5674 = vsub.f32 %v5616, %v5659
        %v5675 = vsub.f32 %v5621, %v5662
        %v5676 = vmul.f32 %v5663, 1.442695
        %v5677 = vpow.pop %v5676
        %v5678 = vmul.f32 %v5664, 1.442695
        %v5679 = vpow.pop %v5678
        %v5680 = vmul.f32 %v5665, 1.442695
        %v5681 = vpow.pop %v5680
        %v5682 = vmul.f32 %v5666, 1.442695
        %v5683 = vpow.pop %v5682
        %v5684 = vmul.f32 %v5667, 1.442695
        %v5685 = vpow.pop %v5684
        %v5686 = vmul.f32 %v5668, 1.442695
        %v5687 = vpow.pop %v5686
        %v5688 = vmul.f32 %v5669, 1.442695
        %v5689 = vpow.pop %v5688
        %v5690 = vmul.f32 %v5670, 1.442695
        %v5691 = vpow.pop %v5690
        %v5692 = vmul.f32 %v5671, 1.442695
        %v5693 = vpow.pop %v5692
        %v5694 = vmul.f32 %v5672, 1.442695
        %v5695 = vpow.pop %v5694
        %v5696 = vmul.f32 %v5673, 1.442695
        %v5697 = vpow.pop %v5696
        %v5698 = vmul.f32 %v5674, 1.442695
        %v5699 = vpow.pop %v5698
        %v5700 = vmul.f32 %v5675, 1.442695
        %v5701 = vpow.pop %v5700
        %v5702 = vsel %vm1390, %v5677, 0.0
        %5703 = vadd.xlane.f32.xlu0 %v5702
        %v5704 = vpop.xlane.xlu0 %5703
        %v5705 = vsel %vm1390, %v5679, 0.0
        %5706 = vadd.xlane.f32.xlu0 %v5705
        %v5707 = vpop.xlane.xlu0 %5706
        %v5708 = vsel %vm1390, %v5681, 0.0
        %5709 = vadd.xlane.f32.xlu0 %v5708
        %v5710 = vpop.xlane.xlu0 %5709
        %v5711 = vsel %vm1390, %v5683, 0.0
        %5712 = vadd.xlane.f32.xlu0 %v5711
        %v5713 = vpop.xlane.xlu0 %5712
        %v5714 = vsel %vm1390, %v5685, 0.0
        %5715 = vadd.xlane.f32.xlu0 %v5714
        %v5716 = vpop.xlane.xlu0 %5715
        %v5717 = vsel %vm1390, %v5687, 0.0
        %5718 = vadd.xlane.f32.xlu0 %v5717
        %v5719 = vpop.xlane.xlu0 %5718
        %v5720 = vsel %vm1390, %v5689, 0.0
        %5721 = vadd.xlane.f32.xlu0 %v5720
        %v5722 = vpop.xlane.xlu0 %5721
        %v5723 = vsel %vm1390, %v5691, 0.0
        %5724 = vadd.xlane.f32.xlu0 %v5723
        %v5725 = vpop.xlane.xlu0 %5724
        %v5726 = vsel %vm1390, %v5693, 0.0
        %5727 = vadd.xlane.f32.xlu0 %v5726
        %v5728 = vpop.xlane.xlu0 %5727
        %v5729 = vsel %vm1390, %v5695, 0.0
        %5730 = vadd.xlane.f32.xlu0 %v5729
        %v5731 = vpop.xlane.xlu0 %5730
        %v5732 = vsel %vm1390, %v5697, 0.0
        %5733 = vadd.xlane.f32.xlu0 %v5732
        %v5734 = vpop.xlane.xlu0 %5733
        %v5735 = vsel %vm1390, %v5699, 0.0
        %5736 = vadd.xlane.f32.xlu0 %v5735
        %v5737 = vpop.xlane.xlu0 %5736
        %v5738 = vsel %vm1427, %v5701, 0.0
        %5739 = vadd.xlane.f32.xlu0 %v5738
        %v5740 = vpop.xlane.xlu0 %5739
        %v5741 = vrcp.pop %v5704
        %v5742 = vrcp.pop %v5707
        %v5743 = vrcp.pop %v5710
        %v5744 = vrcp.pop %v5713
        %v5745 = vrcp.pop %v5716
        %v5746 = vrcp.pop %v5719
        %v5747 = vrcp.pop %v5722
        %v5748 = vrcp.pop %v5725
        %v5749 = vrcp.pop %v5728
        %v5750 = vrcp.pop %v5731
        %v5751 = vrcp.pop %v5734
        %v5752 = vrcp.pop %v5737
        %v5753 = vrcp.pop %v5740
        %v5754 = vmul.f32 %v5677, %v5741
        %v5755 = vmul.f32 %v5679, %v5742
        %v5756 = vmul.f32 %v5681, %v5743
        %v5757 = vmul.f32 %v5683, %v5744
        %v5758 = vmul.f32 %v5685, %v5745
        %v5759 = vmul.f32 %v5687, %v5746
        %v5760 = vmul.f32 %v5689, %v5747
        %v5761 = vmul.f32 %v5691, %v5748
        %v5762 = vmul.f32 %v5693, %v5749
        %v5763 = vmul.f32 %v5695, %v5750
        %v5764 = vmul.f32 %v5697, %v5751
        %v5765 = vmul.f32 %v5699, %v5752
        %v5766 = vmul.f32 %v5701, %v5753
        %s5767 = scalar_lea.vmem [#allocation12], 384
        %v5768 = vld [vmem:[%s5767] sm:$0xff]
        %v5769 = vld [vmem:[%s5767 + $0x8] sm:$0xff]
        %v5770 = vld [vmem:[%s5767 + $0x10] sm:$0xff]
        %v5771 = vld [vmem:[%s5767 + $0x18] sm:$0xff]
        %v5772 = vld [vmem:[%s5767 + $0x20] sm:$0xff]
        %v5773 = vld [vmem:[%s5767 + $0x28] sm:$0xff]
        %v5774 = vld [vmem:[%s5767 + $0x30] sm:$0xff]
        %v5775 = vld [vmem:[%s5767 + $0x38] sm:$0xff]
        %5776 = vmatprep.subr.mxu0 0.0
        %5777 = vmatpush1.msra.mxu0 %v5768
        %5778 = vmatprep.subr.mxu0 0.0
        %5779 = vmatpush1.msra.mxu0 %v5769
        %5780 = vmatprep.subr.mxu0 0.0
        %5781 = vmatpush1.msra.mxu0 %v5770
        %5782 = vmatprep.subr.mxu0 0.0
        %5783 = vmatpush1.msra.mxu0 %v5771
        %5784 = vmatprep.subr.mxu0 0.0
        %5785 = vmatpush1.msra.mxu0 %v5772
        %5786 = vmatprep.subr.mxu0 0.0
        %5787 = vmatpush1.msra.mxu0 %v5773
        %5788 = vmatprep.subr.mxu0 0.0
        %5789 = vmatpush1.msra.mxu0 %v5774
        %5790 = vmatprep.subr.mxu0 0.0
        %5791 = vmatpush1.msra.mxu0 %v5775
        %5792 = vmatprep.subr.mxu0 0.0
        %5793 = vmatpush1.msra.mxu0 0.0
        %5794 = vmatprep.subr.mxu0 0.0
        %5795 = vmatpush1.msra.mxu0 0.0
        %5796 = vmatprep.subr.mxu0 0.0
        %5797 = vmatpush1.msra.mxu0 0.0
        %5798 = vmatprep.subr.mxu0 0.0
        %5799 = vmatpush1.msra.mxu0 0.0
        %5800 = vmatprep.subr.mxu0 0.0
        %5801 = vmatpush1.msra.mxu0 0.0
        %5802 = vmatprep.subr.mxu0 0.0
        %5803 = vmatpush1.msra.mxu0 0.0
        %5804 = vmatprep.subr.mxu0 0.0
        %5805 = vmatpush1.msra.mxu0 0.0
        %5806 = vmatprep.subr.mxu0 0.0
        %5807 = vmatpush1.msra.mxu0 0.0
        %5808 = vmatprep.subr.mxu0 0.0
        %5809 = vmatpush1.msra.mxu0 0.0
        %5810 = vmatprep.subr.mxu0 0.0
        %5811 = vmatpush1.msra.mxu0 0.0
        %5812 = vmatprep.subr.mxu0 0.0
        %5813 = vmatpush1.msra.mxu0 0.0
        %5814 = vmatprep.subr.mxu0 0.0
        %5815 = vmatpush1.msra.mxu0 0.0
        %5816 = vmatprep.subr.mxu0 0.0
        %5817 = vmatpush1.msra.mxu0 0.0
        %5818 = vmatprep.subr.mxu0 0.0
        %5819 = vmatpush1.msra.mxu0 0.0
        %5820 = vmatprep.subr.mxu0 0.0
        %5821 = vmatpush1.msra.mxu0 0.0
        %5822 = vmatprep.subr.mxu0 0.0
        %5823 = vmatpush1.msra.mxu0 0.0
        %5824 = vmatprep.subr.mxu0 0.0
        %5825 = vmatpush1.msra.mxu0 0.0
        %5826 = vmatprep.subr.mxu0 0.0
        %5827 = vmatpush1.msra.mxu0 0.0
        %5828 = vmatprep.subr.mxu0 0.0
        %5829 = vmatpush1.msra.mxu0 0.0
        %5830 = vmatprep.subr.mxu0 0.0
        %5831 = vmatpush1.msra.mxu0 0.0
        %5832 = vmatprep.subr.mxu0 0.0
        %5833 = vmatpush1.msra.mxu0 0.0
        %5834 = vmatprep.subr.mxu0 0.0
        %5835 = vmatpush1.msra.mxu0 0.0
        %5836 = vmatprep.subr.mxu0 0.0
        %5837 = vmatpush1.msra.mxu0 0.0
        %5838 = vmatprep.subr.mxu0 0.0
        %5839 = vmatpush1.msra.mxu0 0.0
        %5840 = vmatprep.mubr.f32.mxu0 0.0
        %5841 = vmatmul.mubr.f32.gmra.mrb[0].mxu0 %v1557
        %v5842 = vpop.f32.mrb[0].mxu0
        %v5843 = vadd.f32 0.0, %v5842
        %v5844 = vpop.f32.mrb[0].mxu0
        %5845 = vmatprep.mubr.f32.mxu0 0.0
        %5846 = vmatmul.mubr.f32.gmra.mrb[0].mxu0 %v1560
        %v5847 = vpop.f32.mrb[0].mxu0
        %v5848 = vadd.f32 0.0, %v5847
        %v5849 = vpop.f32.mrb[0].mxu0
        %5850 = vmatprep.mubr.f32.mxu0 0.0
        %5851 = vmatmul.mubr.f32.gmra.mrb[0].mxu0 %v1563
        %v5852 = vpop.f32.mrb[0].mxu0
        %v5853 = vadd.f32 0.0, %v5852
        %v5854 = vpop.f32.mrb[0].mxu0
        %5855 = vmatprep.mubr.f32.mxu0 0.0
        %5856 = vmatmul.mubr.f32.gmra.mrb[0].mxu0 %v1566
        %v5857 = vpop.f32.mrb[0].mxu0
        %v5858 = vadd.f32 0.0, %v5857
        %v5859 = vpop.f32.mrb[0].mxu0
        %5860 = vmatprep.mubr.f32.mxu0 0.0
        %5861 = vmatmul.mubr.f32.gmra.mrb[0].mxu0 %v1569
        %v5862 = vpop.f32.mrb[0].mxu0
        %v5863 = vadd.f32 0.0, %v5862
        %v5864 = vpop.f32.mrb[0].mxu0
        %5865 = vmatprep.mubr.f32.mxu0 0.0
        %5866 = vmatmul.mubr.f32.gmra.mrb[0].mxu0 %v1572
        %v5867 = vpop.f32.mrb[0].mxu0
        %v5868 = vadd.f32 0.0, %v5867
        %v5869 = vpop.f32.mrb[0].mxu0
        %5870 = vmatprep.mubr.f32.mxu0 0.0
        %5871 = vmatmul.mubr.f32.gmra.mrb[0].mxu0 %v1575
        %v5872 = vpop.f32.mrb[0].mxu0
        %v5873 = vadd.f32 0.0, %v5872
        %v5874 = vpop.f32.mrb[0].mxu0
        %5875 = vmatprep.mubr.f32.mxu0 0.0
        %5876 = vmatmul.mubr.f32.gmra.mrb[0].mxu0 %v1578
        %v5877 = vpop.f32.mrb[0].mxu0
        %v5878 = vadd.f32 0.0, %v5877
        %v5879 = vpop.f32.mrb[0].mxu0
        %5880 = vmatprep.mubr.f32.mxu0 0.0
        %5881 = vmatmul.mubr.f32.gmra.mrb[0].mxu0 %v1581
        %v5882 = vpop.f32.mrb[0].mxu0
        %v5883 = vadd.f32 0.0, %v5882
        %v5884 = vpop.f32.mrb[0].mxu0
        %5885 = vmatprep.mubr.f32.mxu0 0.0
        %5886 = vmatmul.mubr.f32.gmra.mrb[0].mxu0 %v1584
        %v5887 = vpop.f32.mrb[0].mxu0
        %v5888 = vadd.f32 0.0, %v5887
        %v5889 = vpop.f32.mrb[0].mxu0
        %5890 = vmatprep.mubr.f32.mxu0 0.0
        %5891 = vmatmul.mubr.f32.gmra.mrb[0].mxu0 %v1587
        %v5892 = vpop.f32.mrb[0].mxu0
        %v5893 = vadd.f32 0.0, %v5892
        %v5894 = vpop.f32.mrb[0].mxu0
        %5895 = vmatprep.mubr.f32.mxu0 0.0
        %5896 = vmatmul.mubr.f32.gmra.mrb[0].mxu0 %v1590
        %v5897 = vpop.f32.mrb[0].mxu0
        %v5898 = vadd.f32 0.0, %v5897
        %v5899 = vpop.f32.mrb[0].mxu0
        %5900 = vmatprep.mubr.f32.mxu0 0.0
        %5901 = vmatmul.mubr.f32.gmra.mrb[0].mxu0 %v1593
        %v5902 = vpop.f32.mrb[0].mxu0
        %v5903 = vadd.f32 0.0, %v5902
        %v5904 = vpop.f32.mrb[0].mxu0
        %5905 = vdwg.mxu0
        %v5907 = vsel %vm1390, %v5754, 0
        %v5910 = vsel %vm1390, %v5755, 0
        %v5913 = vsel %vm1390, %v5756, 0
        %v5916 = vsel %vm1390, %v5757, 0
        %v5919 = vsel %vm1390, %v5758, 0
        %v5922 = vsel %vm1390, %v5759, 0
        %v5925 = vsel %vm1390, %v5760, 0
        %v5928 = vsel %vm1390, %v5761, 0
        %v5931 = vsel %vm1390, %v5762, 0
        %v5934 = vsel %vm1390, %v5763, 0
        %v5937 = vsel %vm1390, %v5764, 0
        %v5940 = vsel %vm1390, %v5765, 0
        %v5943 = vsel %vm1390, %v5766, 0
        %v5946 = vsel %vm2280, %v5903, 0
        %5948 = vmatprep.subr.mxu0 0.0
        %5949 = vmatpush1.msra.mxu0 %v5843
        %5950 = vmatprep.subr.mxu0 0.0
        %5951 = vmatpush1.msra.mxu0 %v5848
        %5952 = vmatprep.subr.mxu0 0.0
        %5953 = vmatpush1.msra.mxu0 %v5853
        %5954 = vmatprep.subr.mxu0 0.0
        %5955 = vmatpush1.msra.mxu0 %v5858
        %5956 = vmatprep.subr.mxu0 0.0
        %5957 = vmatpush1.msra.mxu0 %v5863
        %5958 = vmatprep.subr.mxu0 0.0
        %5959 = vmatpush1.msra.mxu0 %v5868
        %5960 = vmatprep.subr.mxu0 0.0
        %5961 = vmatpush1.msra.mxu0 %v5873
        %5962 = vmatprep.subr.mxu0 0.0
        %5963 = vmatpush1.msra.mxu0 %v5878
        %5964 = vmatprep.subr.mxu0 0.0
        %5965 = vmatpush1.msra.mxu0 %v5883
        %5966 = vmatprep.subr.mxu0 0.0
        %5967 = vmatpush1.msra.mxu0 %v5888
        %5968 = vmatprep.subr.mxu0 0.0
        %5969 = vmatpush1.msra.mxu0 %v5893
        %5970 = vmatprep.subr.mxu0 0.0
        %5971 = vmatpush1.msra.mxu0 %v5898
        %5972 = vmatprep.subr.mxu0 0.0
        %5973 = vmatpush1.msra.mxu0 %v5946
        %5974 = vmatprep.subr.mxu0 0.0
        %5975 = vmatpush1.msra.mxu0 0.0
        %5976 = vmatprep.subr.mxu0 0.0
        %5977 = vmatpush1.msra.mxu0 0.0
        %5978 = vmatprep.subr.mxu0 0.0
        %5979 = vmatpush1.msra.mxu0 0.0
        %5980 = vmatprep.subr.mxu0 0.0
        %5981 = vmatpush1.msra.mxu0 0.0
        %5982 = vmatprep.subr.mxu0 0.0
        %5983 = vmatpush1.msra.mxu0 0.0
        %5984 = vmatprep.subr.mxu0 0.0
        %5985 = vmatpush1.msra.mxu0 0.0
        %5986 = vmatprep.subr.mxu0 0.0
        %5987 = vmatpush1.msra.mxu0 0.0
        %5988 = vmatprep.subr.mxu0 0.0
        %5989 = vmatpush1.msra.mxu0 0.0
        %5990 = vmatprep.subr.mxu0 0.0
        %5991 = vmatpush1.msra.mxu0 0.0
        %5992 = vmatprep.subr.mxu0 0.0
        %5993 = vmatpush1.msra.mxu0 0.0
        %5994 = vmatprep.subr.mxu0 0.0
        %5995 = vmatpush1.msra.mxu0 0.0
        %5996 = vmatprep.subr.mxu0 0.0
        %5997 = vmatpush1.msra.mxu0 0.0
        %5998 = vmatprep.subr.mxu0 0.0
        %5999 = vmatpush1.msra.mxu0 0.0
        %6000 = vmatprep.subr.mxu0 0.0
        %6001 = vmatpush1.msra.mxu0 0.0
        %6002 = vmatprep.subr.mxu0 0.0
        %6003 = vmatpush1.msra.mxu0 0.0
        %6004 = vmatprep.subr.mxu0 0.0
        %6005 = vmatpush1.msra.mxu0 0.0
        %6006 = vmatprep.subr.mxu0 0.0
        %6007 = vmatpush1.msra.mxu0 0.0
        %6008 = vmatprep.subr.mxu0 0.0
        %6009 = vmatpush1.msra.mxu0 0.0
        %6010 = vmatprep.subr.mxu0 0.0
        %6011 = vmatpush1.msra.mxu0 0.0
        %6012 = vmatprep.mubr.f32.mxu0 0.0
        %6013 = vmatmul.mubr.f32.gmra.mrb[0].mxu0 %v5907
        %v6014 = vpop.f32.mrb[0].mxu0
        %v6015 = vadd.f32 0.0, %v6014
        %v6016 = vpop.f32.mrb[0].mxu0
        %6017 = vmatprep.mubr.f32.mxu0 0.0
        %6018 = vmatmul.mubr.f32.gmra.mrb[0].mxu0 %v5910
        %v6019 = vpop.f32.mrb[0].mxu0
        %v6020 = vadd.f32 0.0, %v6019
        %v6021 = vpop.f32.mrb[0].mxu0
        %6022 = vmatprep.mubr.f32.mxu0 0.0
        %6023 = vmatmul.mubr.f32.gmra.mrb[0].mxu0 %v5913
        %v6024 = vpop.f32.mrb[0].mxu0
        %v6025 = vadd.f32 0.0, %v6024
        %v6026 = vpop.f32.mrb[0].mxu0
        %6027 = vmatprep.mubr.f32.mxu0 0.0
        %6028 = vmatmul.mubr.f32.gmra.mrb[0].mxu0 %v5916
        %v6029 = vpop.f32.mrb[0].mxu0
        %v6030 = vadd.f32 0.0, %v6029
        %v6031 = vpop.f32.mrb[0].mxu0
        %6032 = vmatprep.mubr.f32.mxu0 0.0
        %6033 = vmatmul.mubr.f32.gmra.mrb[0].mxu0 %v5919
        %v6034 = vpop.f32.mrb[0].mxu0
        %v6035 = vadd.f32 0.0, %v6034
        %v6036 = vpop.f32.mrb[0].mxu0
        %6037 = vmatprep.mubr.f32.mxu0 0.0
        %6038 = vmatmul.mubr.f32.gmra.mrb[0].mxu0 %v5922
        %v6039 = vpop.f32.mrb[0].mxu0
        %v6040 = vadd.f32 0.0, %v6039
        %v6041 = vpop.f32.mrb[0].mxu0
        %6042 = vmatprep.mubr.f32.mxu0 0.0
        %6043 = vmatmul.mubr.f32.gmra.mrb[0].mxu0 %v5925
        %v6044 = vpop.f32.mrb[0].mxu0
        %v6045 = vadd.f32 0.0, %v6044
        %v6046 = vpop.f32.mrb[0].mxu0
        %6047 = vmatprep.mubr.f32.mxu0 0.0
        %6048 = vmatmul.mubr.f32.gmra.mrb[0].mxu0 %v5928
        %v6049 = vpop.f32.mrb[0].mxu0
        %v6050 = vadd.f32 0.0, %v6049
        %v6051 = vpop.f32.mrb[0].mxu0
        %6052 = vmatprep.mubr.f32.mxu0 0.0
        %6053 = vmatmul.mubr.f32.gmra.mrb[0].mxu0 %v5931
        %v6054 = vpop.f32.mrb[0].mxu0
        %v6055 = vadd.f32 0.0, %v6054
        %v6056 = vpop.f32.mrb[0].mxu0
        %6057 = vmatprep.mubr.f32.mxu0 0.0
        %6058 = vmatmul.mubr.f32.gmra.mrb[0].mxu0 %v5934
        %v6059 = vpop.f32.mrb[0].mxu0
        %v6060 = vadd.f32 0.0, %v6059
        %v6061 = vpop.f32.mrb[0].mxu0
        %6062 = vmatprep.mubr.f32.mxu0 0.0
        %6063 = vmatmul.mubr.f32.gmra.mrb[0].mxu0 %v5937
        %v6064 = vpop.f32.mrb[0].mxu0
        %v6065 = vadd.f32 0.0, %v6064
        %v6066 = vpop.f32.mrb[0].mxu0
        %6067 = vmatprep.mubr.f32.mxu0 0.0
        %6068 = vmatmul.mubr.f32.gmra.mrb[0].mxu0 %v5940
        %v6069 = vpop.f32.mrb[0].mxu0
        %v6070 = vadd.f32 0.0, %v6069
        %v6071 = vpop.f32.mrb[0].mxu0
        %6072 = vmatprep.mubr.f32.mxu0 0.0
        %6073 = vmatmul.mubr.f32.gmra.mrb[0].mxu0 %v5943
        %v6074 = vpop.f32.mrb[0].mxu0
        %v6075 = vadd.f32 0.0, %v6074
        %v6076 = vpop.f32.mrb[0].mxu0
        %6077 = vdwg.mxu0
        %v6078 = vadd.f32 %v5377, %v6015
        %v6079 = vadd.f32 %v5378, %v6020
        %v6080 = vadd.f32 %v5379, %v6025
        %v6081 = vadd.f32 %v5380, %v6030
        %v6082 = vadd.f32 %v5381, %v6035
        %v6083 = vadd.f32 %v5382, %v6040
        %v6084 = vadd.f32 %v5383, %v6045
        %v6085 = vadd.f32 %v5384, %v6050
        %v6086 = vadd.f32 %v5385, %v6055
        %v6087 = vadd.f32 %v5386, %v6060
        %v6088 = vadd.f32 %v5387, %v6065
        %v6089 = vadd.f32 %v5388, %v6070
        %v6090 = vadd.f32 %v5389, %v6075
        %6091 = vrot.lane.b32.xlu0 %v1155, 72
        %v6092 = vpop.permute.xlu0 %6091
        %6093 = vrot.lane.b32.xlu0 %v1156, 72
        %v6094 = vpop.permute.xlu0 %6093
        %6095 = vrot.lane.b32.xlu0 %v1157, 72
        %v6096 = vpop.permute.xlu0 %6095
        %6097 = vrot.lane.b32.xlu0 %v1158, 72
        %v6098 = vpop.permute.xlu0 %6097
        %6099 = vrot.lane.b32.xlu0 %v1159, 72
        %v6100 = vpop.permute.xlu0 %6099
        %6101 = vrot.lane.b32.xlu0 %v1160, 72
        %v6102 = vpop.permute.xlu0 %6101
        %6103 = vrot.lane.b32.xlu0 %v1161, 72
        %v6104 = vpop.permute.xlu0 %6103
        %6105 = vrot.lane.b32.xlu0 %v1162, 72
        %v6106 = vpop.permute.xlu0 %6105
        %6107 = vrot.lane.b32.xlu0 %v1163, 72
        %v6108 = vpop.permute.xlu0 %6107
        %6109 = vrot.lane.b32.xlu0 %v1164, 72
        %v6110 = vpop.permute.xlu0 %6109
        %6111 = vrot.lane.b32.xlu0 %v1165, 72
        %v6112 = vpop.permute.xlu0 %6111
        %6113 = vrot.lane.b32.xlu0 %v1166, 72
        %v6114 = vpop.permute.xlu0 %6113
        %6115 = vrot.lane.b32.xlu0 %v1167, 72
        %v6116 = vpop.permute.xlu0 %6115
        %6117 = vrot.lane.b32.xlu0 %v1155, 8
        %v6118 = vpop.permute.xlu0 %6117
        %6119 = vrot.lane.b32.xlu0 %v1156, 8
        %v6120 = vpop.permute.xlu0 %6119
        %6121 = vrot.lane.b32.xlu0 %v1157, 8
        %v6122 = vpop.permute.xlu0 %6121
        %6123 = vrot.lane.b32.xlu0 %v1158, 8
        %v6124 = vpop.permute.xlu0 %6123
        %6125 = vrot.lane.b32.xlu0 %v1159, 8
        %v6126 = vpop.permute.xlu0 %6125
        %6127 = vrot.lane.b32.xlu0 %v1160, 8
        %v6128 = vpop.permute.xlu0 %6127
        %6129 = vrot.lane.b32.xlu0 %v1161, 8
        %v6130 = vpop.permute.xlu0 %6129
        %6131 = vrot.lane.b32.xlu0 %v1162, 8
        %v6132 = vpop.permute.xlu0 %6131
        %6133 = vrot.lane.b32.xlu0 %v1163, 8
        %v6134 = vpop.permute.xlu0 %6133
        %6135 = vrot.lane.b32.xlu0 %v1164, 8
        %v6136 = vpop.permute.xlu0 %6135
        %6137 = vrot.lane.b32.xlu0 %v1165, 8
        %v6138 = vpop.permute.xlu0 %6137
        %6139 = vrot.lane.b32.xlu0 %v1166, 8
        %v6140 = vpop.permute.xlu0 %6139
        %6141 = vrot.lane.b32.xlu0 %v1167, 8
        %v6142 = vpop.permute.xlu0 %6141
        %v6143 = vsel %vm1207, %v6092, 0
        %v6145 = vsel %vm1207, %v6094, 0
        %v6147 = vsel %vm1207, %v6096, 0
        %v6149 = vsel %vm1207, %v6098, 0
        %v6151 = vsel %vm1207, %v6100, 0
        %v6153 = vsel %vm1207, %v6102, 0
        %v6155 = vsel %vm1207, %v6104, 0
        %v6157 = vsel %vm1207, %v6106, 0
        %v6159 = vsel %vm1207, %v6108, 0
        %v6161 = vsel %vm1207, %v6110, 0
        %v6163 = vsel %vm1207, %v6112, 0
        %v6165 = vsel %vm1207, %v6114, 0
        %v6167 = vsel %vm1207, %v6116, 0
        %v6169 = vsel %vm1207, %v6118, 0
        %v6171 = vsel %vm1207, %v6120, 0
        %v6173 = vsel %vm1207, %v6122, 0
        %v6175 = vsel %vm1207, %v6124, 0
        %v6177 = vsel %vm1207, %v6126, 0
        %v6179 = vsel %vm1207, %v6128, 0
        %v6181 = vsel %vm1207, %v6130, 0
        %v6183 = vsel %vm1207, %v6132, 0
        %v6185 = vsel %vm1207, %v6134, 0
        %v6187 = vsel %vm1207, %v6136, 0
        %v6189 = vsel %vm1207, %v6138, 0
        %v6191 = vsel %vm1207, %v6140, 0
        %v6193 = vsel %vm1207, %v6142, 0
        %6195 = vmatprep.subr.mxu0 0.0
        %6196 = vmatpush1.xpose.msra.mxu0 %v6169
        %6197 = vmatprep.subr.mxu0 0.0
        %6198 = vmatpush1.xpose.msra.mxu0 %v6171
        %6199 = vmatprep.subr.mxu0 0.0
        %6200 = vmatpush1.xpose.msra.mxu0 %v6173
        %6201 = vmatprep.subr.mxu0 0.0
        %6202 = vmatpush1.xpose.msra.mxu0 %v6175
        %6203 = vmatprep.subr.mxu0 0.0
        %6204 = vmatpush1.xpose.msra.mxu0 %v6177
        %6205 = vmatprep.subr.mxu0 0.0
        %6206 = vmatpush1.xpose.msra.mxu0 %v6179
        %6207 = vmatprep.subr.mxu0 0.0
        %6208 = vmatpush1.xpose.msra.mxu0 %v6181
        %6209 = vmatprep.subr.mxu0 0.0
        %6210 = vmatpush1.xpose.msra.mxu0 %v6183
        %6211 = vmatprep.subr.mxu0 0.0
        %6212 = vmatpush1.xpose.msra.mxu0 %v6185
        %6213 = vmatprep.subr.mxu0 0.0
        %6214 = vmatpush1.xpose.msra.mxu0 %v6187
        %6215 = vmatprep.subr.mxu0 0.0
        %6216 = vmatpush1.xpose.msra.mxu0 %v6189
        %6217 = vmatprep.subr.mxu0 0.0
        %6218 = vmatpush1.xpose.msra.mxu0 %v6191
        %6219 = vmatprep.subr.mxu0 0.0
        %6220 = vmatpush1.xpose.msra.mxu0 %v6193
        %6221 = vmatprep.subr.mxu0 0.0
        %6222 = vmatpush1.xpose.msra.mxu0 0.0
        %6223 = vmatprep.subr.mxu0 0.0
        %6224 = vmatpush1.xpose.msra.mxu0 0.0
        %6225 = vmatprep.subr.mxu0 0.0
        %6226 = vmatpush1.xpose.msra.mxu0 0.0
        %6227 = vmatprep.subr.mxu0 0.0
        %6228 = vmatpush1.xpose.msra.mxu0 0.0
        %6229 = vmatprep.subr.mxu0 0.0
        %6230 = vmatpush1.xpose.msra.mxu0 0.0
        %6231 = vmatprep.subr.mxu0 0.0
        %6232 = vmatpush1.xpose.msra.mxu0 0.0
        %6233 = vmatprep.subr.mxu0 0.0
        %6234 = vmatpush1.xpose.msra.mxu0 0.0
        %6235 = vmatprep.subr.mxu0 0.0
        %6236 = vmatpush1.xpose.msra.mxu0 0.0
        %6237 = vmatprep.subr.mxu0 0.0
        %6238 = vmatpush1.xpose.msra.mxu0 0.0
        %6239 = vmatprep.subr.mxu0 0.0
        %6240 = vmatpush1.xpose.msra.mxu0 0.0
        %6241 = vmatprep.subr.mxu0 0.0
        %6242 = vmatpush1.xpose.msra.mxu0 0.0
        %6243 = vmatprep.subr.mxu0 0.0
        %6244 = vmatpush1.xpose.msra.mxu0 0.0
        %6245 = vmatprep.subr.mxu0 0.0
        %6246 = vmatpush1.xpose.msra.mxu0 0.0
        %6247 = vmatprep.subr.mxu0 0.0
        %6248 = vmatpush1.xpose.msra.mxu0 0.0
        %6249 = vmatprep.subr.mxu0 0.0
        %6250 = vmatpush1.xpose.msra.mxu0 0.0
        %6251 = vmatprep.subr.mxu0 0.0
        %6252 = vmatpush1.xpose.msra.mxu0 0.0
        %6253 = vmatprep.subr.mxu0 0.0
        %6254 = vmatpush1.xpose.msra.mxu0 0.0
        %6255 = vmatprep.subr.mxu0 0.0
        %6256 = vmatpush1.xpose.msra.mxu0 0.0
        %6257 = vmatprep.subr.mxu0 0.0
        %6258 = vmatpush1.xpose.msra.mxu0 0.0
        %6259 = vmatprep.mubr.f32.mxu0 0.0
        %6260 = vmatmul.mubr.f32.gmra.mrb[0].mxu0 %v6143
        %v6261 = vpop.f32.mrb[0].mxu0
        %v6262 = vadd.f32 0.0, %v6261
        %v6263 = vpop.f32.mrb[0].mxu0
        %6264 = vmatprep.mubr.f32.mxu0 0.0
        %6265 = vmatmul.mubr.f32.gmra.mrb[0].mxu0 %v6145
        %v6266 = vpop.f32.mrb[0].mxu0
        %v6267 = vadd.f32 0.0, %v6266
        %v6268 = vpop.f32.mrb[0].mxu0
        %6269 = vmatprep.mubr.f32.mxu0 0.0
        %6270 = vmatmul.mubr.f32.gmra.mrb[0].mxu0 %v6147
        %v6271 = vpop.f32.mrb[0].mxu0
        %v6272 = vadd.f32 0.0, %v6271
        %v6273 = vpop.f32.mrb[0].mxu0
        %6274 = vmatprep.mubr.f32.mxu0 0.0
        %6275 = vmatmul.mubr.f32.gmra.mrb[0].mxu0 %v6149
        %v6276 = vpop.f32.mrb[0].mxu0
        %v6277 = vadd.f32 0.0, %v6276
        %v6278 = vpop.f32.mrb[0].mxu0
        %6279 = vmatprep.mubr.f32.mxu0 0.0
        %6280 = vmatmul.mubr.f32.gmra.mrb[0].mxu0 %v6151
        %v6281 = vpop.f32.mrb[0].mxu0
        %v6282 = vadd.f32 0.0, %v6281
        %v6283 = vpop.f32.mrb[0].mxu0
        %6284 = vmatprep.mubr.f32.mxu0 0.0
        %6285 = vmatmul.mubr.f32.gmra.mrb[0].mxu0 %v6153
        %v6286 = vpop.f32.mrb[0].mxu0
        %v6287 = vadd.f32 0.0, %v6286
        %v6288 = vpop.f32.mrb[0].mxu0
        %6289 = vmatprep.mubr.f32.mxu0 0.0
        %6290 = vmatmul.mubr.f32.gmra.mrb[0].mxu0 %v6155
        %v6291 = vpop.f32.mrb[0].mxu0
        %v6292 = vadd.f32 0.0, %v6291
        %v6293 = vpop.f32.mrb[0].mxu0
        %6294 = vmatprep.mubr.f32.mxu0 0.0
        %6295 = vmatmul.mubr.f32.gmra.mrb[0].mxu0 %v6157
        %v6296 = vpop.f32.mrb[0].mxu0
        %v6297 = vadd.f32 0.0, %v6296
        %v6298 = vpop.f32.mrb[0].mxu0
        %6299 = vmatprep.mubr.f32.mxu0 0.0
        %6300 = vmatmul.mubr.f32.gmra.mrb[0].mxu0 %v6159
        %v6301 = vpop.f32.mrb[0].mxu0
        %v6302 = vadd.f32 0.0, %v6301
        %v6303 = vpop.f32.mrb[0].mxu0
        %6304 = vmatprep.mubr.f32.mxu0 0.0
        %6305 = vmatmul.mubr.f32.gmra.mrb[0].mxu0 %v6161
        %v6306 = vpop.f32.mrb[0].mxu0
        %v6307 = vadd.f32 0.0, %v6306
        %v6308 = vpop.f32.mrb[0].mxu0
        %6309 = vmatprep.mubr.f32.mxu0 0.0
        %6310 = vmatmul.mubr.f32.gmra.mrb[0].mxu0 %v6163
        %v6311 = vpop.f32.mrb[0].mxu0
        %v6312 = vadd.f32 0.0, %v6311
        %v6313 = vpop.f32.mrb[0].mxu0
        %6314 = vmatprep.mubr.f32.mxu0 0.0
        %6315 = vmatmul.mubr.f32.gmra.mrb[0].mxu0 %v6165
        %v6316 = vpop.f32.mrb[0].mxu0
        %v6317 = vadd.f32 0.0, %v6316
        %v6318 = vpop.f32.mrb[0].mxu0
        %6319 = vmatprep.mubr.f32.mxu0 0.0
        %6320 = vmatmul.mubr.f32.gmra.mrb[0].mxu0 %v6167
        %v6321 = vpop.f32.mrb[0].mxu0
        %v6322 = vadd.f32 0.0, %v6321
        %v6323 = vpop.f32.mrb[0].mxu0
        %6324 = vdwg.mxu0
        %v6325 = vsel %vm1390, %v6262, -inf
        %6326 = vmax.xlane.f32.xlu0 %v6325
        %v6327 = vpop.xlane.xlu0 %6326
        %v6328 = vsel %vm1390, %v6267, -inf
        %6329 = vmax.xlane.f32.xlu0 %v6328
        %v6330 = vpop.xlane.xlu0 %6329
        %v6331 = vsel %vm1390, %v6272, -inf
        %6332 = vmax.xlane.f32.xlu0 %v6331
        %v6333 = vpop.xlane.xlu0 %6332
        %v6334 = vsel %vm1390, %v6277, -inf
        %6335 = vmax.xlane.f32.xlu0 %v6334
        %v6336 = vpop.xlane.xlu0 %6335
        %v6337 = vsel %vm1390, %v6282, -inf
        %6338 = vmax.xlane.f32.xlu0 %v6337
        %v6339 = vpop.xlane.xlu0 %6338
        %v6340 = vsel %vm1390, %v6287, -inf
        %6341 = vmax.xlane.f32.xlu0 %v6340
        %v6342 = vpop.xlane.xlu0 %6341
        %v6343 = vsel %vm1390, %v6292, -inf
        %6344 = vmax.xlane.f32.xlu0 %v6343
        %v6345 = vpop.xlane.xlu0 %6344
        %v6346 = vsel %vm1390, %v6297, -inf
        %6347 = vmax.xlane.f32.xlu0 %v6346
        %v6348 = vpop.xlane.xlu0 %6347
        %v6349 = vsel %vm1390, %v6302, -inf
        %6350 = vmax.xlane.f32.xlu0 %v6349
        %v6351 = vpop.xlane.xlu0 %6350
        %v6352 = vsel %vm1390, %v6307, -inf
        %6353 = vmax.xlane.f32.xlu0 %v6352
        %v6354 = vpop.xlane.xlu0 %6353
        %v6355 = vsel %vm1390, %v6312, -inf
        %6356 = vmax.xlane.f32.xlu0 %v6355
        %v6357 = vpop.xlane.xlu0 %6356
        %v6358 = vsel %vm1390, %v6317, -inf
        %6359 = vmax.xlane.f32.xlu0 %v6358
        %v6360 = vpop.xlane.xlu0 %6359
        %v6361 = vsel %vm1427, %v6322, -inf
        %6362 = vmax.xlane.f32.xlu0 %v6361
        %v6363 = vpop.xlane.xlu0 %6362
        %v6364 = vsub.f32 %v6262, %v6327
        %v6365 = vsub.f32 %v6267, %v6330
        %v6366 = vsub.f32 %v6272, %v6333
        %v6367 = vsub.f32 %v6277, %v6336
        %v6368 = vsub.f32 %v6282, %v6339
        %v6369 = vsub.f32 %v6287, %v6342
        %v6370 = vsub.f32 %v6292, %v6345
        %v6371 = vsub.f32 %v6297, %v6348
        %v6372 = vsub.f32 %v6302, %v6351
        %v6373 = vsub.f32 %v6307, %v6354
        %v6374 = vsub.f32 %v6312, %v6357
        %v6375 = vsub.f32 %v6317, %v6360
        %v6376 = vsub.f32 %v6322, %v6363
        %v6377 = vmul.f32 %v6364, 1.442695
        %v6378 = vpow.pop %v6377
        %v6379 = vmul.f32 %v6365, 1.442695
        %v6380 = vpow.pop %v6379
        %v6381 = vmul.f32 %v6366, 1.442695
        %v6382 = vpow.pop %v6381
        %v6383 = vmul.f32 %v6367, 1.442695
        %v6384 = vpow.pop %v6383
        %v6385 = vmul.f32 %v6368, 1.442695
        %v6386 = vpow.pop %v6385
        %v6387 = vmul.f32 %v6369, 1.442695
        %v6388 = vpow.pop %v6387
        %v6389 = vmul.f32 %v6370, 1.442695
        %v6390 = vpow.pop %v6389
        %v6391 = vmul.f32 %v6371, 1.442695
        %v6392 = vpow.pop %v6391
        %v6393 = vmul.f32 %v6372, 1.442695
        %v6394 = vpow.pop %v6393
        %v6395 = vmul.f32 %v6373, 1.442695
        %v6396 = vpow.pop %v6395
        %v6397 = vmul.f32 %v6374, 1.442695
        %v6398 = vpow.pop %v6397
        %v6399 = vmul.f32 %v6375, 1.442695
        %v6400 = vpow.pop %v6399
        %v6401 = vmul.f32 %v6376, 1.442695
        %v6402 = vpow.pop %v6401
        %v6403 = vsel %vm1390, %v6378, 0.0
        %6404 = vadd.xlane.f32.xlu0 %v6403
        %v6405 = vpop.xlane.xlu0 %6404
        %v6406 = vsel %vm1390, %v6380, 0.0
        %6407 = vadd.xlane.f32.xlu0 %v6406
        %v6408 = vpop.xlane.xlu0 %6407
        %v6409 = vsel %vm1390, %v6382, 0.0
        %6410 = vadd.xlane.f32.xlu0 %v6409
        %v6411 = vpop.xlane.xlu0 %6410
        %v6412 = vsel %vm1390, %v6384, 0.0
        %6413 = vadd.xlane.f32.xlu0 %v6412
        %v6414 = vpop.xlane.xlu0 %6413
        %v6415 = vsel %vm1390, %v6386, 0.0
        %6416 = vadd.xlane.f32.xlu0 %v6415
        %v6417 = vpop.xlane.xlu0 %6416
        %v6418 = vsel %vm1390, %v6388, 0.0
        %6419 = vadd.xlane.f32.xlu0 %v6418
        %v6420 = vpop.xlane.xlu0 %6419
        %v6421 = vsel %vm1390, %v6390, 0.0
        %6422 = vadd.xlane.f32.xlu0 %v6421
        %v6423 = vpop.xlane.xlu0 %6422
        %v6424 = vsel %vm1390, %v6392, 0.0
        %6425 = vadd.xlane.f32.xlu0 %v6424
        %v6426 = vpop.xlane.xlu0 %6425
        %v6427 = vsel %vm1390, %v6394, 0.0
        %6428 = vadd.xlane.f32.xlu0 %v6427
        %v6429 = vpop.xlane.xlu0 %6428
        %v6430 = vsel %vm1390, %v6396, 0.0
        %6431 = vadd.xlane.f32.xlu0 %v6430
        %v6432 = vpop.xlane.xlu0 %6431
        %v6433 = vsel %vm1390, %v6398, 0.0
        %6434 = vadd.xlane.f32.xlu0 %v6433
        %v6435 = vpop.xlane.xlu0 %6434
        %v6436 = vsel %vm1390, %v6400, 0.0
        %6437 = vadd.xlane.f32.xlu0 %v6436
        %v6438 = vpop.xlane.xlu0 %6437
        %v6439 = vsel %vm1427, %v6402, 0.0
        %6440 = vadd.xlane.f32.xlu0 %v6439
        %v6441 = vpop.xlane.xlu0 %6440
        %v6442 = vrcp.pop %v6405
        %v6443 = vrcp.pop %v6408
        %v6444 = vrcp.pop %v6411
        %v6445 = vrcp.pop %v6414
        %v6446 = vrcp.pop %v6417
        %v6447 = vrcp.pop %v6420
        %v6448 = vrcp.pop %v6423
        %v6449 = vrcp.pop %v6426
        %v6450 = vrcp.pop %v6429
        %v6451 = vrcp.pop %v6432
        %v6452 = vrcp.pop %v6435
        %v6453 = vrcp.pop %v6438
        %v6454 = vrcp.pop %v6441
        %v6455 = vmul.f32 %v6378, %v6442
        %v6456 = vmul.f32 %v6380, %v6443
        %v6457 = vmul.f32 %v6382, %v6444
        %v6458 = vmul.f32 %v6384, %v6445
        %v6459 = vmul.f32 %v6386, %v6446
        %v6460 = vmul.f32 %v6388, %v6447
        %v6461 = vmul.f32 %v6390, %v6448
        %v6462 = vmul.f32 %v6392, %v6449
        %v6463 = vmul.f32 %v6394, %v6450
        %v6464 = vmul.f32 %v6396, %v6451
        %v6465 = vmul.f32 %v6398, %v6452
        %v6466 = vmul.f32 %v6400, %v6453
        %v6467 = vmul.f32 %v6402, %v6454
        %s6468 = scalar_lea.vmem [#allocation12], 448
        %v6469 = vld [vmem:[%s6468] sm:$0xff]
        %v6470 = vld [vmem:[%s6468 + $0x8] sm:$0xff]
        %v6471 = vld [vmem:[%s6468 + $0x10] sm:$0xff]
        %v6472 = vld [vmem:[%s6468 + $0x18] sm:$0xff]
        %v6473 = vld [vmem:[%s6468 + $0x20] sm:$0xff]
        %v6474 = vld [vmem:[%s6468 + $0x28] sm:$0xff]
        %v6475 = vld [vmem:[%s6468 + $0x30] sm:$0xff]
        %v6476 = vld [vmem:[%s6468 + $0x38] sm:$0xff]
        %6477 = vmatprep.subr.mxu0 0.0
        %6478 = vmatpush1.msra.mxu0 %v6469
        %6479 = vmatprep.subr.mxu0 0.0
        %6480 = vmatpush1.msra.mxu0 %v6470
        %6481 = vmatprep.subr.mxu0 0.0
        %6482 = vmatpush1.msra.mxu0 %v6471
        %6483 = vmatprep.subr.mxu0 0.0
        %6484 = vmatpush1.msra.mxu0 %v6472
        %6485 = vmatprep.subr.mxu0 0.0
        %6486 = vmatpush1.msra.mxu0 %v6473
        %6487 = vmatprep.subr.mxu0 0.0
        %6488 = vmatpush1.msra.mxu0 %v6474
        %6489 = vmatprep.subr.mxu0 0.0
        %6490 = vmatpush1.msra.mxu0 %v6475
        %6491 = vmatprep.subr.mxu0 0.0
        %6492 = vmatpush1.msra.mxu0 %v6476
        %6493 = vmatprep.subr.mxu0 0.0
        %6494 = vmatpush1.msra.mxu0 0.0
        %6495 = vmatprep.subr.mxu0 0.0
        %6496 = vmatpush1.msra.mxu0 0.0
        %6497 = vmatprep.subr.mxu0 0.0
        %6498 = vmatpush1.msra.mxu0 0.0
        %6499 = vmatprep.subr.mxu0 0.0
        %6500 = vmatpush1.msra.mxu0 0.0
        %6501 = vmatprep.subr.mxu0 0.0
        %6502 = vmatpush1.msra.mxu0 0.0
        %6503 = vmatprep.subr.mxu0 0.0
        %6504 = vmatpush1.msra.mxu0 0.0
        %6505 = vmatprep.subr.mxu0 0.0
        %6506 = vmatpush1.msra.mxu0 0.0
        %6507 = vmatprep.subr.mxu0 0.0
        %6508 = vmatpush1.msra.mxu0 0.0
        %6509 = vmatprep.subr.mxu0 0.0
        %6510 = vmatpush1.msra.mxu0 0.0
        %6511 = vmatprep.subr.mxu0 0.0
        %6512 = vmatpush1.msra.mxu0 0.0
        %6513 = vmatprep.subr.mxu0 0.0
        %6514 = vmatpush1.msra.mxu0 0.0
        %6515 = vmatprep.subr.mxu0 0.0
        %6516 = vmatpush1.msra.mxu0 0.0
        %6517 = vmatprep.subr.mxu0 0.0
        %6518 = vmatpush1.msra.mxu0 0.0
        %6519 = vmatprep.subr.mxu0 0.0
        %6520 = vmatpush1.msra.mxu0 0.0
        %6521 = vmatprep.subr.mxu0 0.0
        %6522 = vmatpush1.msra.mxu0 0.0
        %6523 = vmatprep.subr.mxu0 0.0
        %6524 = vmatpush1.msra.mxu0 0.0
        %6525 = vmatprep.subr.mxu0 0.0
        %6526 = vmatpush1.msra.mxu0 0.0
        %6527 = vmatprep.subr.mxu0 0.0
        %6528 = vmatpush1.msra.mxu0 0.0
        %6529 = vmatprep.subr.mxu0 0.0
        %6530 = vmatpush1.msra.mxu0 0.0
        %6531 = vmatprep.subr.mxu0 0.0
        %6532 = vmatpush1.msra.mxu0 0.0
        %6533 = vmatprep.subr.mxu0 0.0
        %6534 = vmatpush1.msra.mxu0 0.0
        %6535 = vmatprep.subr.mxu0 0.0
        %6536 = vmatpush1.msra.mxu0 0.0
        %6537 = vmatprep.subr.mxu0 0.0
        %6538 = vmatpush1.msra.mxu0 0.0
        %6539 = vmatprep.subr.mxu0 0.0
        %6540 = vmatpush1.msra.mxu0 0.0
        %6541 = vmatprep.mubr.f32.mxu0 0.0
        %6542 = vmatmul.mubr.f32.gmra.mrb[0].mxu0 %v1557
        %v6543 = vpop.f32.mrb[0].mxu0
        %v6544 = vadd.f32 0.0, %v6543
        %v6545 = vpop.f32.mrb[0].mxu0
        %6546 = vmatprep.mubr.f32.mxu0 0.0
        %6547 = vmatmul.mubr.f32.gmra.mrb[0].mxu0 %v1560
        %v6548 = vpop.f32.mrb[0].mxu0
        %v6549 = vadd.f32 0.0, %v6548
        %v6550 = vpop.f32.mrb[0].mxu0
        %6551 = vmatprep.mubr.f32.mxu0 0.0
        %6552 = vmatmul.mubr.f32.gmra.mrb[0].mxu0 %v1563
        %v6553 = vpop.f32.mrb[0].mxu0
        %v6554 = vadd.f32 0.0, %v6553
        %v6555 = vpop.f32.mrb[0].mxu0
        %6556 = vmatprep.mubr.f32.mxu0 0.0
        %6557 = vmatmul.mubr.f32.gmra.mrb[0].mxu0 %v1566
        %v6558 = vpop.f32.mrb[0].mxu0
        %v6559 = vadd.f32 0.0, %v6558
        %v6560 = vpop.f32.mrb[0].mxu0
        %6561 = vmatprep.mubr.f32.mxu0 0.0
        %6562 = vmatmul.mubr.f32.gmra.mrb[0].mxu0 %v1569
        %v6563 = vpop.f32.mrb[0].mxu0
        %v6564 = vadd.f32 0.0, %v6563
        %v6565 = vpop.f32.mrb[0].mxu0
        %6566 = vmatprep.mubr.f32.mxu0 0.0
        %6567 = vmatmul.mubr.f32.gmra.mrb[0].mxu0 %v1572
        %v6568 = vpop.f32.mrb[0].mxu0
        %v6569 = vadd.f32 0.0, %v6568
        %v6570 = vpop.f32.mrb[0].mxu0
        %6571 = vmatprep.mubr.f32.mxu0 0.0
        %6572 = vmatmul.mubr.f32.gmra.mrb[0].mxu0 %v1575
        %v6573 = vpop.f32.mrb[0].mxu0
        %v6574 = vadd.f32 0.0, %v6573
        %v6575 = vpop.f32.mrb[0].mxu0
        %6576 = vmatprep.mubr.f32.mxu0 0.0
        %6577 = vmatmul.mubr.f32.gmra.mrb[0].mxu0 %v1578
        %v6578 = vpop.f32.mrb[0].mxu0
        %v6579 = vadd.f32 0.0, %v6578
        %v6580 = vpop.f32.mrb[0].mxu0
        %6581 = vmatprep.mubr.f32.mxu0 0.0
        %6582 = vmatmul.mubr.f32.gmra.mrb[0].mxu0 %v1581
        %v6583 = vpop.f32.mrb[0].mxu0
        %v6584 = vadd.f32 0.0, %v6583
        %v6585 = vpop.f32.mrb[0].mxu0
        %6586 = vmatprep.mubr.f32.mxu0 0.0
        %6587 = vmatmul.mubr.f32.gmra.mrb[0].mxu0 %v1584
        %v6588 = vpop.f32.mrb[0].mxu0
        %v6589 = vadd.f32 0.0, %v6588
        %v6590 = vpop.f32.mrb[0].mxu0
        %6591 = vmatprep.mubr.f32.mxu0 0.0
        %6592 = vmatmul.mubr.f32.gmra.mrb[0].mxu0 %v1587
        %v6593 = vpop.f32.mrb[0].mxu0
        %v6594 = vadd.f32 0.0, %v6593
        %v6595 = vpop.f32.mrb[0].mxu0
        %6596 = vmatprep.mubr.f32.mxu0 0.0
        %6597 = vmatmul.mubr.f32.gmra.mrb[0].mxu0 %v1590
        %v6598 = vpop.f32.mrb[0].mxu0
        %v6599 = vadd.f32 0.0, %v6598
        %v6600 = vpop.f32.mrb[0].mxu0
        %6601 = vmatprep.mubr.f32.mxu0 0.0
        %6602 = vmatmul.mubr.f32.gmra.mrb[0].mxu0 %v1593
        %v6603 = vpop.f32.mrb[0].mxu0
        %v6604 = vadd.f32 0.0, %v6603
        %v6605 = vpop.f32.mrb[0].mxu0
        %6606 = vdwg.mxu0
        %v6608 = vsel %vm1390, %v6455, 0
        %v6611 = vsel %vm1390, %v6456, 0
        %v6614 = vsel %vm1390, %v6457, 0
        %v6617 = vsel %vm1390, %v6458, 0
        %v6620 = vsel %vm1390, %v6459, 0
        %v6623 = vsel %vm1390, %v6460, 0
        %v6626 = vsel %vm1390, %v6461, 0
        %v6629 = vsel %vm1390, %v6462, 0
        %v6632 = vsel %vm1390, %v6463, 0
        %v6635 = vsel %vm1390, %v6464, 0
        %v6638 = vsel %vm1390, %v6465, 0
        %v6641 = vsel %vm1390, %v6466, 0
        %v6644 = vsel %vm1390, %v6467, 0
        %v6647 = vsel %vm2280, %v6604, 0
        %6649 = vmatprep.subr.mxu0 0.0
        %6650 = vmatpush1.msra.mxu0 %v6544
        %6651 = vmatprep.subr.mxu0 0.0
        %6652 = vmatpush1.msra.mxu0 %v6549
        %6653 = vmatprep.subr.mxu0 0.0
        %6654 = vmatpush1.msra.mxu0 %v6554
        %6655 = vmatprep.subr.mxu0 0.0
        %6656 = vmatpush1.msra.mxu0 %v6559
        %6657 = vmatprep.subr.mxu0 0.0
        %6658 = vmatpush1.msra.mxu0 %v6564
        %6659 = vmatprep.subr.mxu0 0.0
        %6660 = vmatpush1.msra.mxu0 %v6569
        %6661 = vmatprep.subr.mxu0 0.0
        %6662 = vmatpush1.msra.mxu0 %v6574
        %6663 = vmatprep.subr.mxu0 0.0
        %6664 = vmatpush1.msra.mxu0 %v6579
        %6665 = vmatprep.subr.mxu0 0.0
        %6666 = vmatpush1.msra.mxu0 %v6584
        %6667 = vmatprep.subr.mxu0 0.0
        %6668 = vmatpush1.msra.mxu0 %v6589
        %6669 = vmatprep.subr.mxu0 0.0
        %6670 = vmatpush1.msra.mxu0 %v6594
        %6671 = vmatprep.subr.mxu0 0.0
        %6672 = vmatpush1.msra.mxu0 %v6599
        %6673 = vmatprep.subr.mxu0 0.0
        %6674 = vmatpush1.msra.mxu0 %v6647
        %6675 = vmatprep.subr.mxu0 0.0
        %6676 = vmatpush1.msra.mxu0 0.0
        %6677 = vmatprep.subr.mxu0 0.0
        %6678 = vmatpush1.msra.mxu0 0.0
        %6679 = vmatprep.subr.mxu0 0.0
        %6680 = vmatpush1.msra.mxu0 0.0
        %6681 = vmatprep.subr.mxu0 0.0
        %6682 = vmatpush1.msra.mxu0 0.0
        %6683 = vmatprep.subr.mxu0 0.0
        %6684 = vmatpush1.msra.mxu0 0.0
        %6685 = vmatprep.subr.mxu0 0.0
        %6686 = vmatpush1.msra.mxu0 0.0
        %6687 = vmatprep.subr.mxu0 0.0
        %6688 = vmatpush1.msra.mxu0 0.0
        %6689 = vmatprep.subr.mxu0 0.0
        %6690 = vmatpush1.msra.mxu0 0.0
        %6691 = vmatprep.subr.mxu0 0.0
        %6692 = vmatpush1.msra.mxu0 0.0
        %6693 = vmatprep.subr.mxu0 0.0
        %6694 = vmatpush1.msra.mxu0 0.0
        %6695 = vmatprep.subr.mxu0 0.0
        %6696 = vmatpush1.msra.mxu0 0.0
        %6697 = vmatprep.subr.mxu0 0.0
        %6698 = vmatpush1.msra.mxu0 0.0
        %6699 = vmatprep.subr.mxu0 0.0
        %6700 = vmatpush1.msra.mxu0 0.0
        %6701 = vmatprep.subr.mxu0 0.0
        %6702 = vmatpush1.msra.mxu0 0.0
        %6703 = vmatprep.subr.mxu0 0.0
        %6704 = vmatpush1.msra.mxu0 0.0
        %6705 = vmatprep.subr.mxu0 0.0
        %6706 = vmatpush1.msra.mxu0 0.0
        %6707 = vmatprep.subr.mxu0 0.0
        %6708 = vmatpush1.msra.mxu0 0.0
        %6709 = vmatprep.subr.mxu0 0.0
        %6710 = vmatpush1.msra.mxu0 0.0
        %6711 = vmatprep.subr.mxu0 0.0
        %6712 = vmatpush1.msra.mxu0 0.0
        %6713 = vmatprep.mubr.f32.mxu0 0.0
        %6714 = vmatmul.mubr.f32.gmra.mrb[0].mxu0 %v6608
        %v6715 = vpop.f32.mrb[0].mxu0
        %v6716 = vadd.f32 0.0, %v6715
        %v6717 = vpop.f32.mrb[0].mxu0
        %6718 = vmatprep.mubr.f32.mxu0 0.0
        %6719 = vmatmul.mubr.f32.gmra.mrb[0].mxu0 %v6611
        %v6720 = vpop.f32.mrb[0].mxu0
        %v6721 = vadd.f32 0.0, %v6720
        %v6722 = vpop.f32.mrb[0].mxu0
        %6723 = vmatprep.mubr.f32.mxu0 0.0
        %6724 = vmatmul.mubr.f32.gmra.mrb[0].mxu0 %v6614
        %v6725 = vpop.f32.mrb[0].mxu0
        %v6726 = vadd.f32 0.0, %v6725
        %v6727 = vpop.f32.mrb[0].mxu0
        %6728 = vmatprep.mubr.f32.mxu0 0.0
        %6729 = vmatmul.mubr.f32.gmra.mrb[0].mxu0 %v6617
        %v6730 = vpop.f32.mrb[0].mxu0
        %v6731 = vadd.f32 0.0, %v6730
        %v6732 = vpop.f32.mrb[0].mxu0
        %6733 = vmatprep.mubr.f32.mxu0 0.0
        %6734 = vmatmul.mubr.f32.gmra.mrb[0].mxu0 %v6620
        %v6735 = vpop.f32.mrb[0].mxu0
        %v6736 = vadd.f32 0.0, %v6735
        %v6737 = vpop.f32.mrb[0].mxu0
        %6738 = vmatprep.mubr.f32.mxu0 0.0
        %6739 = vmatmul.mubr.f32.gmra.mrb[0].mxu0 %v6623
        %v6740 = vpop.f32.mrb[0].mxu0
        %v6741 = vadd.f32 0.0, %v6740
        %v6742 = vpop.f32.mrb[0].mxu0
        %6743 = vmatprep.mubr.f32.mxu0 0.0
        %6744 = vmatmul.mubr.f32.gmra.mrb[0].mxu0 %v6626
        %v6745 = vpop.f32.mrb[0].mxu0
        %v6746 = vadd.f32 0.0, %v6745
        %v6747 = vpop.f32.mrb[0].mxu0
        %6748 = vmatprep.mubr.f32.mxu0 0.0
        %6749 = vmatmul.mubr.f32.gmra.mrb[0].mxu0 %v6629
        %v6750 = vpop.f32.mrb[0].mxu0
        %v6751 = vadd.f32 0.0, %v6750
        %v6752 = vpop.f32.mrb[0].mxu0
        %6753 = vmatprep.mubr.f32.mxu0 0.0
        %6754 = vmatmul.mubr.f32.gmra.mrb[0].mxu0 %v6632
        %v6755 = vpop.f32.mrb[0].mxu0
        %v6756 = vadd.f32 0.0, %v6755
        %v6757 = vpop.f32.mrb[0].mxu0
        %6758 = vmatprep.mubr.f32.mxu0 0.0
        %6759 = vmatmul.mubr.f32.gmra.mrb[0].mxu0 %v6635
        %v6760 = vpop.f32.mrb[0].mxu0
        %v6761 = vadd.f32 0.0, %v6760
        %v6762 = vpop.f32.mrb[0].mxu0
        %6763 = vmatprep.mubr.f32.mxu0 0.0
        %6764 = vmatmul.mubr.f32.gmra.mrb[0].mxu0 %v6638
        %v6765 = vpop.f32.mrb[0].mxu0
        %v6766 = vadd.f32 0.0, %v6765
        %v6767 = vpop.f32.mrb[0].mxu0
        %6768 = vmatprep.mubr.f32.mxu0 0.0
        %6769 = vmatmul.mubr.f32.gmra.mrb[0].mxu0 %v6641
        %v6770 = vpop.f32.mrb[0].mxu0
        %v6771 = vadd.f32 0.0, %v6770
        %v6772 = vpop.f32.mrb[0].mxu0
        %6773 = vmatprep.mubr.f32.mxu0 0.0
        %6774 = vmatmul.mubr.f32.gmra.mrb[0].mxu0 %v6644
        %v6775 = vpop.f32.mrb[0].mxu0
        %v6776 = vadd.f32 0.0, %v6775
        %v6777 = vpop.f32.mrb[0].mxu0
        %6778 = vdwg.mxu0
        %v6779 = vadd.f32 %v6078, %v6716
        %v6780 = vadd.f32 %v6079, %v6721
        %v6781 = vadd.f32 %v6080, %v6726
        %v6782 = vadd.f32 %v6081, %v6731
        %v6783 = vadd.f32 %v6082, %v6736
        %v6784 = vadd.f32 %v6083, %v6741
        %v6785 = vadd.f32 %v6084, %v6746
        %v6786 = vadd.f32 %v6085, %v6751
        %v6787 = vadd.f32 %v6086, %v6756
        %v6788 = vadd.f32 %v6087, %v6761
        %v6789 = vadd.f32 %v6088, %v6766
        %v6790 = vadd.f32 %v6089, %v6771
        %v6791 = vadd.f32 %v6090, %v6776
        %v6792 = vld [vmem:[#allocation2] sm:$0xff]
        %v6793 = vld [vmem:[#allocation2 + $0x8] sm:$0xff]
        %v6794 = vld [vmem:[#allocation2 + $0x10] sm:$0xff]
        %v6795 = vld [vmem:[#allocation2 + $0x18] sm:$0xff]
        %v6796 = vld [vmem:[#allocation2 + $0x20] sm:$0xff]
        %v6797 = vld [vmem:[#allocation2 + $0x28] sm:$0xff]
        %v6798 = vld [vmem:[#allocation2 + $0x30] sm:$0xff]
        %v6799 = vld [vmem:[#allocation2 + $0x38] sm:$0xff]
        %v6800 = vld [vmem:[#allocation2 + $0x40] sm:$0xff]
        %v6801 = vld [vmem:[#allocation2 + $0x48] sm:$0xff]
        %v6802 = vld [vmem:[#allocation2 + $0x50] sm:$0xff]
        %v6803 = vld [vmem:[#allocation2 + $0x58] sm:$0xff]
        %v6804 = vld [vmem:[#allocation2 + $0x60] sm:$0xf]
        %v6805 = vadd.f32 %v6792, %v6779
        %v6806 = vadd.f32 %v6793, %v6780
        %v6807 = vadd.f32 %v6794, %v6781
        %v6808 = vadd.f32 %v6795, %v6782
        %v6809 = vadd.f32 %v6796, %v6783
        %v6810 = vadd.f32 %v6797, %v6784
        %v6811 = vadd.f32 %v6798, %v6785
        %v6812 = vadd.f32 %v6799, %v6786
        %v6813 = vadd.f32 %v6800, %v6787
        %v6814 = vadd.f32 %v6801, %v6788
        %v6815 = vadd.f32 %v6802, %v6789
        %v6816 = vadd.f32 %v6803, %v6790
        %v6817 = vadd.f32 %v6804, %v6791
        %v6818 = vld [vmem:[#allocation14] sm:$0x1]
        %v6820 = vlaneseq
        %v6821 = vshrl.u32 %v6820, 7
        %v6822 = vsub.s32 0, %v6821
        %v6823 = vrot.slane %v6818, %v6822
        %v6825 = vadd.f32 %v6805, %v6823
        %v6826 = vadd.f32 %v6806, %v6823
        %v6827 = vadd.f32 %v6807, %v6823
        %v6828 = vadd.f32 %v6808, %v6823
        %v6829 = vadd.f32 %v6809, %v6823
        %v6830 = vadd.f32 %v6810, %v6823
        %v6831 = vadd.f32 %v6811, %v6823
        %v6832 = vadd.f32 %v6812, %v6823
        %v6833 = vadd.f32 %v6813, %v6823
        %v6834 = vadd.f32 %v6814, %v6823
        %v6835 = vadd.f32 %v6815, %v6823
        %v6836 = vadd.f32 %v6816, %v6823
        %v6837 = vadd.f32 %v6817, %v6823
        %v6838 = vld [vmem:[%s8] sm:$0x1]
        %v6839 = vld [vmem:[%s9] sm:$0x1]
        %v6840 = vsel %vm891, %v6825, 0.0
        %6841 = vadd.xlane.f32.xlu0 %v6840
        %v6842 = vpop.xlane.xlu0 %6841
        %v6843 = vsel %vm891, %v6826, 0.0
        %6844 = vadd.xlane.f32.xlu0 %v6843
        %v6845 = vpop.xlane.xlu0 %6844
        %v6846 = vsel %vm891, %v6827, 0.0
        %6847 = vadd.xlane.f32.xlu0 %v6846
        %v6848 = vpop.xlane.xlu0 %6847
        %v6849 = vsel %vm891, %v6828, 0.0
        %6850 = vadd.xlane.f32.xlu0 %v6849
        %v6851 = vpop.xlane.xlu0 %6850
        %v6852 = vsel %vm891, %v6829, 0.0
        %6853 = vadd.xlane.f32.xlu0 %v6852
        %v6854 = vpop.xlane.xlu0 %6853
        %v6855 = vsel %vm891, %v6830, 0.0
        %6856 = vadd.xlane.f32.xlu0 %v6855
        %v6857 = vpop.xlane.xlu0 %6856
        %v6858 = vsel %vm891, %v6831, 0.0
        %6859 = vadd.xlane.f32.xlu0 %v6858
        %v6860 = vpop.xlane.xlu0 %6859
        %v6861 = vsel %vm891, %v6832, 0.0
        %6862 = vadd.xlane.f32.xlu0 %v6861
        %v6863 = vpop.xlane.xlu0 %6862
        %v6864 = vsel %vm891, %v6833, 0.0
        %6865 = vadd.xlane.f32.xlu0 %v6864
        %v6866 = vpop.xlane.xlu0 %6865
        %v6867 = vsel %vm891, %v6834, 0.0
        %6868 = vadd.xlane.f32.xlu0 %v6867
        %v6869 = vpop.xlane.xlu0 %6868
        %v6870 = vsel %vm891, %v6835, 0.0
        %6871 = vadd.xlane.f32.xlu0 %v6870
        %v6872 = vpop.xlane.xlu0 %6871
        %v6873 = vsel %vm891, %v6836, 0.0
        %6874 = vadd.xlane.f32.xlu0 %v6873
        %v6875 = vpop.xlane.xlu0 %6874
        %v6876 = vsel %vm904, %v6837, 0.0
        %6877 = vadd.xlane.f32.xlu0 %v6876
        %v6878 = vpop.xlane.xlu0 %6877
        %v6879 = vmul.f32 %v6825, %v6825
        %v6880 = vmul.f32 %v6826, %v6826
        %v6881 = vmul.f32 %v6827, %v6827
        %v6882 = vmul.f32 %v6828, %v6828
        %v6883 = vmul.f32 %v6829, %v6829
        %v6884 = vmul.f32 %v6830, %v6830
        %v6885 = vmul.f32 %v6831, %v6831
        %v6886 = vmul.f32 %v6832, %v6832
        %v6887 = vmul.f32 %v6833, %v6833
        %v6888 = vmul.f32 %v6834, %v6834
        %v6889 = vmul.f32 %v6835, %v6835
        %v6890 = vmul.f32 %v6836, %v6836
        %v6891 = vmul.f32 %v6837, %v6837
        %v6892 = vsel %vm891, %v6879, 0.0
        %6893 = vadd.xlane.f32.xlu0 %v6892
        %v6894 = vpop.xlane.xlu0 %6893
        %v6895 = vsel %vm891, %v6880, 0.0
        %6896 = vadd.xlane.f32.xlu0 %v6895
        %v6897 = vpop.xlane.xlu0 %6896
        %v6898 = vsel %vm891, %v6881, 0.0
        %6899 = vadd.xlane.f32.xlu0 %v6898
        %v6900 = vpop.xlane.xlu0 %6899
        %v6901 = vsel %vm891, %v6882, 0.0
        %6902 = vadd.xlane.f32.xlu0 %v6901
        %v6903 = vpop.xlane.xlu0 %6902
        %v6904 = vsel %vm891, %v6883, 0.0
        %6905 = vadd.xlane.f32.xlu0 %v6904
        %v6906 = vpop.xlane.xlu0 %6905
        %v6907 = vsel %vm891, %v6884, 0.0
        %6908 = vadd.xlane.f32.xlu0 %v6907
        %v6909 = vpop.xlane.xlu0 %6908
        %v6910 = vsel %vm891, %v6885, 0.0
        %6911 = vadd.xlane.f32.xlu0 %v6910
        %v6912 = vpop.xlane.xlu0 %6911
        %v6913 = vsel %vm891, %v6886, 0.0
        %6914 = vadd.xlane.f32.xlu0 %v6913
        %v6915 = vpop.xlane.xlu0 %6914
        %v6916 = vsel %vm891, %v6887, 0.0
        %6917 = vadd.xlane.f32.xlu0 %v6916
        %v6918 = vpop.xlane.xlu0 %6917
        %v6919 = vsel %vm891, %v6888, 0.0
        %6920 = vadd.xlane.f32.xlu0 %v6919
        %v6921 = vpop.xlane.xlu0 %6920
        %v6922 = vsel %vm891, %v6889, 0.0
        %6923 = vadd.xlane.f32.xlu0 %v6922
        %v6924 = vpop.xlane.xlu0 %6923
        %v6925 = vsel %vm891, %v6890, 0.0
        %6926 = vadd.xlane.f32.xlu0 %v6925
        %v6927 = vpop.xlane.xlu0 %6926
        %v6928 = vsel %vm904, %v6891, 0.0
        %6929 = vadd.xlane.f32.xlu0 %v6928
        %v6930 = vpop.xlane.xlu0 %6929
        %v6931 = vmul.f32 %v6842, 0.015625
        %v6932 = vmul.f32 %v6845, 0.015625
        %v6933 = vmul.f32 %v6848, 0.015625
        %v6934 = vmul.f32 %v6851, 0.015625
        %v6935 = vmul.f32 %v6854, 0.015625
        %v6936 = vmul.f32 %v6857, 0.015625
        %v6937 = vmul.f32 %v6860, 0.015625
        %v6938 = vmul.f32 %v6863, 0.015625
        %v6939 = vmul.f32 %v6866, 0.015625
        %v6940 = vmul.f32 %v6869, 0.015625
        %v6941 = vmul.f32 %v6872, 0.015625
        %v6942 = vmul.f32 %v6875, 0.015625
        %v6943 = vmul.f32 %v6878, 0.015625
        %v6944 = vmul.f32 %v6894, 0.015625
        %v6945 = vmul.f32 %v6897, 0.015625
        %v6946 = vmul.f32 %v6900, 0.015625
        %v6947 = vmul.f32 %v6903, 0.015625
        %v6948 = vmul.f32 %v6906, 0.015625
        %v6949 = vmul.f32 %v6909, 0.015625
        %v6950 = vmul.f32 %v6912, 0.015625
        %v6951 = vmul.f32 %v6915, 0.015625
        %v6952 = vmul.f32 %v6918, 0.015625
        %v6953 = vmul.f32 %v6921, 0.015625
        %v6954 = vmul.f32 %v6924, 0.015625
        %v6955 = vmul.f32 %v6927, 0.015625
        %v6956 = vmul.f32 %v6930, 0.015625
        %v6957 = vmul.f32 %v6931, %v6931
        %v6958 = vmul.f32 %v6932, %v6932
        %v6959 = vmul.f32 %v6933, %v6933
        %v6960 = vmul.f32 %v6934, %v6934
        %v6961 = vmul.f32 %v6935, %v6935
        %v6962 = vmul.f32 %v6936, %v6936
        %v6963 = vmul.f32 %v6937, %v6937
        %v6964 = vmul.f32 %v6938, %v6938
        %v6965 = vmul.f32 %v6939, %v6939
        %v6966 = vmul.f32 %v6940, %v6940
        %v6967 = vmul.f32 %v6941, %v6941
        %v6968 = vmul.f32 %v6942, %v6942
        %v6969 = vmul.f32 %v6943, %v6943
        %v6970 = vsub.f32 %v6944, %v6957
        %v6971 = vsub.f32 %v6945, %v6958
        %v6972 = vsub.f32 %v6946, %v6959
        %v6973 = vsub.f32 %v6947, %v6960
        %v6974 = vsub.f32 %v6948, %v6961
        %v6975 = vsub.f32 %v6949, %v6962
        %v6976 = vsub.f32 %v6950, %v6963
        %v6977 = vsub.f32 %v6951, %v6964
        %v6978 = vsub.f32 %v6952, %v6965
        %v6979 = vsub.f32 %v6953, %v6966
        %v6980 = vsub.f32 %v6954, %v6967
        %v6981 = vsub.f32 %v6955, %v6968
        %v6982 = vsub.f32 %v6956, %v6969
        %v6983 = vsub.f32 %v6825, %v6931
        %v6984 = vsub.f32 %v6826, %v6932
        %v6985 = vsub.f32 %v6827, %v6933
        %v6986 = vsub.f32 %v6828, %v6934
        %v6987 = vsub.f32 %v6829, %v6935
        %v6988 = vsub.f32 %v6830, %v6936
        %v6989 = vsub.f32 %v6831, %v6937
        %v6990 = vsub.f32 %v6832, %v6938
        %v6991 = vsub.f32 %v6833, %v6939
        %v6992 = vsub.f32 %v6834, %v6940
        %v6993 = vsub.f32 %v6835, %v6941
        %v6994 = vsub.f32 %v6836, %v6942
        %v6995 = vsub.f32 %v6837, %v6943
        %v6996 = vadd.f32 %v6970, 1e-05
        %v6997 = vadd.f32 %v6971, 1e-05
        %v6998 = vadd.f32 %v6972, 1e-05
        %v6999 = vadd.f32 %v6973, 1e-05
        %v7000 = vadd.f32 %v6974, 1e-05
        %v7001 = vadd.f32 %v6975, 1e-05
        %v7002 = vadd.f32 %v6976, 1e-05
        %v7003 = vadd.f32 %v6977, 1e-05
        %v7004 = vadd.f32 %v6978, 1e-05
        %v7005 = vadd.f32 %v6979, 1e-05
        %v7006 = vadd.f32 %v6980, 1e-05
        %v7007 = vadd.f32 %v6981, 1e-05
        %v7008 = vadd.f32 %v6982, 1e-05
        %v7009 = vrsqrt.pop %v6996
        %v7010 = vrsqrt.pop %v6997
        %v7011 = vrsqrt.pop %v6998
        %v7012 = vrsqrt.pop %v6999
        %v7013 = vrsqrt.pop %v7000
        %v7014 = vrsqrt.pop %v7001
        %v7015 = vrsqrt.pop %v7002
        %v7016 = vrsqrt.pop %v7003
        %v7017 = vrsqrt.pop %v7004
        %v7018 = vrsqrt.pop %v7005
        %v7019 = vrsqrt.pop %v7006
        %v7020 = vrsqrt.pop %v7007
        %v7021 = vrsqrt.pop %v7008
        %v7022 = vmul.f32 %v6983, %v7009
        %v7023 = vmul.f32 %v6984, %v7010
        %v7024 = vmul.f32 %v6985, %v7011
        %v7025 = vmul.f32 %v6986, %v7012
        %v7026 = vmul.f32 %v6987, %v7013
        %v7027 = vmul.f32 %v6988, %v7014
        %v7028 = vmul.f32 %v6989, %v7015
        %v7029 = vmul.f32 %v6990, %v7016
        %v7030 = vmul.f32 %v6991, %v7017
        %v7031 = vmul.f32 %v6992, %v7018
        %v7032 = vmul.f32 %v6993, %v7019
        %v7033 = vmul.f32 %v6994, %v7020
        %v7034 = vmul.f32 %v6995, %v7021
        %v7036 = vlaneseq
        %v7037 = vshrl.u32 %v7036, 7
        %v7038 = vsub.s32 0, %v7037
        %v7039 = vrot.slane %v6838, %v7038
        %v7041 = vmul.f32 %v7022, %v7039
        %v7042 = vmul.f32 %v7023, %v7039
        %v7043 = vmul.f32 %v7024, %v7039
        %v7044 = vmul.f32 %v7025, %v7039
        %v7045 = vmul.f32 %v7026, %v7039
        %v7046 = vmul.f32 %v7027, %v7039
        %v7047 = vmul.f32 %v7028, %v7039
        %v7048 = vmul.f32 %v7029, %v7039
        %v7049 = vmul.f32 %v7030, %v7039
        %v7050 = vmul.f32 %v7031, %v7039
        %v7051 = vmul.f32 %v7032, %v7039
        %v7052 = vmul.f32 %v7033, %v7039
        %v7053 = vmul.f32 %v7034, %v7039
        %v7055 = vlaneseq
        %v7056 = vshrl.u32 %v7055, 7
        %v7057 = vsub.s32 0, %v7056
        %v7058 = vrot.slane %v6839, %v7057
        %v7060 = vadd.f32 %v7041, %v7058
        %v7061 = vadd.f32 %v7042, %v7058
        %v7062 = vadd.f32 %v7043, %v7058
        %v7063 = vadd.f32 %v7044, %v7058
        %v7064 = vadd.f32 %v7045, %v7058
        %v7065 = vadd.f32 %v7046, %v7058
        %v7066 = vadd.f32 %v7047, %v7058
        %v7067 = vadd.f32 %v7048, %v7058
        %v7068 = vadd.f32 %v7049, %v7058
        %v7069 = vadd.f32 %v7050, %v7058
        %v7070 = vadd.f32 %v7051, %v7058
        %v7071 = vadd.f32 %v7052, %v7058
        %v7072 = vadd.f32 %v7053, %v7058
        %v7073 = vld [vmem:[#allocation15] sm:$0xff]
        %v7074 = vld [vmem:[#allocation15 + $0x8] sm:$0xff]
        %v7075 = vld [vmem:[#allocation15 + $0x10] sm:$0xff]
        %v7076 = vld [vmem:[#allocation15 + $0x18] sm:$0xff]
        %v7077 = vld [vmem:[#allocation15 + $0x20] sm:$0xff]
        %v7078 = vld [vmem:[#allocation15 + $0x28] sm:$0xff]
        %v7079 = vld [vmem:[#allocation15 + $0x30] sm:$0xff]
        %v7080 = vld [vmem:[#allocation15 + $0x38] sm:$0xff]
        %v7081 = vld [vmem:[#allocation17] sm:$0x1]
        %v7083 = vlaneseq
        %v7084 = vshrl.u32 %v7083, 7
        %v7085 = vsub.s32 0, %v7084
        %v7086 = vrot.slane %v7081, %v7085
        %v7089 = vsel %vm891, %v7060, 0
        %v7092 = vsel %vm891, %v7061, 0
        %v7095 = vsel %vm891, %v7062, 0
        %v7098 = vsel %vm891, %v7063, 0
        %v7101 = vsel %vm891, %v7064, 0
        %v7104 = vsel %vm891, %v7065, 0
        %v7107 = vsel %vm891, %v7066, 0
        %v7110 = vsel %vm891, %v7067, 0
        %v7113 = vsel %vm891, %v7068, 0
        %v7116 = vsel %vm891, %v7069, 0
        %v7119 = vsel %vm891, %v7070, 0
        %v7122 = vsel %vm891, %v7071, 0
        %v7125 = vsel %vm891, %v7072, 0
        %7127 = vmatprep.subr.mxu0 0.0
        %7128 = vmatpush1.msra.mxu0 %v7073
        %7129 = vmatprep.subr.mxu0 0.0
        %7130 = vmatpush1.msra.mxu0 %v7074
        %7131 = vmatprep.subr.mxu0 0.0
        %7132 = vmatpush1.msra.mxu0 %v7075
        %7133 = vmatprep.subr.mxu0 0.0
        %7134 = vmatpush1.msra.mxu0 %v7076
        %7135 = vmatprep.subr.mxu0 0.0
        %7136 = vmatpush1.msra.mxu0 %v7077
        %7137 = vmatprep.subr.mxu0 0.0
        %7138 = vmatpush1.msra.mxu0 %v7078
        %7139 = vmatprep.subr.mxu0 0.0
        %7140 = vmatpush1.msra.mxu0 %v7079
        %7141 = vmatprep.subr.mxu0 0.0
        %7142 = vmatpush1.msra.mxu0 %v7080
        %7143 = vmatprep.subr.mxu0 0.0
        %7144 = vmatpush1.msra.mxu0 0.0
        %7145 = vmatprep.subr.mxu0 0.0
        %7146 = vmatpush1.msra.mxu0 0.0
        %7147 = vmatprep.subr.mxu0 0.0
        %7148 = vmatpush1.msra.mxu0 0.0
        %7149 = vmatprep.subr.mxu0 0.0
        %7150 = vmatpush1.msra.mxu0 0.0
        %7151 = vmatprep.subr.mxu0 0.0
        %7152 = vmatpush1.msra.mxu0 0.0
        %7153 = vmatprep.subr.mxu0 0.0
        %7154 = vmatpush1.msra.mxu0 0.0
        %7155 = vmatprep.subr.mxu0 0.0
        %7156 = vmatpush1.msra.mxu0 0.0
        %7157 = vmatprep.subr.mxu0 0.0
        %7158 = vmatpush1.msra.mxu0 0.0
        %7159 = vmatprep.subr.mxu0 0.0
        %7160 = vmatpush1.msra.mxu0 0.0
        %7161 = vmatprep.subr.mxu0 0.0
        %7162 = vmatpush1.msra.mxu0 0.0
        %7163 = vmatprep.subr.mxu0 0.0
        %7164 = vmatpush1.msra.mxu0 0.0
        %7165 = vmatprep.subr.mxu0 0.0
        %7166 = vmatpush1.msra.mxu0 0.0
        %7167 = vmatprep.subr.mxu0 0.0
        %7168 = vmatpush1.msra.mxu0 0.0
        %7169 = vmatprep.subr.mxu0 0.0
        %7170 = vmatpush1.msra.mxu0 0.0
        %7171 = vmatprep.subr.mxu0 0.0
        %7172 = vmatpush1.msra.mxu0 0.0
        %7173 = vmatprep.subr.mxu0 0.0
        %7174 = vmatpush1.msra.mxu0 0.0
        %7175 = vmatprep.subr.mxu0 0.0
        %7176 = vmatpush1.msra.mxu0 0.0
        %7177 = vmatprep.subr.mxu0 0.0
        %7178 = vmatpush1.msra.mxu0 0.0
        %7179 = vmatprep.subr.mxu0 0.0
        %7180 = vmatpush1.msra.mxu0 0.0
        %7181 = vmatprep.subr.mxu0 0.0
        %7182 = vmatpush1.msra.mxu0 0.0
        %7183 = vmatprep.subr.mxu0 0.0
        %7184 = vmatpush1.msra.mxu0 0.0
        %7185 = vmatprep.subr.mxu0 0.0
        %7186 = vmatpush1.msra.mxu0 0.0
        %7187 = vmatprep.subr.mxu0 0.0
        %7188 = vmatpush1.msra.mxu0 0.0
        %7189 = vmatprep.subr.mxu0 0.0
        %7190 = vmatpush1.msra.mxu0 0.0
        %7191 = vmatprep.mubr.f32.mxu0 0.0
        %7192 = vmatmul.mubr.f32.gmra.mrb[0].mxu0 %v7089
        %v7193 = vpop.f32.mrb[0].mxu0
        %v7194 = vadd.f32 %v7086, %v7193
        %v7195 = vpop.f32.mrb[0].mxu0
        %7196 = vmatprep.mubr.f32.mxu0 0.0
        %7197 = vmatmul.mubr.f32.gmra.mrb[0].mxu0 %v7092
        %v7198 = vpop.f32.mrb[0].mxu0
        %v7199 = vadd.f32 %v7086, %v7198
        %v7200 = vpop.f32.mrb[0].mxu0
        %7201 = vmatprep.mubr.f32.mxu0 0.0
        %7202 = vmatmul.mubr.f32.gmra.mrb[0].mxu0 %v7095
        %v7203 = vpop.f32.mrb[0].mxu0
        %v7204 = vadd.f32 %v7086, %v7203
        %v7205 = vpop.f32.mrb[0].mxu0
        %7206 = vmatprep.mubr.f32.mxu0 0.0
        %7207 = vmatmul.mubr.f32.gmra.mrb[0].mxu0 %v7098
        %v7208 = vpop.f32.mrb[0].mxu0
        %v7209 = vadd.f32 %v7086, %v7208
        %v7210 = vpop.f32.mrb[0].mxu0
        %7211 = vmatprep.mubr.f32.mxu0 0.0
        %7212 = vmatmul.mubr.f32.gmra.mrb[0].mxu0 %v7101
        %v7213 = vpop.f32.mrb[0].mxu0
        %v7214 = vadd.f32 %v7086, %v7213
        %v7215 = vpop.f32.mrb[0].mxu0
        %7216 = vmatprep.mubr.f32.mxu0 0.0
        %7217 = vmatmul.mubr.f32.gmra.mrb[0].mxu0 %v7104
        %v7218 = vpop.f32.mrb[0].mxu0
        %v7219 = vadd.f32 %v7086, %v7218
        %v7220 = vpop.f32.mrb[0].mxu0
        %7221 = vmatprep.mubr.f32.mxu0 0.0
        %7222 = vmatmul.mubr.f32.gmra.mrb[0].mxu0 %v7107
        %v7223 = vpop.f32.mrb[0].mxu0
        %v7224 = vadd.f32 %v7086, %v7223
        %v7225 = vpop.f32.mrb[0].mxu0
        %7226 = vmatprep.mubr.f32.mxu0 0.0
        %7227 = vmatmul.mubr.f32.gmra.mrb[0].mxu0 %v7110
        %v7228 = vpop.f32.mrb[0].mxu0
        %v7229 = vadd.f32 %v7086, %v7228
        %v7230 = vpop.f32.mrb[0].mxu0
        %7231 = vmatprep.mubr.f32.mxu0 0.0
        %7232 = vmatmul.mubr.f32.gmra.mrb[0].mxu0 %v7113
        %v7233 = vpop.f32.mrb[0].mxu0
        %v7234 = vadd.f32 %v7086, %v7233
        %v7235 = vpop.f32.mrb[0].mxu0
        %7236 = vmatprep.mubr.f32.mxu0 0.0
        %7237 = vmatmul.mubr.f32.gmra.mrb[0].mxu0 %v7116
        %v7238 = vpop.f32.mrb[0].mxu0
        %v7239 = vadd.f32 %v7086, %v7238
        %v7240 = vpop.f32.mrb[0].mxu0
        %7241 = vmatprep.mubr.f32.mxu0 0.0
        %7242 = vmatmul.mubr.f32.gmra.mrb[0].mxu0 %v7119
        %v7243 = vpop.f32.mrb[0].mxu0
        %v7244 = vadd.f32 %v7086, %v7243
        %v7245 = vpop.f32.mrb[0].mxu0
        %7246 = vmatprep.mubr.f32.mxu0 0.0
        %7247 = vmatmul.mubr.f32.gmra.mrb[0].mxu0 %v7122
        %v7248 = vpop.f32.mrb[0].mxu0
        %v7249 = vadd.f32 %v7086, %v7248
        %v7250 = vpop.f32.mrb[0].mxu0
        %7251 = vmatprep.mubr.f32.mxu0 0.0
        %7252 = vmatmul.mubr.f32.gmra.mrb[0].mxu0 %v7125
        %v7253 = vpop.f32.mrb[0].mxu0
        %v7254 = vadd.f32 %v7086, %v7253
        %v7255 = vpop.f32.mrb[0].mxu0
        %7256 = vdwg.mxu0
        %v7257 = vmax.f32 %v7194, 0.0
        %v7258 = vmax.f32 %v7199, 0.0
        %v7259 = vmax.f32 %v7204, 0.0
        %v7260 = vmax.f32 %v7209, 0.0
        %v7261 = vmax.f32 %v7214, 0.0
        %v7262 = vmax.f32 %v7219, 0.0
        %v7263 = vmax.f32 %v7224, 0.0
        %v7264 = vmax.f32 %v7229, 0.0
        %v7265 = vmax.f32 %v7234, 0.0
        %v7266 = vmax.f32 %v7239, 0.0
        %v7267 = vmax.f32 %v7244, 0.0
        %v7268 = vmax.f32 %v7249, 0.0
        %v7269 = vmax.f32 %v7254, 0.0
        %v7270 = vld [vmem:[#allocation18] sm:$0xff]
        %v7271 = vld [vmem:[#allocation18 + $0x8] sm:$0xff]
        %v7272 = vld [vmem:[#allocation18 + $0x10] sm:$0xff]
        %v7273 = vld [vmem:[#allocation18 + $0x18] sm:$0xff]
        %v7274 = vld [vmem:[#allocation18 + $0x20] sm:$0xff]
        %v7275 = vld [vmem:[#allocation18 + $0x28] sm:$0xff]
        %v7276 = vld [vmem:[#allocation18 + $0x30] sm:$0xff]
        %v7277 = vld [vmem:[#allocation18 + $0x38] sm:$0xff]
        %v7278 = vld [vmem:[#allocation18 + $0x40] sm:$0xff]
        %v7279 = vld [vmem:[#allocation18 + $0x48] sm:$0xff]
        %v7280 = vld [vmem:[#allocation18 + $0x50] sm:$0xff]
        %v7281 = vld [vmem:[#allocation18 + $0x58] sm:$0xff]
        %v7282 = vld [vmem:[#allocation18 + $0x60] sm:$0xff]
        %v7283 = vld [vmem:[#allocation18 + $0x68] sm:$0xff]
        %v7284 = vld [vmem:[#allocation18 + $0x70] sm:$0xff]
        %v7285 = vld [vmem:[#allocation18 + $0x78] sm:$0xff]
        %v7286 = vld [vmem:[#allocation20] sm:$0x1]
        %v7288 = vlaneseq
        %v7289 = vshrl.u32 %v7288, 7
        %v7290 = vsub.s32 0, %v7289
        %v7291 = vrot.slane %v7286, %v7290
        %7293 = vmatprep.subr.mxu0 0.0
        %7294 = vmatpush1.msra.mxu0 %v7270
        %7295 = vmatprep.subr.mxu0 0.0
        %7296 = vmatpush1.msra.mxu0 %v7271
        %7297 = vmatprep.subr.mxu0 0.0
        %7298 = vmatpush1.msra.mxu0 %v7272
        %7299 = vmatprep.subr.mxu0 0.0
        %7300 = vmatpush1.msra.mxu0 %v7273
        %7301 = vmatprep.subr.mxu0 0.0
        %7302 = vmatpush1.msra.mxu0 %v7274
        %7303 = vmatprep.subr.mxu0 0.0
        %7304 = vmatpush1.msra.mxu0 %v7275
        %7305 = vmatprep.subr.mxu0 0.0
        %7306 = vmatpush1.msra.mxu0 %v7276
        %7307 = vmatprep.subr.mxu0 0.0
        %7308 = vmatpush1.msra.mxu0 %v7277
        %7309 = vmatprep.subr.mxu0 0.0
        %7310 = vmatpush1.msra.mxu0 %v7278
        %7311 = vmatprep.subr.mxu0 0.0
        %7312 = vmatpush1.msra.mxu0 %v7279
        %7313 = vmatprep.subr.mxu0 0.0
        %7314 = vmatpush1.msra.mxu0 %v7280
        %7315 = vmatprep.subr.mxu0 0.0
        %7316 = vmatpush1.msra.mxu0 %v7281
        %7317 = vmatprep.subr.mxu0 0.0
        %7318 = vmatpush1.msra.mxu0 %v7282
        %7319 = vmatprep.subr.mxu0 0.0
        %7320 = vmatpush1.msra.mxu0 %v7283
        %7321 = vmatprep.subr.mxu0 0.0
        %7322 = vmatpush1.msra.mxu0 %v7284
        %7323 = vmatprep.subr.mxu0 0.0
        %7324 = vmatpush1.msra.mxu0 %v7285
        %7325 = vmatprep.subr.mxu0 0.0
        %7326 = vmatpush1.msra.mxu0 0.0
        %7327 = vmatprep.subr.mxu0 0.0
        %7328 = vmatpush1.msra.mxu0 0.0
        %7329 = vmatprep.subr.mxu0 0.0
        %7330 = vmatpush1.msra.mxu0 0.0
        %7331 = vmatprep.subr.mxu0 0.0
        %7332 = vmatpush1.msra.mxu0 0.0
        %7333 = vmatprep.subr.mxu0 0.0
        %7334 = vmatpush1.msra.mxu0 0.0
        %7335 = vmatprep.subr.mxu0 0.0
        %7336 = vmatpush1.msra.mxu0 0.0
        %7337 = vmatprep.subr.mxu0 0.0
        %7338 = vmatpush1.msra.mxu0 0.0
        %7339 = vmatprep.subr.mxu0 0.0
        %7340 = vmatpush1.msra.mxu0 0.0
        %7341 = vmatprep.subr.mxu0 0.0
        %7342 = vmatpush1.msra.mxu0 0.0
        %7343 = vmatprep.subr.mxu0 0.0
        %7344 = vmatpush1.msra.mxu0 0.0
        %7345 = vmatprep.subr.mxu0 0.0
        %7346 = vmatpush1.msra.mxu0 0.0
        %7347 = vmatprep.subr.mxu0 0.0
        %7348 = vmatpush1.msra.mxu0 0.0
        %7349 = vmatprep.subr.mxu0 0.0
        %7350 = vmatpush1.msra.mxu0 0.0
        %7351 = vmatprep.subr.mxu0 0.0
        %7352 = vmatpush1.msra.mxu0 0.0
        %7353 = vmatprep.subr.mxu0 0.0
        %7354 = vmatpush1.msra.mxu0 0.0
        %7355 = vmatprep.subr.mxu0 0.0
        %7356 = vmatpush1.msra.mxu0 0.0
        %7357 = vmatprep.mubr.f32.mxu0 0.0
        %7358 = vmatmul.mubr.f32.gmra.mrb[0].mxu0 %v7257
        %v7359 = vpop.f32.mrb[0].mxu0
        %v7360 = vadd.f32 %v7291, %v7359
        %v7361 = vpop.f32.mrb[0].mxu0
        %7362 = vmatprep.mubr.f32.mxu0 0.0
        %7363 = vmatmul.mubr.f32.gmra.mrb[0].mxu0 %v7258
        %v7364 = vpop.f32.mrb[0].mxu0
        %v7365 = vadd.f32 %v7291, %v7364
        %v7366 = vpop.f32.mrb[0].mxu0
        %7367 = vmatprep.mubr.f32.mxu0 0.0
        %7368 = vmatmul.mubr.f32.gmra.mrb[0].mxu0 %v7259
        %v7369 = vpop.f32.mrb[0].mxu0
        %v7370 = vadd.f32 %v7291, %v7369
        %v7371 = vpop.f32.mrb[0].mxu0
        %7372 = vmatprep.mubr.f32.mxu0 0.0
        %7373 = vmatmul.mubr.f32.gmra.mrb[0].mxu0 %v7260
        %v7374 = vpop.f32.mrb[0].mxu0
        %v7375 = vadd.f32 %v7291, %v7374
        %v7376 = vpop.f32.mrb[0].mxu0
        %7377 = vmatprep.mubr.f32.mxu0 0.0
        %7378 = vmatmul.mubr.f32.gmra.mrb[0].mxu0 %v7261
        %v7379 = vpop.f32.mrb[0].mxu0
        %v7380 = vadd.f32 %v7291, %v7379
        %v7381 = vpop.f32.mrb[0].mxu0
        %7382 = vmatprep.mubr.f32.mxu0 0.0
        %7383 = vmatmul.mubr.f32.gmra.mrb[0].mxu0 %v7262
        %v7384 = vpop.f32.mrb[0].mxu0
        %v7385 = vadd.f32 %v7291, %v7384
        %v7386 = vpop.f32.mrb[0].mxu0
        %7387 = vmatprep.mubr.f32.mxu0 0.0
        %7388 = vmatmul.mubr.f32.gmra.mrb[0].mxu0 %v7263
        %v7389 = vpop.f32.mrb[0].mxu0
        %v7390 = vadd.f32 %v7291, %v7389
        %v7391 = vpop.f32.mrb[0].mxu0
        %7392 = vmatprep.mubr.f32.mxu0 0.0
        %7393 = vmatmul.mubr.f32.gmra.mrb[0].mxu0 %v7264
        %v7394 = vpop.f32.mrb[0].mxu0
        %v7395 = vadd.f32 %v7291, %v7394
        %v7396 = vpop.f32.mrb[0].mxu0
        %7397 = vmatprep.mubr.f32.mxu0 0.0
        %7398 = vmatmul.mubr.f32.gmra.mrb[0].mxu0 %v7265
        %v7399 = vpop.f32.mrb[0].mxu0
        %v7400 = vadd.f32 %v7291, %v7399
        %v7401 = vpop.f32.mrb[0].mxu0
        %7402 = vmatprep.mubr.f32.mxu0 0.0
        %7403 = vmatmul.mubr.f32.gmra.mrb[0].mxu0 %v7266
        %v7404 = vpop.f32.mrb[0].mxu0
        %v7405 = vadd.f32 %v7291, %v7404
        %v7406 = vpop.f32.mrb[0].mxu0
        %7407 = vmatprep.mubr.f32.mxu0 0.0
        %7408 = vmatmul.mubr.f32.gmra.mrb[0].mxu0 %v7267
        %v7409 = vpop.f32.mrb[0].mxu0
        %v7410 = vadd.f32 %v7291, %v7409
        %v7411 = vpop.f32.mrb[0].mxu0
        %7412 = vmatprep.mubr.f32.mxu0 0.0
        %7413 = vmatmul.mubr.f32.gmra.mrb[0].mxu0 %v7268
        %v7414 = vpop.f32.mrb[0].mxu0
        %v7415 = vadd.f32 %v7291, %v7414
        %v7416 = vpop.f32.mrb[0].mxu0
        %7417 = vmatprep.mubr.f32.mxu0 0.0
        %7418 = vmatmul.mubr.f32.gmra.mrb[0].mxu0 %v7269
        %v7419 = vpop.f32.mrb[0].mxu0
        %v7420 = vadd.f32 %v7291, %v7419
        %v7421 = vpop.f32.mrb[0].mxu0
        %7422 = vdwg.mxu0
        %v7423 = vadd.f32 %v7060, %v7360
        %v7424 = vadd.f32 %v7061, %v7365
        %v7425 = vadd.f32 %v7062, %v7370
        %v7426 = vadd.f32 %v7063, %v7375
        %v7427 = vadd.f32 %v7064, %v7380
        %v7428 = vadd.f32 %v7065, %v7385
        %v7429 = vadd.f32 %v7066, %v7390
        %v7430 = vadd.f32 %v7067, %v7395
        %v7431 = vadd.f32 %v7068, %v7400
        %v7432 = vadd.f32 %v7069, %v7405
        %v7433 = vadd.f32 %v7070, %v7410
        %v7434 = vadd.f32 %v7071, %v7415
        %v7435 = vadd.f32 %v7072, %v7420
        %v7436 = vld [vmem:[%s14] sm:$0x1]
        %v7437 = vld [vmem:[%s15] sm:$0x1]
        %v7438 = vsel %vm891, %v7423, 0.0
        %7439 = vadd.xlane.f32.xlu0 %v7438
        %v7440 = vpop.xlane.xlu0 %7439
        %v7441 = vsel %vm891, %v7424, 0.0
        %7442 = vadd.xlane.f32.xlu0 %v7441
        %v7443 = vpop.xlane.xlu0 %7442
        %v7444 = vsel %vm891, %v7425, 0.0
        %7445 = vadd.xlane.f32.xlu0 %v7444
        %v7446 = vpop.xlane.xlu0 %7445
        %v7447 = vsel %vm891, %v7426, 0.0
        %7448 = vadd.xlane.f32.xlu0 %v7447
        %v7449 = vpop.xlane.xlu0 %7448
        %v7450 = vsel %vm891, %v7427, 0.0
        %7451 = vadd.xlane.f32.xlu0 %v7450
        %v7452 = vpop.xlane.xlu0 %7451
        %v7453 = vsel %vm891, %v7428, 0.0
        %7454 = vadd.xlane.f32.xlu0 %v7453
        %v7455 = vpop.xlane.xlu0 %7454
        %v7456 = vsel %vm891, %v7429, 0.0
        %7457 = vadd.xlane.f32.xlu0 %v7456
        %v7458 = vpop.xlane.xlu0 %7457
        %v7459 = vsel %vm891, %v7430, 0.0
        %7460 = vadd.xlane.f32.xlu0 %v7459
        %v7461 = vpop.xlane.xlu0 %7460
        %v7462 = vsel %vm891, %v7431, 0.0
        %7463 = vadd.xlane.f32.xlu0 %v7462
        %v7464 = vpop.xlane.xlu0 %7463
        %v7465 = vsel %vm891, %v7432, 0.0
        %7466 = vadd.xlane.f32.xlu0 %v7465
        %v7467 = vpop.xlane.xlu0 %7466
        %v7468 = vsel %vm891, %v7433, 0.0
        %7469 = vadd.xlane.f32.xlu0 %v7468
        %v7470 = vpop.xlane.xlu0 %7469
        %v7471 = vsel %vm891, %v7434, 0.0
        %7472 = vadd.xlane.f32.xlu0 %v7471
        %v7473 = vpop.xlane.xlu0 %7472
        %v7474 = vsel %vm904, %v7435, 0.0
        %7475 = vadd.xlane.f32.xlu0 %v7474
        %v7476 = vpop.xlane.xlu0 %7475
        %v7477 = vmul.f32 %v7423, %v7423
        %v7478 = vmul.f32 %v7424, %v7424
        %v7479 = vmul.f32 %v7425, %v7425
        %v7480 = vmul.f32 %v7426, %v7426
        %v7481 = vmul.f32 %v7427, %v7427
        %v7482 = vmul.f32 %v7428, %v7428
        %v7483 = vmul.f32 %v7429, %v7429
        %v7484 = vmul.f32 %v7430, %v7430
        %v7485 = vmul.f32 %v7431, %v7431
        %v7486 = vmul.f32 %v7432, %v7432
        %v7487 = vmul.f32 %v7433, %v7433
        %v7488 = vmul.f32 %v7434, %v7434
        %v7489 = vmul.f32 %v7435, %v7435
        %v7490 = vsel %vm891, %v7477, 0.0
        %7491 = vadd.xlane.f32.xlu0 %v7490
        %v7492 = vpop.xlane.xlu0 %7491
        %v7493 = vsel %vm891, %v7478, 0.0
        %7494 = vadd.xlane.f32.xlu0 %v7493
        %v7495 = vpop.xlane.xlu0 %7494
        %v7496 = vsel %vm891, %v7479, 0.0
        %7497 = vadd.xlane.f32.xlu0 %v7496
        %v7498 = vpop.xlane.xlu0 %7497
        %v7499 = vsel %vm891, %v7480, 0.0
        %7500 = vadd.xlane.f32.xlu0 %v7499
        %v7501 = vpop.xlane.xlu0 %7500
        %v7502 = vsel %vm891, %v7481, 0.0
        %7503 = vadd.xlane.f32.xlu0 %v7502
        %v7504 = vpop.xlane.xlu0 %7503
        %v7505 = vsel %vm891, %v7482, 0.0
        %7506 = vadd.xlane.f32.xlu0 %v7505
        %v7507 = vpop.xlane.xlu0 %7506
        %v7508 = vsel %vm891, %v7483, 0.0
        %7509 = vadd.xlane.f32.xlu0 %v7508
        %v7510 = vpop.xlane.xlu0 %7509
        %v7511 = vsel %vm891, %v7484, 0.0
        %7512 = vadd.xlane.f32.xlu0 %v7511
        %v7513 = vpop.xlane.xlu0 %7512
        %v7514 = vsel %vm891, %v7485, 0.0
        %7515 = vadd.xlane.f32.xlu0 %v7514
        %v7516 = vpop.xlane.xlu0 %7515
        %v7517 = vsel %vm891, %v7486, 0.0
        %7518 = vadd.xlane.f32.xlu0 %v7517
        %v7519 = vpop.xlane.xlu0 %7518
        %v7520 = vsel %vm891, %v7487, 0.0
        %7521 = vadd.xlane.f32.xlu0 %v7520
        %v7522 = vpop.xlane.xlu0 %7521
        %v7523 = vsel %vm891, %v7488, 0.0
        %7524 = vadd.xlane.f32.xlu0 %v7523
        %v7525 = vpop.xlane.xlu0 %7524
        %v7526 = vsel %vm904, %v7489, 0.0
        %7527 = vadd.xlane.f32.xlu0 %v7526
        %v7528 = vpop.xlane.xlu0 %7527
        %v7529 = vmul.f32 %v7440, 0.015625
        %v7530 = vmul.f32 %v7443, 0.015625
        %v7531 = vmul.f32 %v7446, 0.015625
        %v7532 = vmul.f32 %v7449, 0.015625
        %v7533 = vmul.f32 %v7452, 0.015625
        %v7534 = vmul.f32 %v7455, 0.015625
        %v7535 = vmul.f32 %v7458, 0.015625
        %v7536 = vmul.f32 %v7461, 0.015625
        %v7537 = vmul.f32 %v7464, 0.015625
        %v7538 = vmul.f32 %v7467, 0.015625
        %v7539 = vmul.f32 %v7470, 0.015625
        %v7540 = vmul.f32 %v7473, 0.015625
        %v7541 = vmul.f32 %v7476, 0.015625
        %v7542 = vmul.f32 %v7492, 0.015625
        %v7543 = vmul.f32 %v7495, 0.015625
        %v7544 = vmul.f32 %v7498, 0.015625
        %v7545 = vmul.f32 %v7501, 0.015625
        %v7546 = vmul.f32 %v7504, 0.015625
        %v7547 = vmul.f32 %v7507, 0.015625
        %v7548 = vmul.f32 %v7510, 0.015625
        %v7549 = vmul.f32 %v7513, 0.015625
        %v7550 = vmul.f32 %v7516, 0.015625
        %v7551 = vmul.f32 %v7519, 0.015625
        %v7552 = vmul.f32 %v7522, 0.015625
        %v7553 = vmul.f32 %v7525, 0.015625
        %v7554 = vmul.f32 %v7528, 0.015625
        %v7555 = vmul.f32 %v7529, %v7529
        %v7556 = vmul.f32 %v7530, %v7530
        %v7557 = vmul.f32 %v7531, %v7531
        %v7558 = vmul.f32 %v7532, %v7532
        %v7559 = vmul.f32 %v7533, %v7533
        %v7560 = vmul.f32 %v7534, %v7534
        %v7561 = vmul.f32 %v7535, %v7535
        %v7562 = vmul.f32 %v7536, %v7536
        %v7563 = vmul.f32 %v7537, %v7537
        %v7564 = vmul.f32 %v7538, %v7538
        %v7565 = vmul.f32 %v7539, %v7539
        %v7566 = vmul.f32 %v7540, %v7540
        %v7567 = vmul.f32 %v7541, %v7541
        %v7568 = vsub.f32 %v7542, %v7555
        %v7569 = vsub.f32 %v7543, %v7556
        %v7570 = vsub.f32 %v7544, %v7557
        %v7571 = vsub.f32 %v7545, %v7558
        %v7572 = vsub.f32 %v7546, %v7559
        %v7573 = vsub.f32 %v7547, %v7560
        %v7574 = vsub.f32 %v7548, %v7561
        %v7575 = vsub.f32 %v7549, %v7562
        %v7576 = vsub.f32 %v7550, %v7563
        %v7577 = vsub.f32 %v7551, %v7564
        %v7578 = vsub.f32 %v7552, %v7565
        %v7579 = vsub.f32 %v7553, %v7566
        %v7580 = vsub.f32 %v7554, %v7567
        %v7581 = vsub.f32 %v7423, %v7529
        %v7582 = vsub.f32 %v7424, %v7530
        %v7583 = vsub.f32 %v7425, %v7531
        %v7584 = vsub.f32 %v7426, %v7532
        %v7585 = vsub.f32 %v7427, %v7533
        %v7586 = vsub.f32 %v7428, %v7534
        %v7587 = vsub.f32 %v7429, %v7535
        %v7588 = vsub.f32 %v7430, %v7536
        %v7589 = vsub.f32 %v7431, %v7537
        %v7590 = vsub.f32 %v7432, %v7538
        %v7591 = vsub.f32 %v7433, %v7539
        %v7592 = vsub.f32 %v7434, %v7540
        %v7593 = vsub.f32 %v7435, %v7541
        %v7594 = vadd.f32 %v7568, 1e-05
        %v7595 = vadd.f32 %v7569, 1e-05
        %v7596 = vadd.f32 %v7570, 1e-05
        %v7597 = vadd.f32 %v7571, 1e-05
        %v7598 = vadd.f32 %v7572, 1e-05
        %v7599 = vadd.f32 %v7573, 1e-05
        %v7600 = vadd.f32 %v7574, 1e-05
        %v7601 = vadd.f32 %v7575, 1e-05
        %v7602 = vadd.f32 %v7576, 1e-05
        %v7603 = vadd.f32 %v7577, 1e-05
        %v7604 = vadd.f32 %v7578, 1e-05
        %v7605 = vadd.f32 %v7579, 1e-05
        %v7606 = vadd.f32 %v7580, 1e-05
        %v7607 = vrsqrt.pop %v7594
        %v7608 = vrsqrt.pop %v7595
        %v7609 = vrsqrt.pop %v7596
        %v7610 = vrsqrt.pop %v7597
        %v7611 = vrsqrt.pop %v7598
        %v7612 = vrsqrt.pop %v7599
        %v7613 = vrsqrt.pop %v7600
        %v7614 = vrsqrt.pop %v7601
        %v7615 = vrsqrt.pop %v7602
        %v7616 = vrsqrt.pop %v7603
        %v7617 = vrsqrt.pop %v7604
        %v7618 = vrsqrt.pop %v7605
        %v7619 = vrsqrt.pop %v7606
        %v7620 = vmul.f32 %v7581, %v7607
        %v7621 = vmul.f32 %v7582, %v7608
        %v7622 = vmul.f32 %v7583, %v7609
        %v7623 = vmul.f32 %v7584, %v7610
        %v7624 = vmul.f32 %v7585, %v7611
        %v7625 = vmul.f32 %v7586, %v7612
        %v7626 = vmul.f32 %v7587, %v7613
        %v7627 = vmul.f32 %v7588, %v7614
        %v7628 = vmul.f32 %v7589, %v7615
        %v7629 = vmul.f32 %v7590, %v7616
        %v7630 = vmul.f32 %v7591, %v7617
        %v7631 = vmul.f32 %v7592, %v7618
        %v7632 = vmul.f32 %v7593, %v7619
        %v7634 = vlaneseq
        %v7635 = vshrl.u32 %v7634, 7
        %v7636 = vsub.s32 0, %v7635
        %v7637 = vrot.slane %v7436, %v7636
        %v7639 = vmul.f32 %v7620, %v7637
        %v7640 = vmul.f32 %v7621, %v7637
        %v7641 = vmul.f32 %v7622, %v7637
        %v7642 = vmul.f32 %v7623, %v7637
        %v7643 = vmul.f32 %v7624, %v7637
        %v7644 = vmul.f32 %v7625, %v7637
        %v7645 = vmul.f32 %v7626, %v7637
        %v7646 = vmul.f32 %v7627, %v7637
        %v7647 = vmul.f32 %v7628, %v7637
        %v7648 = vmul.f32 %v7629, %v7637
        %v7649 = vmul.f32 %v7630, %v7637
        %v7650 = vmul.f32 %v7631, %v7637
        %v7651 = vmul.f32 %v7632, %v7637
        %v7653 = vlaneseq
        %v7654 = vshrl.u32 %v7653, 7
        %v7655 = vsub.s32 0, %v7654
        %v7656 = vrot.slane %v7437, %v7655
        %v7658 = vadd.f32 %v7639, %v7656
        %v7659 = vadd.f32 %v7640, %v7656
        %v7660 = vadd.f32 %v7641, %v7656
        %v7661 = vadd.f32 %v7642, %v7656
        %v7662 = vadd.f32 %v7643, %v7656
        %v7663 = vadd.f32 %v7644, %v7656
        %v7664 = vadd.f32 %v7645, %v7656
        %v7665 = vadd.f32 %v7646, %v7656
        %v7666 = vadd.f32 %v7647, %v7656
        %v7667 = vadd.f32 %v7648, %v7656
        %v7668 = vadd.f32 %v7649, %v7656
        %v7669 = vadd.f32 %v7650, %v7656
        %v7670 = vadd.f32 %v7651, %v7656
        %7671 = vst.msk [vmem:[%s669] sm:$0xff] %vm891, %v7658
        %7672 = vst.msk [vmem:[%s669 + $0x8] sm:$0xff] %vm891, %v7659
        %7673 = vst.msk [vmem:[%s669 + $0x10] sm:$0xff] %vm891, %v7660
        %7674 = vst.msk [vmem:[%s669 + $0x18] sm:$0xff] %vm891, %v7661
        %7675 = vst.msk [vmem:[%s669 + $0x20] sm:$0xff] %vm891, %v7662
        %7676 = vst.msk [vmem:[%s669 + $0x28] sm:$0xff] %vm891, %v7663
        %7677 = vst.msk [vmem:[%s669 + $0x30] sm:$0xff] %vm891, %v7664
        %7678 = vst.msk [vmem:[%s669 + $0x38] sm:$0xff] %vm891, %v7665
        %7679 = vst.msk [vmem:[%s669 + $0x40] sm:$0xff] %vm891, %v7666
        %7680 = vst.msk [vmem:[%s669 + $0x48] sm:$0xff] %vm891, %v7667
        %7681 = vst.msk [vmem:[%s669 + $0x50] sm:$0xff] %vm891, %v7668
        %7682 = vst.msk [vmem:[%s669 + $0x58] sm:$0xff] %vm891, %v7669
        %7683 = vst.msk [vmem:[%s669 + $0x60] sm:$0xf] %vm904, %v7670
        %p7684 = scmp.lt.s32.totalorder %s33, 1
        %s7685 = scalar_select %p7684, %s33, 1
        %s7686 = smul.addr %s7685, 13
        %s7687 = smul.addr %s7686, 8
        %s7688 = scalar_lea.vmem %s16, %s7687
        // Predicated region
        $region129: #{_lambda_.2} parent=83 // pred_check
          %p7689 = pneg %p392
        $region130: #{_lambda_.2} parent=83 // pred_check_branch
          %7691 = sbr.rel (%p7689) target = $region132
        $region131: #{_lambda_.2} parent=83 // pred_region
          _
        $region132: #{_lambda_.2} parent=83 // pred_fallthru
          _
      $region84: #{_lambda_.2} parent=5 // pred_fallthru
        _
      %p7692 = scmp.le.s32.totalorder 2, %s28
      // Predicated region
      $region133: #{_lambda_.2} parent=5 // pred_check
        %p7693 = pneg %p7692
      $region134: #{_lambda_.2} parent=5 // pred_check_branch
        %7695 = sbr.rel (%p7693) target = $region136
      $region135: #{_lambda_.2} parent=5 // pred_region
        %s7696 = ssub.s32 %s28, 2
        // Predicated region
        $region137: #{_lambda_.2} parent=135 // pred_check
          %p7697 = pneg %p398
        $region138: #{_lambda_.2} parent=135 // pred_check_branch
          %7699 = sbr.rel (%p7697) target = $region140
        $region139: #{_lambda_.2} parent=135 // pred_region
          %p7700 = scmp.lt.s32.totalorder %s34, 1
          %s7701 = scalar_select %p7700, %s34, 1
          %s7702 = smul.addr %s7701, 13
          %s7703 = smul.addr %s7702, 8
          %s7704 = scalar_lea.vmem %s16, %s7703
        $region140: #{_lambda_.2} parent=135 // pred_fallthru
          _
      $region136: #{_lambda_.2} parent=5 // pred_fallthru
        _
    $region6: #{_lambda_.2} parent=1 // loop_footer
      %s32 = sadd.s32 1, %s28
    $region7: #{_lambda_.2} parent=1 // loop_footer_branch
      %27 = sbr.rel target = $region3
    $region8: #{_lambda_.2} parent=1 // loop_exit
      _
    %7705 = vsyncpa [#allocation5], 1
    %s7706 = scalar_lea.sflag [#allocation5], 1
    %7707 = vsyncpa %s7706, 1
    %7708 = vsyncpa [#allocation7], 1
    %7709 = vsyncpa [#allocation10], 1
    %7710 = vsyncpa [#allocation13], 1
    %7711 = vsyncpa [#allocation16], 1
    %7712 = vsyncpa [#allocation19], 1

</llo_original>
